<compile_context>
chip_gen: v5e
topology: v5e:2x2
jax: 0.10.0
libtpu: 0.0.40
codegen_flags: <defaults>
</compile_context>

<pallas_src>
import functools

import jax
import jax.numpy as jnp
from jax.experimental import pallas as pl
from jax.experimental.pallas import tpu as pltpu


def _round_up(x, m):
    return (x + m - 1) // m * m


def _is_v5():
    """Generation check for tn selection (v5e/v5p have 128-wide MXUs)."""
    try:
        kind = jax.devices()[0].device_kind.lower()
    except Exception:
        return False
    return "v5" in kind


# ----------------------------------------------------------------------------
# Pallas kernel: tiled matmul (patches @ weights) + bias [+ LeakyReLU] epilogue
# ----------------------------------------------------------------------------
def _conv_mm_kernel(p_ref, w_ref, b_ref, o_ref, acc_ref, *, apply_lrelu, slope):
    k = pl.program_id(2)

    @pl.when(k == 0)
    def _():
        acc_ref[...] = jnp.zeros_like(acc_ref)

    acc_ref[...] += jnp.dot(
        p_ref[...], w_ref[...], preferred_element_type=jnp.float32
    )

    @pl.when(k == pl.num_programs(2) - 1)
    def _():
        acc = acc_ref[...] + b_ref[...]
        if apply_lrelu:
            acc = jnp.where(acc >= 0.0, acc, slope * acc)
        o_ref[...] = acc.astype(o_ref.dtype)


def conv_matmul(patches, w, b, *, apply_lrelu, slope=0.2, out_dtype=jnp.bfloat16):
    """patches (M, K) @ w (K, Cout) + b, optional fused LeakyReLU."""
    M, K = patches.shape
    Kw, Cout = w.shape
    assert K == Kw

    # --- K tiling: skip the 128-pad for small K (layer 1: K = 48) ------------
    if K <= 128:
        K_pad = _round_up(K, 8)
        tk = K_pad                      # full-extent K block, single K step
    else:
        K_pad = _round_up(K, 128)
        tk = 128
        for cand in (2048, 1024, 512, 256):
            if K_pad % cand == 0:
                tk = cand
                break

    # --- M tiling -------------------------------------------------------------
    if M >= 512:
        tm = 512
    elif M >= 256:
        tm = 256
    else:
        tm = _round_up(M, 16)
    M_pad = _round_up(M, tm)

    # --- Cout tiling (generation-aware) ---------------------------------------
    C_pad = _round_up(Cout, 128)
    if (not _is_v5()) and Cout >= 256 and C_pad % 256 == 0 and tm >= 256:
        tn = 256                        # fill the 256-wide MXU on conv3 only
    else:
        tn = 128

    # bf16 operands for the MXU, f32 accumulation inside the kernel.
    p = patches.astype(jnp.bfloat16)
    if (M_pad, K_pad) != (M, K):
        p = jnp.pad(p, ((0, M_pad - M), (0, K_pad - K)))
    wp = w.astype(jnp.bfloat16)
    if (K_pad, C_pad) != (K, Cout):
        wp = jnp.pad(wp, ((0, K_pad - K), (0, C_pad - Cout)))
    bp = b.reshape(1, Cout).astype(jnp.float32)
    if C_pad != Cout:
        bp = jnp.pad(bp, ((0, 0), (0, C_pad - Cout)))

    grid = (M_pad // tm, C_pad // tn, K_pad // tk)
    kern = functools.partial(_conv_mm_kernel, apply_lrelu=apply_lrelu, slope=slope)
    out_itemsize = jnp.dtype(out_dtype).itemsize

    out = pl.pallas_call(
        kern,
        out_shape=jax.ShapeDtypeStruct((M_pad, C_pad), out_dtype),
        grid_spec=pltpu.PrefetchScalarGridSpec(
            num_scalar_prefetch=0,
            grid=grid,
            in_specs=[
                pl.BlockSpec((tm, tk), lambda i, j, k: (i, k)),
                pl.BlockSpec((tk, tn), lambda i, j, k: (k, j)),
                pl.BlockSpec((1, tn), lambda i, j, k: (0, j)),
            ],
            out_specs=pl.BlockSpec((tm, tn), lambda i, j, k: (i, j)),
            scratch_shapes=[pltpu.VMEM((tm, tn), jnp.float32)],
        ),
        compiler_params=pltpu.CompilerParams(
            dimension_semantics=("parallel", "parallel", "arbitrary"),
        ),
        cost_estimate=pl.CostEstimate(
            flops=2 * M_pad * K_pad * C_pad,
            transcendentals=0,
            bytes_accessed=(M_pad * K_pad * 2 + K_pad * C_pad * 2
                            + M_pad * C_pad * out_itemsize),
        ),
    )(p, wp, bp)

    if (M_pad, C_pad) != (M, Cout):
        out = out[:M, :Cout]
    return out


# ----------------------------------------------------------------------------
# Pallas kernels: InstanceNorm2d (affine=False) + LeakyReLU, channels-last
# ----------------------------------------------------------------------------
def _in_lrelu_kernel(x_ref, o_ref, *, slope, eps):
    # Block is one instance: (1, HW, C). Stats over HW, per channel, in f32.
    x = x_ref[...].astype(jnp.float32)
    mean = jnp.mean(x, axis=1, keepdims=True)
    var = jnp.mean(jnp.square(x - mean), axis=1, keepdims=True)
    y = (x - mean) * jax.lax.rsqrt(var + eps)
    o_ref[...] = jnp.where(y >= 0.0, y, slope * y).astype(o_ref.dtype)


def _in_stats_kernel(x_ref, sum_ref, ssq_ref):
    # Accumulate per-channel sum / sum-of-squares across HW tiles.
    t = pl.program_id(1)

    @pl.when(t == 0)
    def _():
        sum_ref[...] = jnp.zeros_like(sum_ref)
        ssq_ref[...] = jnp.zeros_like(ssq_ref)

    x = x_ref[...].astype(jnp.float32)
    sum_ref[...] += jnp.sum(x, axis=1, keepdims=True)
    ssq_ref[...] += jnp.sum(x * x, axis=1, keepdims=True)


def _in_apply_kernel(x_ref, sum_ref, ssq_ref, o_ref, *, inv_hw, slope, eps):
    x = x_ref[...].astype(jnp.float32)
    mean = sum_ref[...] * inv_hw
    var = ssq_ref[...] * inv_hw - mean * mean
    y = (x - mean) * jax.lax.rsqrt(var + eps)
    o_ref[...] = jnp.where(y >= 0.0, y, slope * y).astype(o_ref.dtype)


def instance_norm_lrelu(x_nhwc, *, slope=0.2, eps=1e-5):
    N, H, W, C = x_nhwc.shape
    HW = H * W
    x = x_nhwc.reshape(N, HW, C)
    out_dtype = x_nhwc.dtype

    slab_bytes = HW * C * x.dtype.itemsize
    if slab_bytes <= (4 << 20):
        # Small slab: one (1, HW, C) block per instance.
        kern = functools.partial(_in_lrelu_kernel, slope=slope, eps=eps)
        out = pl.pallas_call(
            kern,
            out_shape=jax.ShapeDtypeStruct((N, HW, C), out_dtype),
            grid_spec=pltpu.PrefetchScalarGridSpec(
                num_scalar_prefetch=0,
                grid=(N,),
                in_specs=[pl.BlockSpec((1, HW, C), lambda n: (n, 0, 0))],
                out_specs=pl.BlockSpec((1, HW, C), lambda n: (n, 0, 0)),
            ),
            compiler_params=pltpu.CompilerParams(dimension_semantics=("parallel",)),
        )(x)
        return out.reshape(N, H, W, C)

    # Large slab (real resolutions): HW-tiled two-pass so even v7x's 32 MiB
    # scoped VMEM limit is respected, and both TensorCores get work.
    thw = 1024
    HW_pad = _round_up(HW, thw)
    xp = x if HW_pad == HW else jnp.pad(x, ((0, 0), (0, HW_pad - HW), (0, 0)))
    T = HW_pad // thw

    sums, ssqs = pl.pallas_call(
        _in_stats_kernel,
        out_shape=(jax.ShapeDtypeStruct((N, 1, C), jnp.float32),
                   jax.ShapeDtypeStruct((N, 1, C), jnp.float32)),
        grid_spec=pltpu.PrefetchScalarGridSpec(
            num_scalar_prefetch=0,
            grid=(N, T),
            in_specs=[pl.BlockSpec((1, thw, C), lambda n, t: (n, t, 0))],
            out_specs=(pl.BlockSpec((1, 1, C), lambda n, t: (n, 0, 0)),
                       pl.BlockSpec((1, 1, C), lambda n, t: (n, 0, 0))),
        ),
        compiler_params=pltpu.CompilerParams(
            dimension_semantics=("parallel", "arbitrary")),
    )(xp)

    kern = functools.partial(_in_apply_kernel, inv_hw=1.0 / HW, slope=slope, eps=eps)
    out = pl.pallas_call(
        kern,
        out_shape=jax.ShapeDtypeStruct((N, HW_pad, C), out_dtype),
        grid_spec=pltpu.PrefetchScalarGridSpec(
            num_scalar_prefetch=0,
            grid=(N, T),
            in_specs=[
                pl.BlockSpec((1, thw, C), lambda n, t: (n, t, 0)),
                pl.BlockSpec((1, 1, C), lambda n, t: (n, 0, 0)),
                pl.BlockSpec((1, 1, C), lambda n, t: (n, 0, 0)),
            ],
            out_specs=pl.BlockSpec((1, thw, C), lambda n, t: (n, t, 0)),
        ),
        compiler_params=pltpu.CompilerParams(
            dimension_semantics=("parallel", "parallel")),
    )(xp, sums, ssqs)
    if HW_pad != HW:
        out = out[:, :HW, :]
    return out.reshape(N, H, W, C)


# ----------------------------------------------------------------------------
# JAX glue: channels-last im2col + layer wrappers
# ----------------------------------------------------------------------------
def im2col_nhwc(x, k, stride, pad):
    """x: (N, H, W, C) -> patches (N*Ho*Wo, k*k*C), columns ordered (kh, kw, c)."""
    N, H, W, C = x.shape
    xp = jnp.pad(x, ((0, 0), (pad, pad), (pad, pad), (0, 0)))
    Ho = (H + 2 * pad - k) // stride + 1
    Wo = (W + 2 * pad - k) // stride + 1
    rows = (jnp.arange(Ho) * stride)[:, None] + jnp.arange(k)[None, :]  # (Ho, k)
    cols = (jnp.arange(Wo) * stride)[:, None] + jnp.arange(k)[None, :]  # (Wo, k)
    t = xp[:, rows]                           # (N, Ho, kh, Wp, C)
    t = t[:, :, :, cols]                      # (N, Ho, kh, Wo, kw, C)
    t = jnp.transpose(t, (0, 1, 3, 2, 4, 5))  # (N, Ho, Wo, kh, kw, C)
    return t.reshape(N * Ho * Wo, k * k * C), (N, Ho, Wo)


def conv2d_layer(x_nhwc, w, b, *, stride, pad, apply_lrelu, out_dtype=jnp.bfloat16):
    """w in PyTorch layout (Cout, Cin, kh, kw); NHWC in -> NHWC out."""
    Cout, Cin, k, _ = w.shape
    patches, (N, Ho, Wo) = im2col_nhwc(x_nhwc, k, stride, pad)
    wmat = jnp.transpose(w, (2, 3, 1, 0)).reshape(k * k * Cin, Cout)
    out = conv_matmul(patches, wmat, b, apply_lrelu=apply_lrelu, out_dtype=out_dtype)
    return out.reshape(N, Ho, Wo, Cout)


def discriminator_forward(x_nchw, params):
    (w1, b1), (w2, b2), (w3, b3), (w4, b4) = params

    # NCHW -> NHWC once; cast to bf16 BEFORE im2col so the k*k patch blow-up is
    # materialized at half the bytes.
    x = jnp.transpose(x_nchw, (0, 2, 3, 1)).astype(jnp.bfloat16)

    h = conv2d_layer(x, w1, b1, stride=2, pad=1, apply_lrelu=True)

    h = conv2d_layer(h, w2, b2, stride=2, pad=1, apply_lrelu=False)
    h = instance_norm_lrelu(h)

    h = conv2d_layer(h, w3, b3, stride=2, pad=1, apply_lrelu=False)
    h = instance_norm_lrelu(h)

    h = conv2d_layer(h, w4, b4, stride=1, pad=1, apply_lrelu=False,
                     out_dtype=jnp.float32)

    return jnp.transpose(h, (0, 3, 1, 2))  # back to NCHW to match PyTorch


# ----------------------------------------------------------------------------
# Deterministic parameter init (synthetic weights, PyTorch shapes)
# ----------------------------------------------------------------------------
def init_params(key, input_channels=3):
    shapes = [
        (64, input_channels, 4, 4),
        (128, 64, 4, 4),
        (256, 128, 4, 4),
        (1, 256, 4, 4),
    ]
    params = []
    for i, s in enumerate(shapes):
        kw, kb = jax.random.split(jax.random.fold_in(key, i))
        fan_in = s[1] * s[2] * s[3]
        w = jax.random.normal(kw, s, jnp.float32) * (1.0 / jnp.sqrt(fan_in))
        b = jax.random.normal(kb, (s[0],), jnp.float32) * 0.01
        params.append((w, b))
    return params


if __name__ == "__main__":
    key = jax.random.PRNGKey(0)
    k_x, k_p = jax.random.split(key)

    # Small NCHW input consistent with the module: (batch=2, C=3, H=W=16)
    x = jax.random.normal(k_x, (2, 3, 16, 16), jnp.float32)
    params = init_params(k_p, input_channels=3)

    fwd = jax.jit(discriminator_forward)
    out = fwd(x, params)
    jax.block_until_ready(out)

    assert out.shape == (2, 1, 1, 1), out.shape
    assert bool(jnp.all(jnp.isfinite(out)))
    print("KERNEL_OK")
</pallas_src>

<mosaic_0001>
module attributes {stable_mosaic.version = 11 : i64} {
  func.func @_conv_mm_kernel(%arg0: i32, %arg1: i32, %arg2: i32, %arg3: memref<128x48xbf16, #tpu.memory_space<vmem>>, %arg4: memref<48x128xbf16, #tpu.memory_space<vmem>>, %arg5: memref<1x128xf32, #tpu.memory_space<vmem>>, %arg6: memref<128x128xbf16, #tpu.memory_space<vmem>>, %arg7: memref<128x128xf32, #tpu.memory_space<vmem>>) attributes {dimension_semantics = [#tpu.dimension_semantics<parallel>, #tpu.dimension_semantics<parallel>, #tpu.dimension_semantics<arbitrary>], iteration_bounds = array<i64: 1, 1, 1>, scalar_prefetch = 0 : i64, scratch_operands = 1 : i64, tpu.core_type = #tpu.core_type<tc>, window_params = [{transform_indices = @transform_0, window_bounds = array<i64: 128, 48>}, {transform_indices = @transform_1, window_bounds = array<i64: 48, 128>}, {transform_indices = @transform_2, window_bounds = array<i64: 1, 128>}, {transform_indices = @transform_3, window_bounds = array<i64: 128, 128>}]} {
    %c0_i32 = arith.constant 0 : i32
    %0 = arith.cmpi eq, %arg2, %c0_i32 : i32
    %1 = arith.extui %0 : i1 to i32
    %c0_i32_0 = arith.constant 0 : i32
    %2 = arith.cmpi ne, %1, %c0_i32_0 : i32
    scf.if %2 {
      %cst_10 = arith.constant 0.000000e+00 : f32
      %12 = vector.broadcast %cst_10 : f32 to vector<128x128xf32>
      %c0_11 = arith.constant 0 : index
      %c0_12 = arith.constant 0 : index
      %13 = vector.load %arg7[%c0_11, %c0_12] : memref<128x128xf32, #tpu.memory_space<vmem>>, vector<128x128xf32>
      tpu.vector_store %arg7[%c0_11, %c0_12], %12 {strides = array<i32>} : memref<128x128xf32, #tpu.memory_space<vmem>>, vector<128x128xf32>,
    } else {
    }
    %c0 = arith.constant 0 : index
    %c0_1 = arith.constant 0 : index
    %3 = vector.load %arg7[%c0, %c0_1] : memref<128x128xf32, #tpu.memory_space<vmem>>, vector<128x128xf32>
    %c0_2 = arith.constant 0 : index
    %c0_3 = arith.constant 0 : index
    %4 = vector.load %arg3[%c0_2, %c0_3] : memref<128x48xbf16, #tpu.memory_space<vmem>>, vector<128x48xbf16>
    %c0_4 = arith.constant 0 : index
    %c0_5 = arith.constant 0 : index
    %5 = vector.load %arg4[%c0_4, %c0_5] : memref<48x128xbf16, #tpu.memory_space<vmem>>, vector<48x128xbf16>
    %cst = arith.constant dense<0.000000e+00> : vector<128x128xf32>
    %6 = tpu.matmul %4, %5, %cst {dimension_numbers = #tpu.dot_dimension_numbers<[1], [0], [0], [1], [0, 0, 1, 1], [], []>} : vector<128x48xbf16>, vector<48x128xbf16>, vector<128x128xf32> -> vector<128x128xf32>
    %7 = arith.addf %3, %6 : vector<128x128xf32>
    %c0_6 = arith.constant 0 : index
    %c0_7 = arith.constant 0 : index
    %8 = vector.load %arg7[%c0_6, %c0_7] : memref<128x128xf32, #tpu.memory_space<vmem>>, vector<128x128xf32>
    tpu.vector_store %arg7[%c0_6, %c0_7], %7 {strides = array<i32>} : memref<128x128xf32, #tpu.memory_space<vmem>>, vector<128x128xf32>,
    %c0_i32_8 = arith.constant 0 : i32
    %9 = arith.cmpi eq, %arg2, %c0_i32_8 : i32
    %10 = arith.extui %9 : i1 to i32
    %c0_i32_9 = arith.constant 0 : i32
    %11 = arith.cmpi ne, %10, %c0_i32_9 : i32
    scf.if %11 {
      %c0_10 = arith.constant 0 : index
      %c0_11 = arith.constant 0 : index
      %12 = vector.load %arg7[%c0_10, %c0_11] : memref<128x128xf32, #tpu.memory_space<vmem>>, vector<128x128xf32>
      %c0_12 = arith.constant 0 : index
      %c0_13 = arith.constant 0 : index
      %13 = vector.load %arg5[%c0_12, %c0_13] : memref<1x128xf32, #tpu.memory_space<vmem>>, vector<1x128xf32>
      %14 = vector.broadcast %13 : vector<1x128xf32> to vector<128x128xf32>
      %15 = arith.addf %12, %14 : vector<128x128xf32>
      %cst_14 = arith.constant 0.000000e+00 : f32
      %16 = vector.broadcast %cst_14 : f32 to vector<128x128xf32>
      %17 = arith.cmpf oge, %15, %16 : vector<128x128xf32>
      %cst_15 = arith.constant 2.000000e-01 : f32
      %18 = vector.broadcast %cst_15 : f32 to vector<128x128xf32>
      %19 = arith.mulf %18, %15 : vector<128x128xf32>
      %20 = arith.select %17, %15, %19 : vector<128x128xi1>, vector<128x128xf32>
      %21 = arith.truncf %20 : vector<128x128xf32> to vector<128x128xbf16>
      %c0_16 = arith.constant 0 : index
      %c0_17 = arith.constant 0 : index
      %22 = vector.load %arg6[%c0_16, %c0_17] : memref<128x128xbf16, #tpu.memory_space<vmem>>, vector<128x128xbf16>
      tpu.vector_store %arg6[%c0_16, %c0_17], %21 {strides = array<i32>} : memref<128x128xbf16, #tpu.memory_space<vmem>>, vector<128x128xbf16>,
    } else {
    }
    return
  }
  func.func @transform_0(%arg0: i32, %arg1: i32, %arg2: i32) -> (i32, i32) {
    %c0_i32 = arith.constant 0 : i32
    return %arg0, %arg2 : i32, i32
  }
  func.func @transform_1(%arg0: i32, %arg1: i32, %arg2: i32) -> (i32, i32) {
    %c0_i32 = arith.constant 0 : i32
    return %arg2, %arg1 : i32, i32
  }
  func.func @transform_2(%arg0: i32, %arg1: i32, %arg2: i32) -> (i32, i32) {
    %c0_i32 = arith.constant 0 : i32
    %c0_i32_0 = arith.constant 0 : i32
    return %c0_i32, %arg1 : i32, i32
  }
  func.func @transform_3(%arg0: i32, %arg1: i32, %arg2: i32) -> (i32, i32) {
    %c0_i32 = arith.constant 0 : i32
    return %arg0, %arg1 : i32, i32
  }
}

module attributes {stable_mosaic.version = 11 : i64} {
  func.func @_conv_mm_kernel(%arg0: i32, %arg1: i32, %arg2: i32, %arg3: memref<32x1024xbf16, #tpu.memory_space<vmem>>, %arg4: memref<1024x128xbf16, #tpu.memory_space<vmem>>, %arg5: memref<1x128xf32, #tpu.memory_space<vmem>>, %arg6: memref<32x128xbf16, #tpu.memory_space<vmem>>, %arg7: memref<32x128xf32, #tpu.memory_space<vmem>>) attributes {dimension_semantics = [#tpu.dimension_semantics<parallel>, #tpu.dimension_semantics<parallel>, #tpu.dimension_semantics<arbitrary>], iteration_bounds = array<i64: 1, 1, 1>, scalar_prefetch = 0 : i64, scratch_operands = 1 : i64, tpu.core_type = #tpu.core_type<tc>, window_params = [{transform_indices = @transform_0, window_bounds = array<i64: 32, 1024>}, {transform_indices = @transform_1, window_bounds = array<i64: 1024, 128>}, {transform_indices = @transform_2, window_bounds = array<i64: 1, 128>}, {transform_indices = @transform_3, window_bounds = array<i64: 32, 128>}]} {
    %c0_i32 = arith.constant 0 : i32
    %0 = arith.cmpi eq, %arg2, %c0_i32 : i32
    %1 = arith.extui %0 : i1 to i32
    %c0_i32_0 = arith.constant 0 : i32
    %2 = arith.cmpi ne, %1, %c0_i32_0 : i32
    scf.if %2 {
      %cst_10 = arith.constant 0.000000e+00 : f32
      %12 = vector.broadcast %cst_10 : f32 to vector<32x128xf32>
      %c0_11 = arith.constant 0 : index
      %c0_12 = arith.constant 0 : index
      %13 = vector.load %arg7[%c0_11, %c0_12] : memref<32x128xf32, #tpu.memory_space<vmem>>, vector<32x128xf32>
      tpu.vector_store %arg7[%c0_11, %c0_12], %12 {strides = array<i32>} : memref<32x128xf32, #tpu.memory_space<vmem>>, vector<32x128xf32>,
    } else {
    }
    %c0 = arith.constant 0 : index
    %c0_1 = arith.constant 0 : index
    %3 = vector.load %arg7[%c0, %c0_1] : memref<32x128xf32, #tpu.memory_space<vmem>>, vector<32x128xf32>
    %c0_2 = arith.constant 0 : index
    %c0_3 = arith.constant 0 : index
    %4 = vector.load %arg3[%c0_2, %c0_3] : memref<32x1024xbf16, #tpu.memory_space<vmem>>, vector<32x1024xbf16>
    %c0_4 = arith.constant 0 : index
    %c0_5 = arith.constant 0 : index
    %5 = vector.load %arg4[%c0_4, %c0_5] : memref<1024x128xbf16, #tpu.memory_space<vmem>>, vector<1024x128xbf16>
    %cst = arith.constant dense<0.000000e+00> : vector<32x128xf32>
    %6 = tpu.matmul %4, %5, %cst {dimension_numbers = #tpu.dot_dimension_numbers<[1], [0], [0], [1], [0, 0, 1, 1], [], []>} : vector<32x1024xbf16>, vector<1024x128xbf16>, vector<32x128xf32> -> vector<32x128xf32>
    %7 = arith.addf %3, %6 : vector<32x128xf32>
    %c0_6 = arith.constant 0 : index
    %c0_7 = arith.constant 0 : index
    %8 = vector.load %arg7[%c0_6, %c0_7] : memref<32x128xf32, #tpu.memory_space<vmem>>, vector<32x128xf32>
    tpu.vector_store %arg7[%c0_6, %c0_7], %7 {strides = array<i32>} : memref<32x128xf32, #tpu.memory_space<vmem>>, vector<32x128xf32>,
    %c0_i32_8 = arith.constant 0 : i32
    %9 = arith.cmpi eq, %arg2, %c0_i32_8 : i32
    %10 = arith.extui %9 : i1 to i32
    %c0_i32_9 = arith.constant 0 : i32
    %11 = arith.cmpi ne, %10, %c0_i32_9 : i32
    scf.if %11 {
      %c0_10 = arith.constant 0 : index
      %c0_11 = arith.constant 0 : index
      %12 = vector.load %arg7[%c0_10, %c0_11] : memref<32x128xf32, #tpu.memory_space<vmem>>, vector<32x128xf32>
      %c0_12 = arith.constant 0 : index
      %c0_13 = arith.constant 0 : index
      %13 = vector.load %arg5[%c0_12, %c0_13] : memref<1x128xf32, #tpu.memory_space<vmem>>, vector<1x128xf32>
      %14 = vector.broadcast %13 : vector<1x128xf32> to vector<32x128xf32>
      %15 = arith.addf %12, %14 : vector<32x128xf32>
      %16 = arith.truncf %15 : vector<32x128xf32> to vector<32x128xbf16>
      %c0_14 = arith.constant 0 : index
      %c0_15 = arith.constant 0 : index
      %17 = vector.load %arg6[%c0_14, %c0_15] : memref<32x128xbf16, #tpu.memory_space<vmem>>, vector<32x128xbf16>
      tpu.vector_store %arg6[%c0_14, %c0_15], %16 {strides = array<i32>} : memref<32x128xbf16, #tpu.memory_space<vmem>>, vector<32x128xbf16>,
    } else {
    }
    return
  }
  func.func @transform_0(%arg0: i32, %arg1: i32, %arg2: i32) -> (i32, i32) {
    %c0_i32 = arith.constant 0 : i32
    return %arg0, %arg2 : i32, i32
  }
  func.func @transform_1(%arg0: i32, %arg1: i32, %arg2: i32) -> (i32, i32) {
    %c0_i32 = arith.constant 0 : i32
    return %arg2, %arg1 : i32, i32
  }
  func.func @transform_2(%arg0: i32, %arg1: i32, %arg2: i32) -> (i32, i32) {
    %c0_i32 = arith.constant 0 : i32
    %c0_i32_0 = arith.constant 0 : i32
    return %c0_i32, %arg1 : i32, i32
  }
  func.func @transform_3(%arg0: i32, %arg1: i32, %arg2: i32) -> (i32, i32) {
    %c0_i32 = arith.constant 0 : i32
    return %arg0, %arg1 : i32, i32
  }
}

module attributes {stable_mosaic.version = 11 : i64} {
  func.func @_in_lrelu_kernel(%arg0: i32, %arg1: memref<1x16x128xbf16, #tpu.memory_space<vmem>>, %arg2: memref<1x16x128xbf16, #tpu.memory_space<vmem>>) attributes {dimension_semantics = [#tpu.dimension_semantics<parallel>], iteration_bounds = array<i64: 2>, scalar_prefetch = 0 : i64, scratch_operands = 0 : i64, tpu.core_type = #tpu.core_type<tc>, window_params = [{transform_indices = @transform_0, window_bounds = array<i64: 1, 16, 128>}, {transform_indices = @transform_1, window_bounds = array<i64: 1, 16, 128>}]} {
    %c0 = arith.constant 0 : index
    %c0_0 = arith.constant 0 : index
    %c0_1 = arith.constant 0 : index
    %0 = vector.load %arg1[%c0, %c0_0, %c0_1] : memref<1x16x128xbf16, #tpu.memory_space<vmem>>, vector<1x16x128xbf16>
    %1 = arith.extf %0 : vector<1x16x128xbf16> to vector<1x16x128xf32>
    %cst = arith.constant dense<0.000000e+00> : vector<1x128xf32>
    %2 = vector.multi_reduction <add>, %1, %cst [1] : vector<1x16x128xf32> to vector<1x128xf32>
    %3 = vector.shape_cast %2 : vector<1x128xf32> to vector<1x1x128xf32>
    %cst_2 = arith.constant 1.600000e+01 : f32
    %4 = vector.broadcast %cst_2 : f32 to vector<1x1x128xf32>
    %5 = arith.divf %3, %4 : vector<1x1x128xf32>
    %6 = vector.broadcast %5 : vector<1x1x128xf32> to vector<1x16x128xf32>
    %7 = arith.subf %1, %6 : vector<1x16x128xf32>
    %8 = arith.mulf %7, %7 : vector<1x16x128xf32>
    %cst_3 = arith.constant dense<0.000000e+00> : vector<1x128xf32>
    %9 = vector.multi_reduction <add>, %8, %cst_3 [1] : vector<1x16x128xf32> to vector<1x128xf32>
    %10 = vector.shape_cast %9 : vector<1x128xf32> to vector<1x1x128xf32>
    %cst_4 = arith.constant 1.600000e+01 : f32
    %11 = vector.broadcast %cst_4 : f32 to vector<1x1x128xf32>
    %12 = arith.divf %10, %11 : vector<1x1x128xf32>
    %13 = vector.broadcast %5 : vector<1x1x128xf32> to vector<1x16x128xf32>
    %14 = arith.subf %1, %13 : vector<1x16x128xf32>
    %cst_5 = arith.constant 9.99999974E-6 : f32
    %15 = vector.broadcast %cst_5 : f32 to vector<1x1x128xf32>
    %16 = arith.addf %12, %15 : vector<1x1x128xf32>
    %17 = math.rsqrt %16 : vector<1x1x128xf32>
    %18 = vector.broadcast %17 : vector<1x1x128xf32> to vector<1x16x128xf32>
    %19 = arith.mulf %14, %18 : vector<1x16x128xf32>
    %cst_6 = arith.constant 0.000000e+00 : f32
    %20 = vector.broadcast %cst_6 : f32 to vector<1x16x128xf32>
    %21 = arith.cmpf oge, %19, %20 : vector<1x16x128xf32>
    %cst_7 = arith.constant 2.000000e-01 : f32
    %22 = vector.broadcast %cst_7 : f32 to vector<1x16x128xf32>
    %23 = arith.mulf %22, %19 : vector<1x16x128xf32>
    %24 = arith.select %21, %19, %23 : vector<1x16x128xi1>, vector<1x16x128xf32>
    %25 = arith.truncf %24 : vector<1x16x128xf32> to vector<1x16x128xbf16>
    %c0_8 = arith.constant 0 : index
    %c0_9 = arith.constant 0 : index
    %c0_10 = arith.constant 0 : index
    %26 = vector.load %arg2[%c0_8, %c0_9, %c0_10] : memref<1x16x128xbf16, #tpu.memory_space<vmem>>, vector<1x16x128xbf16>
    tpu.vector_store %arg2[%c0_8, %c0_9, %c0_10], %25 {strides = array<i32>} : memref<1x16x128xbf16, #tpu.memory_space<vmem>>, vector<1x16x128xbf16>,
    return
  }
  func.func @transform_0(%arg0: i32) -> (i32, i32, i32) {
    %c0_i32 = arith.constant 0 : i32
    %c0_i32_0 = arith.constant 0 : i32
    %c0_i32_1 = arith.constant 0 : i32
    return %arg0, %c0_i32, %c0_i32_0 : i32, i32, i32
  }
  func.func @transform_1(%arg0: i32) -> (i32, i32, i32) {
    %c0_i32 = arith.constant 0 : i32
    %c0_i32_0 = arith.constant 0 : i32
    %c0_i32_1 = arith.constant 0 : i32
    return %arg0, %c0_i32, %c0_i32_0 : i32, i32, i32
  }
}

module attributes {stable_mosaic.version = 11 : i64} {
  func.func @_in_lrelu_kernel(%arg0: i32, %arg1: memref<1x4x256xbf16, #tpu.memory_space<vmem>>, %arg2: memref<1x4x256xbf16, #tpu.memory_space<vmem>>) attributes {dimension_semantics = [#tpu.dimension_semantics<parallel>], iteration_bounds = array<i64: 2>, scalar_prefetch = 0 : i64, scratch_operands = 0 : i64, tpu.core_type = #tpu.core_type<tc>, window_params = [{transform_indices = @transform_0, window_bounds = array<i64: 1, 4, 256>}, {transform_indices = @transform_1, window_bounds = array<i64: 1, 4, 256>}]} {
    %c0 = arith.constant 0 : index
    %c0_0 = arith.constant 0 : index
    %c0_1 = arith.constant 0 : index
    %0 = vector.load %arg1[%c0, %c0_0, %c0_1] : memref<1x4x256xbf16, #tpu.memory_space<vmem>>, vector<1x4x256xbf16>
    %1 = arith.extf %0 : vector<1x4x256xbf16> to vector<1x4x256xf32>
    %cst = arith.constant dense<0.000000e+00> : vector<1x256xf32>
    %2 = vector.multi_reduction <add>, %1, %cst [1] : vector<1x4x256xf32> to vector<1x256xf32>
    %3 = vector.shape_cast %2 : vector<1x256xf32> to vector<1x1x256xf32>
    %cst_2 = arith.constant 4.000000e+00 : f32
    %4 = vector.broadcast %cst_2 : f32 to vector<1x1x256xf32>
    %5 = arith.divf %3, %4 : vector<1x1x256xf32>
    %6 = vector.broadcast %5 : vector<1x1x256xf32> to vector<1x4x256xf32>
    %7 = arith.subf %1, %6 : vector<1x4x256xf32>
    %8 = arith.mulf %7, %7 : vector<1x4x256xf32>
    %cst_3 = arith.constant dense<0.000000e+00> : vector<1x256xf32>
    %9 = vector.multi_reduction <add>, %8, %cst_3 [1] : vector<1x4x256xf32> to vector<1x256xf32>
    %10 = vector.shape_cast %9 : vector<1x256xf32> to vector<1x1x256xf32>
    %cst_4 = arith.constant 4.000000e+00 : f32
    %11 = vector.broadcast %cst_4 : f32 to vector<1x1x256xf32>
    %12 = arith.divf %10, %11 : vector<1x1x256xf32>
    %13 = vector.broadcast %5 : vector<1x1x256xf32> to vector<1x4x256xf32>
    %14 = arith.subf %1, %13 : vector<1x4x256xf32>
    %cst_5 = arith.constant 9.99999974E-6 : f32
    %15 = vector.broadcast %cst_5 : f32 to vector<1x1x256xf32>
    %16 = arith.addf %12, %15 : vector<1x1x256xf32>
    %17 = math.rsqrt %16 : vector<1x1x256xf32>
    %18 = vector.broadcast %17 : vector<1x1x256xf32> to vector<1x4x256xf32>
    %19 = arith.mulf %14, %18 : vector<1x4x256xf32>
    %cst_6 = arith.constant 0.000000e+00 : f32
    %20 = vector.broadcast %cst_6 : f32 to vector<1x4x256xf32>
    %21 = arith.cmpf oge, %19, %20 : vector<1x4x256xf32>
    %cst_7 = arith.constant 2.000000e-01 : f32
    %22 = vector.broadcast %cst_7 : f32 to vector<1x4x256xf32>
    %23 = arith.mulf %22, %19 : vector<1x4x256xf32>
    %24 = arith.select %21, %19, %23 : vector<1x4x256xi1>, vector<1x4x256xf32>
    %25 = arith.truncf %24 : vector<1x4x256xf32> to vector<1x4x256xbf16>
    %c0_8 = arith.constant 0 : index
    %c0_9 = arith.constant 0 : index
    %c0_10 = arith.constant 0 : index
    %26 = vector.load %arg2[%c0_8, %c0_9, %c0_10] : memref<1x4x256xbf16, #tpu.memory_space<vmem>>, vector<1x4x256xbf16>
    tpu.vector_store %arg2[%c0_8, %c0_9, %c0_10], %25 {strides = array<i32>} : memref<1x4x256xbf16, #tpu.memory_space<vmem>>, vector<1x4x256xbf16>,
    return
  }
  func.func @transform_0(%arg0: i32) -> (i32, i32, i32) {
    %c0_i32 = arith.constant 0 : i32
    %c0_i32_0 = arith.constant 0 : i32
    %c0_i32_1 = arith.constant 0 : i32
    return %arg0, %c0_i32, %c0_i32_0 : i32, i32, i32
  }
  func.func @transform_1(%arg0: i32) -> (i32, i32, i32) {
    %c0_i32 = arith.constant 0 : i32
    %c0_i32_0 = arith.constant 0 : i32
    %c0_i32_1 = arith.constant 0 : i32
    return %arg0, %c0_i32, %c0_i32_0 : i32, i32, i32
  }
}

module attributes {stable_mosaic.version = 11 : i64} {
  func.func @_conv_mm_kernel(%arg0: i32, %arg1: i32, %arg2: i32, %arg3: memref<16x2048xbf16, #tpu.memory_space<vmem>>, %arg4: memref<2048x128xbf16, #tpu.memory_space<vmem>>, %arg5: memref<1x128xf32, #tpu.memory_space<vmem>>, %arg6: memref<16x128xbf16, #tpu.memory_space<vmem>>, %arg7: memref<16x128xf32, #tpu.memory_space<vmem>>) attributes {dimension_semantics = [#tpu.dimension_semantics<parallel>, #tpu.dimension_semantics<parallel>, #tpu.dimension_semantics<arbitrary>], iteration_bounds = array<i64: 1, 2, 1>, scalar_prefetch = 0 : i64, scratch_operands = 1 : i64, tpu.core_type = #tpu.core_type<tc>, window_params = [{transform_indices = @transform_0, window_bounds = array<i64: 16, 2048>}, {transform_indices = @transform_1, window_bounds = array<i64: 2048, 128>}, {transform_indices = @transform_2, window_bounds = array<i64: 1, 128>}, {transform_indices = @transform_3, window_bounds = array<i64: 16, 128>}]} {
    %c0_i32 = arith.constant 0 : i32
    %0 = arith.cmpi eq, %arg2, %c0_i32 : i32
    %1 = arith.extui %0 : i1 to i32
    %c0_i32_0 = arith.constant 0 : i32
    %2 = arith.cmpi ne, %1, %c0_i32_0 : i32
    scf.if %2 {
      %cst_10 = arith.constant 0.000000e+00 : f32
      %12 = vector.broadcast %cst_10 : f32 to vector<16x128xf32>
      %c0_11 = arith.constant 0 : index
      %c0_12 = arith.constant 0 : index
      %13 = vector.load %arg7[%c0_11, %c0_12] : memref<16x128xf32, #tpu.memory_space<vmem>>, vector<16x128xf32>
      tpu.vector_store %arg7[%c0_11, %c0_12], %12 {strides = array<i32>} : memref<16x128xf32, #tpu.memory_space<vmem>>, vector<16x128xf32>,
    } else {
    }
    %c0 = arith.constant 0 : index
    %c0_1 = arith.constant 0 : index
    %3 = vector.load %arg7[%c0, %c0_1] : memref<16x128xf32, #tpu.memory_space<vmem>>, vector<16x128xf32>
    %c0_2 = arith.constant 0 : index
    %c0_3 = arith.constant 0 : index
    %4 = vector.load %arg3[%c0_2, %c0_3] : memref<16x2048xbf16, #tpu.memory_space<vmem>>, vector<16x2048xbf16>
    %c0_4 = arith.constant 0 : index
    %c0_5 = arith.constant 0 : index
    %5 = vector.load %arg4[%c0_4, %c0_5] : memref<2048x128xbf16, #tpu.memory_space<vmem>>, vector<2048x128xbf16>
    %cst = arith.constant dense<0.000000e+00> : vector<16x128xf32>
    %6 = tpu.matmul %4, %5, %cst {dimension_numbers = #tpu.dot_dimension_numbers<[1], [0], [0], [1], [0, 0, 1, 1], [], []>} : vector<16x2048xbf16>, vector<2048x128xbf16>, vector<16x128xf32> -> vector<16x128xf32>
    %7 = arith.addf %3, %6 : vector<16x128xf32>
    %c0_6 = arith.constant 0 : index
    %c0_7 = arith.constant 0 : index
    %8 = vector.load %arg7[%c0_6, %c0_7] : memref<16x128xf32, #tpu.memory_space<vmem>>, vector<16x128xf32>
    tpu.vector_store %arg7[%c0_6, %c0_7], %7 {strides = array<i32>} : memref<16x128xf32, #tpu.memory_space<vmem>>, vector<16x128xf32>,
    %c0_i32_8 = arith.constant 0 : i32
    %9 = arith.cmpi eq, %arg2, %c0_i32_8 : i32
    %10 = arith.extui %9 : i1 to i32
    %c0_i32_9 = arith.constant 0 : i32
    %11 = arith.cmpi ne, %10, %c0_i32_9 : i32
    scf.if %11 {
      %c0_10 = arith.constant 0 : index
      %c0_11 = arith.constant 0 : index
      %12 = vector.load %arg7[%c0_10, %c0_11] : memref<16x128xf32, #tpu.memory_space<vmem>>, vector<16x128xf32>
      %c0_12 = arith.constant 0 : index
      %c0_13 = arith.constant 0 : index
      %13 = vector.load %arg5[%c0_12, %c0_13] : memref<1x128xf32, #tpu.memory_space<vmem>>, vector<1x128xf32>
      %14 = vector.broadcast %13 : vector<1x128xf32> to vector<16x128xf32>
      %15 = arith.addf %12, %14 : vector<16x128xf32>
      %16 = arith.truncf %15 : vector<16x128xf32> to vector<16x128xbf16>
      %c0_14 = arith.constant 0 : index
      %c0_15 = arith.constant 0 : index
      %17 = vector.load %arg6[%c0_14, %c0_15] : memref<16x128xbf16, #tpu.memory_space<vmem>>, vector<16x128xbf16>
      tpu.vector_store %arg6[%c0_14, %c0_15], %16 {strides = array<i32>} : memref<16x128xbf16, #tpu.memory_space<vmem>>, vector<16x128xbf16>,
    } else {
    }
    return
  }
  func.func @transform_0(%arg0: i32, %arg1: i32, %arg2: i32) -> (i32, i32) {
    %c0_i32 = arith.constant 0 : i32
    return %arg0, %arg2 : i32, i32
  }
  func.func @transform_1(%arg0: i32, %arg1: i32, %arg2: i32) -> (i32, i32) {
    %c0_i32 = arith.constant 0 : i32
    return %arg2, %arg1 : i32, i32
  }
  func.func @transform_2(%arg0: i32, %arg1: i32, %arg2: i32) -> (i32, i32) {
    %c0_i32 = arith.constant 0 : i32
    %c0_i32_0 = arith.constant 0 : i32
    return %c0_i32, %arg1 : i32, i32
  }
  func.func @transform_3(%arg0: i32, %arg1: i32, %arg2: i32) -> (i32, i32) {
    %c0_i32 = arith.constant 0 : i32
    return %arg0, %arg1 : i32, i32
  }
}

module attributes {stable_mosaic.version = 11 : i64} {
  func.func @_conv_mm_kernel(%arg0: i32, %arg1: i32, %arg2: i32, %arg3: memref<16x2048xbf16, #tpu.memory_space<vmem>>, %arg4: memref<2048x128xbf16, #tpu.memory_space<vmem>>, %arg5: memref<1x128xf32, #tpu.memory_space<vmem>>, %arg6: memref<16x128xf32, #tpu.memory_space<vmem>>, %arg7: memref<16x128xf32, #tpu.memory_space<vmem>>) attributes {dimension_semantics = [#tpu.dimension_semantics<parallel>, #tpu.dimension_semantics<parallel>, #tpu.dimension_semantics<arbitrary>], iteration_bounds = array<i64: 1, 1, 2>, scalar_prefetch = 0 : i64, scratch_operands = 1 : i64, tpu.core_type = #tpu.core_type<tc>, window_params = [{transform_indices = @transform_0, window_bounds = array<i64: 16, 2048>}, {transform_indices = @transform_1, window_bounds = array<i64: 2048, 128>}, {transform_indices = @transform_2, window_bounds = array<i64: 1, 128>}, {transform_indices = @transform_3, window_bounds = array<i64: 16, 128>}]} {
    %c0_i32 = arith.constant 0 : i32
    %0 = arith.cmpi eq, %arg2, %c0_i32 : i32
    %1 = arith.extui %0 : i1 to i32
    %c0_i32_0 = arith.constant 0 : i32
    %2 = arith.cmpi ne, %1, %c0_i32_0 : i32
    scf.if %2 {
      %cst_9 = arith.constant 0.000000e+00 : f32
      %12 = vector.broadcast %cst_9 : f32 to vector<16x128xf32>
      %c0_10 = arith.constant 0 : index
      %c0_11 = arith.constant 0 : index
      %13 = vector.load %arg7[%c0_10, %c0_11] : memref<16x128xf32, #tpu.memory_space<vmem>>, vector<16x128xf32>
      tpu.vector_store %arg7[%c0_10, %c0_11], %12 {strides = array<i32>} : memref<16x128xf32, #tpu.memory_space<vmem>>, vector<16x128xf32>,
    } else {
    }
    %c0 = arith.constant 0 : index
    %c0_1 = arith.constant 0 : index
    %3 = vector.load %arg7[%c0, %c0_1] : memref<16x128xf32, #tpu.memory_space<vmem>>, vector<16x128xf32>
    %c0_2 = arith.constant 0 : index
    %c0_3 = arith.constant 0 : index
    %4 = vector.load %arg3[%c0_2, %c0_3] : memref<16x2048xbf16, #tpu.memory_space<vmem>>, vector<16x2048xbf16>
    %c0_4 = arith.constant 0 : index
    %c0_5 = arith.constant 0 : index
    %5 = vector.load %arg4[%c0_4, %c0_5] : memref<2048x128xbf16, #tpu.memory_space<vmem>>, vector<2048x128xbf16>
    %cst = arith.constant dense<0.000000e+00> : vector<16x128xf32>
    %6 = tpu.matmul %4, %5, %cst {dimension_numbers = #tpu.dot_dimension_numbers<[1], [0], [0], [1], [0, 0, 1, 1], [], []>} : vector<16x2048xbf16>, vector<2048x128xbf16>, vector<16x128xf32> -> vector<16x128xf32>
    %7 = arith.addf %3, %6 : vector<16x128xf32>
    %c0_6 = arith.constant 0 : index
    %c0_7 = arith.constant 0 : index
    %8 = vector.load %arg7[%c0_6, %c0_7] : memref<16x128xf32, #tpu.memory_space<vmem>>, vector<16x128xf32>
    tpu.vector_store %arg7[%c0_6, %c0_7], %7 {strides = array<i32>} : memref<16x128xf32, #tpu.memory_space<vmem>>, vector<16x128xf32>,
    %c1_i32 = arith.constant 1 : i32
    %9 = arith.cmpi eq, %arg2, %c1_i32 : i32
    %10 = arith.extui %9 : i1 to i32
    %c0_i32_8 = arith.constant 0 : i32
    %11 = arith.cmpi ne, %10, %c0_i32_8 : i32
    scf.if %11 {
      %c0_9 = arith.constant 0 : index
      %c0_10 = arith.constant 0 : index
      %12 = vector.load %arg7[%c0_9, %c0_10] : memref<16x128xf32, #tpu.memory_space<vmem>>, vector<16x128xf32>
      %c0_11 = arith.constant 0 : index
      %c0_12 = arith.constant 0 : index
      %13 = vector.load %arg5[%c0_11, %c0_12] : memref<1x128xf32, #tpu.memory_space<vmem>>, vector<1x128xf32>
      %14 = vector.broadcast %13 : vector<1x128xf32> to vector<16x128xf32>
      %15 = arith.addf %12, %14 : vector<16x128xf32>
      %c0_13 = arith.constant 0 : index
      %c0_14 = arith.constant 0 : index
      %16 = vector.load %arg6[%c0_13, %c0_14] : memref<16x128xf32, #tpu.memory_space<vmem>>, vector<16x128xf32>
      tpu.vector_store %arg6[%c0_13, %c0_14], %15 {strides = array<i32>} : memref<16x128xf32, #tpu.memory_space<vmem>>, vector<16x128xf32>,
    } else {
    }
    return
  }
  func.func @transform_0(%arg0: i32, %arg1: i32, %arg2: i32) -> (i32, i32) {
    %c0_i32 = arith.constant 0 : i32
    return %arg0, %arg2 : i32, i32
  }
  func.func @transform_1(%arg0: i32, %arg1: i32, %arg2: i32) -> (i32, i32) {
    %c0_i32 = arith.constant 0 : i32
    return %arg2, %arg1 : i32, i32
  }
  func.func @transform_2(%arg0: i32, %arg1: i32, %arg2: i32) -> (i32, i32) {
    %c0_i32 = arith.constant 0 : i32
    %c0_i32_0 = arith.constant 0 : i32
    return %c0_i32, %arg1 : i32, i32
  }
  func.func @transform_3(%arg0: i32, %arg1: i32, %arg2: i32) -> (i32, i32) {
    %c0_i32 = arith.constant 0 : i32
    return %arg0, %arg1 : i32, i32
  }
}

</mosaic_0001>

<llo_original>
// kernel: discriminator_forward.6
$region0: #{discriminator_forward.6}
  #allocation0 [shape = 'u32[]', space=smem, size = 0x4, offset = 0x4, fixed_abs, tag = 'smem constant byte address 0x4 - core index']
  #allocation1 [shape = 'u32[72,128]{1,0:T(1,128)}', space=vmem, size = 0x9000, scoped, tag = 'internal scratch']
  #allocation2 [shape = 'f32[128,128]{1,0:T(8,128)}', space=vmem, size = 0x10000, scoped, tag = 'scratch operand']
  %s0 = inlined_call_operand.vmem [shape: bf16[128,48], index: 0, kind: input, shape index: {}]
  %s1 = inlined_call_operand.vmem [shape: bf16[48,128], index: 1, kind: input, shape index: {}]
  %s2 = inlined_call_operand.vmem [shape: f32[1,128], index: 2, kind: input, shape index: {}]
  %s3 = inlined_call_operand.vmem [shape: bf16[128,128], index: 3, kind: output, shape index: {}]
  %s4 = sld [smem:[#allocation0]]
  $region30: #{discriminator_forward.6} parent=0
    _
  %s6 = ssub.s32 1, %s4
  %s7 = scalar_select 0, %s6, %s4
  // Predicated region
  $region2: #{discriminator_forward.6} parent=0 // pred_check
    _
  $region3: #{discriminator_forward.6} parent=0 // pred_check_branch
    %9 = sbr.rel (0) target = $region5
  $region4: #{discriminator_forward.6} parent=0 // pred_region
    _
  $region5: #{discriminator_forward.6} parent=0 // pred_fallthru
    _
  // Predicated region
  $region6: #{discriminator_forward.6} parent=0 // pred_check
    _
  $region7: #{discriminator_forward.6} parent=0 // pred_check_branch
    %11 = sbr.rel (0) target = $region9
  $region8: #{discriminator_forward.6} parent=0 // pred_region
    _
  $region9: #{discriminator_forward.6} parent=0 // pred_fallthru
    _
  // Predicated region
  $region10: #{discriminator_forward.6} parent=0 // pred_check
    _
  $region11: #{discriminator_forward.6} parent=0 // pred_check_branch
    %13 = sbr.rel (0) target = $region13
  $region12: #{discriminator_forward.6} parent=0 // pred_region
    _
  $region13: #{discriminator_forward.6} parent=0 // pred_fallthru
    _
  %p15 = scmp.eq.s32.totalorder 0, 0
  // Predicated region
  $region14: #{discriminator_forward.6} parent=0 // pred_check
    %p16 = pneg %p15
  $region15: #{discriminator_forward.6} parent=0 // pred_check_branch
    %18 = sbr.rel (%p16) target = $region17
  $region16: #{discriminator_forward.6} parent=0 // pred_region
    %19 = vst [vmem:[#allocation2] sm:$0xff] 0.0
    %20 = vst [vmem:[#allocation2 + $0x8] sm:$0xff] 0.0
    %21 = vst [vmem:[#allocation2 + $0x10] sm:$0xff] 0.0
    %22 = vst [vmem:[#allocation2 + $0x18] sm:$0xff] 0.0
    %23 = vst [vmem:[#allocation2 + $0x20] sm:$0xff] 0.0
    %24 = vst [vmem:[#allocation2 + $0x28] sm:$0xff] 0.0
    %25 = vst [vmem:[#allocation2 + $0x30] sm:$0xff] 0.0
    %26 = vst [vmem:[#allocation2 + $0x38] sm:$0xff] 0.0
    %27 = vst [vmem:[#allocation2 + $0x40] sm:$0xff] 0.0
    %28 = vst [vmem:[#allocation2 + $0x48] sm:$0xff] 0.0
    %29 = vst [vmem:[#allocation2 + $0x50] sm:$0xff] 0.0
    %30 = vst [vmem:[#allocation2 + $0x58] sm:$0xff] 0.0
    %31 = vst [vmem:[#allocation2 + $0x60] sm:$0xff] 0.0
    %32 = vst [vmem:[#allocation2 + $0x68] sm:$0xff] 0.0
    %33 = vst [vmem:[#allocation2 + $0x70] sm:$0xff] 0.0
    %34 = vst [vmem:[#allocation2 + $0x78] sm:$0xff] 0.0
  $region17: #{discriminator_forward.6} parent=0 // pred_fallthru
    _
  %v35 = vld [vmem:[#allocation2] sm:$0xff]
  %v36 = vld [vmem:[#allocation2 + $0x8] sm:$0xff]
  %v37 = vld [vmem:[#allocation2 + $0x10] sm:$0xff]
  %v38 = vld [vmem:[#allocation2 + $0x18] sm:$0xff]
  %v39 = vld [vmem:[#allocation2 + $0x20] sm:$0xff]
  %v40 = vld [vmem:[#allocation2 + $0x28] sm:$0xff]
  %v41 = vld [vmem:[#allocation2 + $0x30] sm:$0xff]
  %v42 = vld [vmem:[#allocation2 + $0x38] sm:$0xff]
  %v43 = vld [vmem:[#allocation2 + $0x40] sm:$0xff]
  %v44 = vld [vmem:[#allocation2 + $0x48] sm:$0xff]
  %v45 = vld [vmem:[#allocation2 + $0x50] sm:$0xff]
  %v46 = vld [vmem:[#allocation2 + $0x58] sm:$0xff]
  %v47 = vld [vmem:[#allocation2 + $0x60] sm:$0xff]
  %v48 = vld [vmem:[#allocation2 + $0x68] sm:$0xff]
  %v49 = vld [vmem:[#allocation2 + $0x70] sm:$0xff]
  %v50 = vld [vmem:[#allocation2 + $0x78] sm:$0xff]
  %v51 = vld [vmem:[%s0] sm:$0xf]
  %v52 = vld [vmem:[%s0 + $0x4] sm:$0xf]
  %v53 = vld [vmem:[%s0 + $0x8] sm:$0xf]
  %v54 = vld [vmem:[%s0 + $0xc] sm:$0xf]
  %v55 = vld [vmem:[%s0 + $0x10] sm:$0xf]
  %v56 = vld [vmem:[%s0 + $0x14] sm:$0xf]
  %v57 = vld [vmem:[%s0 + $0x18] sm:$0xf]
  %v58 = vld [vmem:[%s0 + $0x1c] sm:$0xf]
  %v59 = vld [vmem:[%s0 + $0x20] sm:$0xf]
  %v60 = vld [vmem:[%s0 + $0x24] sm:$0xf]
  %v61 = vld [vmem:[%s0 + $0x28] sm:$0xf]
  %v62 = vld [vmem:[%s0 + $0x2c] sm:$0xf]
  %v63 = vld [vmem:[%s0 + $0x30] sm:$0xf]
  %v64 = vld [vmem:[%s0 + $0x34] sm:$0xf]
  %v65 = vld [vmem:[%s0 + $0x38] sm:$0xf]
  %v66 = vld [vmem:[%s0 + $0x3c] sm:$0xf]
  %v67 = vld [vmem:[%s1] sm:$0xf]
  %v68 = vld [vmem:[%s1 + $0x4] sm:$0xf]
  %v69 = vld [vmem:[%s1 + $0x8] sm:$0xf]
  %v70 = vld [vmem:[%s1 + $0xc] sm:$0xf]
  %v71 = vld [vmem:[%s1 + $0x10] sm:$0xf]
  %v72 = vld [vmem:[%s1 + $0x14] sm:$0xf]
  %v89 = vunpack.c.l.b16 %v51
  %v90 = vunpack.c.l.b16 %v52
  %v91 = vunpack.c.l.b16 %v53
  %v92 = vunpack.c.l.b16 %v54
  %v93 = vunpack.c.l.b16 %v55
  %v94 = vunpack.c.l.b16 %v56
  %v95 = vunpack.c.l.b16 %v57
  %v96 = vunpack.c.l.b16 %v58
  %v97 = vunpack.c.l.b16 %v59
  %v98 = vunpack.c.l.b16 %v60
  %v99 = vunpack.c.l.b16 %v61
  %v100 = vunpack.c.l.b16 %v62
  %v101 = vunpack.c.l.b16 %v63
  %v102 = vunpack.c.l.b16 %v64
  %v103 = vunpack.c.l.b16 %v65
  %v104 = vunpack.c.l.b16 %v66
  %v105 = vpack.c.b16 %v90, %v89
  %v106 = vpack.c.b16 %v92, %v91
  %v107 = vpack.c.b16 %v94, %v93
  %v108 = vpack.c.b16 %v96, %v95
  %v109 = vpack.c.b16 %v98, %v97
  %v110 = vpack.c.b16 %v100, %v99
  %v111 = vpack.c.b16 %v102, %v101
  %v112 = vpack.c.b16 %v104, %v103
  %v119 = vunpack.c.l.b16 %v67
  %v120 = vunpack.c.l.b16 %v68
  %v121 = vunpack.c.l.b16 %v69
  %v122 = vunpack.c.l.b16 %v70
  %v123 = vunpack.c.l.b16 %v71
  %v124 = vunpack.c.l.b16 %v72
  %v125 = vpack.c.b16 %v120, %v119
  %v126 = vpack.c.b16 %v122, %v121
  %v127 = vpack.c.b16 %v124, %v123
  %vm131 = vcmask 392192
  %v133 = vsel %vm131, %v105, 0
  %v136 = vsel %vm131, %v106, 0
  %v139 = vsel %vm131, %v107, 0
  %v142 = vsel %vm131, %v108, 0
  %v145 = vsel %vm131, %v109, 0
  %v148 = vsel %vm131, %v110, 0
  %v151 = vsel %vm131, %v111, 0
  %v154 = vsel %vm131, %v112, 0
  %156 = vmatpush.bf16.msra.mxu0 0
  %157 = vmatpush.bf16.msra.mxu0 0
  %158 = vmatpush.bf16.msra.mxu0 0
  %159 = vmatpush.bf16.msra.mxu0 0
  %160 = vmatpush.bf16.msra.mxu0 0
  %161 = vmatpush.bf16.msra.mxu0 %v127
  %162 = vmatpush.bf16.msra.mxu0 %v126
  %163 = vmatpush.bf16.msra.mxu0 %v125
  %164 = vmatmul.bf16.gmra.mxu0 %v133
  %v165 = vpop.f32.mrf.mxu0
  %v166 = vadd.f32 0.0, %v165
  %v167 = vpop.f32.mrf.mxu0
  %v168 = vadd.f32 0.0, %v167
  %169 = vmatmul.bf16.gmra.mxu0 %v136
  %v170 = vpop.f32.mrf.mxu0
  %v171 = vadd.f32 0.0, %v170
  %v172 = vpop.f32.mrf.mxu0
  %v173 = vadd.f32 0.0, %v172
  %174 = vmatmul.bf16.gmra.mxu0 %v139
  %v175 = vpop.f32.mrf.mxu0
  %v176 = vadd.f32 0.0, %v175
  %v177 = vpop.f32.mrf.mxu0
  %v178 = vadd.f32 0.0, %v177
  %179 = vmatmul.bf16.gmra.mxu0 %v142
  %v180 = vpop.f32.mrf.mxu0
  %v181 = vadd.f32 0.0, %v180
  %v182 = vpop.f32.mrf.mxu0
  %v183 = vadd.f32 0.0, %v182
  %184 = vmatmul.bf16.gmra.mxu0 %v145
  %v185 = vpop.f32.mrf.mxu0
  %v186 = vadd.f32 0.0, %v185
  %v187 = vpop.f32.mrf.mxu0
  %v188 = vadd.f32 0.0, %v187
  %189 = vmatmul.bf16.gmra.mxu0 %v148
  %v190 = vpop.f32.mrf.mxu0
  %v191 = vadd.f32 0.0, %v190
  %v192 = vpop.f32.mrf.mxu0
  %v193 = vadd.f32 0.0, %v192
  %194 = vmatmul.bf16.gmra.mxu0 %v151
  %v195 = vpop.f32.mrf.mxu0
  %v196 = vadd.f32 0.0, %v195
  %v197 = vpop.f32.mrf.mxu0
  %v198 = vadd.f32 0.0, %v197
  %199 = vmatmul.bf16.gmra.mxu0 %v154
  %v200 = vpop.f32.mrf.mxu0
  %v201 = vadd.f32 0.0, %v200
  %v202 = vpop.f32.mrf.mxu0
  %v203 = vadd.f32 0.0, %v202
  %204 = vdwg.mxu0
  %v205 = vadd.f32 %v35, %v166
  %v206 = vadd.f32 %v36, %v168
  %v207 = vadd.f32 %v37, %v171
  %v208 = vadd.f32 %v38, %v173
  %v209 = vadd.f32 %v39, %v176
  %v210 = vadd.f32 %v40, %v178
  %v211 = vadd.f32 %v41, %v181
  %v212 = vadd.f32 %v42, %v183
  %v213 = vadd.f32 %v43, %v186
  %v214 = vadd.f32 %v44, %v188
  %v215 = vadd.f32 %v45, %v191
  %v216 = vadd.f32 %v46, %v193
  %v217 = vadd.f32 %v47, %v196
  %v218 = vadd.f32 %v48, %v198
  %v219 = vadd.f32 %v49, %v201
  %v220 = vadd.f32 %v50, %v203
  %221 = vst [vmem:[#allocation2] sm:$0xff] %v205
  %222 = vst [vmem:[#allocation2 + $0x8] sm:$0xff] %v206
  %223 = vst [vmem:[#allocation2 + $0x10] sm:$0xff] %v207
  %224 = vst [vmem:[#allocation2 + $0x18] sm:$0xff] %v208
  %225 = vst [vmem:[#allocation2 + $0x20] sm:$0xff] %v209
  %226 = vst [vmem:[#allocation2 + $0x28] sm:$0xff] %v210
  %227 = vst [vmem:[#allocation2 + $0x30] sm:$0xff] %v211
  %228 = vst [vmem:[#allocation2 + $0x38] sm:$0xff] %v212
  %229 = vst [vmem:[#allocation2 + $0x40] sm:$0xff] %v213
  %230 = vst [vmem:[#allocation2 + $0x48] sm:$0xff] %v214
  %231 = vst [vmem:[#allocation2 + $0x50] sm:$0xff] %v215
  %232 = vst [vmem:[#allocation2 + $0x58] sm:$0xff] %v216
  %233 = vst [vmem:[#allocation2 + $0x60] sm:$0xff] %v217
  %234 = vst [vmem:[#allocation2 + $0x68] sm:$0xff] %v218
  %235 = vst [vmem:[#allocation2 + $0x70] sm:$0xff] %v219
  %236 = vst [vmem:[#allocation2 + $0x78] sm:$0xff] %v220
  // Predicated region
  $region18: #{discriminator_forward.6} parent=0 // pred_check
    %p237 = pneg %p15
  $region19: #{discriminator_forward.6} parent=0 // pred_check_branch
    %239 = sbr.rel (%p237) target = $region21
  $region20: #{discriminator_forward.6} parent=0 // pred_region
    %v240 = vld [vmem:[#allocation2] sm:$0xff]
    %v241 = vld [vmem:[#allocation2 + $0x8] sm:$0xff]
    %v242 = vld [vmem:[#allocation2 + $0x10] sm:$0xff]
    %v243 = vld [vmem:[#allocation2 + $0x18] sm:$0xff]
    %v244 = vld [vmem:[#allocation2 + $0x20] sm:$0xff]
    %v245 = vld [vmem:[#allocation2 + $0x28] sm:$0xff]
    %v246 = vld [vmem:[#allocation2 + $0x30] sm:$0xff]
    %v247 = vld [vmem:[#allocation2 + $0x38] sm:$0xff]
    %v248 = vld [vmem:[#allocation2 + $0x40] sm:$0xff]
    %v249 = vld [vmem:[#allocation2 + $0x48] sm:$0xff]
    %v250 = vld [vmem:[#allocation2 + $0x50] sm:$0xff]
    %v251 = vld [vmem:[#allocation2 + $0x58] sm:$0xff]
    %v252 = vld [vmem:[#allocation2 + $0x60] sm:$0xff]
    %v253 = vld [vmem:[#allocation2 + $0x68] sm:$0xff]
    %v254 = vld [vmem:[#allocation2 + $0x70] sm:$0xff]
    %v255 = vld [vmem:[#allocation2 + $0x78] sm:$0xff]
    %v256 = vld [vmem:[%s2] sm:$0x1]
    %v258 = vperm.slane %v256, 0
    %v260 = vadd.f32 %v240, %v258
    %v261 = vadd.f32 %v241, %v258
    %v262 = vadd.f32 %v242, %v258
    %v263 = vadd.f32 %v243, %v258
    %v264 = vadd.f32 %v244, %v258
    %v265 = vadd.f32 %v245, %v258
    %v266 = vadd.f32 %v246, %v258
    %v267 = vadd.f32 %v247, %v258
    %v268 = vadd.f32 %v248, %v258
    %v269 = vadd.f32 %v249, %v258
    %v270 = vadd.f32 %v250, %v258
    %v271 = vadd.f32 %v251, %v258
    %v272 = vadd.f32 %v252, %v258
    %v273 = vadd.f32 %v253, %v258
    %v274 = vadd.f32 %v254, %v258
    %v275 = vadd.f32 %v255, %v258
    %vm276 = vcmp.ge.f32.partialorder %v260, 0.0
    %vm277 = vcmp.ge.f32.partialorder %v261, 0.0
    %vm278 = vcmp.ge.f32.partialorder %v262, 0.0
    %vm279 = vcmp.ge.f32.partialorder %v263, 0.0
    %vm280 = vcmp.ge.f32.partialorder %v264, 0.0
    %vm281 = vcmp.ge.f32.partialorder %v265, 0.0
    %vm282 = vcmp.ge.f32.partialorder %v266, 0.0
    %vm283 = vcmp.ge.f32.partialorder %v267, 0.0
    %vm284 = vcmp.ge.f32.partialorder %v268, 0.0
    %vm285 = vcmp.ge.f32.partialorder %v269, 0.0
    %vm286 = vcmp.ge.f32.partialorder %v270, 0.0
    %vm287 = vcmp.ge.f32.partialorder %v271, 0.0
    %vm288 = vcmp.ge.f32.partialorder %v272, 0.0
    %vm289 = vcmp.ge.f32.partialorder %v273, 0.0
    %vm290 = vcmp.ge.f32.partialorder %v274, 0.0
    %vm291 = vcmp.ge.f32.partialorder %v275, 0.0
    %v292 = vmul.f32 %v260, 0.2
    %v293 = vmul.f32 %v261, 0.2
    %v294 = vmul.f32 %v262, 0.2
    %v295 = vmul.f32 %v263, 0.2
    %v296 = vmul.f32 %v264, 0.2
    %v297 = vmul.f32 %v265, 0.2
    %v298 = vmul.f32 %v266, 0.2
    %v299 = vmul.f32 %v267, 0.2
    %v300 = vmul.f32 %v268, 0.2
    %v301 = vmul.f32 %v269, 0.2
    %v302 = vmul.f32 %v270, 0.2
    %v303 = vmul.f32 %v271, 0.2
    %v304 = vmul.f32 %v272, 0.2
    %v305 = vmul.f32 %v273, 0.2
    %v306 = vmul.f32 %v274, 0.2
    %v307 = vmul.f32 %v275, 0.2
    %v308 = vsel %vm276, %v260, %v292
    %v309 = vsel %vm277, %v261, %v293
    %v310 = vsel %vm278, %v262, %v294
    %v311 = vsel %vm279, %v263, %v295
    %v312 = vsel %vm280, %v264, %v296
    %v313 = vsel %vm281, %v265, %v297
    %v314 = vsel %vm282, %v266, %v298
    %v315 = vsel %vm283, %v267, %v299
    %v316 = vsel %vm284, %v268, %v300
    %v317 = vsel %vm285, %v269, %v301
    %v318 = vsel %vm286, %v270, %v302
    %v319 = vsel %vm287, %v271, %v303
    %v320 = vsel %vm288, %v272, %v304
    %v321 = vsel %vm289, %v273, %v305
    %v322 = vsel %vm290, %v274, %v306
    %v323 = vsel %vm291, %v275, %v307
    %v324 = vpack.c.bf16 %v308, %v308
    %v325 = vpack.c.bf16 %v309, %v309
    %v326 = vpack.c.bf16 %v310, %v310
    %v327 = vpack.c.bf16 %v311, %v311
    %v328 = vpack.c.bf16 %v312, %v312
    %v329 = vpack.c.bf16 %v313, %v313
    %v330 = vpack.c.bf16 %v314, %v314
    %v331 = vpack.c.bf16 %v315, %v315
    %v332 = vpack.c.bf16 %v316, %v316
    %v333 = vpack.c.bf16 %v317, %v317
    %v334 = vpack.c.bf16 %v318, %v318
    %v335 = vpack.c.bf16 %v319, %v319
    %v336 = vpack.c.bf16 %v320, %v320
    %v337 = vpack.c.bf16 %v321, %v321
    %v338 = vpack.c.bf16 %v322, %v322
    %v339 = vpack.c.bf16 %v323, %v323
    %340 = vst [vmem:[%s3] sm:$0xf] %v324
    %341 = vst [vmem:[%s3 + $0x4] sm:$0xf] %v325
    %342 = vst [vmem:[%s3 + $0x8] sm:$0xf] %v326
    %343 = vst [vmem:[%s3 + $0xc] sm:$0xf] %v327
    %344 = vst [vmem:[%s3 + $0x10] sm:$0xf] %v328
    %345 = vst [vmem:[%s3 + $0x14] sm:$0xf] %v329
    %346 = vst [vmem:[%s3 + $0x18] sm:$0xf] %v330
    %347 = vst [vmem:[%s3 + $0x1c] sm:$0xf] %v331
    %348 = vst [vmem:[%s3 + $0x20] sm:$0xf] %v332
    %349 = vst [vmem:[%s3 + $0x24] sm:$0xf] %v333
    %350 = vst [vmem:[%s3 + $0x28] sm:$0xf] %v334
    %351 = vst [vmem:[%s3 + $0x2c] sm:$0xf] %v335
    %352 = vst [vmem:[%s3 + $0x30] sm:$0xf] %v336
    %353 = vst [vmem:[%s3 + $0x34] sm:$0xf] %v337
    %354 = vst [vmem:[%s3 + $0x38] sm:$0xf] %v338
    %355 = vst [vmem:[%s3 + $0x3c] sm:$0xf] %v339
  $region21: #{discriminator_forward.6} parent=0 // pred_fallthru
    _
  // Predicated region
  $region22: #{discriminator_forward.6} parent=0 // pred_check
    _
  $region23: #{discriminator_forward.6} parent=0 // pred_check_branch
    %357 = sbr.rel (0) target = $region25
  $region24: #{discriminator_forward.6} parent=0 // pred_region
    _
  $region25: #{discriminator_forward.6} parent=0 // pred_fallthru
    _
  // Predicated region
  $region26: #{discriminator_forward.6} parent=0 // pred_check
    _
  $region27: #{discriminator_forward.6} parent=0 // pred_check_branch
    %359 = sbr.rel (0) target = $region29
  $region28: #{discriminator_forward.6} parent=0 // pred_region
    _
  $region29: #{discriminator_forward.6} parent=0 // pred_fallthru
    _

// kernel: discriminator_forward.8
$region0: #{discriminator_forward.8}
  #allocation0 [shape = 'u32[]', space=smem, size = 0x4, offset = 0x4, fixed_abs, tag = 'smem constant byte address 0x4 - core index']
  #allocation1 [shape = 'u32[72,128]{1,0:T(1,128)}', space=vmem, size = 0x9000, scoped, tag = 'internal scratch']
  %s0 = inlined_call_operand.vmem [shape: bf16[2,16,128], index: 0, kind: input, shape index: {}]
  %s1 = inlined_call_operand.vmem [shape: bf16[2,16,128], index: 1, kind: output, shape index: {}]
  %s2 = sld [smem:[#allocation0]]
  $region37: #{discriminator_forward.8} parent=0
    _
  %s4 = ssub.s32 1, %s2
  %s5 = scalar_select 0, %s4, %s2
  loop: start=0, step=1, limit=4
  $region2: #{discriminator_forward.8} parent=0 // loop_pre_header
    _
  $region3: #{discriminator_forward.8} parent=0 // loop_header
    %s7 = sphi 0, %s11
    %p8 = scmp.ge.s32.totalorder %s7, 4
    %s17 = sphi 0, %s19
    %s20 = sphi 0, %s17
    %s21 = sphi 0, %s20
    %s37 = sphi 0, %s21
    %s43 = sphi 0, %s45
    %s46 = sphi 0, %s43
    %s47 = sphi 0, %s46
    %s63 = sphi 0, %s47
  $region4: #{discriminator_forward.8} parent=0 // loop_header_branch
    %10 = sbr.rel (%p8) target = $region8
  $region5: #{discriminator_forward.8} parent=0 // loop_body
    %s12 = ssub.s32 %s7, 1
    %s13 = ssub.s32 %s7, 2
    %s14 = sadd.s32 %s7, 1
    %s15 = ssub.s32 %s7, %s14
    %p16 = scmp.eq.s32.totalorder %s15, 0
    %s18 = sadd.s32 %s17, 1
    %s19 = scalar_select %p16, %s17, %s18
    %p22 = pneg %p16
    %p23 = scmp.eq.s32.totalorder %s7, 1
    %p24 = por %p22, %p23
    %p25 = scmp.ne.s32.totalorder %s17, %s20
    %p26 = scmp.eq.s32.totalorder %s7, 0
    %p27 = por %p25, %p26
    %p28 = scmp.ne.s32.totalorder %s17, %s20
    %p29 = scmp.eq.s32.totalorder %s12, 1
    %p30 = por %p28, %p29
    %p31 = scmp.ne.s32.totalorder %s20, %s21
    %p32 = scmp.eq.s32.totalorder %s12, 0
    %p33 = por %p31, %p32
    %p34 = scmp.ne.s32.totalorder %s20, %s21
    %p35 = scmp.eq.s32.totalorder %s13, 1
    %p36 = por %p34, %p35
    %p38 = scmp.ne.s32.totalorder %s21, %s37
    %p39 = scmp.eq.s32.totalorder %s13, 0
    %p40 = por %p38, %p39
    %s41 = ssub.s32 %s7, %s14
    %p42 = scmp.eq.s32.totalorder %s41, 0
    %s44 = sadd.s32 %s43, 1
    %s45 = scalar_select %p42, %s43, %s44
    %p48 = pneg %p42
    %p49 = scmp.eq.s32.totalorder %s7, 1
    %p50 = por %p48, %p49
    %p51 = scmp.ne.s32.totalorder %s43, %s46
    %p52 = scmp.eq.s32.totalorder %s7, 0
    %p53 = por %p51, %p52
    %p54 = scmp.ne.s32.totalorder %s43, %s46
    %p55 = scmp.eq.s32.totalorder %s12, 1
    %p56 = por %p54, %p55
    %p57 = scmp.ne.s32.totalorder %s46, %s47
    %p58 = scmp.eq.s32.totalorder %s12, 0
    %p59 = por %p57, %p58
    %p60 = scmp.ne.s32.totalorder %s46, %s47
    %p61 = scmp.eq.s32.totalorder %s13, 1
    %p62 = por %p60, %p61
    %p64 = scmp.ne.s32.totalorder %s47, %s63
    %p65 = scmp.eq.s32.totalorder %s13, 0
    %p66 = por %p64, %p65
    %p67 = scmp.le.s32.totalorder 1, %s7
    %p68 = scmp.lt.s32.totalorder %s7, 3
    %p69 = pnand %p67, %p68
    %p70 = pneg %p69
    // Predicated region
    $region9: #{discriminator_forward.8} parent=5 // pred_check
      _
    $region10: #{discriminator_forward.8} parent=5 // pred_check_branch
      %72 = sbr.rel (%p69) target = $region12
    $region11: #{discriminator_forward.8} parent=5 // pred_region
      %s73 = ssub.s32 %s7, 1
    $region12: #{discriminator_forward.8} parent=5 // pred_fallthru
      _
    %p74 = scmp.lt.s32.totalorder %s7, 2
    // Predicated region
    $region13: #{discriminator_forward.8} parent=5 // pred_check
      %p75 = pneg %p74
    $region14: #{discriminator_forward.8} parent=5 // pred_check_branch
      %77 = sbr.rel (%p75) target = $region16
    $region15: #{discriminator_forward.8} parent=5 // pred_region
      // Predicated region
      $region17: #{discriminator_forward.8} parent=15 // pred_check
        %p78 = pneg %p27
      $region18: #{discriminator_forward.8} parent=15 // pred_check_branch
        %80 = sbr.rel (%p78) target = $region20
      $region19: #{discriminator_forward.8} parent=15 // pred_region
        %p81 = scmp.lt.s32.totalorder %s7, 1
        %s82 = scalar_select %p81, %s7, 1
        %s83 = smul.addr %s82, 2
        %s84 = smul.addr %s83, 4
        %s85 = scalar_lea.vmem %s0, %s84
      $region20: #{discriminator_forward.8} parent=15 // pred_fallthru
        _
    $region16: #{discriminator_forward.8} parent=5 // pred_fallthru
      _
    %p86 = scmp.le.s32.totalorder 1, %s7
    %p87 = scmp.lt.s32.totalorder %s7, 3
    %p88 = pnand %p86, %p87
    %p89 = pneg %p88
    // Predicated region
    $region21: #{discriminator_forward.8} parent=5 // pred_check
      _
    $region22: #{discriminator_forward.8} parent=5 // pred_check_branch
      %91 = sbr.rel (%p88) target = $region24
    $region23: #{discriminator_forward.8} parent=5 // pred_region
      %s92 = ssub.s32 %s7, 1
      %p93 = scmp.lt.s32.totalorder %s12, 1
      %s94 = scalar_select %p93, %s12, 1
      %s95 = smul.addr %s94, 2
      %s96 = smul.addr %s95, 4
      %s97 = scalar_lea.vmem %s0, %s96
      %p98 = pneg %p33
      %p99 = pneg %p30
      %p100 = pneg %p59
      %p101 = pneg %p56
      %p102 = scmp.lt.s32.totalorder %s12, 1
      %s103 = scalar_select %p102, %s12, 1
      %s104 = smul.addr %s103, 2
      %s105 = smul.addr %s104, 4
      %s106 = scalar_lea.vmem %s1, %s105
      %p107 = scmp.lt.s32.totalorder %s12, 1
      %s108 = scalar_select %p107, %s12, 1
      %s109 = smul.addr %s108, 2
      %s110 = smul.addr %s109, 4
      %s111 = scalar_lea.vmem %s0, %s110
      %p112 = scmp.lt.s32.totalorder %s12, 1
      %s113 = scalar_select %p112, %s12, 1
      %s114 = smul.addr %s113, 2
      %s115 = smul.addr %s114, 4
      %s116 = scalar_lea.vmem %s1, %s115
      %v117 = vld [vmem:[%s111] sm:$0xf]
      %v118 = vld [vmem:[%s111 + $0x4] sm:$0xf]
      %v119 = vunpack.c.l.bf16 %v117
      %v120 = vunpack.c.l.bf16 %v118
      %v121 = vadd.f32 %v119, %v120
      %v122 = vrot.slane %v121, 4
      %v123 = vadd.f32 %v121, %v122
      %v124 = vrot.slane %v123, 2
      %v125 = vadd.f32 %v123, %v124
      %v126 = vrot.slane %v125, 1
      %v127 = vadd.f32 %v125, %v126
      %v128 = vrcp.pop 16.0
      %v129 = vmul.f32 16.0, %v128
      %v130 = vsub.f32 1.0, %v129
      %v131 = vmul.f32 %v128, %v130
      %v132 = vadd.f32 %v128, %v131
      %vm133 = vweird.f32 %v128
      %v134 = vsel %vm133, %v128, %v132
      %v135 = vmul.f32 %v127, %v134
      %v136 = vsub.f32 %v119, %v135
      %v137 = vsub.f32 %v120, %v135
      %v138 = vmul.f32 %v136, %v136
      %v139 = vmul.f32 %v137, %v137
      %v140 = vadd.f32 %v138, %v139
      %v141 = vrot.slane %v140, 4
      %v142 = vadd.f32 %v140, %v141
      %v143 = vrot.slane %v142, 2
      %v144 = vadd.f32 %v142, %v143
      %v145 = vrot.slane %v144, 1
      %v146 = vadd.f32 %v144, %v145
      %v147 = vmul.f32 %v146, %v134
      %v148 = vadd.f32 %v147, 1e-05
      %v149 = vrsqrt.pop %v148
      %v150 = vmul.f32 %v149, %v148
      %v151 = vmul.f32 %v150, %v149
      %v152 = vmul.f32 0.5, %v151
      %v153 = vsub.f32 1.5, %v152
      %v154 = vmul.f32 %v149, %v153
      %vm155 = vweird.f32 %v148
      %vm156 = vweird.f32 %v149
      %vm157 = vmor %vm155, %vm156
      %v158 = vsel %vm157, %v149, %v154
      %v159 = vmul.f32 %v136, %v158
      %v160 = vmul.f32 %v137, %v158
      %vm161 = vcmp.ge.f32.partialorder %v159, 0.0
      %vm162 = vcmp.ge.f32.partialorder %v160, 0.0
      %v163 = vmul.f32 %v159, 0.2
      %v164 = vmul.f32 %v160, 0.2
      %v165 = vsel %vm161, %v159, %v163
      %v166 = vsel %vm162, %v160, %v164
      %v167 = vpack.c.bf16 %v165, %v165
      %v168 = vpack.c.bf16 %v166, %v166
      %169 = vst [vmem:[%s116] sm:$0xf] %v167
      %170 = vst [vmem:[%s116 + $0x4] sm:$0xf] %v168
      %p171 = scmp.lt.s32.totalorder %s12, 1
      %s172 = scalar_select %p171, %s12, 1
      %s173 = smul.addr %s172, 2
      %s174 = smul.addr %s173, 4
      %s175 = scalar_lea.vmem %s1, %s174
      // Predicated region
      $region25: #{discriminator_forward.8} parent=23 // pred_check
        %p176 = pneg %p56
      $region26: #{discriminator_forward.8} parent=23 // pred_check_branch
        %178 = sbr.rel (%p176) target = $region28
      $region27: #{discriminator_forward.8} parent=23 // pred_region
        _
      $region28: #{discriminator_forward.8} parent=23 // pred_fallthru
        _
    $region24: #{discriminator_forward.8} parent=5 // pred_fallthru
      _
    %p179 = scmp.le.s32.totalorder 2, %s7
    // Predicated region
    $region29: #{discriminator_forward.8} parent=5 // pred_check
      %p180 = pneg %p179
    $region30: #{discriminator_forward.8} parent=5 // pred_check_branch
      %182 = sbr.rel (%p180) target = $region32
    $region31: #{discriminator_forward.8} parent=5 // pred_region
      %s183 = ssub.s32 %s7, 2
      // Predicated region
      $region33: #{discriminator_forward.8} parent=31 // pred_check
        %p184 = pneg %p62
      $region34: #{discriminator_forward.8} parent=31 // pred_check_branch
        %186 = sbr.rel (%p184) target = $region36
      $region35: #{discriminator_forward.8} parent=31 // pred_region
        %p187 = scmp.lt.s32.totalorder %s13, 1
        %s188 = scalar_select %p187, %s13, 1
        %s189 = smul.addr %s188, 2
        %s190 = smul.addr %s189, 4
        %s191 = scalar_lea.vmem %s1, %s190
      $region36: #{discriminator_forward.8} parent=31 // pred_fallthru
        _
    $region32: #{discriminator_forward.8} parent=5 // pred_fallthru
      _
  $region6: #{discriminator_forward.8} parent=0 // loop_footer
    %s11 = sadd.s32 1, %s7
  $region7: #{discriminator_forward.8} parent=0 // loop_footer_branch
    %6 = sbr.rel target = $region3
  $region8: #{discriminator_forward.8} parent=0 // loop_exit
    _

// kernel: discriminator_forward.7
$region0: #{discriminator_forward.7}
  #allocation0 [shape = 'u32[]', space=smem, size = 0x4, offset = 0x4, fixed_abs, tag = 'smem constant byte address 0x4 - core index']
  #allocation1 [shape = 'u32[72,128]{1,0:T(1,128)}', space=vmem, size = 0x9000, scoped, tag = 'internal scratch']
  #allocation2 [shape = 'f32[32,128]{1,0:T(8,128)}', space=vmem, size = 0x4000, scoped, tag = 'scratch operand']
  %s0 = inlined_call_operand.vmem [shape: bf16[32,1024], index: 0, kind: input, shape index: {}]
  %s1 = inlined_call_operand.vmem [shape: bf16[1024,128], index: 1, kind: input, shape index: {}]
  %s2 = inlined_call_operand.vmem [shape: f32[1,128], index: 2, kind: input, shape index: {}]
  %s3 = inlined_call_operand.vmem [shape: bf16[32,128], index: 3, kind: output, shape index: {}]
  %s4 = sld [smem:[#allocation0]]
  $region30: #{discriminator_forward.7} parent=0
    _
  %s6 = ssub.s32 1, %s4
  %s7 = scalar_select 0, %s6, %s4
  // Predicated region
  $region2: #{discriminator_forward.7} parent=0 // pred_check
    _
  $region3: #{discriminator_forward.7} parent=0 // pred_check_branch
    %9 = sbr.rel (0) target = $region5
  $region4: #{discriminator_forward.7} parent=0 // pred_region
    _
  $region5: #{discriminator_forward.7} parent=0 // pred_fallthru
    _
  // Predicated region
  $region6: #{discriminator_forward.7} parent=0 // pred_check
    _
  $region7: #{discriminator_forward.7} parent=0 // pred_check_branch
    %11 = sbr.rel (0) target = $region9
  $region8: #{discriminator_forward.7} parent=0 // pred_region
    _
  $region9: #{discriminator_forward.7} parent=0 // pred_fallthru
    _
  // Predicated region
  $region10: #{discriminator_forward.7} parent=0 // pred_check
    _
  $region11: #{discriminator_forward.7} parent=0 // pred_check_branch
    %13 = sbr.rel (0) target = $region13
  $region12: #{discriminator_forward.7} parent=0 // pred_region
    _
  $region13: #{discriminator_forward.7} parent=0 // pred_fallthru
    _
  %p14 = scmp.eq.s32.totalorder 0, 0
  // Predicated region
  $region14: #{discriminator_forward.7} parent=0 // pred_check
    %p15 = pneg %p14
  $region15: #{discriminator_forward.7} parent=0 // pred_check_branch
    %17 = sbr.rel (%p15) target = $region17
  $region16: #{discriminator_forward.7} parent=0 // pred_region
    %18 = vst [vmem:[#allocation2] sm:$0xff] 0.0
    %19 = vst [vmem:[#allocation2 + $0x8] sm:$0xff] 0.0
    %20 = vst [vmem:[#allocation2 + $0x10] sm:$0xff] 0.0
    %21 = vst [vmem:[#allocation2 + $0x18] sm:$0xff] 0.0
  $region17: #{discriminator_forward.7} parent=0 // pred_fallthru
    _
  %v22 = vld [vmem:[#allocation2] sm:$0xff]
  %v23 = vld [vmem:[#allocation2 + $0x8] sm:$0xff]
  %v24 = vld [vmem:[#allocation2 + $0x10] sm:$0xff]
  %v25 = vld [vmem:[#allocation2 + $0x18] sm:$0xff]
  %v26 = vld [vmem:[%s0] sm:$0xff]
  %v27 = vld [vmem:[%s0 + $0x8] sm:$0xff]
  %v28 = vld [vmem:[%s0 + $0x10] sm:$0xff]
  %v29 = vld [vmem:[%s0 + $0x18] sm:$0xff]
  %v30 = vld [vmem:[%s0 + $0x20] sm:$0xff]
  %v31 = vld [vmem:[%s0 + $0x28] sm:$0xff]
  %v32 = vld [vmem:[%s0 + $0x30] sm:$0xff]
  %v33 = vld [vmem:[%s0 + $0x38] sm:$0xff]
  %v34 = vld [vmem:[%s0 + $0x40] sm:$0xff]
  %v35 = vld [vmem:[%s0 + $0x48] sm:$0xff]
  %v36 = vld [vmem:[%s0 + $0x50] sm:$0xff]
  %v37 = vld [vmem:[%s0 + $0x58] sm:$0xff]
  %v38 = vld [vmem:[%s0 + $0x60] sm:$0xff]
  %v39 = vld [vmem:[%s0 + $0x68] sm:$0xff]
  %v40 = vld [vmem:[%s0 + $0x70] sm:$0xff]
  %v41 = vld [vmem:[%s0 + $0x78] sm:$0xff]
  %v42 = vld [vmem:[%s1] sm:$0xf]
  %v43 = vld [vmem:[%s1 + $0x4] sm:$0xf]
  %v44 = vld [vmem:[%s1 + $0x8] sm:$0xf]
  %v45 = vld [vmem:[%s1 + $0xc] sm:$0xf]
  %v46 = vld [vmem:[%s1 + $0x10] sm:$0xf]
  %v47 = vld [vmem:[%s1 + $0x14] sm:$0xf]
  %v48 = vld [vmem:[%s1 + $0x18] sm:$0xf]
  %v49 = vld [vmem:[%s1 + $0x1c] sm:$0xf]
  %v50 = vld [vmem:[%s1 + $0x20] sm:$0xf]
  %v51 = vld [vmem:[%s1 + $0x24] sm:$0xf]
  %v52 = vld [vmem:[%s1 + $0x28] sm:$0xf]
  %v53 = vld [vmem:[%s1 + $0x2c] sm:$0xf]
  %v54 = vld [vmem:[%s1 + $0x30] sm:$0xf]
  %v55 = vld [vmem:[%s1 + $0x34] sm:$0xf]
  %v56 = vld [vmem:[%s1 + $0x38] sm:$0xf]
  %v57 = vld [vmem:[%s1 + $0x3c] sm:$0xf]
  %v58 = vld [vmem:[%s1 + $0x40] sm:$0xf]
  %v59 = vld [vmem:[%s1 + $0x44] sm:$0xf]
  %v60 = vld [vmem:[%s1 + $0x48] sm:$0xf]
  %v61 = vld [vmem:[%s1 + $0x4c] sm:$0xf]
  %v62 = vld [vmem:[%s1 + $0x50] sm:$0xf]
  %v63 = vld [vmem:[%s1 + $0x54] sm:$0xf]
  %v64 = vld [vmem:[%s1 + $0x58] sm:$0xf]
  %v65 = vld [vmem:[%s1 + $0x5c] sm:$0xf]
  %v66 = vld [vmem:[%s1 + $0x60] sm:$0xf]
  %v67 = vld [vmem:[%s1 + $0x64] sm:$0xf]
  %v68 = vld [vmem:[%s1 + $0x68] sm:$0xf]
  %v69 = vld [vmem:[%s1 + $0x6c] sm:$0xf]
  %v70 = vld [vmem:[%s1 + $0x70] sm:$0xf]
  %v71 = vld [vmem:[%s1 + $0x74] sm:$0xf]
  %v72 = vld [vmem:[%s1 + $0x78] sm:$0xf]
  %v73 = vld [vmem:[%s1 + $0x7c] sm:$0xf]
  %v74 = vld [vmem:[%s1 + $0x80] sm:$0xf]
  %v75 = vld [vmem:[%s1 + $0x84] sm:$0xf]
  %v76 = vld [vmem:[%s1 + $0x88] sm:$0xf]
  %v77 = vld [vmem:[%s1 + $0x8c] sm:$0xf]
  %v78 = vld [vmem:[%s1 + $0x90] sm:$0xf]
  %v79 = vld [vmem:[%s1 + $0x94] sm:$0xf]
  %v80 = vld [vmem:[%s1 + $0x98] sm:$0xf]
  %v81 = vld [vmem:[%s1 + $0x9c] sm:$0xf]
  %v82 = vld [vmem:[%s1 + $0xa0] sm:$0xf]
  %v83 = vld [vmem:[%s1 + $0xa4] sm:$0xf]
  %v84 = vld [vmem:[%s1 + $0xa8] sm:$0xf]
  %v85 = vld [vmem:[%s1 + $0xac] sm:$0xf]
  %v86 = vld [vmem:[%s1 + $0xb0] sm:$0xf]
  %v87 = vld [vmem:[%s1 + $0xb4] sm:$0xf]
  %v88 = vld [vmem:[%s1 + $0xb8] sm:$0xf]
  %v89 = vld [vmem:[%s1 + $0xbc] sm:$0xf]
  %v90 = vld [vmem:[%s1 + $0xc0] sm:$0xf]
  %v91 = vld [vmem:[%s1 + $0xc4] sm:$0xf]
  %v92 = vld [vmem:[%s1 + $0xc8] sm:$0xf]
  %v93 = vld [vmem:[%s1 + $0xcc] sm:$0xf]
  %v94 = vld [vmem:[%s1 + $0xd0] sm:$0xf]
  %v95 = vld [vmem:[%s1 + $0xd4] sm:$0xf]
  %v96 = vld [vmem:[%s1 + $0xd8] sm:$0xf]
  %v97 = vld [vmem:[%s1 + $0xdc] sm:$0xf]
  %v98 = vld [vmem:[%s1 + $0xe0] sm:$0xf]
  %v99 = vld [vmem:[%s1 + $0xe4] sm:$0xf]
  %v100 = vld [vmem:[%s1 + $0xe8] sm:$0xf]
  %v101 = vld [vmem:[%s1 + $0xec] sm:$0xf]
  %v102 = vld [vmem:[%s1 + $0xf0] sm:$0xf]
  %v103 = vld [vmem:[%s1 + $0xf4] sm:$0xf]
  %v104 = vld [vmem:[%s1 + $0xf8] sm:$0xf]
  %v105 = vld [vmem:[%s1 + $0xfc] sm:$0xf]
  %v106 = vld [vmem:[%s1 + $0x100] sm:$0xf]
  %v107 = vld [vmem:[%s1 + $0x104] sm:$0xf]
  %v108 = vld [vmem:[%s1 + $0x108] sm:$0xf]
  %v109 = vld [vmem:[%s1 + $0x10c] sm:$0xf]
  %v110 = vld [vmem:[%s1 + $0x110] sm:$0xf]
  %v111 = vld [vmem:[%s1 + $0x114] sm:$0xf]
  %v112 = vld [vmem:[%s1 + $0x118] sm:$0xf]
  %v113 = vld [vmem:[%s1 + $0x11c] sm:$0xf]
  %v114 = vld [vmem:[%s1 + $0x120] sm:$0xf]
  %v115 = vld [vmem:[%s1 + $0x124] sm:$0xf]
  %v116 = vld [vmem:[%s1 + $0x128] sm:$0xf]
  %v117 = vld [vmem:[%s1 + $0x12c] sm:$0xf]
  %v118 = vld [vmem:[%s1 + $0x130] sm:$0xf]
  %v119 = vld [vmem:[%s1 + $0x134] sm:$0xf]
  %v120 = vld [vmem:[%s1 + $0x138] sm:$0xf]
  %v121 = vld [vmem:[%s1 + $0x13c] sm:$0xf]
  %v122 = vld [vmem:[%s1 + $0x140] sm:$0xf]
  %v123 = vld [vmem:[%s1 + $0x144] sm:$0xf]
  %v124 = vld [vmem:[%s1 + $0x148] sm:$0xf]
  %v125 = vld [vmem:[%s1 + $0x14c] sm:$0xf]
  %v126 = vld [vmem:[%s1 + $0x150] sm:$0xf]
  %v127 = vld [vmem:[%s1 + $0x154] sm:$0xf]
  %v128 = vld [vmem:[%s1 + $0x158] sm:$0xf]
  %v129 = vld [vmem:[%s1 + $0x15c] sm:$0xf]
  %v130 = vld [vmem:[%s1 + $0x160] sm:$0xf]
  %v131 = vld [vmem:[%s1 + $0x164] sm:$0xf]
  %v132 = vld [vmem:[%s1 + $0x168] sm:$0xf]
  %v133 = vld [vmem:[%s1 + $0x16c] sm:$0xf]
  %v134 = vld [vmem:[%s1 + $0x170] sm:$0xf]
  %v135 = vld [vmem:[%s1 + $0x174] sm:$0xf]
  %v136 = vld [vmem:[%s1 + $0x178] sm:$0xf]
  %v137 = vld [vmem:[%s1 + $0x17c] sm:$0xf]
  %v138 = vld [vmem:[%s1 + $0x180] sm:$0xf]
  %v139 = vld [vmem:[%s1 + $0x184] sm:$0xf]
  %v140 = vld [vmem:[%s1 + $0x188] sm:$0xf]
  %v141 = vld [vmem:[%s1 + $0x18c] sm:$0xf]
  %v142 = vld [vmem:[%s1 + $0x190] sm:$0xf]
  %v143 = vld [vmem:[%s1 + $0x194] sm:$0xf]
  %v144 = vld [vmem:[%s1 + $0x198] sm:$0xf]
  %v145 = vld [vmem:[%s1 + $0x19c] sm:$0xf]
  %v146 = vld [vmem:[%s1 + $0x1a0] sm:$0xf]
  %v147 = vld [vmem:[%s1 + $0x1a4] sm:$0xf]
  %v148 = vld [vmem:[%s1 + $0x1a8] sm:$0xf]
  %v149 = vld [vmem:[%s1 + $0x1ac] sm:$0xf]
  %v150 = vld [vmem:[%s1 + $0x1b0] sm:$0xf]
  %v151 = vld [vmem:[%s1 + $0x1b4] sm:$0xf]
  %v152 = vld [vmem:[%s1 + $0x1b8] sm:$0xf]
  %v153 = vld [vmem:[%s1 + $0x1bc] sm:$0xf]
  %v154 = vld [vmem:[%s1 + $0x1c0] sm:$0xf]
  %v155 = vld [vmem:[%s1 + $0x1c4] sm:$0xf]
  %v156 = vld [vmem:[%s1 + $0x1c8] sm:$0xf]
  %v157 = vld [vmem:[%s1 + $0x1cc] sm:$0xf]
  %v158 = vld [vmem:[%s1 + $0x1d0] sm:$0xf]
  %v159 = vld [vmem:[%s1 + $0x1d4] sm:$0xf]
  %v160 = vld [vmem:[%s1 + $0x1d8] sm:$0xf]
  %v161 = vld [vmem:[%s1 + $0x1dc] sm:$0xf]
  %v162 = vld [vmem:[%s1 + $0x1e0] sm:$0xf]
  %v163 = vld [vmem:[%s1 + $0x1e4] sm:$0xf]
  %v164 = vld [vmem:[%s1 + $0x1e8] sm:$0xf]
  %v165 = vld [vmem:[%s1 + $0x1ec] sm:$0xf]
  %v166 = vld [vmem:[%s1 + $0x1f0] sm:$0xf]
  %v167 = vld [vmem:[%s1 + $0x1f4] sm:$0xf]
  %v168 = vld [vmem:[%s1 + $0x1f8] sm:$0xf]
  %v169 = vld [vmem:[%s1 + $0x1fc] sm:$0xf]
  %v186 = vunpack.c.l.b16 %v26
  %v187 = vunpack.c.h.b16 %v26
  %v188 = vunpack.c.l.b16 %v27
  %v189 = vunpack.c.h.b16 %v27
  %v190 = vunpack.c.l.b16 %v28
  %v191 = vunpack.c.h.b16 %v28
  %v192 = vunpack.c.l.b16 %v29
  %v193 = vunpack.c.h.b16 %v29
  %v194 = vunpack.c.l.b16 %v30
  %v195 = vunpack.c.h.b16 %v30
  %v196 = vunpack.c.l.b16 %v31
  %v197 = vunpack.c.h.b16 %v31
  %v198 = vunpack.c.l.b16 %v32
  %v199 = vunpack.c.h.b16 %v32
  %v200 = vunpack.c.l.b16 %v33
  %v201 = vunpack.c.h.b16 %v33
  %v202 = vunpack.c.l.b16 %v34
  %v203 = vunpack.c.h.b16 %v34
  %v204 = vunpack.c.l.b16 %v35
  %v205 = vunpack.c.h.b16 %v35
  %v206 = vunpack.c.l.b16 %v36
  %v207 = vunpack.c.h.b16 %v36
  %v208 = vunpack.c.l.b16 %v37
  %v209 = vunpack.c.h.b16 %v37
  %v210 = vunpack.c.l.b16 %v38
  %v211 = vunpack.c.h.b16 %v38
  %v212 = vunpack.c.l.b16 %v39
  %v213 = vunpack.c.h.b16 %v39
  %v214 = vunpack.c.l.b16 %v40
  %v215 = vunpack.c.h.b16 %v40
  %v216 = vunpack.c.l.b16 %v41
  %v217 = vunpack.c.h.b16 %v41
  %v218 = vpack.c.b16 %v194, %v186
  %v219 = vpack.c.b16 %v195, %v187
  %v220 = vpack.c.b16 %v196, %v188
  %v221 = vpack.c.b16 %v197, %v189
  %v222 = vpack.c.b16 %v198, %v190
  %v223 = vpack.c.b16 %v199, %v191
  %v224 = vpack.c.b16 %v200, %v192
  %v225 = vpack.c.b16 %v201, %v193
  %v226 = vpack.c.b16 %v210, %v202
  %v227 = vpack.c.b16 %v211, %v203
  %v228 = vpack.c.b16 %v212, %v204
  %v229 = vpack.c.b16 %v213, %v205
  %v230 = vpack.c.b16 %v214, %v206
  %v231 = vpack.c.b16 %v215, %v207
  %v232 = vpack.c.b16 %v216, %v208
  %v233 = vpack.c.b16 %v217, %v209
  %v378 = vunpack.c.l.b16 %v42
  %v379 = vunpack.c.l.b16 %v43
  %v380 = vunpack.c.l.b16 %v44
  %v381 = vunpack.c.l.b16 %v45
  %v382 = vunpack.c.l.b16 %v46
  %v383 = vunpack.c.l.b16 %v47
  %v384 = vunpack.c.l.b16 %v48
  %v385 = vunpack.c.l.b16 %v49
  %v386 = vunpack.c.l.b16 %v50
  %v387 = vunpack.c.l.b16 %v51
  %v388 = vunpack.c.l.b16 %v52
  %v389 = vunpack.c.l.b16 %v53
  %v390 = vunpack.c.l.b16 %v54
  %v391 = vunpack.c.l.b16 %v55
  %v392 = vunpack.c.l.b16 %v56
  %v393 = vunpack.c.l.b16 %v57
  %v394 = vunpack.c.l.b16 %v58
  %v395 = vunpack.c.l.b16 %v59
  %v396 = vunpack.c.l.b16 %v60
  %v397 = vunpack.c.l.b16 %v61
  %v398 = vunpack.c.l.b16 %v62
  %v399 = vunpack.c.l.b16 %v63
  %v400 = vunpack.c.l.b16 %v64
  %v401 = vunpack.c.l.b16 %v65
  %v402 = vunpack.c.l.b16 %v66
  %v403 = vunpack.c.l.b16 %v67
  %v404 = vunpack.c.l.b16 %v68
  %v405 = vunpack.c.l.b16 %v69
  %v406 = vunpack.c.l.b16 %v70
  %v407 = vunpack.c.l.b16 %v71
  %v408 = vunpack.c.l.b16 %v72
  %v409 = vunpack.c.l.b16 %v73
  %v410 = vunpack.c.l.b16 %v74
  %v411 = vunpack.c.l.b16 %v75
  %v412 = vunpack.c.l.b16 %v76
  %v413 = vunpack.c.l.b16 %v77
  %v414 = vunpack.c.l.b16 %v78
  %v415 = vunpack.c.l.b16 %v79
  %v416 = vunpack.c.l.b16 %v80
  %v417 = vunpack.c.l.b16 %v81
  %v418 = vunpack.c.l.b16 %v82
  %v419 = vunpack.c.l.b16 %v83
  %v420 = vunpack.c.l.b16 %v84
  %v421 = vunpack.c.l.b16 %v85
  %v422 = vunpack.c.l.b16 %v86
  %v423 = vunpack.c.l.b16 %v87
  %v424 = vunpack.c.l.b16 %v88
  %v425 = vunpack.c.l.b16 %v89
  %v426 = vunpack.c.l.b16 %v90
  %v427 = vunpack.c.l.b16 %v91
  %v428 = vunpack.c.l.b16 %v92
  %v429 = vunpack.c.l.b16 %v93
  %v430 = vunpack.c.l.b16 %v94
  %v431 = vunpack.c.l.b16 %v95
  %v432 = vunpack.c.l.b16 %v96
  %v433 = vunpack.c.l.b16 %v97
  %v434 = vunpack.c.l.b16 %v98
  %v435 = vunpack.c.l.b16 %v99
  %v436 = vunpack.c.l.b16 %v100
  %v437 = vunpack.c.l.b16 %v101
  %v438 = vunpack.c.l.b16 %v102
  %v439 = vunpack.c.l.b16 %v103
  %v440 = vunpack.c.l.b16 %v104
  %v441 = vunpack.c.l.b16 %v105
  %v442 = vunpack.c.l.b16 %v106
  %v443 = vunpack.c.l.b16 %v107
  %v444 = vunpack.c.l.b16 %v108
  %v445 = vunpack.c.l.b16 %v109
  %v446 = vunpack.c.l.b16 %v110
  %v447 = vunpack.c.l.b16 %v111
  %v448 = vunpack.c.l.b16 %v112
  %v449 = vunpack.c.l.b16 %v113
  %v450 = vunpack.c.l.b16 %v114
  %v451 = vunpack.c.l.b16 %v115
  %v452 = vunpack.c.l.b16 %v116
  %v453 = vunpack.c.l.b16 %v117
  %v454 = vunpack.c.l.b16 %v118
  %v455 = vunpack.c.l.b16 %v119
  %v456 = vunpack.c.l.b16 %v120
  %v457 = vunpack.c.l.b16 %v121
  %v458 = vunpack.c.l.b16 %v122
  %v459 = vunpack.c.l.b16 %v123
  %v460 = vunpack.c.l.b16 %v124
  %v461 = vunpack.c.l.b16 %v125
  %v462 = vunpack.c.l.b16 %v126
  %v463 = vunpack.c.l.b16 %v127
  %v464 = vunpack.c.l.b16 %v128
  %v465 = vunpack.c.l.b16 %v129
  %v466 = vunpack.c.l.b16 %v130
  %v467 = vunpack.c.l.b16 %v131
  %v468 = vunpack.c.l.b16 %v132
  %v469 = vunpack.c.l.b16 %v133
  %v470 = vunpack.c.l.b16 %v134
  %v471 = vunpack.c.l.b16 %v135
  %v472 = vunpack.c.l.b16 %v136
  %v473 = vunpack.c.l.b16 %v137
  %v474 = vunpack.c.l.b16 %v138
  %v475 = vunpack.c.l.b16 %v139
  %v476 = vunpack.c.l.b16 %v140
  %v477 = vunpack.c.l.b16 %v141
  %v478 = vunpack.c.l.b16 %v142
  %v479 = vunpack.c.l.b16 %v143
  %v480 = vunpack.c.l.b16 %v144
  %v481 = vunpack.c.l.b16 %v145
  %v482 = vunpack.c.l.b16 %v146
  %v483 = vunpack.c.l.b16 %v147
  %v484 = vunpack.c.l.b16 %v148
  %v485 = vunpack.c.l.b16 %v149
  %v486 = vunpack.c.l.b16 %v150
  %v487 = vunpack.c.l.b16 %v151
  %v488 = vunpack.c.l.b16 %v152
  %v489 = vunpack.c.l.b16 %v153
  %v490 = vunpack.c.l.b16 %v154
  %v491 = vunpack.c.l.b16 %v155
  %v492 = vunpack.c.l.b16 %v156
  %v493 = vunpack.c.l.b16 %v157
  %v494 = vunpack.c.l.b16 %v158
  %v495 = vunpack.c.l.b16 %v159
  %v496 = vunpack.c.l.b16 %v160
  %v497 = vunpack.c.l.b16 %v161
  %v498 = vunpack.c.l.b16 %v162
  %v499 = vunpack.c.l.b16 %v163
  %v500 = vunpack.c.l.b16 %v164
  %v501 = vunpack.c.l.b16 %v165
  %v502 = vunpack.c.l.b16 %v166
  %v503 = vunpack.c.l.b16 %v167
  %v504 = vunpack.c.l.b16 %v168
  %v505 = vunpack.c.l.b16 %v169
  %v506 = vpack.c.b16 %v379, %v378
  %v507 = vpack.c.b16 %v381, %v380
  %v508 = vpack.c.b16 %v383, %v382
  %v509 = vpack.c.b16 %v385, %v384
  %v510 = vpack.c.b16 %v387, %v386
  %v511 = vpack.c.b16 %v389, %v388
  %v512 = vpack.c.b16 %v391, %v390
  %v513 = vpack.c.b16 %v393, %v392
  %v514 = vpack.c.b16 %v395, %v394
  %v515 = vpack.c.b16 %v397, %v396
  %v516 = vpack.c.b16 %v399, %v398
  %v517 = vpack.c.b16 %v401, %v400
  %v518 = vpack.c.b16 %v403, %v402
  %v519 = vpack.c.b16 %v405, %v404
  %v520 = vpack.c.b16 %v407, %v406
  %v521 = vpack.c.b16 %v409, %v408
  %v522 = vpack.c.b16 %v411, %v410
  %v523 = vpack.c.b16 %v413, %v412
  %v524 = vpack.c.b16 %v415, %v414
  %v525 = vpack.c.b16 %v417, %v416
  %v526 = vpack.c.b16 %v419, %v418
  %v527 = vpack.c.b16 %v421, %v420
  %v528 = vpack.c.b16 %v423, %v422
  %v529 = vpack.c.b16 %v425, %v424
  %v530 = vpack.c.b16 %v427, %v426
  %v531 = vpack.c.b16 %v429, %v428
  %v532 = vpack.c.b16 %v431, %v430
  %v533 = vpack.c.b16 %v433, %v432
  %v534 = vpack.c.b16 %v435, %v434
  %v535 = vpack.c.b16 %v437, %v436
  %v536 = vpack.c.b16 %v439, %v438
  %v537 = vpack.c.b16 %v441, %v440
  %v538 = vpack.c.b16 %v443, %v442
  %v539 = vpack.c.b16 %v445, %v444
  %v540 = vpack.c.b16 %v447, %v446
  %v541 = vpack.c.b16 %v449, %v448
  %v542 = vpack.c.b16 %v451, %v450
  %v543 = vpack.c.b16 %v453, %v452
  %v544 = vpack.c.b16 %v455, %v454
  %v545 = vpack.c.b16 %v457, %v456
  %v546 = vpack.c.b16 %v459, %v458
  %v547 = vpack.c.b16 %v461, %v460
  %v548 = vpack.c.b16 %v463, %v462
  %v549 = vpack.c.b16 %v465, %v464
  %v550 = vpack.c.b16 %v467, %v466
  %v551 = vpack.c.b16 %v469, %v468
  %v552 = vpack.c.b16 %v471, %v470
  %v553 = vpack.c.b16 %v473, %v472
  %v554 = vpack.c.b16 %v475, %v474
  %v555 = vpack.c.b16 %v477, %v476
  %v556 = vpack.c.b16 %v479, %v478
  %v557 = vpack.c.b16 %v481, %v480
  %v558 = vpack.c.b16 %v483, %v482
  %v559 = vpack.c.b16 %v485, %v484
  %v560 = vpack.c.b16 %v487, %v486
  %v561 = vpack.c.b16 %v489, %v488
  %v562 = vpack.c.b16 %v491, %v490
  %v563 = vpack.c.b16 %v493, %v492
  %v564 = vpack.c.b16 %v495, %v494
  %v565 = vpack.c.b16 %v497, %v496
  %v566 = vpack.c.b16 %v499, %v498
  %v567 = vpack.c.b16 %v501, %v500
  %v568 = vpack.c.b16 %v503, %v502
  %v569 = vpack.c.b16 %v505, %v504
  %634 = vmatpush.bf16.msra.mxu0 %v513
  %635 = vmatpush.bf16.msra.mxu0 %v512
  %636 = vmatpush.bf16.msra.mxu0 %v511
  %637 = vmatpush.bf16.msra.mxu0 %v510
  %638 = vmatpush.bf16.msra.mxu0 %v509
  %639 = vmatpush.bf16.msra.mxu0 %v508
  %640 = vmatpush.bf16.msra.mxu0 %v507
  %641 = vmatpush.bf16.msra.mxu0 %v506
  %642 = vmatmul.bf16.gmra.mxu0 %v218
  %v643 = vpop.f32.mrf.mxu0
  %v644 = vadd.f32 0.0, %v643
  %v645 = vpop.f32.mrf.mxu0
  %v646 = vadd.f32 0.0, %v645
  %647 = vmatmul.bf16.gmra.mxu0 %v226
  %v648 = vpop.f32.mrf.mxu0
  %v649 = vadd.f32 0.0, %v648
  %v650 = vpop.f32.mrf.mxu0
  %v651 = vadd.f32 0.0, %v650
  %652 = vdwg.mxu0
  %653 = vmatpush.bf16.msra.mxu0 %v521
  %654 = vmatpush.bf16.msra.mxu0 %v520
  %655 = vmatpush.bf16.msra.mxu0 %v519
  %656 = vmatpush.bf16.msra.mxu0 %v518
  %657 = vmatpush.bf16.msra.mxu0 %v517
  %658 = vmatpush.bf16.msra.mxu0 %v516
  %659 = vmatpush.bf16.msra.mxu0 %v515
  %660 = vmatpush.bf16.msra.mxu0 %v514
  %661 = vmatmul.bf16.gmra.mxu0 %v219
  %v662 = vpop.f32.mrf.mxu0
  %v663 = vadd.f32 %v644, %v662
  %v664 = vpop.f32.mrf.mxu0
  %v665 = vadd.f32 %v646, %v664
  %666 = vmatmul.bf16.gmra.mxu0 %v227
  %v667 = vpop.f32.mrf.mxu0
  %v668 = vadd.f32 %v649, %v667
  %v669 = vpop.f32.mrf.mxu0
  %v670 = vadd.f32 %v651, %v669
  %671 = vdwg.mxu0
  %672 = vmatpush.bf16.msra.mxu0 %v529
  %673 = vmatpush.bf16.msra.mxu0 %v528
  %674 = vmatpush.bf16.msra.mxu0 %v527
  %675 = vmatpush.bf16.msra.mxu0 %v526
  %676 = vmatpush.bf16.msra.mxu0 %v525
  %677 = vmatpush.bf16.msra.mxu0 %v524
  %678 = vmatpush.bf16.msra.mxu0 %v523
  %679 = vmatpush.bf16.msra.mxu0 %v522
  %680 = vmatmul.bf16.gmra.mxu0 %v220
  %v681 = vpop.f32.mrf.mxu0
  %v682 = vadd.f32 %v663, %v681
  %v683 = vpop.f32.mrf.mxu0
  %v684 = vadd.f32 %v665, %v683
  %685 = vmatmul.bf16.gmra.mxu0 %v228
  %v686 = vpop.f32.mrf.mxu0
  %v687 = vadd.f32 %v668, %v686
  %v688 = vpop.f32.mrf.mxu0
  %v689 = vadd.f32 %v670, %v688
  %690 = vdwg.mxu0
  %691 = vmatpush.bf16.msra.mxu0 %v537
  %692 = vmatpush.bf16.msra.mxu0 %v536
  %693 = vmatpush.bf16.msra.mxu0 %v535
  %694 = vmatpush.bf16.msra.mxu0 %v534
  %695 = vmatpush.bf16.msra.mxu0 %v533
  %696 = vmatpush.bf16.msra.mxu0 %v532
  %697 = vmatpush.bf16.msra.mxu0 %v531
  %698 = vmatpush.bf16.msra.mxu0 %v530
  %699 = vmatmul.bf16.gmra.mxu0 %v221
  %v700 = vpop.f32.mrf.mxu0
  %v701 = vadd.f32 %v682, %v700
  %v702 = vpop.f32.mrf.mxu0
  %v703 = vadd.f32 %v684, %v702
  %704 = vmatmul.bf16.gmra.mxu0 %v229
  %v705 = vpop.f32.mrf.mxu0
  %v706 = vadd.f32 %v687, %v705
  %v707 = vpop.f32.mrf.mxu0
  %v708 = vadd.f32 %v689, %v707
  %709 = vdwg.mxu0
  %710 = vmatpush.bf16.msra.mxu0 %v545
  %711 = vmatpush.bf16.msra.mxu0 %v544
  %712 = vmatpush.bf16.msra.mxu0 %v543
  %713 = vmatpush.bf16.msra.mxu0 %v542
  %714 = vmatpush.bf16.msra.mxu0 %v541
  %715 = vmatpush.bf16.msra.mxu0 %v540
  %716 = vmatpush.bf16.msra.mxu0 %v539
  %717 = vmatpush.bf16.msra.mxu0 %v538
  %718 = vmatmul.bf16.gmra.mxu0 %v222
  %v719 = vpop.f32.mrf.mxu0
  %v720 = vadd.f32 %v701, %v719
  %v721 = vpop.f32.mrf.mxu0
  %v722 = vadd.f32 %v703, %v721
  %723 = vmatmul.bf16.gmra.mxu0 %v230
  %v724 = vpop.f32.mrf.mxu0
  %v725 = vadd.f32 %v706, %v724
  %v726 = vpop.f32.mrf.mxu0
  %v727 = vadd.f32 %v708, %v726
  %728 = vdwg.mxu0
  %729 = vmatpush.bf16.msra.mxu0 %v553
  %730 = vmatpush.bf16.msra.mxu0 %v552
  %731 = vmatpush.bf16.msra.mxu0 %v551
  %732 = vmatpush.bf16.msra.mxu0 %v550
  %733 = vmatpush.bf16.msra.mxu0 %v549
  %734 = vmatpush.bf16.msra.mxu0 %v548
  %735 = vmatpush.bf16.msra.mxu0 %v547
  %736 = vmatpush.bf16.msra.mxu0 %v546
  %737 = vmatmul.bf16.gmra.mxu0 %v223
  %v738 = vpop.f32.mrf.mxu0
  %v739 = vadd.f32 %v720, %v738
  %v740 = vpop.f32.mrf.mxu0
  %v741 = vadd.f32 %v722, %v740
  %742 = vmatmul.bf16.gmra.mxu0 %v231
  %v743 = vpop.f32.mrf.mxu0
  %v744 = vadd.f32 %v725, %v743
  %v745 = vpop.f32.mrf.mxu0
  %v746 = vadd.f32 %v727, %v745
  %747 = vdwg.mxu0
  %748 = vmatpush.bf16.msra.mxu0 %v561
  %749 = vmatpush.bf16.msra.mxu0 %v560
  %750 = vmatpush.bf16.msra.mxu0 %v559
  %751 = vmatpush.bf16.msra.mxu0 %v558
  %752 = vmatpush.bf16.msra.mxu0 %v557
  %753 = vmatpush.bf16.msra.mxu0 %v556
  %754 = vmatpush.bf16.msra.mxu0 %v555
  %755 = vmatpush.bf16.msra.mxu0 %v554
  %756 = vmatmul.bf16.gmra.mxu0 %v224
  %v757 = vpop.f32.mrf.mxu0
  %v758 = vadd.f32 %v739, %v757
  %v759 = vpop.f32.mrf.mxu0
  %v760 = vadd.f32 %v741, %v759
  %761 = vmatmul.bf16.gmra.mxu0 %v232
  %v762 = vpop.f32.mrf.mxu0
  %v763 = vadd.f32 %v744, %v762
  %v764 = vpop.f32.mrf.mxu0
  %v765 = vadd.f32 %v746, %v764
  %766 = vdwg.mxu0
  %767 = vmatpush.bf16.msra.mxu0 %v569
  %768 = vmatpush.bf16.msra.mxu0 %v568
  %769 = vmatpush.bf16.msra.mxu0 %v567
  %770 = vmatpush.bf16.msra.mxu0 %v566
  %771 = vmatpush.bf16.msra.mxu0 %v565
  %772 = vmatpush.bf16.msra.mxu0 %v564
  %773 = vmatpush.bf16.msra.mxu0 %v563
  %774 = vmatpush.bf16.msra.mxu0 %v562
  %775 = vmatmul.bf16.gmra.mxu0 %v225
  %v776 = vpop.f32.mrf.mxu0
  %v777 = vadd.f32 %v758, %v776
  %v778 = vpop.f32.mrf.mxu0
  %v779 = vadd.f32 %v760, %v778
  %780 = vmatmul.bf16.gmra.mxu0 %v233
  %v781 = vpop.f32.mrf.mxu0
  %v782 = vadd.f32 %v763, %v781
  %v783 = vpop.f32.mrf.mxu0
  %v784 = vadd.f32 %v765, %v783
  %785 = vdwg.mxu0
  %v786 = vadd.f32 %v22, %v777
  %v787 = vadd.f32 %v23, %v779
  %v788 = vadd.f32 %v24, %v782
  %v789 = vadd.f32 %v25, %v784
  %790 = vst [vmem:[#allocation2] sm:$0xff] %v786
  %791 = vst [vmem:[#allocation2 + $0x8] sm:$0xff] %v787
  %792 = vst [vmem:[#allocation2 + $0x10] sm:$0xff] %v788
  %793 = vst [vmem:[#allocation2 + $0x18] sm:$0xff] %v789
  // Predicated region
  $region18: #{discriminator_forward.7} parent=0 // pred_check
    %p794 = pneg %p14
  $region19: #{discriminator_forward.7} parent=0 // pred_check_branch
    %796 = sbr.rel (%p794) target = $region21
  $region20: #{discriminator_forward.7} parent=0 // pred_region
    %v797 = vld [vmem:[#allocation2] sm:$0xff]
    %v798 = vld [vmem:[#allocation2 + $0x8] sm:$0xff]
    %v799 = vld [vmem:[#allocation2 + $0x10] sm:$0xff]
    %v800 = vld [vmem:[#allocation2 + $0x18] sm:$0xff]
    %v801 = vld [vmem:[%s2] sm:$0x1]
    %v803 = vperm.slane %v801, 0
    %v805 = vadd.f32 %v797, %v803
    %v806 = vadd.f32 %v798, %v803
    %v807 = vadd.f32 %v799, %v803
    %v808 = vadd.f32 %v800, %v803
    %v809 = vpack.c.bf16 %v805, %v805
    %v810 = vpack.c.bf16 %v806, %v806
    %v811 = vpack.c.bf16 %v807, %v807
    %v812 = vpack.c.bf16 %v808, %v808
    %813 = vst [vmem:[%s3] sm:$0xf] %v809
    %814 = vst [vmem:[%s3 + $0x4] sm:$0xf] %v810
    %815 = vst [vmem:[%s3 + $0x8] sm:$0xf] %v811
    %816 = vst [vmem:[%s3 + $0xc] sm:$0xf] %v812
  $region21: #{discriminator_forward.7} parent=0 // pred_fallthru
    _
  // Predicated region
  $region22: #{discriminator_forward.7} parent=0 // pred_check
    _
  $region23: #{discriminator_forward.7} parent=0 // pred_check_branch
    %818 = sbr.rel (0) target = $region25
  $region24: #{discriminator_forward.7} parent=0 // pred_region
    _
  $region25: #{discriminator_forward.7} parent=0 // pred_fallthru
    _
  // Predicated region
  $region26: #{discriminator_forward.7} parent=0 // pred_check
    _
  $region27: #{discriminator_forward.7} parent=0 // pred_check_branch
    %820 = sbr.rel (0) target = $region29
  $region28: #{discriminator_forward.7} parent=0 // pred_region
    _
  $region29: #{discriminator_forward.7} parent=0 // pred_fallthru
    _

// kernel: discriminator_forward.10
$region0: #{discriminator_forward.10}
  #allocation0 [shape = 'u32[]', space=smem, size = 0x4, offset = 0x4, fixed_abs, tag = 'smem constant byte address 0x4 - core index']
  #allocation1 [shape = 'u32[72,128]{1,0:T(1,128)}', space=vmem, size = 0x9000, scoped, tag = 'internal scratch']
  %s0 = inlined_call_operand.vmem [shape: bf16[2,4,256], index: 0, kind: input, shape index: {}]
  %s1 = inlined_call_operand.vmem [shape: bf16[2,4,256], index: 1, kind: output, shape index: {}]
  %s2 = sld [smem:[#allocation0]]
  $region37: #{discriminator_forward.10} parent=0
    _
  %s4 = ssub.s32 1, %s2
  %s5 = scalar_select 0, %s4, %s2
  loop: start=0, step=1, limit=4
  $region2: #{discriminator_forward.10} parent=0 // loop_pre_header
    _
  $region3: #{discriminator_forward.10} parent=0 // loop_header
    %s7 = sphi 0, %s11
    %p8 = scmp.ge.s32.totalorder %s7, 4
    %s17 = sphi 0, %s19
    %s20 = sphi 0, %s17
    %s21 = sphi 0, %s20
    %s37 = sphi 0, %s21
    %s43 = sphi 0, %s45
    %s46 = sphi 0, %s43
    %s47 = sphi 0, %s46
    %s63 = sphi 0, %s47
  $region4: #{discriminator_forward.10} parent=0 // loop_header_branch
    %10 = sbr.rel (%p8) target = $region8
  $region5: #{discriminator_forward.10} parent=0 // loop_body
    %s12 = ssub.s32 %s7, 1
    %s13 = ssub.s32 %s7, 2
    %s14 = sadd.s32 %s7, 1
    %s15 = ssub.s32 %s7, %s14
    %p16 = scmp.eq.s32.totalorder %s15, 0
    %s18 = sadd.s32 %s17, 1
    %s19 = scalar_select %p16, %s17, %s18
    %p22 = pneg %p16
    %p23 = scmp.eq.s32.totalorder %s7, 1
    %p24 = por %p22, %p23
    %p25 = scmp.ne.s32.totalorder %s17, %s20
    %p26 = scmp.eq.s32.totalorder %s7, 0
    %p27 = por %p25, %p26
    %p28 = scmp.ne.s32.totalorder %s17, %s20
    %p29 = scmp.eq.s32.totalorder %s12, 1
    %p30 = por %p28, %p29
    %p31 = scmp.ne.s32.totalorder %s20, %s21
    %p32 = scmp.eq.s32.totalorder %s12, 0
    %p33 = por %p31, %p32
    %p34 = scmp.ne.s32.totalorder %s20, %s21
    %p35 = scmp.eq.s32.totalorder %s13, 1
    %p36 = por %p34, %p35
    %p38 = scmp.ne.s32.totalorder %s21, %s37
    %p39 = scmp.eq.s32.totalorder %s13, 0
    %p40 = por %p38, %p39
    %s41 = ssub.s32 %s7, %s14
    %p42 = scmp.eq.s32.totalorder %s41, 0
    %s44 = sadd.s32 %s43, 1
    %s45 = scalar_select %p42, %s43, %s44
    %p48 = pneg %p42
    %p49 = scmp.eq.s32.totalorder %s7, 1
    %p50 = por %p48, %p49
    %p51 = scmp.ne.s32.totalorder %s43, %s46
    %p52 = scmp.eq.s32.totalorder %s7, 0
    %p53 = por %p51, %p52
    %p54 = scmp.ne.s32.totalorder %s43, %s46
    %p55 = scmp.eq.s32.totalorder %s12, 1
    %p56 = por %p54, %p55
    %p57 = scmp.ne.s32.totalorder %s46, %s47
    %p58 = scmp.eq.s32.totalorder %s12, 0
    %p59 = por %p57, %p58
    %p60 = scmp.ne.s32.totalorder %s46, %s47
    %p61 = scmp.eq.s32.totalorder %s13, 1
    %p62 = por %p60, %p61
    %p64 = scmp.ne.s32.totalorder %s47, %s63
    %p65 = scmp.eq.s32.totalorder %s13, 0
    %p66 = por %p64, %p65
    %p67 = scmp.le.s32.totalorder 1, %s7
    %p68 = scmp.lt.s32.totalorder %s7, 3
    %p69 = pnand %p67, %p68
    %p70 = pneg %p69
    // Predicated region
    $region9: #{discriminator_forward.10} parent=5 // pred_check
      _
    $region10: #{discriminator_forward.10} parent=5 // pred_check_branch
      %72 = sbr.rel (%p69) target = $region12
    $region11: #{discriminator_forward.10} parent=5 // pred_region
      %s73 = ssub.s32 %s7, 1
    $region12: #{discriminator_forward.10} parent=5 // pred_fallthru
      _
    %p74 = scmp.lt.s32.totalorder %s7, 2
    // Predicated region
    $region13: #{discriminator_forward.10} parent=5 // pred_check
      %p75 = pneg %p74
    $region14: #{discriminator_forward.10} parent=5 // pred_check_branch
      %77 = sbr.rel (%p75) target = $region16
    $region15: #{discriminator_forward.10} parent=5 // pred_region
      // Predicated region
      $region17: #{discriminator_forward.10} parent=15 // pred_check
        %p78 = pneg %p27
      $region18: #{discriminator_forward.10} parent=15 // pred_check_branch
        %80 = sbr.rel (%p78) target = $region20
      $region19: #{discriminator_forward.10} parent=15 // pred_region
        %p81 = scmp.lt.s32.totalorder %s7, 1
        %s82 = scalar_select %p81, %s7, 1
        %s83 = smul.addr %s82, 2
        %s84 = smul.addr %s83, 2
        %s85 = scalar_lea.vmem %s0, %s84
      $region20: #{discriminator_forward.10} parent=15 // pred_fallthru
        _
    $region16: #{discriminator_forward.10} parent=5 // pred_fallthru
      _
    %p86 = scmp.le.s32.totalorder 1, %s7
    %p87 = scmp.lt.s32.totalorder %s7, 3
    %p88 = pnand %p86, %p87
    %p89 = pneg %p88
    // Predicated region
    $region21: #{discriminator_forward.10} parent=5 // pred_check
      _
    $region22: #{discriminator_forward.10} parent=5 // pred_check_branch
      %91 = sbr.rel (%p88) target = $region24
    $region23: #{discriminator_forward.10} parent=5 // pred_region
      %s92 = ssub.s32 %s7, 1
      %p93 = scmp.lt.s32.totalorder %s12, 1
      %s94 = scalar_select %p93, %s12, 1
      %s95 = smul.addr %s94, 2
      %s96 = smul.addr %s95, 2
      %s97 = scalar_lea.vmem %s0, %s96
      %p98 = pneg %p33
      %p99 = pneg %p30
      %p100 = pneg %p59
      %p101 = pneg %p56
      %p102 = scmp.lt.s32.totalorder %s12, 1
      %s103 = scalar_select %p102, %s12, 1
      %s104 = smul.addr %s103, 2
      %s105 = smul.addr %s104, 2
      %s106 = scalar_lea.vmem %s1, %s105
      %p107 = scmp.lt.s32.totalorder %s12, 1
      %s108 = scalar_select %p107, %s12, 1
      %s109 = smul.addr %s108, 2
      %s110 = smul.addr %s109, 2
      %s111 = scalar_lea.vmem %s0, %s110
      %p112 = scmp.lt.s32.totalorder %s12, 1
      %s113 = scalar_select %p112, %s12, 1
      %s114 = smul.addr %s113, 2
      %s115 = smul.addr %s114, 2
      %s116 = scalar_lea.vmem %s1, %s115
      %v117 = vld [vmem:[%s111] sm:$0xf]
      %v118 = vunpack.c.l.bf16 %v117
      %120 = vst [vmem:[#allocation1] ss:$2 sm:$0xff] %v118
      %v121 = vld.sshfl [vmem:[#allocation1] sm:$0xff pattern:$0x75316420]
      %v122 = vld.sshfl [vmem:[#allocation1 + $0x8] sm:$0xff pattern:$0x75316420]
      %vm125 = vcmask 1043456
      %v126 = vsel %vm125, %v121, 0.0
      %v127 = vrot.slane %v126, 4
      %v128 = vadd.f32 %v126, %v127
      %v129 = vrot.slane %v128, 2
      %v130 = vadd.f32 %v128, %v129
      %v131 = vrot.slane %v130, 1
      %v132 = vadd.f32 %v130, %v131
      %v133 = vsel %vm125, %v122, 0.0
      %v134 = vrot.slane %v133, 4
      %v135 = vadd.f32 %v133, %v134
      %v136 = vrot.slane %v135, 2
      %v137 = vadd.f32 %v135, %v136
      %v138 = vrot.slane %v137, 1
      %v139 = vadd.f32 %v137, %v138
      %v140 = vrcp.pop 4.0
      %v141 = vmul.f32 4.0, %v140
      %v142 = vsub.f32 1.0, %v141
      %v143 = vmul.f32 %v140, %v142
      %v144 = vadd.f32 %v140, %v143
      %vm145 = vweird.f32 %v140
      %v146 = vsel %vm145, %v140, %v144
      %v147 = vmul.f32 %v132, %v146
      %v148 = vmul.f32 %v139, %v146
      %v151 = vrot.slane %v148, 4
      %v152 = vsel %vm125, %v147, %v151
      %v154 = vsub.f32 %v118, %v152
      %v155 = vmul.f32 %v154, %v154
      %157 = vst [vmem:[#allocation1] ss:$2 sm:$0xff] %v155
      %v158 = vld.sshfl [vmem:[#allocation1] sm:$0xff pattern:$0x75316420]
      %v159 = vld.sshfl [vmem:[#allocation1 + $0x8] sm:$0xff pattern:$0x75316420]
      %v162 = vsel %vm125, %v158, 0.0
      %v163 = vrot.slane %v162, 4
      %v164 = vadd.f32 %v162, %v163
      %v165 = vrot.slane %v164, 2
      %v166 = vadd.f32 %v164, %v165
      %v167 = vrot.slane %v166, 1
      %v168 = vadd.f32 %v166, %v167
      %v169 = vsel %vm125, %v159, 0.0
      %v170 = vrot.slane %v169, 4
      %v171 = vadd.f32 %v169, %v170
      %v172 = vrot.slane %v171, 2
      %v173 = vadd.f32 %v171, %v172
      %v174 = vrot.slane %v173, 1
      %v175 = vadd.f32 %v173, %v174
      %v176 = vmul.f32 %v168, %v146
      %v177 = vmul.f32 %v175, %v146
      %v178 = vadd.f32 %v176, 1e-05
      %v179 = vadd.f32 %v177, 1e-05
      %v180 = vrsqrt.pop %v178
      %v181 = vmul.f32 %v180, %v178
      %v182 = vmul.f32 %v181, %v180
      %v183 = vmul.f32 0.5, %v182
      %v184 = vsub.f32 1.5, %v183
      %v185 = vmul.f32 %v180, %v184
      %vm186 = vweird.f32 %v178
      %vm187 = vweird.f32 %v180
      %vm188 = vmor %vm186, %vm187
      %v189 = vsel %vm188, %v180, %v185
      %v190 = vrsqrt.pop %v179
      %v191 = vmul.f32 %v190, %v179
      %v192 = vmul.f32 %v191, %v190
      %v193 = vmul.f32 0.5, %v192
      %v194 = vsub.f32 1.5, %v193
      %v195 = vmul.f32 %v190, %v194
      %vm196 = vweird.f32 %v179
      %vm197 = vweird.f32 %v190
      %vm198 = vmor %vm196, %vm197
      %v199 = vsel %vm198, %v190, %v195
      %v202 = vrot.slane %v199, 4
      %v203 = vsel %vm125, %v189, %v202
      %v205 = vmul.f32 %v154, %v203
      %vm206 = vcmp.ge.f32.partialorder %v205, 0.0
      %v207 = vmul.f32 %v205, 0.2
      %v208 = vsel %vm206, %v205, %v207
      %210 = vst [vmem:[#allocation1] ss:$2 sm:$0xff] %v208
      %v211 = vld.sshfl [vmem:[#allocation1] sm:$0xff pattern:$0x75316420]
      %v212 = vld.sshfl [vmem:[#allocation1 + $0x8] sm:$0xff pattern:$0x75316420]
      %v215 = vpack.c.bf16 %v212, %v211
      %v217 = vrot.slane %v215, 2
      %vm218 = vcmask 1041408
      %v221 = vsel %vm218, %v215, %v217
      %223 = vst [vmem:[%s116] sm:$0xf] %v221
      %p224 = scmp.lt.s32.totalorder %s12, 1
      %s225 = scalar_select %p224, %s12, 1
      %s226 = smul.addr %s225, 2
      %s227 = smul.addr %s226, 2
      %s228 = scalar_lea.vmem %s1, %s227
      // Predicated region
      $region25: #{discriminator_forward.10} parent=23 // pred_check
        %p229 = pneg %p56
      $region26: #{discriminator_forward.10} parent=23 // pred_check_branch
        %231 = sbr.rel (%p229) target = $region28
      $region27: #{discriminator_forward.10} parent=23 // pred_region
        _
      $region28: #{discriminator_forward.10} parent=23 // pred_fallthru
        _
    $region24: #{discriminator_forward.10} parent=5 // pred_fallthru
      _
    %p232 = scmp.le.s32.totalorder 2, %s7
    // Predicated region
    $region29: #{discriminator_forward.10} parent=5 // pred_check
      %p233 = pneg %p232
    $region30: #{discriminator_forward.10} parent=5 // pred_check_branch
      %235 = sbr.rel (%p233) target = $region32
    $region31: #{discriminator_forward.10} parent=5 // pred_region
      %s236 = ssub.s32 %s7, 2
      // Predicated region
      $region33: #{discriminator_forward.10} parent=31 // pred_check
        %p237 = pneg %p62
      $region34: #{discriminator_forward.10} parent=31 // pred_check_branch
        %239 = sbr.rel (%p237) target = $region36
      $region35: #{discriminator_forward.10} parent=31 // pred_region
        %p240 = scmp.lt.s32.totalorder %s13, 1
        %s241 = scalar_select %p240, %s13, 1
        %s242 = smul.addr %s241, 2
        %s243 = smul.addr %s242, 2
        %s244 = scalar_lea.vmem %s1, %s243
      $region36: #{discriminator_forward.10} parent=31 // pred_fallthru
        _
    $region32: #{discriminator_forward.10} parent=5 // pred_fallthru
      _
  $region6: #{discriminator_forward.10} parent=0 // loop_footer
    %s11 = sadd.s32 1, %s7
  $region7: #{discriminator_forward.10} parent=0 // loop_footer_branch
    %6 = sbr.rel target = $region3
  $region8: #{discriminator_forward.10} parent=0 // loop_exit
    _

// kernel: discriminator_forward.9
$region0: #{discriminator_forward.9}
  #allocation0 [shape = 'u32[]', space=smem, size = 0x4, offset = 0x4, fixed_abs, tag = 'smem constant byte address 0x4 - core index']
  #allocation1 [shape = 'u32[72,128]{1,0:T(1,128)}', space=vmem, size = 0x9000, scoped, tag = 'internal scratch']
  #allocation2 [shape = 'f32[16,128]{1,0:T(8,128)}', space=vmem, size = 0x2000, scoped, tag = 'scratch operand']
  %s0 = inlined_call_operand.vmem [shape: bf16[16,2048], index: 0, kind: input, shape index: {}]
  %s1 = inlined_call_operand.vmem [shape: bf16[2048,256], index: 1, kind: input, shape index: {}]
  %s2 = inlined_call_operand.vmem [shape: f32[1,256], index: 2, kind: input, shape index: {}]
  %s3 = inlined_call_operand.vmem [shape: bf16[16,256], index: 3, kind: output, shape index: {}]
  %s4 = sld [smem:[#allocation0]]
  $region142: #{discriminator_forward.9} parent=0
    _
  %s6 = ssub.s32 1, %s4
  %s7 = scalar_select 0, %s6, %s4
  $region1: #{discriminator_forward.9} parent=0
    #allocation3 [shape = 'u8[1048576]{0}', space=vmem, size = 0x100000, scoped, tag = 'input window, operand 1']
    #allocation4 [shape = 'u8[8192]{0}', space=vmem, size = 0x2000, scoped, tag = 'output window, operand 0']
    loop: start=0, step=1, limit=4
    $region2: #{discriminator_forward.9} parent=1 // loop_pre_header
      _
    $region3: #{discriminator_forward.9} parent=1 // loop_header
      %s9 = sphi 0, %s13
      %p10 = scmp.ge.s32.totalorder %s9, 4
      %s16 = sphi 0, %s35
      %s17 = sphi 0, %s31
      %s18 = sphi 0, %s27
      %s19 = sphi 0, %s16
      %s20 = sphi 0, %s17
      %s21 = sphi 0, %s18
      %s22 = sphi 0, %s19
      %s23 = sphi 0, %s20
      %s24 = sphi 0, %s21
      %s40 = sphi 0, %s42
      %s43 = sphi 0, %s40
      %s44 = sphi 0, %s43
      %s60 = sphi 0, %s44
      %s68 = sphi 0, %s70
      %s71 = sphi 0, %s68
      %s72 = sphi 0, %s71
      %s88 = sphi 0, %s72
      %s94 = sphi 0, %s96
      %s97 = sphi 0, %s94
      %s98 = sphi 0, %s97
      %s114 = sphi 0, %s98
      %s122 = sphi 0, %s124
      %s125 = sphi 0, %s122
      %s126 = sphi 0, %s125
      %s142 = sphi 0, %s126
    $region4: #{discriminator_forward.9} parent=1 // loop_header_branch
      %12 = sbr.rel (%p10) target = $region8
    $region5: #{discriminator_forward.9} parent=1 // loop_body
      %s14 = ssub.s32 %s9, 1
      %s15 = ssub.s32 %s9, 2
      %s25 = sadd.s32 1, %s18
      %p26 = scmp.ge.s32.totalorder %s25, 1
      %s27 = scalar_select %p26, 0, %s25
      %s28 = sadd.s32 1, %s17
      %s29 = scalar_select %p26, %s28, %s17
      %p30 = scmp.ge.s32.totalorder %s29, 2
      %s31 = scalar_select %p30, 0, %s29
      %s32 = sadd.s32 1, %s16
      %s33 = scalar_select %p30, %s32, %s16
      %p34 = scmp.ge.s32.totalorder %s33, 1
      %s35 = scalar_select %p34, 0, %s33
      %s36 = ssub.s32 %s16, %s35
      %s37 = ssub.s32 %s18, %s27
      %s38 = sor.u32 %s36, %s37
      %p39 = scmp.eq.s32.totalorder %s38, 0
      %s41 = sadd.s32 %s40, 1
      %s42 = scalar_select %p39, %s40, %s41
      %p45 = pneg %p39
      %p46 = scmp.eq.s32.totalorder %s9, 1
      %p47 = por %p45, %p46
      %p48 = scmp.ne.s32.totalorder %s40, %s43
      %p49 = scmp.eq.s32.totalorder %s9, 0
      %p50 = por %p48, %p49
      %p51 = scmp.ne.s32.totalorder %s40, %s43
      %p52 = scmp.eq.s32.totalorder %s14, 1
      %p53 = por %p51, %p52
      %p54 = scmp.ne.s32.totalorder %s43, %s44
      %p55 = scmp.eq.s32.totalorder %s14, 0
      %p56 = por %p54, %p55
      %p57 = scmp.ne.s32.totalorder %s43, %s44
      %p58 = scmp.eq.s32.totalorder %s15, 1
      %p59 = por %p57, %p58
      %p61 = scmp.ne.s32.totalorder %s44, %s60
      %p62 = scmp.eq.s32.totalorder %s15, 0
      %p63 = por %p61, %p62
      %s64 = ssub.s32 %s18, %s27
      %s65 = ssub.s32 %s17, %s31
      %s66 = sor.u32 %s64, %s65
      %p67 = scmp.eq.s32.totalorder %s66, 0
      %s69 = sadd.s32 %s68, 1
      %s70 = scalar_select %p67, %s68, %s69
      %p73 = pneg %p67
      %p74 = scmp.eq.s32.totalorder %s9, 1
      %p75 = por %p73, %p74
      %p76 = scmp.ne.s32.totalorder %s68, %s71
      %p77 = scmp.eq.s32.totalorder %s9, 0
      %p78 = por %p76, %p77
      %p79 = scmp.ne.s32.totalorder %s68, %s71
      %p80 = scmp.eq.s32.totalorder %s14, 1
      %p81 = por %p79, %p80
      %p82 = scmp.ne.s32.totalorder %s71, %s72
      %p83 = scmp.eq.s32.totalorder %s14, 0
      %p84 = por %p82, %p83
      %p85 = scmp.ne.s32.totalorder %s71, %s72
      %p86 = scmp.eq.s32.totalorder %s15, 1
      %p87 = por %p85, %p86
      %p89 = scmp.ne.s32.totalorder %s72, %s88
      %p90 = scmp.eq.s32.totalorder %s15, 0
      %p91 = por %p89, %p90
      %s92 = ssub.s32 %s17, %s31
      %p93 = scmp.eq.s32.totalorder %s92, 0
      %s95 = sadd.s32 %s94, 1
      %s96 = scalar_select %p93, %s94, %s95
      %p99 = pneg %p93
      %p100 = scmp.eq.s32.totalorder %s9, 1
      %p101 = por %p99, %p100
      %p102 = scmp.ne.s32.totalorder %s94, %s97
      %p103 = scmp.eq.s32.totalorder %s9, 0
      %p104 = por %p102, %p103
      %p105 = scmp.ne.s32.totalorder %s94, %s97
      %p106 = scmp.eq.s32.totalorder %s14, 1
      %p107 = por %p105, %p106
      %p108 = scmp.ne.s32.totalorder %s97, %s98
      %p109 = scmp.eq.s32.totalorder %s14, 0
      %p110 = por %p108, %p109
      %p111 = scmp.ne.s32.totalorder %s97, %s98
      %p112 = scmp.eq.s32.totalorder %s15, 1
      %p113 = por %p111, %p112
      %p115 = scmp.ne.s32.totalorder %s98, %s114
      %p116 = scmp.eq.s32.totalorder %s15, 0
      %p117 = por %p115, %p116
      %s118 = ssub.s32 %s16, %s35
      %s119 = ssub.s32 %s17, %s31
      %s120 = sor.u32 %s118, %s119
      %p121 = scmp.eq.s32.totalorder %s120, 0
      %s123 = sadd.s32 %s122, 1
      %s124 = scalar_select %p121, %s122, %s123
      %p127 = pneg %p121
      %p128 = scmp.eq.s32.totalorder %s9, 1
      %p129 = por %p127, %p128
      %p130 = scmp.ne.s32.totalorder %s122, %s125
      %p131 = scmp.eq.s32.totalorder %s9, 0
      %p132 = por %p130, %p131
      %p133 = scmp.ne.s32.totalorder %s122, %s125
      %p134 = scmp.eq.s32.totalorder %s14, 1
      %p135 = por %p133, %p134
      %p136 = scmp.ne.s32.totalorder %s125, %s126
      %p137 = scmp.eq.s32.totalorder %s14, 0
      %p138 = por %p136, %p137
      %p139 = scmp.ne.s32.totalorder %s125, %s126
      %p140 = scmp.eq.s32.totalorder %s15, 1
      %p141 = por %p139, %p140
      %p143 = scmp.ne.s32.totalorder %s126, %s142
      %p144 = scmp.eq.s32.totalorder %s15, 0
      %p145 = por %p143, %p144
      %p146 = scmp.le.s32.totalorder 1, %s9
      %p147 = scmp.lt.s32.totalorder %s9, 3
      %p148 = pnand %p146, %p147
      %p149 = pneg %p148
      // Predicated region
      $region9: #{discriminator_forward.9} parent=5 // pred_check
        _
      $region10: #{discriminator_forward.9} parent=5 // pred_check_branch
        %151 = sbr.rel (%p148) target = $region12
      $region11: #{discriminator_forward.9} parent=5 // pred_region
        %s152 = ssub.s32 %s9, 1
        // Predicated region
        $region13: #{discriminator_forward.9} parent=11 // pred_check
          %p153 = pneg %p56
        $region14: #{discriminator_forward.9} parent=11 // pred_check_branch
          %155 = sbr.rel (%p153) target = $region16
        $region15: #{discriminator_forward.9} parent=11 // pred_region
          %s156 = smul.u32 2, %s19
          %s157 = smul.u32 16, %s21
          %p158 = scmp.lt.s32.totalorder %s156, 1
          %s159 = scalar_select %p158, %s156, 1
          %p160 = scmp.lt.s32.totalorder %s157, 15
          %s161 = scalar_select %p160, %s157, 15
          %s162 = smul.addr %s159, 16
          %s163 = sadd.s32 %s161, %s162
          %s164 = smul.addr %s163, 4
          %s165 = scalar_lea.vmem %s0, %s164
          %s166 = smul.u32 2, %s19
          %s167 = smul.u32 16, %s21
        $region16: #{discriminator_forward.9} parent=11 // pred_fallthru
          _
      $region12: #{discriminator_forward.9} parent=5 // pred_fallthru
        _
      %p168 = scmp.lt.s32.totalorder %s9, 2
      // Predicated region
      $region17: #{discriminator_forward.9} parent=5 // pred_check
        %p169 = pneg %p168
      $region18: #{discriminator_forward.9} parent=5 // pred_check_branch
        %171 = sbr.rel (%p169) target = $region20
      $region19: #{discriminator_forward.9} parent=5 // pred_region
        // Predicated region
        $region21: #{discriminator_forward.9} parent=19 // pred_check
          %p172 = pneg %p78
        $region22: #{discriminator_forward.9} parent=19 // pred_check_branch
          %174 = sbr.rel (%p172) target = $region24
        $region23: #{discriminator_forward.9} parent=19 // pred_region
          %s175 = sand.u32 %s68, 1
          %s176 = sand.u32 %s68, 1
          %s177 = smul.addr %s176, 1024
          %s178 = scalar_lea.vmem [#allocation3], %s177
          %s179 = smul.u32 256, %s18
          %s180 = smul.addr %s179, 2
          %s181 = sadd.s32 %s17, %s180
          %s182 = smul.addr %s181, 4
          %s183 = scalar_lea.vmem %s1, %s182
          // Predicated region
          $region25: #{discriminator_forward.9} parent=23 // pred_check
            _
          $region26: #{discriminator_forward.9} parent=23 // pred_check_branch
            %185 = sbr.rel (0) target = $region28
          $region27: #{discriminator_forward.9} parent=23 // pred_region
            // Predicated region
            $region29: #{discriminator_forward.9} parent=27 // pred_check
              _
            $region30: #{discriminator_forward.9} parent=27 // pred_check_branch
              %187 = sbr.rel target = $region32
            $region31: #{discriminator_forward.9} parent=27 // pred_region
              // Predicated region
              $region44: #{discriminator_forward.9} parent=31 // pred_check
                _
              $region45: #{discriminator_forward.9} parent=31 // pred_check_branch
                %713 = sbr.rel target = $region47
              $region46: #{discriminator_forward.9} parent=31 // pred_region
                loop: start=0, step=1, limit=0
                $region48: #{discriminator_forward.9} parent=46 // loop_pre_header
                  _
                $region49: #{discriminator_forward.9} parent=46 // loop_header
                  %s715 = sphi 0, %s719
                  %p716 = scmp.ge.s32.totalorder %s715, 0
                  %s720 = sphi 0, %s1237
                  %s721 = sphi %s183, %s1240
                  %s722 = sphi %s178, %s1241
                $region50: #{discriminator_forward.9} parent=46 // loop_header_branch
                  %718 = sbr.rel (%p716) target = $region54
                $region51: #{discriminator_forward.9} parent=46 // loop_body
                  %v723 = vld [vmem:[%s721] sm:$0xff]
                  %724 = vst [vmem:[%s722] sm:$0xff] %v723
                  %v725 = vld [vmem:[%s721 + $0x8] sm:$0xff]
                  %726 = vst [vmem:[%s722 + $0x4] sm:$0xff] %v725
                  %v727 = vld [vmem:[%s721 + $0x10] sm:$0xff]
                  %728 = vst [vmem:[%s722 + $0x8] sm:$0xff] %v727
                  %v729 = vld [vmem:[%s721 + $0x18] sm:$0xff]
                  %730 = vst [vmem:[%s722 + $0xc] sm:$0xff] %v729
                  %v731 = vld [vmem:[%s721 + $0x20] sm:$0xff]
                  %732 = vst [vmem:[%s722 + $0x10] sm:$0xff] %v731
                  %v733 = vld [vmem:[%s721 + $0x28] sm:$0xff]
                  %734 = vst [vmem:[%s722 + $0x14] sm:$0xff] %v733
                  %v735 = vld [vmem:[%s721 + $0x30] sm:$0xff]
                  %736 = vst [vmem:[%s722 + $0x18] sm:$0xff] %v735
                  %v737 = vld [vmem:[%s721 + $0x38] sm:$0xff]
                  %738 = vst [vmem:[%s722 + $0x1c] sm:$0xff] %v737
                  %v739 = vld [vmem:[%s721 + $0x40] sm:$0xff]
                  %740 = vst [vmem:[%s722 + $0x20] sm:$0xff] %v739
                  %v741 = vld [vmem:[%s721 + $0x48] sm:$0xff]
                  %742 = vst [vmem:[%s722 + $0x24] sm:$0xff] %v741
                  %v743 = vld [vmem:[%s721 + $0x50] sm:$0xff]
                  %744 = vst [vmem:[%s722 + $0x28] sm:$0xff] %v743
                  %v745 = vld [vmem:[%s721 + $0x58] sm:$0xff]
                  %746 = vst [vmem:[%s722 + $0x2c] sm:$0xff] %v745
                  %v747 = vld [vmem:[%s721 + $0x60] sm:$0xff]
                  %748 = vst [vmem:[%s722 + $0x30] sm:$0xff] %v747
                  %v749 = vld [vmem:[%s721 + $0x68] sm:$0xff]
                  %750 = vst [vmem:[%s722 + $0x34] sm:$0xff] %v749
                  %v751 = vld [vmem:[%s721 + $0x70] sm:$0xff]
                  %752 = vst [vmem:[%s722 + $0x38] sm:$0xff] %v751
                  %v753 = vld [vmem:[%s721 + $0x78] sm:$0xff]
                  %754 = vst [vmem:[%s722 + $0x3c] sm:$0xff] %v753
                  %v755 = vld [vmem:[%s721 + $0x80] sm:$0xff]
                  %756 = vst [vmem:[%s722 + $0x40] sm:$0xff] %v755
                  %v757 = vld [vmem:[%s721 + $0x88] sm:$0xff]
                  %758 = vst [vmem:[%s722 + $0x44] sm:$0xff] %v757
                  %v759 = vld [vmem:[%s721 + $0x90] sm:$0xff]
                  %760 = vst [vmem:[%s722 + $0x48] sm:$0xff] %v759
                  %v761 = vld [vmem:[%s721 + $0x98] sm:$0xff]
                  %762 = vst [vmem:[%s722 + $0x4c] sm:$0xff] %v761
                  %v763 = vld [vmem:[%s721 + $0xa0] sm:$0xff]
                  %764 = vst [vmem:[%s722 + $0x50] sm:$0xff] %v763
                  %v765 = vld [vmem:[%s721 + $0xa8] sm:$0xff]
                  %766 = vst [vmem:[%s722 + $0x54] sm:$0xff] %v765
                  %v767 = vld [vmem:[%s721 + $0xb0] sm:$0xff]
                  %768 = vst [vmem:[%s722 + $0x58] sm:$0xff] %v767
                  %v769 = vld [vmem:[%s721 + $0xb8] sm:$0xff]
                  %770 = vst [vmem:[%s722 + $0x5c] sm:$0xff] %v769
                  %v771 = vld [vmem:[%s721 + $0xc0] sm:$0xff]
                  %772 = vst [vmem:[%s722 + $0x60] sm:$0xff] %v771
                  %v773 = vld [vmem:[%s721 + $0xc8] sm:$0xff]
                  %774 = vst [vmem:[%s722 + $0x64] sm:$0xff] %v773
                  %v775 = vld [vmem:[%s721 + $0xd0] sm:$0xff]
                  %776 = vst [vmem:[%s722 + $0x68] sm:$0xff] %v775
                  %v777 = vld [vmem:[%s721 + $0xd8] sm:$0xff]
                  %778 = vst [vmem:[%s722 + $0x6c] sm:$0xff] %v777
                  %v779 = vld [vmem:[%s721 + $0xe0] sm:$0xff]
                  %780 = vst [vmem:[%s722 + $0x70] sm:$0xff] %v779
                  %v781 = vld [vmem:[%s721 + $0xe8] sm:$0xff]
                  %782 = vst [vmem:[%s722 + $0x74] sm:$0xff] %v781
                  %v783 = vld [vmem:[%s721 + $0xf0] sm:$0xff]
                  %784 = vst [vmem:[%s722 + $0x78] sm:$0xff] %v783
                  %v785 = vld [vmem:[%s721 + $0xf8] sm:$0xff]
                  %786 = vst [vmem:[%s722 + $0x7c] sm:$0xff] %v785
                  %v787 = vld [vmem:[%s721 + $0x100] sm:$0xff]
                  %788 = vst [vmem:[%s722 + $0x80] sm:$0xff] %v787
                  %v789 = vld [vmem:[%s721 + $0x108] sm:$0xff]
                  %790 = vst [vmem:[%s722 + $0x84] sm:$0xff] %v789
                  %v791 = vld [vmem:[%s721 + $0x110] sm:$0xff]
                  %792 = vst [vmem:[%s722 + $0x88] sm:$0xff] %v791
                  %v793 = vld [vmem:[%s721 + $0x118] sm:$0xff]
                  %794 = vst [vmem:[%s722 + $0x8c] sm:$0xff] %v793
                  %v795 = vld [vmem:[%s721 + $0x120] sm:$0xff]
                  %796 = vst [vmem:[%s722 + $0x90] sm:$0xff] %v795
                  %v797 = vld [vmem:[%s721 + $0x128] sm:$0xff]
                  %798 = vst [vmem:[%s722 + $0x94] sm:$0xff] %v797
                  %v799 = vld [vmem:[%s721 + $0x130] sm:$0xff]
                  %800 = vst [vmem:[%s722 + $0x98] sm:$0xff] %v799
                  %v801 = vld [vmem:[%s721 + $0x138] sm:$0xff]
                  %802 = vst [vmem:[%s722 + $0x9c] sm:$0xff] %v801
                  %v803 = vld [vmem:[%s721 + $0x140] sm:$0xff]
                  %804 = vst [vmem:[%s722 + $0xa0] sm:$0xff] %v803
                  %v805 = vld [vmem:[%s721 + $0x148] sm:$0xff]
                  %806 = vst [vmem:[%s722 + $0xa4] sm:$0xff] %v805
                  %v807 = vld [vmem:[%s721 + $0x150] sm:$0xff]
                  %808 = vst [vmem:[%s722 + $0xa8] sm:$0xff] %v807
                  %v809 = vld [vmem:[%s721 + $0x158] sm:$0xff]
                  %810 = vst [vmem:[%s722 + $0xac] sm:$0xff] %v809
                  %v811 = vld [vmem:[%s721 + $0x160] sm:$0xff]
                  %812 = vst [vmem:[%s722 + $0xb0] sm:$0xff] %v811
                  %v813 = vld [vmem:[%s721 + $0x168] sm:$0xff]
                  %814 = vst [vmem:[%s722 + $0xb4] sm:$0xff] %v813
                  %v815 = vld [vmem:[%s721 + $0x170] sm:$0xff]
                  %816 = vst [vmem:[%s722 + $0xb8] sm:$0xff] %v815
                  %v817 = vld [vmem:[%s721 + $0x178] sm:$0xff]
                  %818 = vst [vmem:[%s722 + $0xbc] sm:$0xff] %v817
                  %v819 = vld [vmem:[%s721 + $0x180] sm:$0xff]
                  %820 = vst [vmem:[%s722 + $0xc0] sm:$0xff] %v819
                  %v821 = vld [vmem:[%s721 + $0x188] sm:$0xff]
                  %822 = vst [vmem:[%s722 + $0xc4] sm:$0xff] %v821
                  %v823 = vld [vmem:[%s721 + $0x190] sm:$0xff]
                  %824 = vst [vmem:[%s722 + $0xc8] sm:$0xff] %v823
                  %v825 = vld [vmem:[%s721 + $0x198] sm:$0xff]
                  %826 = vst [vmem:[%s722 + $0xcc] sm:$0xff] %v825
                  %v827 = vld [vmem:[%s721 + $0x1a0] sm:$0xff]
                  %828 = vst [vmem:[%s722 + $0xd0] sm:$0xff] %v827
                  %v829 = vld [vmem:[%s721 + $0x1a8] sm:$0xff]
                  %830 = vst [vmem:[%s722 + $0xd4] sm:$0xff] %v829
                  %v831 = vld [vmem:[%s721 + $0x1b0] sm:$0xff]
                  %832 = vst [vmem:[%s722 + $0xd8] sm:$0xff] %v831
                  %v833 = vld [vmem:[%s721 + $0x1b8] sm:$0xff]
                  %834 = vst [vmem:[%s722 + $0xdc] sm:$0xff] %v833
                  %v835 = vld [vmem:[%s721 + $0x1c0] sm:$0xff]
                  %836 = vst [vmem:[%s722 + $0xe0] sm:$0xff] %v835
                  %v837 = vld [vmem:[%s721 + $0x1c8] sm:$0xff]
                  %838 = vst [vmem:[%s722 + $0xe4] sm:$0xff] %v837
                  %v839 = vld [vmem:[%s721 + $0x1d0] sm:$0xff]
                  %840 = vst [vmem:[%s722 + $0xe8] sm:$0xff] %v839
                  %v841 = vld [vmem:[%s721 + $0x1d8] sm:$0xff]
                  %842 = vst [vmem:[%s722 + $0xec] sm:$0xff] %v841
                  %v843 = vld [vmem:[%s721 + $0x1e0] sm:$0xff]
                  %844 = vst [vmem:[%s722 + $0xf0] sm:$0xff] %v843
                  %v845 = vld [vmem:[%s721 + $0x1e8] sm:$0xff]
                  %846 = vst [vmem:[%s722 + $0xf4] sm:$0xff] %v845
                  %v847 = vld [vmem:[%s721 + $0x1f0] sm:$0xff]
                  %848 = vst [vmem:[%s722 + $0xf8] sm:$0xff] %v847
                  %v849 = vld [vmem:[%s721 + $0x1f8] sm:$0xff]
                  %850 = vst [vmem:[%s722 + $0xfc] sm:$0xff] %v849
                  %v851 = vld [vmem:[%s721 + $0x200] sm:$0xff]
                  %852 = vst [vmem:[%s722 + $0x100] sm:$0xff] %v851
                  %v853 = vld [vmem:[%s721 + $0x208] sm:$0xff]
                  %854 = vst [vmem:[%s722 + $0x104] sm:$0xff] %v853
                  %v855 = vld [vmem:[%s721 + $0x210] sm:$0xff]
                  %856 = vst [vmem:[%s722 + $0x108] sm:$0xff] %v855
                  %v857 = vld [vmem:[%s721 + $0x218] sm:$0xff]
                  %858 = vst [vmem:[%s722 + $0x10c] sm:$0xff] %v857
                  %v859 = vld [vmem:[%s721 + $0x220] sm:$0xff]
                  %860 = vst [vmem:[%s722 + $0x110] sm:$0xff] %v859
                  %v861 = vld [vmem:[%s721 + $0x228] sm:$0xff]
                  %862 = vst [vmem:[%s722 + $0x114] sm:$0xff] %v861
                  %v863 = vld [vmem:[%s721 + $0x230] sm:$0xff]
                  %864 = vst [vmem:[%s722 + $0x118] sm:$0xff] %v863
                  %v865 = vld [vmem:[%s721 + $0x238] sm:$0xff]
                  %866 = vst [vmem:[%s722 + $0x11c] sm:$0xff] %v865
                  %v867 = vld [vmem:[%s721 + $0x240] sm:$0xff]
                  %868 = vst [vmem:[%s722 + $0x120] sm:$0xff] %v867
                  %v869 = vld [vmem:[%s721 + $0x248] sm:$0xff]
                  %870 = vst [vmem:[%s722 + $0x124] sm:$0xff] %v869
                  %v871 = vld [vmem:[%s721 + $0x250] sm:$0xff]
                  %872 = vst [vmem:[%s722 + $0x128] sm:$0xff] %v871
                  %v873 = vld [vmem:[%s721 + $0x258] sm:$0xff]
                  %874 = vst [vmem:[%s722 + $0x12c] sm:$0xff] %v873
                  %v875 = vld [vmem:[%s721 + $0x260] sm:$0xff]
                  %876 = vst [vmem:[%s722 + $0x130] sm:$0xff] %v875
                  %v877 = vld [vmem:[%s721 + $0x268] sm:$0xff]
                  %878 = vst [vmem:[%s722 + $0x134] sm:$0xff] %v877
                  %v879 = vld [vmem:[%s721 + $0x270] sm:$0xff]
                  %880 = vst [vmem:[%s722 + $0x138] sm:$0xff] %v879
                  %v881 = vld [vmem:[%s721 + $0x278] sm:$0xff]
                  %882 = vst [vmem:[%s722 + $0x13c] sm:$0xff] %v881
                  %v883 = vld [vmem:[%s721 + $0x280] sm:$0xff]
                  %884 = vst [vmem:[%s722 + $0x140] sm:$0xff] %v883
                  %v885 = vld [vmem:[%s721 + $0x288] sm:$0xff]
                  %886 = vst [vmem:[%s722 + $0x144] sm:$0xff] %v885
                  %v887 = vld [vmem:[%s721 + $0x290] sm:$0xff]
                  %888 = vst [vmem:[%s722 + $0x148] sm:$0xff] %v887
                  %v889 = vld [vmem:[%s721 + $0x298] sm:$0xff]
                  %890 = vst [vmem:[%s722 + $0x14c] sm:$0xff] %v889
                  %v891 = vld [vmem:[%s721 + $0x2a0] sm:$0xff]
                  %892 = vst [vmem:[%s722 + $0x150] sm:$0xff] %v891
                  %v893 = vld [vmem:[%s721 + $0x2a8] sm:$0xff]
                  %894 = vst [vmem:[%s722 + $0x154] sm:$0xff] %v893
                  %v895 = vld [vmem:[%s721 + $0x2b0] sm:$0xff]
                  %896 = vst [vmem:[%s722 + $0x158] sm:$0xff] %v895
                  %v897 = vld [vmem:[%s721 + $0x2b8] sm:$0xff]
                  %898 = vst [vmem:[%s722 + $0x15c] sm:$0xff] %v897
                  %v899 = vld [vmem:[%s721 + $0x2c0] sm:$0xff]
                  %900 = vst [vmem:[%s722 + $0x160] sm:$0xff] %v899
                  %v901 = vld [vmem:[%s721 + $0x2c8] sm:$0xff]
                  %902 = vst [vmem:[%s722 + $0x164] sm:$0xff] %v901
                  %v903 = vld [vmem:[%s721 + $0x2d0] sm:$0xff]
                  %904 = vst [vmem:[%s722 + $0x168] sm:$0xff] %v903
                  %v905 = vld [vmem:[%s721 + $0x2d8] sm:$0xff]
                  %906 = vst [vmem:[%s722 + $0x16c] sm:$0xff] %v905
                  %v907 = vld [vmem:[%s721 + $0x2e0] sm:$0xff]
                  %908 = vst [vmem:[%s722 + $0x170] sm:$0xff] %v907
                  %v909 = vld [vmem:[%s721 + $0x2e8] sm:$0xff]
                  %910 = vst [vmem:[%s722 + $0x174] sm:$0xff] %v909
                  %v911 = vld [vmem:[%s721 + $0x2f0] sm:$0xff]
                  %912 = vst [vmem:[%s722 + $0x178] sm:$0xff] %v911
                  %v913 = vld [vmem:[%s721 + $0x2f8] sm:$0xff]
                  %914 = vst [vmem:[%s722 + $0x17c] sm:$0xff] %v913
                  %v915 = vld [vmem:[%s721 + $0x300] sm:$0xff]
                  %916 = vst [vmem:[%s722 + $0x180] sm:$0xff] %v915
                  %v917 = vld [vmem:[%s721 + $0x308] sm:$0xff]
                  %918 = vst [vmem:[%s722 + $0x184] sm:$0xff] %v917
                  %v919 = vld [vmem:[%s721 + $0x310] sm:$0xff]
                  %920 = vst [vmem:[%s722 + $0x188] sm:$0xff] %v919
                  %v921 = vld [vmem:[%s721 + $0x318] sm:$0xff]
                  %922 = vst [vmem:[%s722 + $0x18c] sm:$0xff] %v921
                  %v923 = vld [vmem:[%s721 + $0x320] sm:$0xff]
                  %924 = vst [vmem:[%s722 + $0x190] sm:$0xff] %v923
                  %v925 = vld [vmem:[%s721 + $0x328] sm:$0xff]
                  %926 = vst [vmem:[%s722 + $0x194] sm:$0xff] %v925
                  %v927 = vld [vmem:[%s721 + $0x330] sm:$0xff]
                  %928 = vst [vmem:[%s722 + $0x198] sm:$0xff] %v927
                  %v929 = vld [vmem:[%s721 + $0x338] sm:$0xff]
                  %930 = vst [vmem:[%s722 + $0x19c] sm:$0xff] %v929
                  %v931 = vld [vmem:[%s721 + $0x340] sm:$0xff]
                  %932 = vst [vmem:[%s722 + $0x1a0] sm:$0xff] %v931
                  %v933 = vld [vmem:[%s721 + $0x348] sm:$0xff]
                  %934 = vst [vmem:[%s722 + $0x1a4] sm:$0xff] %v933
                  %v935 = vld [vmem:[%s721 + $0x350] sm:$0xff]
                  %936 = vst [vmem:[%s722 + $0x1a8] sm:$0xff] %v935
                  %v937 = vld [vmem:[%s721 + $0x358] sm:$0xff]
                  %938 = vst [vmem:[%s722 + $0x1ac] sm:$0xff] %v937
                  %v939 = vld [vmem:[%s721 + $0x360] sm:$0xff]
                  %940 = vst [vmem:[%s722 + $0x1b0] sm:$0xff] %v939
                  %v941 = vld [vmem:[%s721 + $0x368] sm:$0xff]
                  %942 = vst [vmem:[%s722 + $0x1b4] sm:$0xff] %v941
                  %v943 = vld [vmem:[%s721 + $0x370] sm:$0xff]
                  %944 = vst [vmem:[%s722 + $0x1b8] sm:$0xff] %v943
                  %v945 = vld [vmem:[%s721 + $0x378] sm:$0xff]
                  %946 = vst [vmem:[%s722 + $0x1bc] sm:$0xff] %v945
                  %v947 = vld [vmem:[%s721 + $0x380] sm:$0xff]
                  %948 = vst [vmem:[%s722 + $0x1c0] sm:$0xff] %v947
                  %v949 = vld [vmem:[%s721 + $0x388] sm:$0xff]
                  %950 = vst [vmem:[%s722 + $0x1c4] sm:$0xff] %v949
                  %v951 = vld [vmem:[%s721 + $0x390] sm:$0xff]
                  %952 = vst [vmem:[%s722 + $0x1c8] sm:$0xff] %v951
                  %v953 = vld [vmem:[%s721 + $0x398] sm:$0xff]
                  %954 = vst [vmem:[%s722 + $0x1cc] sm:$0xff] %v953
                  %v955 = vld [vmem:[%s721 + $0x3a0] sm:$0xff]
                  %956 = vst [vmem:[%s722 + $0x1d0] sm:$0xff] %v955
                  %v957 = vld [vmem:[%s721 + $0x3a8] sm:$0xff]
                  %958 = vst [vmem:[%s722 + $0x1d4] sm:$0xff] %v957
                  %v959 = vld [vmem:[%s721 + $0x3b0] sm:$0xff]
                  %960 = vst [vmem:[%s722 + $0x1d8] sm:$0xff] %v959
                  %v961 = vld [vmem:[%s721 + $0x3b8] sm:$0xff]
                  %962 = vst [vmem:[%s722 + $0x1dc] sm:$0xff] %v961
                  %v963 = vld [vmem:[%s721 + $0x3c0] sm:$0xff]
                  %964 = vst [vmem:[%s722 + $0x1e0] sm:$0xff] %v963
                  %v965 = vld [vmem:[%s721 + $0x3c8] sm:$0xff]
                  %966 = vst [vmem:[%s722 + $0x1e4] sm:$0xff] %v965
                  %v967 = vld [vmem:[%s721 + $0x3d0] sm:$0xff]
                  %968 = vst [vmem:[%s722 + $0x1e8] sm:$0xff] %v967
                  %v969 = vld [vmem:[%s721 + $0x3d8] sm:$0xff]
                  %970 = vst [vmem:[%s722 + $0x1ec] sm:$0xff] %v969
                  %v971 = vld [vmem:[%s721 + $0x3e0] sm:$0xff]
                  %972 = vst [vmem:[%s722 + $0x1f0] sm:$0xff] %v971
                  %v973 = vld [vmem:[%s721 + $0x3e8] sm:$0xff]
                  %974 = vst [vmem:[%s722 + $0x1f4] sm:$0xff] %v973
                  %v975 = vld [vmem:[%s721 + $0x3f0] sm:$0xff]
                  %976 = vst [vmem:[%s722 + $0x1f8] sm:$0xff] %v975
                  %v977 = vld [vmem:[%s721 + $0x3f8] sm:$0xff]
                  %978 = vst [vmem:[%s722 + $0x1fc] sm:$0xff] %v977
                  %v979 = vld [vmem:[%s721 + $0x400] sm:$0xff]
                  %980 = vst [vmem:[%s722 + $0x200] sm:$0xff] %v979
                  %v981 = vld [vmem:[%s721 + $0x408] sm:$0xff]
                  %982 = vst [vmem:[%s722 + $0x204] sm:$0xff] %v981
                  %v983 = vld [vmem:[%s721 + $0x410] sm:$0xff]
                  %984 = vst [vmem:[%s722 + $0x208] sm:$0xff] %v983
                  %v985 = vld [vmem:[%s721 + $0x418] sm:$0xff]
                  %986 = vst [vmem:[%s722 + $0x20c] sm:$0xff] %v985
                  %v987 = vld [vmem:[%s721 + $0x420] sm:$0xff]
                  %988 = vst [vmem:[%s722 + $0x210] sm:$0xff] %v987
                  %v989 = vld [vmem:[%s721 + $0x428] sm:$0xff]
                  %990 = vst [vmem:[%s722 + $0x214] sm:$0xff] %v989
                  %v991 = vld [vmem:[%s721 + $0x430] sm:$0xff]
                  %992 = vst [vmem:[%s722 + $0x218] sm:$0xff] %v991
                  %v993 = vld [vmem:[%s721 + $0x438] sm:$0xff]
                  %994 = vst [vmem:[%s722 + $0x21c] sm:$0xff] %v993
                  %v995 = vld [vmem:[%s721 + $0x440] sm:$0xff]
                  %996 = vst [vmem:[%s722 + $0x220] sm:$0xff] %v995
                  %v997 = vld [vmem:[%s721 + $0x448] sm:$0xff]
                  %998 = vst [vmem:[%s722 + $0x224] sm:$0xff] %v997
                  %v999 = vld [vmem:[%s721 + $0x450] sm:$0xff]
                  %1000 = vst [vmem:[%s722 + $0x228] sm:$0xff] %v999
                  %v1001 = vld [vmem:[%s721 + $0x458] sm:$0xff]
                  %1002 = vst [vmem:[%s722 + $0x22c] sm:$0xff] %v1001
                  %v1003 = vld [vmem:[%s721 + $0x460] sm:$0xff]
                  %1004 = vst [vmem:[%s722 + $0x230] sm:$0xff] %v1003
                  %v1005 = vld [vmem:[%s721 + $0x468] sm:$0xff]
                  %1006 = vst [vmem:[%s722 + $0x234] sm:$0xff] %v1005
                  %v1007 = vld [vmem:[%s721 + $0x470] sm:$0xff]
                  %1008 = vst [vmem:[%s722 + $0x238] sm:$0xff] %v1007
                  %v1009 = vld [vmem:[%s721 + $0x478] sm:$0xff]
                  %1010 = vst [vmem:[%s722 + $0x23c] sm:$0xff] %v1009
                  %v1011 = vld [vmem:[%s721 + $0x480] sm:$0xff]
                  %1012 = vst [vmem:[%s722 + $0x240] sm:$0xff] %v1011
                  %v1013 = vld [vmem:[%s721 + $0x488] sm:$0xff]
                  %1014 = vst [vmem:[%s722 + $0x244] sm:$0xff] %v1013
                  %v1015 = vld [vmem:[%s721 + $0x490] sm:$0xff]
                  %1016 = vst [vmem:[%s722 + $0x248] sm:$0xff] %v1015
                  %v1017 = vld [vmem:[%s721 + $0x498] sm:$0xff]
                  %1018 = vst [vmem:[%s722 + $0x24c] sm:$0xff] %v1017
                  %v1019 = vld [vmem:[%s721 + $0x4a0] sm:$0xff]
                  %1020 = vst [vmem:[%s722 + $0x250] sm:$0xff] %v1019
                  %v1021 = vld [vmem:[%s721 + $0x4a8] sm:$0xff]
                  %1022 = vst [vmem:[%s722 + $0x254] sm:$0xff] %v1021
                  %v1023 = vld [vmem:[%s721 + $0x4b0] sm:$0xff]
                  %1024 = vst [vmem:[%s722 + $0x258] sm:$0xff] %v1023
                  %v1025 = vld [vmem:[%s721 + $0x4b8] sm:$0xff]
                  %1026 = vst [vmem:[%s722 + $0x25c] sm:$0xff] %v1025
                  %v1027 = vld [vmem:[%s721 + $0x4c0] sm:$0xff]
                  %1028 = vst [vmem:[%s722 + $0x260] sm:$0xff] %v1027
                  %v1029 = vld [vmem:[%s721 + $0x4c8] sm:$0xff]
                  %1030 = vst [vmem:[%s722 + $0x264] sm:$0xff] %v1029
                  %v1031 = vld [vmem:[%s721 + $0x4d0] sm:$0xff]
                  %1032 = vst [vmem:[%s722 + $0x268] sm:$0xff] %v1031
                  %v1033 = vld [vmem:[%s721 + $0x4d8] sm:$0xff]
                  %1034 = vst [vmem:[%s722 + $0x26c] sm:$0xff] %v1033
                  %v1035 = vld [vmem:[%s721 + $0x4e0] sm:$0xff]
                  %1036 = vst [vmem:[%s722 + $0x270] sm:$0xff] %v1035
                  %v1037 = vld [vmem:[%s721 + $0x4e8] sm:$0xff]
                  %1038 = vst [vmem:[%s722 + $0x274] sm:$0xff] %v1037
                  %v1039 = vld [vmem:[%s721 + $0x4f0] sm:$0xff]
                  %1040 = vst [vmem:[%s722 + $0x278] sm:$0xff] %v1039
                  %v1041 = vld [vmem:[%s721 + $0x4f8] sm:$0xff]
                  %1042 = vst [vmem:[%s722 + $0x27c] sm:$0xff] %v1041
                  %v1043 = vld [vmem:[%s721 + $0x500] sm:$0xff]
                  %1044 = vst [vmem:[%s722 + $0x280] sm:$0xff] %v1043
                  %v1045 = vld [vmem:[%s721 + $0x508] sm:$0xff]
                  %1046 = vst [vmem:[%s722 + $0x284] sm:$0xff] %v1045
                  %v1047 = vld [vmem:[%s721 + $0x510] sm:$0xff]
                  %1048 = vst [vmem:[%s722 + $0x288] sm:$0xff] %v1047
                  %v1049 = vld [vmem:[%s721 + $0x518] sm:$0xff]
                  %1050 = vst [vmem:[%s722 + $0x28c] sm:$0xff] %v1049
                  %v1051 = vld [vmem:[%s721 + $0x520] sm:$0xff]
                  %1052 = vst [vmem:[%s722 + $0x290] sm:$0xff] %v1051
                  %v1053 = vld [vmem:[%s721 + $0x528] sm:$0xff]
                  %1054 = vst [vmem:[%s722 + $0x294] sm:$0xff] %v1053
                  %v1055 = vld [vmem:[%s721 + $0x530] sm:$0xff]
                  %1056 = vst [vmem:[%s722 + $0x298] sm:$0xff] %v1055
                  %v1057 = vld [vmem:[%s721 + $0x538] sm:$0xff]
                  %1058 = vst [vmem:[%s722 + $0x29c] sm:$0xff] %v1057
                  %v1059 = vld [vmem:[%s721 + $0x540] sm:$0xff]
                  %1060 = vst [vmem:[%s722 + $0x2a0] sm:$0xff] %v1059
                  %v1061 = vld [vmem:[%s721 + $0x548] sm:$0xff]
                  %1062 = vst [vmem:[%s722 + $0x2a4] sm:$0xff] %v1061
                  %v1063 = vld [vmem:[%s721 + $0x550] sm:$0xff]
                  %1064 = vst [vmem:[%s722 + $0x2a8] sm:$0xff] %v1063
                  %v1065 = vld [vmem:[%s721 + $0x558] sm:$0xff]
                  %1066 = vst [vmem:[%s722 + $0x2ac] sm:$0xff] %v1065
                  %v1067 = vld [vmem:[%s721 + $0x560] sm:$0xff]
                  %1068 = vst [vmem:[%s722 + $0x2b0] sm:$0xff] %v1067
                  %v1069 = vld [vmem:[%s721 + $0x568] sm:$0xff]
                  %1070 = vst [vmem:[%s722 + $0x2b4] sm:$0xff] %v1069
                  %v1071 = vld [vmem:[%s721 + $0x570] sm:$0xff]
                  %1072 = vst [vmem:[%s722 + $0x2b8] sm:$0xff] %v1071
                  %v1073 = vld [vmem:[%s721 + $0x578] sm:$0xff]
                  %1074 = vst [vmem:[%s722 + $0x2bc] sm:$0xff] %v1073
                  %v1075 = vld [vmem:[%s721 + $0x580] sm:$0xff]
                  %1076 = vst [vmem:[%s722 + $0x2c0] sm:$0xff] %v1075
                  %v1077 = vld [vmem:[%s721 + $0x588] sm:$0xff]
                  %1078 = vst [vmem:[%s722 + $0x2c4] sm:$0xff] %v1077
                  %v1079 = vld [vmem:[%s721 + $0x590] sm:$0xff]
                  %1080 = vst [vmem:[%s722 + $0x2c8] sm:$0xff] %v1079
                  %v1081 = vld [vmem:[%s721 + $0x598] sm:$0xff]
                  %1082 = vst [vmem:[%s722 + $0x2cc] sm:$0xff] %v1081
                  %v1083 = vld [vmem:[%s721 + $0x5a0] sm:$0xff]
                  %1084 = vst [vmem:[%s722 + $0x2d0] sm:$0xff] %v1083
                  %v1085 = vld [vmem:[%s721 + $0x5a8] sm:$0xff]
                  %1086 = vst [vmem:[%s722 + $0x2d4] sm:$0xff] %v1085
                  %v1087 = vld [vmem:[%s721 + $0x5b0] sm:$0xff]
                  %1088 = vst [vmem:[%s722 + $0x2d8] sm:$0xff] %v1087
                  %v1089 = vld [vmem:[%s721 + $0x5b8] sm:$0xff]
                  %1090 = vst [vmem:[%s722 + $0x2dc] sm:$0xff] %v1089
                  %v1091 = vld [vmem:[%s721 + $0x5c0] sm:$0xff]
                  %1092 = vst [vmem:[%s722 + $0x2e0] sm:$0xff] %v1091
                  %v1093 = vld [vmem:[%s721 + $0x5c8] sm:$0xff]
                  %1094 = vst [vmem:[%s722 + $0x2e4] sm:$0xff] %v1093
                  %v1095 = vld [vmem:[%s721 + $0x5d0] sm:$0xff]
                  %1096 = vst [vmem:[%s722 + $0x2e8] sm:$0xff] %v1095
                  %v1097 = vld [vmem:[%s721 + $0x5d8] sm:$0xff]
                  %1098 = vst [vmem:[%s722 + $0x2ec] sm:$0xff] %v1097
                  %v1099 = vld [vmem:[%s721 + $0x5e0] sm:$0xff]
                  %1100 = vst [vmem:[%s722 + $0x2f0] sm:$0xff] %v1099
                  %v1101 = vld [vmem:[%s721 + $0x5e8] sm:$0xff]
                  %1102 = vst [vmem:[%s722 + $0x2f4] sm:$0xff] %v1101
                  %v1103 = vld [vmem:[%s721 + $0x5f0] sm:$0xff]
                  %1104 = vst [vmem:[%s722 + $0x2f8] sm:$0xff] %v1103
                  %v1105 = vld [vmem:[%s721 + $0x5f8] sm:$0xff]
                  %1106 = vst [vmem:[%s722 + $0x2fc] sm:$0xff] %v1105
                  %v1107 = vld [vmem:[%s721 + $0x600] sm:$0xff]
                  %1108 = vst [vmem:[%s722 + $0x300] sm:$0xff] %v1107
                  %v1109 = vld [vmem:[%s721 + $0x608] sm:$0xff]
                  %1110 = vst [vmem:[%s722 + $0x304] sm:$0xff] %v1109
                  %v1111 = vld [vmem:[%s721 + $0x610] sm:$0xff]
                  %1112 = vst [vmem:[%s722 + $0x308] sm:$0xff] %v1111
                  %v1113 = vld [vmem:[%s721 + $0x618] sm:$0xff]
                  %1114 = vst [vmem:[%s722 + $0x30c] sm:$0xff] %v1113
                  %v1115 = vld [vmem:[%s721 + $0x620] sm:$0xff]
                  %1116 = vst [vmem:[%s722 + $0x310] sm:$0xff] %v1115
                  %v1117 = vld [vmem:[%s721 + $0x628] sm:$0xff]
                  %1118 = vst [vmem:[%s722 + $0x314] sm:$0xff] %v1117
                  %v1119 = vld [vmem:[%s721 + $0x630] sm:$0xff]
                  %1120 = vst [vmem:[%s722 + $0x318] sm:$0xff] %v1119
                  %v1121 = vld [vmem:[%s721 + $0x638] sm:$0xff]
                  %1122 = vst [vmem:[%s722 + $0x31c] sm:$0xff] %v1121
                  %v1123 = vld [vmem:[%s721 + $0x640] sm:$0xff]
                  %1124 = vst [vmem:[%s722 + $0x320] sm:$0xff] %v1123
                  %v1125 = vld [vmem:[%s721 + $0x648] sm:$0xff]
                  %1126 = vst [vmem:[%s722 + $0x324] sm:$0xff] %v1125
                  %v1127 = vld [vmem:[%s721 + $0x650] sm:$0xff]
                  %1128 = vst [vmem:[%s722 + $0x328] sm:$0xff] %v1127
                  %v1129 = vld [vmem:[%s721 + $0x658] sm:$0xff]
                  %1130 = vst [vmem:[%s722 + $0x32c] sm:$0xff] %v1129
                  %v1131 = vld [vmem:[%s721 + $0x660] sm:$0xff]
                  %1132 = vst [vmem:[%s722 + $0x330] sm:$0xff] %v1131
                  %v1133 = vld [vmem:[%s721 + $0x668] sm:$0xff]
                  %1134 = vst [vmem:[%s722 + $0x334] sm:$0xff] %v1133
                  %v1135 = vld [vmem:[%s721 + $0x670] sm:$0xff]
                  %1136 = vst [vmem:[%s722 + $0x338] sm:$0xff] %v1135
                  %v1137 = vld [vmem:[%s721 + $0x678] sm:$0xff]
                  %1138 = vst [vmem:[%s722 + $0x33c] sm:$0xff] %v1137
                  %v1139 = vld [vmem:[%s721 + $0x680] sm:$0xff]
                  %1140 = vst [vmem:[%s722 + $0x340] sm:$0xff] %v1139
                  %v1141 = vld [vmem:[%s721 + $0x688] sm:$0xff]
                  %1142 = vst [vmem:[%s722 + $0x344] sm:$0xff] %v1141
                  %v1143 = vld [vmem:[%s721 + $0x690] sm:$0xff]
                  %1144 = vst [vmem:[%s722 + $0x348] sm:$0xff] %v1143
                  %v1145 = vld [vmem:[%s721 + $0x698] sm:$0xff]
                  %1146 = vst [vmem:[%s722 + $0x34c] sm:$0xff] %v1145
                  %v1147 = vld [vmem:[%s721 + $0x6a0] sm:$0xff]
                  %1148 = vst [vmem:[%s722 + $0x350] sm:$0xff] %v1147
                  %v1149 = vld [vmem:[%s721 + $0x6a8] sm:$0xff]
                  %1150 = vst [vmem:[%s722 + $0x354] sm:$0xff] %v1149
                  %v1151 = vld [vmem:[%s721 + $0x6b0] sm:$0xff]
                  %1152 = vst [vmem:[%s722 + $0x358] sm:$0xff] %v1151
                  %v1153 = vld [vmem:[%s721 + $0x6b8] sm:$0xff]
                  %1154 = vst [vmem:[%s722 + $0x35c] sm:$0xff] %v1153
                  %v1155 = vld [vmem:[%s721 + $0x6c0] sm:$0xff]
                  %1156 = vst [vmem:[%s722 + $0x360] sm:$0xff] %v1155
                  %v1157 = vld [vmem:[%s721 + $0x6c8] sm:$0xff]
                  %1158 = vst [vmem:[%s722 + $0x364] sm:$0xff] %v1157
                  %v1159 = vld [vmem:[%s721 + $0x6d0] sm:$0xff]
                  %1160 = vst [vmem:[%s722 + $0x368] sm:$0xff] %v1159
                  %v1161 = vld [vmem:[%s721 + $0x6d8] sm:$0xff]
                  %1162 = vst [vmem:[%s722 + $0x36c] sm:$0xff] %v1161
                  %v1163 = vld [vmem:[%s721 + $0x6e0] sm:$0xff]
                  %1164 = vst [vmem:[%s722 + $0x370] sm:$0xff] %v1163
                  %v1165 = vld [vmem:[%s721 + $0x6e8] sm:$0xff]
                  %1166 = vst [vmem:[%s722 + $0x374] sm:$0xff] %v1165
                  %v1167 = vld [vmem:[%s721 + $0x6f0] sm:$0xff]
                  %1168 = vst [vmem:[%s722 + $0x378] sm:$0xff] %v1167
                  %v1169 = vld [vmem:[%s721 + $0x6f8] sm:$0xff]
                  %1170 = vst [vmem:[%s722 + $0x37c] sm:$0xff] %v1169
                  %v1171 = vld [vmem:[%s721 + $0x700] sm:$0xff]
                  %1172 = vst [vmem:[%s722 + $0x380] sm:$0xff] %v1171
                  %v1173 = vld [vmem:[%s721 + $0x708] sm:$0xff]
                  %1174 = vst [vmem:[%s722 + $0x384] sm:$0xff] %v1173
                  %v1175 = vld [vmem:[%s721 + $0x710] sm:$0xff]
                  %1176 = vst [vmem:[%s722 + $0x388] sm:$0xff] %v1175
                  %v1177 = vld [vmem:[%s721 + $0x718] sm:$0xff]
                  %1178 = vst [vmem:[%s722 + $0x38c] sm:$0xff] %v1177
                  %v1179 = vld [vmem:[%s721 + $0x720] sm:$0xff]
                  %1180 = vst [vmem:[%s722 + $0x390] sm:$0xff] %v1179
                  %v1181 = vld [vmem:[%s721 + $0x728] sm:$0xff]
                  %1182 = vst [vmem:[%s722 + $0x394] sm:$0xff] %v1181
                  %v1183 = vld [vmem:[%s721 + $0x730] sm:$0xff]
                  %1184 = vst [vmem:[%s722 + $0x398] sm:$0xff] %v1183
                  %v1185 = vld [vmem:[%s721 + $0x738] sm:$0xff]
                  %1186 = vst [vmem:[%s722 + $0x39c] sm:$0xff] %v1185
                  %v1187 = vld [vmem:[%s721 + $0x740] sm:$0xff]
                  %1188 = vst [vmem:[%s722 + $0x3a0] sm:$0xff] %v1187
                  %v1189 = vld [vmem:[%s721 + $0x748] sm:$0xff]
                  %1190 = vst [vmem:[%s722 + $0x3a4] sm:$0xff] %v1189
                  %v1191 = vld [vmem:[%s721 + $0x750] sm:$0xff]
                  %1192 = vst [vmem:[%s722 + $0x3a8] sm:$0xff] %v1191
                  %v1193 = vld [vmem:[%s721 + $0x758] sm:$0xff]
                  %1194 = vst [vmem:[%s722 + $0x3ac] sm:$0xff] %v1193
                  %v1195 = vld [vmem:[%s721 + $0x760] sm:$0xff]
                  %1196 = vst [vmem:[%s722 + $0x3b0] sm:$0xff] %v1195
                  %v1197 = vld [vmem:[%s721 + $0x768] sm:$0xff]
                  %1198 = vst [vmem:[%s722 + $0x3b4] sm:$0xff] %v1197
                  %v1199 = vld [vmem:[%s721 + $0x770] sm:$0xff]
                  %1200 = vst [vmem:[%s722 + $0x3b8] sm:$0xff] %v1199
                  %v1201 = vld [vmem:[%s721 + $0x778] sm:$0xff]
                  %1202 = vst [vmem:[%s722 + $0x3bc] sm:$0xff] %v1201
                  %v1203 = vld [vmem:[%s721 + $0x780] sm:$0xff]
                  %1204 = vst [vmem:[%s722 + $0x3c0] sm:$0xff] %v1203
                  %v1205 = vld [vmem:[%s721 + $0x788] sm:$0xff]
                  %1206 = vst [vmem:[%s722 + $0x3c4] sm:$0xff] %v1205
                  %v1207 = vld [vmem:[%s721 + $0x790] sm:$0xff]
                  %1208 = vst [vmem:[%s722 + $0x3c8] sm:$0xff] %v1207
                  %v1209 = vld [vmem:[%s721 + $0x798] sm:$0xff]
                  %1210 = vst [vmem:[%s722 + $0x3cc] sm:$0xff] %v1209
                  %v1211 = vld [vmem:[%s721 + $0x7a0] sm:$0xff]
                  %1212 = vst [vmem:[%s722 + $0x3d0] sm:$0xff] %v1211
                  %v1213 = vld [vmem:[%s721 + $0x7a8] sm:$0xff]
                  %1214 = vst [vmem:[%s722 + $0x3d4] sm:$0xff] %v1213
                  %v1215 = vld [vmem:[%s721 + $0x7b0] sm:$0xff]
                  %1216 = vst [vmem:[%s722 + $0x3d8] sm:$0xff] %v1215
                  %v1217 = vld [vmem:[%s721 + $0x7b8] sm:$0xff]
                  %1218 = vst [vmem:[%s722 + $0x3dc] sm:$0xff] %v1217
                  %v1219 = vld [vmem:[%s721 + $0x7c0] sm:$0xff]
                  %1220 = vst [vmem:[%s722 + $0x3e0] sm:$0xff] %v1219
                  %v1221 = vld [vmem:[%s721 + $0x7c8] sm:$0xff]
                  %1222 = vst [vmem:[%s722 + $0x3e4] sm:$0xff] %v1221
                  %v1223 = vld [vmem:[%s721 + $0x7d0] sm:$0xff]
                  %1224 = vst [vmem:[%s722 + $0x3e8] sm:$0xff] %v1223
                  %v1225 = vld [vmem:[%s721 + $0x7d8] sm:$0xff]
                  %1226 = vst [vmem:[%s722 + $0x3ec] sm:$0xff] %v1225
                  %v1227 = vld [vmem:[%s721 + $0x7e0] sm:$0xff]
                  %1228 = vst [vmem:[%s722 + $0x3f0] sm:$0xff] %v1227
                  %v1229 = vld [vmem:[%s721 + $0x7e8] sm:$0xff]
                  %1230 = vst [vmem:[%s722 + $0x3f4] sm:$0xff] %v1229
                  %v1231 = vld [vmem:[%s721 + $0x7f0] sm:$0xff]
                  %1232 = vst [vmem:[%s722 + $0x3f8] sm:$0xff] %v1231
                  %v1233 = vld [vmem:[%s721 + $0x7f8] sm:$0xff]
                  %1234 = vst [vmem:[%s722 + $0x3fc] sm:$0xff] %v1233
                  %s1235 = sadd.s32 1, %s720
                  %p1236 = scmp.ge.s32.totalorder %s1235, 0
                  %s1237 = scalar_select %p1236, 0, %s1235
                  %s1238 = smul.u32 %s1237, 8
                  %s1239 = smul.u32 %s1237, 8
                  %s1240 = scalar_lea.vmem %s183, %s1238
                  %s1241 = scalar_lea.vmem %s178, %s1239 [#allocation3]
                $region52: #{discriminator_forward.9} parent=46 // loop_footer
                  %s719 = sadd.s32 1, %s715
                $region53: #{discriminator_forward.9} parent=46 // loop_footer_branch
                  %714 = sbr.rel target = $region49
                $region54: #{discriminator_forward.9} parent=46 // loop_exit
                  _
              $region47: #{discriminator_forward.9} parent=31 // pred_fallthru
                _
              // Predicated region
              $region55: #{discriminator_forward.9} parent=31 // pred_check
                _
              $region56: #{discriminator_forward.9} parent=31 // pred_check_branch
                %1243 = sbr.rel (0) target = $region58
              $region57: #{discriminator_forward.9} parent=31 // pred_region
                loop: start=0, step=1, limit=0
                $region59: #{discriminator_forward.9} parent=57 // loop_pre_header
                  _
                $region60: #{discriminator_forward.9} parent=57 // loop_header
                  %s1245 = sphi 0, %s1249
                  %p1246 = scmp.ge.s32.totalorder %s1245, 0
                  %s1250 = sphi 0, %s1767
                  %s1251 = sphi %s183, %s1770
                  %s1252 = sphi %s178, %s1771
                $region61: #{discriminator_forward.9} parent=57 // loop_header_branch
                  %1248 = sbr.rel (%p1246) target = $region65
                $region62: #{discriminator_forward.9} parent=57 // loop_body
                  %v1253 = vld [vmem:[%s1251] sm:$0xff]
                  %1254 = vst [vmem:[%s1252] sm:$0xff] %v1253
                  %v1255 = vld [vmem:[%s1251 + $0x8] sm:$0xff]
                  %1256 = vst [vmem:[%s1252 + $0x4] sm:$0xff] %v1255
                  %v1257 = vld [vmem:[%s1251 + $0x10] sm:$0xff]
                  %1258 = vst [vmem:[%s1252 + $0x8] sm:$0xff] %v1257
                  %v1259 = vld [vmem:[%s1251 + $0x18] sm:$0xff]
                  %1260 = vst [vmem:[%s1252 + $0xc] sm:$0xff] %v1259
                  %v1261 = vld [vmem:[%s1251 + $0x20] sm:$0xff]
                  %1262 = vst [vmem:[%s1252 + $0x10] sm:$0xff] %v1261
                  %v1263 = vld [vmem:[%s1251 + $0x28] sm:$0xff]
                  %1264 = vst [vmem:[%s1252 + $0x14] sm:$0xff] %v1263
                  %v1265 = vld [vmem:[%s1251 + $0x30] sm:$0xff]
                  %1266 = vst [vmem:[%s1252 + $0x18] sm:$0xff] %v1265
                  %v1267 = vld [vmem:[%s1251 + $0x38] sm:$0xff]
                  %1268 = vst [vmem:[%s1252 + $0x1c] sm:$0xff] %v1267
                  %v1269 = vld [vmem:[%s1251 + $0x40] sm:$0xff]
                  %1270 = vst [vmem:[%s1252 + $0x20] sm:$0xff] %v1269
                  %v1271 = vld [vmem:[%s1251 + $0x48] sm:$0xff]
                  %1272 = vst [vmem:[%s1252 + $0x24] sm:$0xff] %v1271
                  %v1273 = vld [vmem:[%s1251 + $0x50] sm:$0xff]
                  %1274 = vst [vmem:[%s1252 + $0x28] sm:$0xff] %v1273
                  %v1275 = vld [vmem:[%s1251 + $0x58] sm:$0xff]
                  %1276 = vst [vmem:[%s1252 + $0x2c] sm:$0xff] %v1275
                  %v1277 = vld [vmem:[%s1251 + $0x60] sm:$0xff]
                  %1278 = vst [vmem:[%s1252 + $0x30] sm:$0xff] %v1277
                  %v1279 = vld [vmem:[%s1251 + $0x68] sm:$0xff]
                  %1280 = vst [vmem:[%s1252 + $0x34] sm:$0xff] %v1279
                  %v1281 = vld [vmem:[%s1251 + $0x70] sm:$0xff]
                  %1282 = vst [vmem:[%s1252 + $0x38] sm:$0xff] %v1281
                  %v1283 = vld [vmem:[%s1251 + $0x78] sm:$0xff]
                  %1284 = vst [vmem:[%s1252 + $0x3c] sm:$0xff] %v1283
                  %v1285 = vld [vmem:[%s1251 + $0x80] sm:$0xff]
                  %1286 = vst [vmem:[%s1252 + $0x40] sm:$0xff] %v1285
                  %v1287 = vld [vmem:[%s1251 + $0x88] sm:$0xff]
                  %1288 = vst [vmem:[%s1252 + $0x44] sm:$0xff] %v1287
                  %v1289 = vld [vmem:[%s1251 + $0x90] sm:$0xff]
                  %1290 = vst [vmem:[%s1252 + $0x48] sm:$0xff] %v1289
                  %v1291 = vld [vmem:[%s1251 + $0x98] sm:$0xff]
                  %1292 = vst [vmem:[%s1252 + $0x4c] sm:$0xff] %v1291
                  %v1293 = vld [vmem:[%s1251 + $0xa0] sm:$0xff]
                  %1294 = vst [vmem:[%s1252 + $0x50] sm:$0xff] %v1293
                  %v1295 = vld [vmem:[%s1251 + $0xa8] sm:$0xff]
                  %1296 = vst [vmem:[%s1252 + $0x54] sm:$0xff] %v1295
                  %v1297 = vld [vmem:[%s1251 + $0xb0] sm:$0xff]
                  %1298 = vst [vmem:[%s1252 + $0x58] sm:$0xff] %v1297
                  %v1299 = vld [vmem:[%s1251 + $0xb8] sm:$0xff]
                  %1300 = vst [vmem:[%s1252 + $0x5c] sm:$0xff] %v1299
                  %v1301 = vld [vmem:[%s1251 + $0xc0] sm:$0xff]
                  %1302 = vst [vmem:[%s1252 + $0x60] sm:$0xff] %v1301
                  %v1303 = vld [vmem:[%s1251 + $0xc8] sm:$0xff]
                  %1304 = vst [vmem:[%s1252 + $0x64] sm:$0xff] %v1303
                  %v1305 = vld [vmem:[%s1251 + $0xd0] sm:$0xff]
                  %1306 = vst [vmem:[%s1252 + $0x68] sm:$0xff] %v1305
                  %v1307 = vld [vmem:[%s1251 + $0xd8] sm:$0xff]
                  %1308 = vst [vmem:[%s1252 + $0x6c] sm:$0xff] %v1307
                  %v1309 = vld [vmem:[%s1251 + $0xe0] sm:$0xff]
                  %1310 = vst [vmem:[%s1252 + $0x70] sm:$0xff] %v1309
                  %v1311 = vld [vmem:[%s1251 + $0xe8] sm:$0xff]
                  %1312 = vst [vmem:[%s1252 + $0x74] sm:$0xff] %v1311
                  %v1313 = vld [vmem:[%s1251 + $0xf0] sm:$0xff]
                  %1314 = vst [vmem:[%s1252 + $0x78] sm:$0xff] %v1313
                  %v1315 = vld [vmem:[%s1251 + $0xf8] sm:$0xff]
                  %1316 = vst [vmem:[%s1252 + $0x7c] sm:$0xff] %v1315
                  %v1317 = vld [vmem:[%s1251 + $0x100] sm:$0xff]
                  %1318 = vst [vmem:[%s1252 + $0x80] sm:$0xff] %v1317
                  %v1319 = vld [vmem:[%s1251 + $0x108] sm:$0xff]
                  %1320 = vst [vmem:[%s1252 + $0x84] sm:$0xff] %v1319
                  %v1321 = vld [vmem:[%s1251 + $0x110] sm:$0xff]
                  %1322 = vst [vmem:[%s1252 + $0x88] sm:$0xff] %v1321
                  %v1323 = vld [vmem:[%s1251 + $0x118] sm:$0xff]
                  %1324 = vst [vmem:[%s1252 + $0x8c] sm:$0xff] %v1323
                  %v1325 = vld [vmem:[%s1251 + $0x120] sm:$0xff]
                  %1326 = vst [vmem:[%s1252 + $0x90] sm:$0xff] %v1325
                  %v1327 = vld [vmem:[%s1251 + $0x128] sm:$0xff]
                  %1328 = vst [vmem:[%s1252 + $0x94] sm:$0xff] %v1327
                  %v1329 = vld [vmem:[%s1251 + $0x130] sm:$0xff]
                  %1330 = vst [vmem:[%s1252 + $0x98] sm:$0xff] %v1329
                  %v1331 = vld [vmem:[%s1251 + $0x138] sm:$0xff]
                  %1332 = vst [vmem:[%s1252 + $0x9c] sm:$0xff] %v1331
                  %v1333 = vld [vmem:[%s1251 + $0x140] sm:$0xff]
                  %1334 = vst [vmem:[%s1252 + $0xa0] sm:$0xff] %v1333
                  %v1335 = vld [vmem:[%s1251 + $0x148] sm:$0xff]
                  %1336 = vst [vmem:[%s1252 + $0xa4] sm:$0xff] %v1335
                  %v1337 = vld [vmem:[%s1251 + $0x150] sm:$0xff]
                  %1338 = vst [vmem:[%s1252 + $0xa8] sm:$0xff] %v1337
                  %v1339 = vld [vmem:[%s1251 + $0x158] sm:$0xff]
                  %1340 = vst [vmem:[%s1252 + $0xac] sm:$0xff] %v1339
                  %v1341 = vld [vmem:[%s1251 + $0x160] sm:$0xff]
                  %1342 = vst [vmem:[%s1252 + $0xb0] sm:$0xff] %v1341
                  %v1343 = vld [vmem:[%s1251 + $0x168] sm:$0xff]
                  %1344 = vst [vmem:[%s1252 + $0xb4] sm:$0xff] %v1343
                  %v1345 = vld [vmem:[%s1251 + $0x170] sm:$0xff]
                  %1346 = vst [vmem:[%s1252 + $0xb8] sm:$0xff] %v1345
                  %v1347 = vld [vmem:[%s1251 + $0x178] sm:$0xff]
                  %1348 = vst [vmem:[%s1252 + $0xbc] sm:$0xff] %v1347
                  %v1349 = vld [vmem:[%s1251 + $0x180] sm:$0xff]
                  %1350 = vst [vmem:[%s1252 + $0xc0] sm:$0xff] %v1349
                  %v1351 = vld [vmem:[%s1251 + $0x188] sm:$0xff]
                  %1352 = vst [vmem:[%s1252 + $0xc4] sm:$0xff] %v1351
                  %v1353 = vld [vmem:[%s1251 + $0x190] sm:$0xff]
                  %1354 = vst [vmem:[%s1252 + $0xc8] sm:$0xff] %v1353
                  %v1355 = vld [vmem:[%s1251 + $0x198] sm:$0xff]
                  %1356 = vst [vmem:[%s1252 + $0xcc] sm:$0xff] %v1355
                  %v1357 = vld [vmem:[%s1251 + $0x1a0] sm:$0xff]
                  %1358 = vst [vmem:[%s1252 + $0xd0] sm:$0xff] %v1357
                  %v1359 = vld [vmem:[%s1251 + $0x1a8] sm:$0xff]
                  %1360 = vst [vmem:[%s1252 + $0xd4] sm:$0xff] %v1359
                  %v1361 = vld [vmem:[%s1251 + $0x1b0] sm:$0xff]
                  %1362 = vst [vmem:[%s1252 + $0xd8] sm:$0xff] %v1361
                  %v1363 = vld [vmem:[%s1251 + $0x1b8] sm:$0xff]
                  %1364 = vst [vmem:[%s1252 + $0xdc] sm:$0xff] %v1363
                  %v1365 = vld [vmem:[%s1251 + $0x1c0] sm:$0xff]
                  %1366 = vst [vmem:[%s1252 + $0xe0] sm:$0xff] %v1365
                  %v1367 = vld [vmem:[%s1251 + $0x1c8] sm:$0xff]
                  %1368 = vst [vmem:[%s1252 + $0xe4] sm:$0xff] %v1367
                  %v1369 = vld [vmem:[%s1251 + $0x1d0] sm:$0xff]
                  %1370 = vst [vmem:[%s1252 + $0xe8] sm:$0xff] %v1369
                  %v1371 = vld [vmem:[%s1251 + $0x1d8] sm:$0xff]
                  %1372 = vst [vmem:[%s1252 + $0xec] sm:$0xff] %v1371
                  %v1373 = vld [vmem:[%s1251 + $0x1e0] sm:$0xff]
                  %1374 = vst [vmem:[%s1252 + $0xf0] sm:$0xff] %v1373
                  %v1375 = vld [vmem:[%s1251 + $0x1e8] sm:$0xff]
                  %1376 = vst [vmem:[%s1252 + $0xf4] sm:$0xff] %v1375
                  %v1377 = vld [vmem:[%s1251 + $0x1f0] sm:$0xff]
                  %1378 = vst [vmem:[%s1252 + $0xf8] sm:$0xff] %v1377
                  %v1379 = vld [vmem:[%s1251 + $0x1f8] sm:$0xff]
                  %1380 = vst [vmem:[%s1252 + $0xfc] sm:$0xff] %v1379
                  %v1381 = vld [vmem:[%s1251 + $0x200] sm:$0xff]
                  %1382 = vst [vmem:[%s1252 + $0x100] sm:$0xff] %v1381
                  %v1383 = vld [vmem:[%s1251 + $0x208] sm:$0xff]
                  %1384 = vst [vmem:[%s1252 + $0x104] sm:$0xff] %v1383
                  %v1385 = vld [vmem:[%s1251 + $0x210] sm:$0xff]
                  %1386 = vst [vmem:[%s1252 + $0x108] sm:$0xff] %v1385
                  %v1387 = vld [vmem:[%s1251 + $0x218] sm:$0xff]
                  %1388 = vst [vmem:[%s1252 + $0x10c] sm:$0xff] %v1387
                  %v1389 = vld [vmem:[%s1251 + $0x220] sm:$0xff]
                  %1390 = vst [vmem:[%s1252 + $0x110] sm:$0xff] %v1389
                  %v1391 = vld [vmem:[%s1251 + $0x228] sm:$0xff]
                  %1392 = vst [vmem:[%s1252 + $0x114] sm:$0xff] %v1391
                  %v1393 = vld [vmem:[%s1251 + $0x230] sm:$0xff]
                  %1394 = vst [vmem:[%s1252 + $0x118] sm:$0xff] %v1393
                  %v1395 = vld [vmem:[%s1251 + $0x238] sm:$0xff]
                  %1396 = vst [vmem:[%s1252 + $0x11c] sm:$0xff] %v1395
                  %v1397 = vld [vmem:[%s1251 + $0x240] sm:$0xff]
                  %1398 = vst [vmem:[%s1252 + $0x120] sm:$0xff] %v1397
                  %v1399 = vld [vmem:[%s1251 + $0x248] sm:$0xff]
                  %1400 = vst [vmem:[%s1252 + $0x124] sm:$0xff] %v1399
                  %v1401 = vld [vmem:[%s1251 + $0x250] sm:$0xff]
                  %1402 = vst [vmem:[%s1252 + $0x128] sm:$0xff] %v1401
                  %v1403 = vld [vmem:[%s1251 + $0x258] sm:$0xff]
                  %1404 = vst [vmem:[%s1252 + $0x12c] sm:$0xff] %v1403
                  %v1405 = vld [vmem:[%s1251 + $0x260] sm:$0xff]
                  %1406 = vst [vmem:[%s1252 + $0x130] sm:$0xff] %v1405
                  %v1407 = vld [vmem:[%s1251 + $0x268] sm:$0xff]
                  %1408 = vst [vmem:[%s1252 + $0x134] sm:$0xff] %v1407
                  %v1409 = vld [vmem:[%s1251 + $0x270] sm:$0xff]
                  %1410 = vst [vmem:[%s1252 + $0x138] sm:$0xff] %v1409
                  %v1411 = vld [vmem:[%s1251 + $0x278] sm:$0xff]
                  %1412 = vst [vmem:[%s1252 + $0x13c] sm:$0xff] %v1411
                  %v1413 = vld [vmem:[%s1251 + $0x280] sm:$0xff]
                  %1414 = vst [vmem:[%s1252 + $0x140] sm:$0xff] %v1413
                  %v1415 = vld [vmem:[%s1251 + $0x288] sm:$0xff]
                  %1416 = vst [vmem:[%s1252 + $0x144] sm:$0xff] %v1415
                  %v1417 = vld [vmem:[%s1251 + $0x290] sm:$0xff]
                  %1418 = vst [vmem:[%s1252 + $0x148] sm:$0xff] %v1417
                  %v1419 = vld [vmem:[%s1251 + $0x298] sm:$0xff]
                  %1420 = vst [vmem:[%s1252 + $0x14c] sm:$0xff] %v1419
                  %v1421 = vld [vmem:[%s1251 + $0x2a0] sm:$0xff]
                  %1422 = vst [vmem:[%s1252 + $0x150] sm:$0xff] %v1421
                  %v1423 = vld [vmem:[%s1251 + $0x2a8] sm:$0xff]
                  %1424 = vst [vmem:[%s1252 + $0x154] sm:$0xff] %v1423
                  %v1425 = vld [vmem:[%s1251 + $0x2b0] sm:$0xff]
                  %1426 = vst [vmem:[%s1252 + $0x158] sm:$0xff] %v1425
                  %v1427 = vld [vmem:[%s1251 + $0x2b8] sm:$0xff]
                  %1428 = vst [vmem:[%s1252 + $0x15c] sm:$0xff] %v1427
                  %v1429 = vld [vmem:[%s1251 + $0x2c0] sm:$0xff]
                  %1430 = vst [vmem:[%s1252 + $0x160] sm:$0xff] %v1429
                  %v1431 = vld [vmem:[%s1251 + $0x2c8] sm:$0xff]
                  %1432 = vst [vmem:[%s1252 + $0x164] sm:$0xff] %v1431
                  %v1433 = vld [vmem:[%s1251 + $0x2d0] sm:$0xff]
                  %1434 = vst [vmem:[%s1252 + $0x168] sm:$0xff] %v1433
                  %v1435 = vld [vmem:[%s1251 + $0x2d8] sm:$0xff]
                  %1436 = vst [vmem:[%s1252 + $0x16c] sm:$0xff] %v1435
                  %v1437 = vld [vmem:[%s1251 + $0x2e0] sm:$0xff]
                  %1438 = vst [vmem:[%s1252 + $0x170] sm:$0xff] %v1437
                  %v1439 = vld [vmem:[%s1251 + $0x2e8] sm:$0xff]
                  %1440 = vst [vmem:[%s1252 + $0x174] sm:$0xff] %v1439
                  %v1441 = vld [vmem:[%s1251 + $0x2f0] sm:$0xff]
                  %1442 = vst [vmem:[%s1252 + $0x178] sm:$0xff] %v1441
                  %v1443 = vld [vmem:[%s1251 + $0x2f8] sm:$0xff]
                  %1444 = vst [vmem:[%s1252 + $0x17c] sm:$0xff] %v1443
                  %v1445 = vld [vmem:[%s1251 + $0x300] sm:$0xff]
                  %1446 = vst [vmem:[%s1252 + $0x180] sm:$0xff] %v1445
                  %v1447 = vld [vmem:[%s1251 + $0x308] sm:$0xff]
                  %1448 = vst [vmem:[%s1252 + $0x184] sm:$0xff] %v1447
                  %v1449 = vld [vmem:[%s1251 + $0x310] sm:$0xff]
                  %1450 = vst [vmem:[%s1252 + $0x188] sm:$0xff] %v1449
                  %v1451 = vld [vmem:[%s1251 + $0x318] sm:$0xff]
                  %1452 = vst [vmem:[%s1252 + $0x18c] sm:$0xff] %v1451
                  %v1453 = vld [vmem:[%s1251 + $0x320] sm:$0xff]
                  %1454 = vst [vmem:[%s1252 + $0x190] sm:$0xff] %v1453
                  %v1455 = vld [vmem:[%s1251 + $0x328] sm:$0xff]
                  %1456 = vst [vmem:[%s1252 + $0x194] sm:$0xff] %v1455
                  %v1457 = vld [vmem:[%s1251 + $0x330] sm:$0xff]
                  %1458 = vst [vmem:[%s1252 + $0x198] sm:$0xff] %v1457
                  %v1459 = vld [vmem:[%s1251 + $0x338] sm:$0xff]
                  %1460 = vst [vmem:[%s1252 + $0x19c] sm:$0xff] %v1459
                  %v1461 = vld [vmem:[%s1251 + $0x340] sm:$0xff]
                  %1462 = vst [vmem:[%s1252 + $0x1a0] sm:$0xff] %v1461
                  %v1463 = vld [vmem:[%s1251 + $0x348] sm:$0xff]
                  %1464 = vst [vmem:[%s1252 + $0x1a4] sm:$0xff] %v1463
                  %v1465 = vld [vmem:[%s1251 + $0x350] sm:$0xff]
                  %1466 = vst [vmem:[%s1252 + $0x1a8] sm:$0xff] %v1465
                  %v1467 = vld [vmem:[%s1251 + $0x358] sm:$0xff]
                  %1468 = vst [vmem:[%s1252 + $0x1ac] sm:$0xff] %v1467
                  %v1469 = vld [vmem:[%s1251 + $0x360] sm:$0xff]
                  %1470 = vst [vmem:[%s1252 + $0x1b0] sm:$0xff] %v1469
                  %v1471 = vld [vmem:[%s1251 + $0x368] sm:$0xff]
                  %1472 = vst [vmem:[%s1252 + $0x1b4] sm:$0xff] %v1471
                  %v1473 = vld [vmem:[%s1251 + $0x370] sm:$0xff]
                  %1474 = vst [vmem:[%s1252 + $0x1b8] sm:$0xff] %v1473
                  %v1475 = vld [vmem:[%s1251 + $0x378] sm:$0xff]
                  %1476 = vst [vmem:[%s1252 + $0x1bc] sm:$0xff] %v1475
                  %v1477 = vld [vmem:[%s1251 + $0x380] sm:$0xff]
                  %1478 = vst [vmem:[%s1252 + $0x1c0] sm:$0xff] %v1477
                  %v1479 = vld [vmem:[%s1251 + $0x388] sm:$0xff]
                  %1480 = vst [vmem:[%s1252 + $0x1c4] sm:$0xff] %v1479
                  %v1481 = vld [vmem:[%s1251 + $0x390] sm:$0xff]
                  %1482 = vst [vmem:[%s1252 + $0x1c8] sm:$0xff] %v1481
                  %v1483 = vld [vmem:[%s1251 + $0x398] sm:$0xff]
                  %1484 = vst [vmem:[%s1252 + $0x1cc] sm:$0xff] %v1483
                  %v1485 = vld [vmem:[%s1251 + $0x3a0] sm:$0xff]
                  %1486 = vst [vmem:[%s1252 + $0x1d0] sm:$0xff] %v1485
                  %v1487 = vld [vmem:[%s1251 + $0x3a8] sm:$0xff]
                  %1488 = vst [vmem:[%s1252 + $0x1d4] sm:$0xff] %v1487
                  %v1489 = vld [vmem:[%s1251 + $0x3b0] sm:$0xff]
                  %1490 = vst [vmem:[%s1252 + $0x1d8] sm:$0xff] %v1489
                  %v1491 = vld [vmem:[%s1251 + $0x3b8] sm:$0xff]
                  %1492 = vst [vmem:[%s1252 + $0x1dc] sm:$0xff] %v1491
                  %v1493 = vld [vmem:[%s1251 + $0x3c0] sm:$0xff]
                  %1494 = vst [vmem:[%s1252 + $0x1e0] sm:$0xff] %v1493
                  %v1495 = vld [vmem:[%s1251 + $0x3c8] sm:$0xff]
                  %1496 = vst [vmem:[%s1252 + $0x1e4] sm:$0xff] %v1495
                  %v1497 = vld [vmem:[%s1251 + $0x3d0] sm:$0xff]
                  %1498 = vst [vmem:[%s1252 + $0x1e8] sm:$0xff] %v1497
                  %v1499 = vld [vmem:[%s1251 + $0x3d8] sm:$0xff]
                  %1500 = vst [vmem:[%s1252 + $0x1ec] sm:$0xff] %v1499
                  %v1501 = vld [vmem:[%s1251 + $0x3e0] sm:$0xff]
                  %1502 = vst [vmem:[%s1252 + $0x1f0] sm:$0xff] %v1501
                  %v1503 = vld [vmem:[%s1251 + $0x3e8] sm:$0xff]
                  %1504 = vst [vmem:[%s1252 + $0x1f4] sm:$0xff] %v1503
                  %v1505 = vld [vmem:[%s1251 + $0x3f0] sm:$0xff]
                  %1506 = vst [vmem:[%s1252 + $0x1f8] sm:$0xff] %v1505
                  %v1507 = vld [vmem:[%s1251 + $0x3f8] sm:$0xff]
                  %1508 = vst [vmem:[%s1252 + $0x1fc] sm:$0xff] %v1507
                  %v1509 = vld [vmem:[%s1251 + $0x400] sm:$0xff]
                  %1510 = vst [vmem:[%s1252 + $0x200] sm:$0xff] %v1509
                  %v1511 = vld [vmem:[%s1251 + $0x408] sm:$0xff]
                  %1512 = vst [vmem:[%s1252 + $0x204] sm:$0xff] %v1511
                  %v1513 = vld [vmem:[%s1251 + $0x410] sm:$0xff]
                  %1514 = vst [vmem:[%s1252 + $0x208] sm:$0xff] %v1513
                  %v1515 = vld [vmem:[%s1251 + $0x418] sm:$0xff]
                  %1516 = vst [vmem:[%s1252 + $0x20c] sm:$0xff] %v1515
                  %v1517 = vld [vmem:[%s1251 + $0x420] sm:$0xff]
                  %1518 = vst [vmem:[%s1252 + $0x210] sm:$0xff] %v1517
                  %v1519 = vld [vmem:[%s1251 + $0x428] sm:$0xff]
                  %1520 = vst [vmem:[%s1252 + $0x214] sm:$0xff] %v1519
                  %v1521 = vld [vmem:[%s1251 + $0x430] sm:$0xff]
                  %1522 = vst [vmem:[%s1252 + $0x218] sm:$0xff] %v1521
                  %v1523 = vld [vmem:[%s1251 + $0x438] sm:$0xff]
                  %1524 = vst [vmem:[%s1252 + $0x21c] sm:$0xff] %v1523
                  %v1525 = vld [vmem:[%s1251 + $0x440] sm:$0xff]
                  %1526 = vst [vmem:[%s1252 + $0x220] sm:$0xff] %v1525
                  %v1527 = vld [vmem:[%s1251 + $0x448] sm:$0xff]
                  %1528 = vst [vmem:[%s1252 + $0x224] sm:$0xff] %v1527
                  %v1529 = vld [vmem:[%s1251 + $0x450] sm:$0xff]
                  %1530 = vst [vmem:[%s1252 + $0x228] sm:$0xff] %v1529
                  %v1531 = vld [vmem:[%s1251 + $0x458] sm:$0xff]
                  %1532 = vst [vmem:[%s1252 + $0x22c] sm:$0xff] %v1531
                  %v1533 = vld [vmem:[%s1251 + $0x460] sm:$0xff]
                  %1534 = vst [vmem:[%s1252 + $0x230] sm:$0xff] %v1533
                  %v1535 = vld [vmem:[%s1251 + $0x468] sm:$0xff]
                  %1536 = vst [vmem:[%s1252 + $0x234] sm:$0xff] %v1535
                  %v1537 = vld [vmem:[%s1251 + $0x470] sm:$0xff]
                  %1538 = vst [vmem:[%s1252 + $0x238] sm:$0xff] %v1537
                  %v1539 = vld [vmem:[%s1251 + $0x478] sm:$0xff]
                  %1540 = vst [vmem:[%s1252 + $0x23c] sm:$0xff] %v1539
                  %v1541 = vld [vmem:[%s1251 + $0x480] sm:$0xff]
                  %1542 = vst [vmem:[%s1252 + $0x240] sm:$0xff] %v1541
                  %v1543 = vld [vmem:[%s1251 + $0x488] sm:$0xff]
                  %1544 = vst [vmem:[%s1252 + $0x244] sm:$0xff] %v1543
                  %v1545 = vld [vmem:[%s1251 + $0x490] sm:$0xff]
                  %1546 = vst [vmem:[%s1252 + $0x248] sm:$0xff] %v1545
                  %v1547 = vld [vmem:[%s1251 + $0x498] sm:$0xff]
                  %1548 = vst [vmem:[%s1252 + $0x24c] sm:$0xff] %v1547
                  %v1549 = vld [vmem:[%s1251 + $0x4a0] sm:$0xff]
                  %1550 = vst [vmem:[%s1252 + $0x250] sm:$0xff] %v1549
                  %v1551 = vld [vmem:[%s1251 + $0x4a8] sm:$0xff]
                  %1552 = vst [vmem:[%s1252 + $0x254] sm:$0xff] %v1551
                  %v1553 = vld [vmem:[%s1251 + $0x4b0] sm:$0xff]
                  %1554 = vst [vmem:[%s1252 + $0x258] sm:$0xff] %v1553
                  %v1555 = vld [vmem:[%s1251 + $0x4b8] sm:$0xff]
                  %1556 = vst [vmem:[%s1252 + $0x25c] sm:$0xff] %v1555
                  %v1557 = vld [vmem:[%s1251 + $0x4c0] sm:$0xff]
                  %1558 = vst [vmem:[%s1252 + $0x260] sm:$0xff] %v1557
                  %v1559 = vld [vmem:[%s1251 + $0x4c8] sm:$0xff]
                  %1560 = vst [vmem:[%s1252 + $0x264] sm:$0xff] %v1559
                  %v1561 = vld [vmem:[%s1251 + $0x4d0] sm:$0xff]
                  %1562 = vst [vmem:[%s1252 + $0x268] sm:$0xff] %v1561
                  %v1563 = vld [vmem:[%s1251 + $0x4d8] sm:$0xff]
                  %1564 = vst [vmem:[%s1252 + $0x26c] sm:$0xff] %v1563
                  %v1565 = vld [vmem:[%s1251 + $0x4e0] sm:$0xff]
                  %1566 = vst [vmem:[%s1252 + $0x270] sm:$0xff] %v1565
                  %v1567 = vld [vmem:[%s1251 + $0x4e8] sm:$0xff]
                  %1568 = vst [vmem:[%s1252 + $0x274] sm:$0xff] %v1567
                  %v1569 = vld [vmem:[%s1251 + $0x4f0] sm:$0xff]
                  %1570 = vst [vmem:[%s1252 + $0x278] sm:$0xff] %v1569
                  %v1571 = vld [vmem:[%s1251 + $0x4f8] sm:$0xff]
                  %1572 = vst [vmem:[%s1252 + $0x27c] sm:$0xff] %v1571
                  %v1573 = vld [vmem:[%s1251 + $0x500] sm:$0xff]
                  %1574 = vst [vmem:[%s1252 + $0x280] sm:$0xff] %v1573
                  %v1575 = vld [vmem:[%s1251 + $0x508] sm:$0xff]
                  %1576 = vst [vmem:[%s1252 + $0x284] sm:$0xff] %v1575
                  %v1577 = vld [vmem:[%s1251 + $0x510] sm:$0xff]
                  %1578 = vst [vmem:[%s1252 + $0x288] sm:$0xff] %v1577
                  %v1579 = vld [vmem:[%s1251 + $0x518] sm:$0xff]
                  %1580 = vst [vmem:[%s1252 + $0x28c] sm:$0xff] %v1579
                  %v1581 = vld [vmem:[%s1251 + $0x520] sm:$0xff]
                  %1582 = vst [vmem:[%s1252 + $0x290] sm:$0xff] %v1581
                  %v1583 = vld [vmem:[%s1251 + $0x528] sm:$0xff]
                  %1584 = vst [vmem:[%s1252 + $0x294] sm:$0xff] %v1583
                  %v1585 = vld [vmem:[%s1251 + $0x530] sm:$0xff]
                  %1586 = vst [vmem:[%s1252 + $0x298] sm:$0xff] %v1585
                  %v1587 = vld [vmem:[%s1251 + $0x538] sm:$0xff]
                  %1588 = vst [vmem:[%s1252 + $0x29c] sm:$0xff] %v1587
                  %v1589 = vld [vmem:[%s1251 + $0x540] sm:$0xff]
                  %1590 = vst [vmem:[%s1252 + $0x2a0] sm:$0xff] %v1589
                  %v1591 = vld [vmem:[%s1251 + $0x548] sm:$0xff]
                  %1592 = vst [vmem:[%s1252 + $0x2a4] sm:$0xff] %v1591
                  %v1593 = vld [vmem:[%s1251 + $0x550] sm:$0xff]
                  %1594 = vst [vmem:[%s1252 + $0x2a8] sm:$0xff] %v1593
                  %v1595 = vld [vmem:[%s1251 + $0x558] sm:$0xff]
                  %1596 = vst [vmem:[%s1252 + $0x2ac] sm:$0xff] %v1595
                  %v1597 = vld [vmem:[%s1251 + $0x560] sm:$0xff]
                  %1598 = vst [vmem:[%s1252 + $0x2b0] sm:$0xff] %v1597
                  %v1599 = vld [vmem:[%s1251 + $0x568] sm:$0xff]
                  %1600 = vst [vmem:[%s1252 + $0x2b4] sm:$0xff] %v1599
                  %v1601 = vld [vmem:[%s1251 + $0x570] sm:$0xff]
                  %1602 = vst [vmem:[%s1252 + $0x2b8] sm:$0xff] %v1601
                  %v1603 = vld [vmem:[%s1251 + $0x578] sm:$0xff]
                  %1604 = vst [vmem:[%s1252 + $0x2bc] sm:$0xff] %v1603
                  %v1605 = vld [vmem:[%s1251 + $0x580] sm:$0xff]
                  %1606 = vst [vmem:[%s1252 + $0x2c0] sm:$0xff] %v1605
                  %v1607 = vld [vmem:[%s1251 + $0x588] sm:$0xff]
                  %1608 = vst [vmem:[%s1252 + $0x2c4] sm:$0xff] %v1607
                  %v1609 = vld [vmem:[%s1251 + $0x590] sm:$0xff]
                  %1610 = vst [vmem:[%s1252 + $0x2c8] sm:$0xff] %v1609
                  %v1611 = vld [vmem:[%s1251 + $0x598] sm:$0xff]
                  %1612 = vst [vmem:[%s1252 + $0x2cc] sm:$0xff] %v1611
                  %v1613 = vld [vmem:[%s1251 + $0x5a0] sm:$0xff]
                  %1614 = vst [vmem:[%s1252 + $0x2d0] sm:$0xff] %v1613
                  %v1615 = vld [vmem:[%s1251 + $0x5a8] sm:$0xff]
                  %1616 = vst [vmem:[%s1252 + $0x2d4] sm:$0xff] %v1615
                  %v1617 = vld [vmem:[%s1251 + $0x5b0] sm:$0xff]
                  %1618 = vst [vmem:[%s1252 + $0x2d8] sm:$0xff] %v1617
                  %v1619 = vld [vmem:[%s1251 + $0x5b8] sm:$0xff]
                  %1620 = vst [vmem:[%s1252 + $0x2dc] sm:$0xff] %v1619
                  %v1621 = vld [vmem:[%s1251 + $0x5c0] sm:$0xff]
                  %1622 = vst [vmem:[%s1252 + $0x2e0] sm:$0xff] %v1621
                  %v1623 = vld [vmem:[%s1251 + $0x5c8] sm:$0xff]
                  %1624 = vst [vmem:[%s1252 + $0x2e4] sm:$0xff] %v1623
                  %v1625 = vld [vmem:[%s1251 + $0x5d0] sm:$0xff]
                  %1626 = vst [vmem:[%s1252 + $0x2e8] sm:$0xff] %v1625
                  %v1627 = vld [vmem:[%s1251 + $0x5d8] sm:$0xff]
                  %1628 = vst [vmem:[%s1252 + $0x2ec] sm:$0xff] %v1627
                  %v1629 = vld [vmem:[%s1251 + $0x5e0] sm:$0xff]
                  %1630 = vst [vmem:[%s1252 + $0x2f0] sm:$0xff] %v1629
                  %v1631 = vld [vmem:[%s1251 + $0x5e8] sm:$0xff]
                  %1632 = vst [vmem:[%s1252 + $0x2f4] sm:$0xff] %v1631
                  %v1633 = vld [vmem:[%s1251 + $0x5f0] sm:$0xff]
                  %1634 = vst [vmem:[%s1252 + $0x2f8] sm:$0xff] %v1633
                  %v1635 = vld [vmem:[%s1251 + $0x5f8] sm:$0xff]
                  %1636 = vst [vmem:[%s1252 + $0x2fc] sm:$0xff] %v1635
                  %v1637 = vld [vmem:[%s1251 + $0x600] sm:$0xff]
                  %1638 = vst [vmem:[%s1252 + $0x300] sm:$0xff] %v1637
                  %v1639 = vld [vmem:[%s1251 + $0x608] sm:$0xff]
                  %1640 = vst [vmem:[%s1252 + $0x304] sm:$0xff] %v1639
                  %v1641 = vld [vmem:[%s1251 + $0x610] sm:$0xff]
                  %1642 = vst [vmem:[%s1252 + $0x308] sm:$0xff] %v1641
                  %v1643 = vld [vmem:[%s1251 + $0x618] sm:$0xff]
                  %1644 = vst [vmem:[%s1252 + $0x30c] sm:$0xff] %v1643
                  %v1645 = vld [vmem:[%s1251 + $0x620] sm:$0xff]
                  %1646 = vst [vmem:[%s1252 + $0x310] sm:$0xff] %v1645
                  %v1647 = vld [vmem:[%s1251 + $0x628] sm:$0xff]
                  %1648 = vst [vmem:[%s1252 + $0x314] sm:$0xff] %v1647
                  %v1649 = vld [vmem:[%s1251 + $0x630] sm:$0xff]
                  %1650 = vst [vmem:[%s1252 + $0x318] sm:$0xff] %v1649
                  %v1651 = vld [vmem:[%s1251 + $0x638] sm:$0xff]
                  %1652 = vst [vmem:[%s1252 + $0x31c] sm:$0xff] %v1651
                  %v1653 = vld [vmem:[%s1251 + $0x640] sm:$0xff]
                  %1654 = vst [vmem:[%s1252 + $0x320] sm:$0xff] %v1653
                  %v1655 = vld [vmem:[%s1251 + $0x648] sm:$0xff]
                  %1656 = vst [vmem:[%s1252 + $0x324] sm:$0xff] %v1655
                  %v1657 = vld [vmem:[%s1251 + $0x650] sm:$0xff]
                  %1658 = vst [vmem:[%s1252 + $0x328] sm:$0xff] %v1657
                  %v1659 = vld [vmem:[%s1251 + $0x658] sm:$0xff]
                  %1660 = vst [vmem:[%s1252 + $0x32c] sm:$0xff] %v1659
                  %v1661 = vld [vmem:[%s1251 + $0x660] sm:$0xff]
                  %1662 = vst [vmem:[%s1252 + $0x330] sm:$0xff] %v1661
                  %v1663 = vld [vmem:[%s1251 + $0x668] sm:$0xff]
                  %1664 = vst [vmem:[%s1252 + $0x334] sm:$0xff] %v1663
                  %v1665 = vld [vmem:[%s1251 + $0x670] sm:$0xff]
                  %1666 = vst [vmem:[%s1252 + $0x338] sm:$0xff] %v1665
                  %v1667 = vld [vmem:[%s1251 + $0x678] sm:$0xff]
                  %1668 = vst [vmem:[%s1252 + $0x33c] sm:$0xff] %v1667
                  %v1669 = vld [vmem:[%s1251 + $0x680] sm:$0xff]
                  %1670 = vst [vmem:[%s1252 + $0x340] sm:$0xff] %v1669
                  %v1671 = vld [vmem:[%s1251 + $0x688] sm:$0xff]
                  %1672 = vst [vmem:[%s1252 + $0x344] sm:$0xff] %v1671
                  %v1673 = vld [vmem:[%s1251 + $0x690] sm:$0xff]
                  %1674 = vst [vmem:[%s1252 + $0x348] sm:$0xff] %v1673
                  %v1675 = vld [vmem:[%s1251 + $0x698] sm:$0xff]
                  %1676 = vst [vmem:[%s1252 + $0x34c] sm:$0xff] %v1675
                  %v1677 = vld [vmem:[%s1251 + $0x6a0] sm:$0xff]
                  %1678 = vst [vmem:[%s1252 + $0x350] sm:$0xff] %v1677
                  %v1679 = vld [vmem:[%s1251 + $0x6a8] sm:$0xff]
                  %1680 = vst [vmem:[%s1252 + $0x354] sm:$0xff] %v1679
                  %v1681 = vld [vmem:[%s1251 + $0x6b0] sm:$0xff]
                  %1682 = vst [vmem:[%s1252 + $0x358] sm:$0xff] %v1681
                  %v1683 = vld [vmem:[%s1251 + $0x6b8] sm:$0xff]
                  %1684 = vst [vmem:[%s1252 + $0x35c] sm:$0xff] %v1683
                  %v1685 = vld [vmem:[%s1251 + $0x6c0] sm:$0xff]
                  %1686 = vst [vmem:[%s1252 + $0x360] sm:$0xff] %v1685
                  %v1687 = vld [vmem:[%s1251 + $0x6c8] sm:$0xff]
                  %1688 = vst [vmem:[%s1252 + $0x364] sm:$0xff] %v1687
                  %v1689 = vld [vmem:[%s1251 + $0x6d0] sm:$0xff]
                  %1690 = vst [vmem:[%s1252 + $0x368] sm:$0xff] %v1689
                  %v1691 = vld [vmem:[%s1251 + $0x6d8] sm:$0xff]
                  %1692 = vst [vmem:[%s1252 + $0x36c] sm:$0xff] %v1691
                  %v1693 = vld [vmem:[%s1251 + $0x6e0] sm:$0xff]
                  %1694 = vst [vmem:[%s1252 + $0x370] sm:$0xff] %v1693
                  %v1695 = vld [vmem:[%s1251 + $0x6e8] sm:$0xff]
                  %1696 = vst [vmem:[%s1252 + $0x374] sm:$0xff] %v1695
                  %v1697 = vld [vmem:[%s1251 + $0x6f0] sm:$0xff]
                  %1698 = vst [vmem:[%s1252 + $0x378] sm:$0xff] %v1697
                  %v1699 = vld [vmem:[%s1251 + $0x6f8] sm:$0xff]
                  %1700 = vst [vmem:[%s1252 + $0x37c] sm:$0xff] %v1699
                  %v1701 = vld [vmem:[%s1251 + $0x700] sm:$0xff]
                  %1702 = vst [vmem:[%s1252 + $0x380] sm:$0xff] %v1701
                  %v1703 = vld [vmem:[%s1251 + $0x708] sm:$0xff]
                  %1704 = vst [vmem:[%s1252 + $0x384] sm:$0xff] %v1703
                  %v1705 = vld [vmem:[%s1251 + $0x710] sm:$0xff]
                  %1706 = vst [vmem:[%s1252 + $0x388] sm:$0xff] %v1705
                  %v1707 = vld [vmem:[%s1251 + $0x718] sm:$0xff]
                  %1708 = vst [vmem:[%s1252 + $0x38c] sm:$0xff] %v1707
                  %v1709 = vld [vmem:[%s1251 + $0x720] sm:$0xff]
                  %1710 = vst [vmem:[%s1252 + $0x390] sm:$0xff] %v1709
                  %v1711 = vld [vmem:[%s1251 + $0x728] sm:$0xff]
                  %1712 = vst [vmem:[%s1252 + $0x394] sm:$0xff] %v1711
                  %v1713 = vld [vmem:[%s1251 + $0x730] sm:$0xff]
                  %1714 = vst [vmem:[%s1252 + $0x398] sm:$0xff] %v1713
                  %v1715 = vld [vmem:[%s1251 + $0x738] sm:$0xff]
                  %1716 = vst [vmem:[%s1252 + $0x39c] sm:$0xff] %v1715
                  %v1717 = vld [vmem:[%s1251 + $0x740] sm:$0xff]
                  %1718 = vst [vmem:[%s1252 + $0x3a0] sm:$0xff] %v1717
                  %v1719 = vld [vmem:[%s1251 + $0x748] sm:$0xff]
                  %1720 = vst [vmem:[%s1252 + $0x3a4] sm:$0xff] %v1719
                  %v1721 = vld [vmem:[%s1251 + $0x750] sm:$0xff]
                  %1722 = vst [vmem:[%s1252 + $0x3a8] sm:$0xff] %v1721
                  %v1723 = vld [vmem:[%s1251 + $0x758] sm:$0xff]
                  %1724 = vst [vmem:[%s1252 + $0x3ac] sm:$0xff] %v1723
                  %v1725 = vld [vmem:[%s1251 + $0x760] sm:$0xff]
                  %1726 = vst [vmem:[%s1252 + $0x3b0] sm:$0xff] %v1725
                  %v1727 = vld [vmem:[%s1251 + $0x768] sm:$0xff]
                  %1728 = vst [vmem:[%s1252 + $0x3b4] sm:$0xff] %v1727
                  %v1729 = vld [vmem:[%s1251 + $0x770] sm:$0xff]
                  %1730 = vst [vmem:[%s1252 + $0x3b8] sm:$0xff] %v1729
                  %v1731 = vld [vmem:[%s1251 + $0x778] sm:$0xff]
                  %1732 = vst [vmem:[%s1252 + $0x3bc] sm:$0xff] %v1731
                  %v1733 = vld [vmem:[%s1251 + $0x780] sm:$0xff]
                  %1734 = vst [vmem:[%s1252 + $0x3c0] sm:$0xff] %v1733
                  %v1735 = vld [vmem:[%s1251 + $0x788] sm:$0xff]
                  %1736 = vst [vmem:[%s1252 + $0x3c4] sm:$0xff] %v1735
                  %v1737 = vld [vmem:[%s1251 + $0x790] sm:$0xff]
                  %1738 = vst [vmem:[%s1252 + $0x3c8] sm:$0xff] %v1737
                  %v1739 = vld [vmem:[%s1251 + $0x798] sm:$0xff]
                  %1740 = vst [vmem:[%s1252 + $0x3cc] sm:$0xff] %v1739
                  %v1741 = vld [vmem:[%s1251 + $0x7a0] sm:$0xff]
                  %1742 = vst [vmem:[%s1252 + $0x3d0] sm:$0xff] %v1741
                  %v1743 = vld [vmem:[%s1251 + $0x7a8] sm:$0xff]
                  %1744 = vst [vmem:[%s1252 + $0x3d4] sm:$0xff] %v1743
                  %v1745 = vld [vmem:[%s1251 + $0x7b0] sm:$0xff]
                  %1746 = vst [vmem:[%s1252 + $0x3d8] sm:$0xff] %v1745
                  %v1747 = vld [vmem:[%s1251 + $0x7b8] sm:$0xff]
                  %1748 = vst [vmem:[%s1252 + $0x3dc] sm:$0xff] %v1747
                  %v1749 = vld [vmem:[%s1251 + $0x7c0] sm:$0xff]
                  %1750 = vst [vmem:[%s1252 + $0x3e0] sm:$0xff] %v1749
                  %v1751 = vld [vmem:[%s1251 + $0x7c8] sm:$0xff]
                  %1752 = vst [vmem:[%s1252 + $0x3e4] sm:$0xff] %v1751
                  %v1753 = vld [vmem:[%s1251 + $0x7d0] sm:$0xff]
                  %1754 = vst [vmem:[%s1252 + $0x3e8] sm:$0xff] %v1753
                  %v1755 = vld [vmem:[%s1251 + $0x7d8] sm:$0xff]
                  %1756 = vst [vmem:[%s1252 + $0x3ec] sm:$0xff] %v1755
                  %v1757 = vld [vmem:[%s1251 + $0x7e0] sm:$0xff]
                  %1758 = vst [vmem:[%s1252 + $0x3f0] sm:$0xff] %v1757
                  %v1759 = vld [vmem:[%s1251 + $0x7e8] sm:$0xff]
                  %1760 = vst [vmem:[%s1252 + $0x3f4] sm:$0xff] %v1759
                  %v1761 = vld [vmem:[%s1251 + $0x7f0] sm:$0xff]
                  %1762 = vst [vmem:[%s1252 + $0x3f8] sm:$0xff] %v1761
                  %v1763 = vld [vmem:[%s1251 + $0x7f8] sm:$0xff]
                  %1764 = vst [vmem:[%s1252 + $0x3fc] sm:$0xff] %v1763
                  %s1765 = sadd.s32 1, %s1250
                  %p1766 = scmp.ge.s32.totalorder %s1765, 0
                  %s1767 = scalar_select %p1766, 0, %s1765
                  %s1768 = smul.u32 %s1767, 8
                  %s1769 = smul.u32 %s1767, 8
                  %s1770 = scalar_lea.vmem %s183, %s1768
                  %s1771 = scalar_lea.vmem %s178, %s1769 [#allocation3]
                $region63: #{discriminator_forward.9} parent=57 // loop_footer
                  %s1249 = sadd.s32 1, %s1245
                $region64: #{discriminator_forward.9} parent=57 // loop_footer_branch
                  %1244 = sbr.rel target = $region60
                $region65: #{discriminator_forward.9} parent=57 // loop_exit
                  _
                %s1773 = ssub.s32 16, 1
                loop: start=0, step=1, limit=1
                $region66: #{discriminator_forward.9} parent=57 // loop_pre_header
                  _
                $region67: #{discriminator_forward.9} parent=57 // loop_header
                  %s1775 = sphi 0, %s1779
                  %p1776 = scmp.ge.s32.totalorder %s1775, 1
                  %s1780 = sphi %s183, %s183
                  %s1781 = sphi %s178, %s178
                $region68: #{discriminator_forward.9} parent=57 // loop_header_branch
                  %1778 = sbr.rel (%p1776) target = $region72
                $region69: #{discriminator_forward.9} parent=57 // loop_body
                  %v1782 = vld [vmem:[%s1780] sm:%s1773]
                  %1783 = vst [vmem:[%s1781] sm:%s1773] %v1782
                  %v1784 = vld [vmem:[%s1780 + $0x8] sm:%s1773]
                  %1785 = vst [vmem:[%s1781 + $0x4] sm:%s1773] %v1784
                  %v1786 = vld [vmem:[%s1780 + $0x10] sm:%s1773]
                  %1787 = vst [vmem:[%s1781 + $0x8] sm:%s1773] %v1786
                  %v1788 = vld [vmem:[%s1780 + $0x18] sm:%s1773]
                  %1789 = vst [vmem:[%s1781 + $0xc] sm:%s1773] %v1788
                  %v1790 = vld [vmem:[%s1780 + $0x20] sm:%s1773]
                  %1791 = vst [vmem:[%s1781 + $0x10] sm:%s1773] %v1790
                  %v1792 = vld [vmem:[%s1780 + $0x28] sm:%s1773]
                  %1793 = vst [vmem:[%s1781 + $0x14] sm:%s1773] %v1792
                  %v1794 = vld [vmem:[%s1780 + $0x30] sm:%s1773]
                  %1795 = vst [vmem:[%s1781 + $0x18] sm:%s1773] %v1794
                  %v1796 = vld [vmem:[%s1780 + $0x38] sm:%s1773]
                  %1797 = vst [vmem:[%s1781 + $0x1c] sm:%s1773] %v1796
                  %v1798 = vld [vmem:[%s1780 + $0x40] sm:%s1773]
                  %1799 = vst [vmem:[%s1781 + $0x20] sm:%s1773] %v1798
                  %v1800 = vld [vmem:[%s1780 + $0x48] sm:%s1773]
                  %1801 = vst [vmem:[%s1781 + $0x24] sm:%s1773] %v1800
                  %v1802 = vld [vmem:[%s1780 + $0x50] sm:%s1773]
                  %1803 = vst [vmem:[%s1781 + $0x28] sm:%s1773] %v1802
                  %v1804 = vld [vmem:[%s1780 + $0x58] sm:%s1773]
                  %1805 = vst [vmem:[%s1781 + $0x2c] sm:%s1773] %v1804
                  %v1806 = vld [vmem:[%s1780 + $0x60] sm:%s1773]
                  %1807 = vst [vmem:[%s1781 + $0x30] sm:%s1773] %v1806
                  %v1808 = vld [vmem:[%s1780 + $0x68] sm:%s1773]
                  %1809 = vst [vmem:[%s1781 + $0x34] sm:%s1773] %v1808
                  %v1810 = vld [vmem:[%s1780 + $0x70] sm:%s1773]
                  %1811 = vst [vmem:[%s1781 + $0x38] sm:%s1773] %v1810
                  %v1812 = vld [vmem:[%s1780 + $0x78] sm:%s1773]
                  %1813 = vst [vmem:[%s1781 + $0x3c] sm:%s1773] %v1812
                  %v1814 = vld [vmem:[%s1780 + $0x80] sm:%s1773]
                  %1815 = vst [vmem:[%s1781 + $0x40] sm:%s1773] %v1814
                  %v1816 = vld [vmem:[%s1780 + $0x88] sm:%s1773]
                  %1817 = vst [vmem:[%s1781 + $0x44] sm:%s1773] %v1816
                  %v1818 = vld [vmem:[%s1780 + $0x90] sm:%s1773]
                  %1819 = vst [vmem:[%s1781 + $0x48] sm:%s1773] %v1818
                  %v1820 = vld [vmem:[%s1780 + $0x98] sm:%s1773]
                  %1821 = vst [vmem:[%s1781 + $0x4c] sm:%s1773] %v1820
                  %v1822 = vld [vmem:[%s1780 + $0xa0] sm:%s1773]
                  %1823 = vst [vmem:[%s1781 + $0x50] sm:%s1773] %v1822
                  %v1824 = vld [vmem:[%s1780 + $0xa8] sm:%s1773]
                  %1825 = vst [vmem:[%s1781 + $0x54] sm:%s1773] %v1824
                  %v1826 = vld [vmem:[%s1780 + $0xb0] sm:%s1773]
                  %1827 = vst [vmem:[%s1781 + $0x58] sm:%s1773] %v1826
                  %v1828 = vld [vmem:[%s1780 + $0xb8] sm:%s1773]
                  %1829 = vst [vmem:[%s1781 + $0x5c] sm:%s1773] %v1828
                  %v1830 = vld [vmem:[%s1780 + $0xc0] sm:%s1773]
                  %1831 = vst [vmem:[%s1781 + $0x60] sm:%s1773] %v1830
                  %v1832 = vld [vmem:[%s1780 + $0xc8] sm:%s1773]
                  %1833 = vst [vmem:[%s1781 + $0x64] sm:%s1773] %v1832
                  %v1834 = vld [vmem:[%s1780 + $0xd0] sm:%s1773]
                  %1835 = vst [vmem:[%s1781 + $0x68] sm:%s1773] %v1834
                  %v1836 = vld [vmem:[%s1780 + $0xd8] sm:%s1773]
                  %1837 = vst [vmem:[%s1781 + $0x6c] sm:%s1773] %v1836
                  %v1838 = vld [vmem:[%s1780 + $0xe0] sm:%s1773]
                  %1839 = vst [vmem:[%s1781 + $0x70] sm:%s1773] %v1838
                  %v1840 = vld [vmem:[%s1780 + $0xe8] sm:%s1773]
                  %1841 = vst [vmem:[%s1781 + $0x74] sm:%s1773] %v1840
                  %v1842 = vld [vmem:[%s1780 + $0xf0] sm:%s1773]
                  %1843 = vst [vmem:[%s1781 + $0x78] sm:%s1773] %v1842
                  %v1844 = vld [vmem:[%s1780 + $0xf8] sm:%s1773]
                  %1845 = vst [vmem:[%s1781 + $0x7c] sm:%s1773] %v1844
                  %v1846 = vld [vmem:[%s1780 + $0x100] sm:%s1773]
                  %1847 = vst [vmem:[%s1781 + $0x80] sm:%s1773] %v1846
                  %v1848 = vld [vmem:[%s1780 + $0x108] sm:%s1773]
                  %1849 = vst [vmem:[%s1781 + $0x84] sm:%s1773] %v1848
                  %v1850 = vld [vmem:[%s1780 + $0x110] sm:%s1773]
                  %1851 = vst [vmem:[%s1781 + $0x88] sm:%s1773] %v1850
                  %v1852 = vld [vmem:[%s1780 + $0x118] sm:%s1773]
                  %1853 = vst [vmem:[%s1781 + $0x8c] sm:%s1773] %v1852
                  %v1854 = vld [vmem:[%s1780 + $0x120] sm:%s1773]
                  %1855 = vst [vmem:[%s1781 + $0x90] sm:%s1773] %v1854
                  %v1856 = vld [vmem:[%s1780 + $0x128] sm:%s1773]
                  %1857 = vst [vmem:[%s1781 + $0x94] sm:%s1773] %v1856
                  %v1858 = vld [vmem:[%s1780 + $0x130] sm:%s1773]
                  %1859 = vst [vmem:[%s1781 + $0x98] sm:%s1773] %v1858
                  %v1860 = vld [vmem:[%s1780 + $0x138] sm:%s1773]
                  %1861 = vst [vmem:[%s1781 + $0x9c] sm:%s1773] %v1860
                  %v1862 = vld [vmem:[%s1780 + $0x140] sm:%s1773]
                  %1863 = vst [vmem:[%s1781 + $0xa0] sm:%s1773] %v1862
                  %v1864 = vld [vmem:[%s1780 + $0x148] sm:%s1773]
                  %1865 = vst [vmem:[%s1781 + $0xa4] sm:%s1773] %v1864
                  %v1866 = vld [vmem:[%s1780 + $0x150] sm:%s1773]
                  %1867 = vst [vmem:[%s1781 + $0xa8] sm:%s1773] %v1866
                  %v1868 = vld [vmem:[%s1780 + $0x158] sm:%s1773]
                  %1869 = vst [vmem:[%s1781 + $0xac] sm:%s1773] %v1868
                  %v1870 = vld [vmem:[%s1780 + $0x160] sm:%s1773]
                  %1871 = vst [vmem:[%s1781 + $0xb0] sm:%s1773] %v1870
                  %v1872 = vld [vmem:[%s1780 + $0x168] sm:%s1773]
                  %1873 = vst [vmem:[%s1781 + $0xb4] sm:%s1773] %v1872
                  %v1874 = vld [vmem:[%s1780 + $0x170] sm:%s1773]
                  %1875 = vst [vmem:[%s1781 + $0xb8] sm:%s1773] %v1874
                  %v1876 = vld [vmem:[%s1780 + $0x178] sm:%s1773]
                  %1877 = vst [vmem:[%s1781 + $0xbc] sm:%s1773] %v1876
                  %v1878 = vld [vmem:[%s1780 + $0x180] sm:%s1773]
                  %1879 = vst [vmem:[%s1781 + $0xc0] sm:%s1773] %v1878
                  %v1880 = vld [vmem:[%s1780 + $0x188] sm:%s1773]
                  %1881 = vst [vmem:[%s1781 + $0xc4] sm:%s1773] %v1880
                  %v1882 = vld [vmem:[%s1780 + $0x190] sm:%s1773]
                  %1883 = vst [vmem:[%s1781 + $0xc8] sm:%s1773] %v1882
                  %v1884 = vld [vmem:[%s1780 + $0x198] sm:%s1773]
                  %1885 = vst [vmem:[%s1781 + $0xcc] sm:%s1773] %v1884
                  %v1886 = vld [vmem:[%s1780 + $0x1a0] sm:%s1773]
                  %1887 = vst [vmem:[%s1781 + $0xd0] sm:%s1773] %v1886
                  %v1888 = vld [vmem:[%s1780 + $0x1a8] sm:%s1773]
                  %1889 = vst [vmem:[%s1781 + $0xd4] sm:%s1773] %v1888
                  %v1890 = vld [vmem:[%s1780 + $0x1b0] sm:%s1773]
                  %1891 = vst [vmem:[%s1781 + $0xd8] sm:%s1773] %v1890
                  %v1892 = vld [vmem:[%s1780 + $0x1b8] sm:%s1773]
                  %1893 = vst [vmem:[%s1781 + $0xdc] sm:%s1773] %v1892
                  %v1894 = vld [vmem:[%s1780 + $0x1c0] sm:%s1773]
                  %1895 = vst [vmem:[%s1781 + $0xe0] sm:%s1773] %v1894
                  %v1896 = vld [vmem:[%s1780 + $0x1c8] sm:%s1773]
                  %1897 = vst [vmem:[%s1781 + $0xe4] sm:%s1773] %v1896
                  %v1898 = vld [vmem:[%s1780 + $0x1d0] sm:%s1773]
                  %1899 = vst [vmem:[%s1781 + $0xe8] sm:%s1773] %v1898
                  %v1900 = vld [vmem:[%s1780 + $0x1d8] sm:%s1773]
                  %1901 = vst [vmem:[%s1781 + $0xec] sm:%s1773] %v1900
                  %v1902 = vld [vmem:[%s1780 + $0x1e0] sm:%s1773]
                  %1903 = vst [vmem:[%s1781 + $0xf0] sm:%s1773] %v1902
                  %v1904 = vld [vmem:[%s1780 + $0x1e8] sm:%s1773]
                  %1905 = vst [vmem:[%s1781 + $0xf4] sm:%s1773] %v1904
                  %v1906 = vld [vmem:[%s1780 + $0x1f0] sm:%s1773]
                  %1907 = vst [vmem:[%s1781 + $0xf8] sm:%s1773] %v1906
                  %v1908 = vld [vmem:[%s1780 + $0x1f8] sm:%s1773]
                  %1909 = vst [vmem:[%s1781 + $0xfc] sm:%s1773] %v1908
                  %v1910 = vld [vmem:[%s1780 + $0x200] sm:%s1773]
                  %1911 = vst [vmem:[%s1781 + $0x100] sm:%s1773] %v1910
                  %v1912 = vld [vmem:[%s1780 + $0x208] sm:%s1773]
                  %1913 = vst [vmem:[%s1781 + $0x104] sm:%s1773] %v1912
                  %v1914 = vld [vmem:[%s1780 + $0x210] sm:%s1773]
                  %1915 = vst [vmem:[%s1781 + $0x108] sm:%s1773] %v1914
                  %v1916 = vld [vmem:[%s1780 + $0x218] sm:%s1773]
                  %1917 = vst [vmem:[%s1781 + $0x10c] sm:%s1773] %v1916
                  %v1918 = vld [vmem:[%s1780 + $0x220] sm:%s1773]
                  %1919 = vst [vmem:[%s1781 + $0x110] sm:%s1773] %v1918
                  %v1920 = vld [vmem:[%s1780 + $0x228] sm:%s1773]
                  %1921 = vst [vmem:[%s1781 + $0x114] sm:%s1773] %v1920
                  %v1922 = vld [vmem:[%s1780 + $0x230] sm:%s1773]
                  %1923 = vst [vmem:[%s1781 + $0x118] sm:%s1773] %v1922
                  %v1924 = vld [vmem:[%s1780 + $0x238] sm:%s1773]
                  %1925 = vst [vmem:[%s1781 + $0x11c] sm:%s1773] %v1924
                  %v1926 = vld [vmem:[%s1780 + $0x240] sm:%s1773]
                  %1927 = vst [vmem:[%s1781 + $0x120] sm:%s1773] %v1926
                  %v1928 = vld [vmem:[%s1780 + $0x248] sm:%s1773]
                  %1929 = vst [vmem:[%s1781 + $0x124] sm:%s1773] %v1928
                  %v1930 = vld [vmem:[%s1780 + $0x250] sm:%s1773]
                  %1931 = vst [vmem:[%s1781 + $0x128] sm:%s1773] %v1930
                  %v1932 = vld [vmem:[%s1780 + $0x258] sm:%s1773]
                  %1933 = vst [vmem:[%s1781 + $0x12c] sm:%s1773] %v1932
                  %v1934 = vld [vmem:[%s1780 + $0x260] sm:%s1773]
                  %1935 = vst [vmem:[%s1781 + $0x130] sm:%s1773] %v1934
                  %v1936 = vld [vmem:[%s1780 + $0x268] sm:%s1773]
                  %1937 = vst [vmem:[%s1781 + $0x134] sm:%s1773] %v1936
                  %v1938 = vld [vmem:[%s1780 + $0x270] sm:%s1773]
                  %1939 = vst [vmem:[%s1781 + $0x138] sm:%s1773] %v1938
                  %v1940 = vld [vmem:[%s1780 + $0x278] sm:%s1773]
                  %1941 = vst [vmem:[%s1781 + $0x13c] sm:%s1773] %v1940
                  %v1942 = vld [vmem:[%s1780 + $0x280] sm:%s1773]
                  %1943 = vst [vmem:[%s1781 + $0x140] sm:%s1773] %v1942
                  %v1944 = vld [vmem:[%s1780 + $0x288] sm:%s1773]
                  %1945 = vst [vmem:[%s1781 + $0x144] sm:%s1773] %v1944
                  %v1946 = vld [vmem:[%s1780 + $0x290] sm:%s1773]
                  %1947 = vst [vmem:[%s1781 + $0x148] sm:%s1773] %v1946
                  %v1948 = vld [vmem:[%s1780 + $0x298] sm:%s1773]
                  %1949 = vst [vmem:[%s1781 + $0x14c] sm:%s1773] %v1948
                  %v1950 = vld [vmem:[%s1780 + $0x2a0] sm:%s1773]
                  %1951 = vst [vmem:[%s1781 + $0x150] sm:%s1773] %v1950
                  %v1952 = vld [vmem:[%s1780 + $0x2a8] sm:%s1773]
                  %1953 = vst [vmem:[%s1781 + $0x154] sm:%s1773] %v1952
                  %v1954 = vld [vmem:[%s1780 + $0x2b0] sm:%s1773]
                  %1955 = vst [vmem:[%s1781 + $0x158] sm:%s1773] %v1954
                  %v1956 = vld [vmem:[%s1780 + $0x2b8] sm:%s1773]
                  %1957 = vst [vmem:[%s1781 + $0x15c] sm:%s1773] %v1956
                  %v1958 = vld [vmem:[%s1780 + $0x2c0] sm:%s1773]
                  %1959 = vst [vmem:[%s1781 + $0x160] sm:%s1773] %v1958
                  %v1960 = vld [vmem:[%s1780 + $0x2c8] sm:%s1773]
                  %1961 = vst [vmem:[%s1781 + $0x164] sm:%s1773] %v1960
                  %v1962 = vld [vmem:[%s1780 + $0x2d0] sm:%s1773]
                  %1963 = vst [vmem:[%s1781 + $0x168] sm:%s1773] %v1962
                  %v1964 = vld [vmem:[%s1780 + $0x2d8] sm:%s1773]
                  %1965 = vst [vmem:[%s1781 + $0x16c] sm:%s1773] %v1964
                  %v1966 = vld [vmem:[%s1780 + $0x2e0] sm:%s1773]
                  %1967 = vst [vmem:[%s1781 + $0x170] sm:%s1773] %v1966
                  %v1968 = vld [vmem:[%s1780 + $0x2e8] sm:%s1773]
                  %1969 = vst [vmem:[%s1781 + $0x174] sm:%s1773] %v1968
                  %v1970 = vld [vmem:[%s1780 + $0x2f0] sm:%s1773]
                  %1971 = vst [vmem:[%s1781 + $0x178] sm:%s1773] %v1970
                  %v1972 = vld [vmem:[%s1780 + $0x2f8] sm:%s1773]
                  %1973 = vst [vmem:[%s1781 + $0x17c] sm:%s1773] %v1972
                  %v1974 = vld [vmem:[%s1780 + $0x300] sm:%s1773]
                  %1975 = vst [vmem:[%s1781 + $0x180] sm:%s1773] %v1974
                  %v1976 = vld [vmem:[%s1780 + $0x308] sm:%s1773]
                  %1977 = vst [vmem:[%s1781 + $0x184] sm:%s1773] %v1976
                  %v1978 = vld [vmem:[%s1780 + $0x310] sm:%s1773]
                  %1979 = vst [vmem:[%s1781 + $0x188] sm:%s1773] %v1978
                  %v1980 = vld [vmem:[%s1780 + $0x318] sm:%s1773]
                  %1981 = vst [vmem:[%s1781 + $0x18c] sm:%s1773] %v1980
                  %v1982 = vld [vmem:[%s1780 + $0x320] sm:%s1773]
                  %1983 = vst [vmem:[%s1781 + $0x190] sm:%s1773] %v1982
                  %v1984 = vld [vmem:[%s1780 + $0x328] sm:%s1773]
                  %1985 = vst [vmem:[%s1781 + $0x194] sm:%s1773] %v1984
                  %v1986 = vld [vmem:[%s1780 + $0x330] sm:%s1773]
                  %1987 = vst [vmem:[%s1781 + $0x198] sm:%s1773] %v1986
                  %v1988 = vld [vmem:[%s1780 + $0x338] sm:%s1773]
                  %1989 = vst [vmem:[%s1781 + $0x19c] sm:%s1773] %v1988
                  %v1990 = vld [vmem:[%s1780 + $0x340] sm:%s1773]
                  %1991 = vst [vmem:[%s1781 + $0x1a0] sm:%s1773] %v1990
                  %v1992 = vld [vmem:[%s1780 + $0x348] sm:%s1773]
                  %1993 = vst [vmem:[%s1781 + $0x1a4] sm:%s1773] %v1992
                  %v1994 = vld [vmem:[%s1780 + $0x350] sm:%s1773]
                  %1995 = vst [vmem:[%s1781 + $0x1a8] sm:%s1773] %v1994
                  %v1996 = vld [vmem:[%s1780 + $0x358] sm:%s1773]
                  %1997 = vst [vmem:[%s1781 + $0x1ac] sm:%s1773] %v1996
                  %v1998 = vld [vmem:[%s1780 + $0x360] sm:%s1773]
                  %1999 = vst [vmem:[%s1781 + $0x1b0] sm:%s1773] %v1998
                  %v2000 = vld [vmem:[%s1780 + $0x368] sm:%s1773]
                  %2001 = vst [vmem:[%s1781 + $0x1b4] sm:%s1773] %v2000
                  %v2002 = vld [vmem:[%s1780 + $0x370] sm:%s1773]
                  %2003 = vst [vmem:[%s1781 + $0x1b8] sm:%s1773] %v2002
                  %v2004 = vld [vmem:[%s1780 + $0x378] sm:%s1773]
                  %2005 = vst [vmem:[%s1781 + $0x1bc] sm:%s1773] %v2004
                  %v2006 = vld [vmem:[%s1780 + $0x380] sm:%s1773]
                  %2007 = vst [vmem:[%s1781 + $0x1c0] sm:%s1773] %v2006
                  %v2008 = vld [vmem:[%s1780 + $0x388] sm:%s1773]
                  %2009 = vst [vmem:[%s1781 + $0x1c4] sm:%s1773] %v2008
                  %v2010 = vld [vmem:[%s1780 + $0x390] sm:%s1773]
                  %2011 = vst [vmem:[%s1781 + $0x1c8] sm:%s1773] %v2010
                  %v2012 = vld [vmem:[%s1780 + $0x398] sm:%s1773]
                  %2013 = vst [vmem:[%s1781 + $0x1cc] sm:%s1773] %v2012
                  %v2014 = vld [vmem:[%s1780 + $0x3a0] sm:%s1773]
                  %2015 = vst [vmem:[%s1781 + $0x1d0] sm:%s1773] %v2014
                  %v2016 = vld [vmem:[%s1780 + $0x3a8] sm:%s1773]
                  %2017 = vst [vmem:[%s1781 + $0x1d4] sm:%s1773] %v2016
                  %v2018 = vld [vmem:[%s1780 + $0x3b0] sm:%s1773]
                  %2019 = vst [vmem:[%s1781 + $0x1d8] sm:%s1773] %v2018
                  %v2020 = vld [vmem:[%s1780 + $0x3b8] sm:%s1773]
                  %2021 = vst [vmem:[%s1781 + $0x1dc] sm:%s1773] %v2020
                  %v2022 = vld [vmem:[%s1780 + $0x3c0] sm:%s1773]
                  %2023 = vst [vmem:[%s1781 + $0x1e0] sm:%s1773] %v2022
                  %v2024 = vld [vmem:[%s1780 + $0x3c8] sm:%s1773]
                  %2025 = vst [vmem:[%s1781 + $0x1e4] sm:%s1773] %v2024
                  %v2026 = vld [vmem:[%s1780 + $0x3d0] sm:%s1773]
                  %2027 = vst [vmem:[%s1781 + $0x1e8] sm:%s1773] %v2026
                  %v2028 = vld [vmem:[%s1780 + $0x3d8] sm:%s1773]
                  %2029 = vst [vmem:[%s1781 + $0x1ec] sm:%s1773] %v2028
                  %v2030 = vld [vmem:[%s1780 + $0x3e0] sm:%s1773]
                  %2031 = vst [vmem:[%s1781 + $0x1f0] sm:%s1773] %v2030
                  %v2032 = vld [vmem:[%s1780 + $0x3e8] sm:%s1773]
                  %2033 = vst [vmem:[%s1781 + $0x1f4] sm:%s1773] %v2032
                  %v2034 = vld [vmem:[%s1780 + $0x3f0] sm:%s1773]
                  %2035 = vst [vmem:[%s1781 + $0x1f8] sm:%s1773] %v2034
                  %v2036 = vld [vmem:[%s1780 + $0x3f8] sm:%s1773]
                  %2037 = vst [vmem:[%s1781 + $0x1fc] sm:%s1773] %v2036
                  %v2038 = vld [vmem:[%s1780 + $0x400] sm:%s1773]
                  %2039 = vst [vmem:[%s1781 + $0x200] sm:%s1773] %v2038
                  %v2040 = vld [vmem:[%s1780 + $0x408] sm:%s1773]
                  %2041 = vst [vmem:[%s1781 + $0x204] sm:%s1773] %v2040
                  %v2042 = vld [vmem:[%s1780 + $0x410] sm:%s1773]
                  %2043 = vst [vmem:[%s1781 + $0x208] sm:%s1773] %v2042
                  %v2044 = vld [vmem:[%s1780 + $0x418] sm:%s1773]
                  %2045 = vst [vmem:[%s1781 + $0x20c] sm:%s1773] %v2044
                  %v2046 = vld [vmem:[%s1780 + $0x420] sm:%s1773]
                  %2047 = vst [vmem:[%s1781 + $0x210] sm:%s1773] %v2046
                  %v2048 = vld [vmem:[%s1780 + $0x428] sm:%s1773]
                  %2049 = vst [vmem:[%s1781 + $0x214] sm:%s1773] %v2048
                  %v2050 = vld [vmem:[%s1780 + $0x430] sm:%s1773]
                  %2051 = vst [vmem:[%s1781 + $0x218] sm:%s1773] %v2050
                  %v2052 = vld [vmem:[%s1780 + $0x438] sm:%s1773]
                  %2053 = vst [vmem:[%s1781 + $0x21c] sm:%s1773] %v2052
                  %v2054 = vld [vmem:[%s1780 + $0x440] sm:%s1773]
                  %2055 = vst [vmem:[%s1781 + $0x220] sm:%s1773] %v2054
                  %v2056 = vld [vmem:[%s1780 + $0x448] sm:%s1773]
                  %2057 = vst [vmem:[%s1781 + $0x224] sm:%s1773] %v2056
                  %v2058 = vld [vmem:[%s1780 + $0x450] sm:%s1773]
                  %2059 = vst [vmem:[%s1781 + $0x228] sm:%s1773] %v2058
                  %v2060 = vld [vmem:[%s1780 + $0x458] sm:%s1773]
                  %2061 = vst [vmem:[%s1781 + $0x22c] sm:%s1773] %v2060
                  %v2062 = vld [vmem:[%s1780 + $0x460] sm:%s1773]
                  %2063 = vst [vmem:[%s1781 + $0x230] sm:%s1773] %v2062
                  %v2064 = vld [vmem:[%s1780 + $0x468] sm:%s1773]
                  %2065 = vst [vmem:[%s1781 + $0x234] sm:%s1773] %v2064
                  %v2066 = vld [vmem:[%s1780 + $0x470] sm:%s1773]
                  %2067 = vst [vmem:[%s1781 + $0x238] sm:%s1773] %v2066
                  %v2068 = vld [vmem:[%s1780 + $0x478] sm:%s1773]
                  %2069 = vst [vmem:[%s1781 + $0x23c] sm:%s1773] %v2068
                  %v2070 = vld [vmem:[%s1780 + $0x480] sm:%s1773]
                  %2071 = vst [vmem:[%s1781 + $0x240] sm:%s1773] %v2070
                  %v2072 = vld [vmem:[%s1780 + $0x488] sm:%s1773]
                  %2073 = vst [vmem:[%s1781 + $0x244] sm:%s1773] %v2072
                  %v2074 = vld [vmem:[%s1780 + $0x490] sm:%s1773]
                  %2075 = vst [vmem:[%s1781 + $0x248] sm:%s1773] %v2074
                  %v2076 = vld [vmem:[%s1780 + $0x498] sm:%s1773]
                  %2077 = vst [vmem:[%s1781 + $0x24c] sm:%s1773] %v2076
                  %v2078 = vld [vmem:[%s1780 + $0x4a0] sm:%s1773]
                  %2079 = vst [vmem:[%s1781 + $0x250] sm:%s1773] %v2078
                  %v2080 = vld [vmem:[%s1780 + $0x4a8] sm:%s1773]
                  %2081 = vst [vmem:[%s1781 + $0x254] sm:%s1773] %v2080
                  %v2082 = vld [vmem:[%s1780 + $0x4b0] sm:%s1773]
                  %2083 = vst [vmem:[%s1781 + $0x258] sm:%s1773] %v2082
                  %v2084 = vld [vmem:[%s1780 + $0x4b8] sm:%s1773]
                  %2085 = vst [vmem:[%s1781 + $0x25c] sm:%s1773] %v2084
                  %v2086 = vld [vmem:[%s1780 + $0x4c0] sm:%s1773]
                  %2087 = vst [vmem:[%s1781 + $0x260] sm:%s1773] %v2086
                  %v2088 = vld [vmem:[%s1780 + $0x4c8] sm:%s1773]
                  %2089 = vst [vmem:[%s1781 + $0x264] sm:%s1773] %v2088
                  %v2090 = vld [vmem:[%s1780 + $0x4d0] sm:%s1773]
                  %2091 = vst [vmem:[%s1781 + $0x268] sm:%s1773] %v2090
                  %v2092 = vld [vmem:[%s1780 + $0x4d8] sm:%s1773]
                  %2093 = vst [vmem:[%s1781 + $0x26c] sm:%s1773] %v2092
                  %v2094 = vld [vmem:[%s1780 + $0x4e0] sm:%s1773]
                  %2095 = vst [vmem:[%s1781 + $0x270] sm:%s1773] %v2094
                  %v2096 = vld [vmem:[%s1780 + $0x4e8] sm:%s1773]
                  %2097 = vst [vmem:[%s1781 + $0x274] sm:%s1773] %v2096
                  %v2098 = vld [vmem:[%s1780 + $0x4f0] sm:%s1773]
                  %2099 = vst [vmem:[%s1781 + $0x278] sm:%s1773] %v2098
                  %v2100 = vld [vmem:[%s1780 + $0x4f8] sm:%s1773]
                  %2101 = vst [vmem:[%s1781 + $0x27c] sm:%s1773] %v2100
                  %v2102 = vld [vmem:[%s1780 + $0x500] sm:%s1773]
                  %2103 = vst [vmem:[%s1781 + $0x280] sm:%s1773] %v2102
                  %v2104 = vld [vmem:[%s1780 + $0x508] sm:%s1773]
                  %2105 = vst [vmem:[%s1781 + $0x284] sm:%s1773] %v2104
                  %v2106 = vld [vmem:[%s1780 + $0x510] sm:%s1773]
                  %2107 = vst [vmem:[%s1781 + $0x288] sm:%s1773] %v2106
                  %v2108 = vld [vmem:[%s1780 + $0x518] sm:%s1773]
                  %2109 = vst [vmem:[%s1781 + $0x28c] sm:%s1773] %v2108
                  %v2110 = vld [vmem:[%s1780 + $0x520] sm:%s1773]
                  %2111 = vst [vmem:[%s1781 + $0x290] sm:%s1773] %v2110
                  %v2112 = vld [vmem:[%s1780 + $0x528] sm:%s1773]
                  %2113 = vst [vmem:[%s1781 + $0x294] sm:%s1773] %v2112
                  %v2114 = vld [vmem:[%s1780 + $0x530] sm:%s1773]
                  %2115 = vst [vmem:[%s1781 + $0x298] sm:%s1773] %v2114
                  %v2116 = vld [vmem:[%s1780 + $0x538] sm:%s1773]
                  %2117 = vst [vmem:[%s1781 + $0x29c] sm:%s1773] %v2116
                  %v2118 = vld [vmem:[%s1780 + $0x540] sm:%s1773]
                  %2119 = vst [vmem:[%s1781 + $0x2a0] sm:%s1773] %v2118
                  %v2120 = vld [vmem:[%s1780 + $0x548] sm:%s1773]
                  %2121 = vst [vmem:[%s1781 + $0x2a4] sm:%s1773] %v2120
                  %v2122 = vld [vmem:[%s1780 + $0x550] sm:%s1773]
                  %2123 = vst [vmem:[%s1781 + $0x2a8] sm:%s1773] %v2122
                  %v2124 = vld [vmem:[%s1780 + $0x558] sm:%s1773]
                  %2125 = vst [vmem:[%s1781 + $0x2ac] sm:%s1773] %v2124
                  %v2126 = vld [vmem:[%s1780 + $0x560] sm:%s1773]
                  %2127 = vst [vmem:[%s1781 + $0x2b0] sm:%s1773] %v2126
                  %v2128 = vld [vmem:[%s1780 + $0x568] sm:%s1773]
                  %2129 = vst [vmem:[%s1781 + $0x2b4] sm:%s1773] %v2128
                  %v2130 = vld [vmem:[%s1780 + $0x570] sm:%s1773]
                  %2131 = vst [vmem:[%s1781 + $0x2b8] sm:%s1773] %v2130
                  %v2132 = vld [vmem:[%s1780 + $0x578] sm:%s1773]
                  %2133 = vst [vmem:[%s1781 + $0x2bc] sm:%s1773] %v2132
                  %v2134 = vld [vmem:[%s1780 + $0x580] sm:%s1773]
                  %2135 = vst [vmem:[%s1781 + $0x2c0] sm:%s1773] %v2134
                  %v2136 = vld [vmem:[%s1780 + $0x588] sm:%s1773]
                  %2137 = vst [vmem:[%s1781 + $0x2c4] sm:%s1773] %v2136
                  %v2138 = vld [vmem:[%s1780 + $0x590] sm:%s1773]
                  %2139 = vst [vmem:[%s1781 + $0x2c8] sm:%s1773] %v2138
                  %v2140 = vld [vmem:[%s1780 + $0x598] sm:%s1773]
                  %2141 = vst [vmem:[%s1781 + $0x2cc] sm:%s1773] %v2140
                  %v2142 = vld [vmem:[%s1780 + $0x5a0] sm:%s1773]
                  %2143 = vst [vmem:[%s1781 + $0x2d0] sm:%s1773] %v2142
                  %v2144 = vld [vmem:[%s1780 + $0x5a8] sm:%s1773]
                  %2145 = vst [vmem:[%s1781 + $0x2d4] sm:%s1773] %v2144
                  %v2146 = vld [vmem:[%s1780 + $0x5b0] sm:%s1773]
                  %2147 = vst [vmem:[%s1781 + $0x2d8] sm:%s1773] %v2146
                  %v2148 = vld [vmem:[%s1780 + $0x5b8] sm:%s1773]
                  %2149 = vst [vmem:[%s1781 + $0x2dc] sm:%s1773] %v2148
                  %v2150 = vld [vmem:[%s1780 + $0x5c0] sm:%s1773]
                  %2151 = vst [vmem:[%s1781 + $0x2e0] sm:%s1773] %v2150
                  %v2152 = vld [vmem:[%s1780 + $0x5c8] sm:%s1773]
                  %2153 = vst [vmem:[%s1781 + $0x2e4] sm:%s1773] %v2152
                  %v2154 = vld [vmem:[%s1780 + $0x5d0] sm:%s1773]
                  %2155 = vst [vmem:[%s1781 + $0x2e8] sm:%s1773] %v2154
                  %v2156 = vld [vmem:[%s1780 + $0x5d8] sm:%s1773]
                  %2157 = vst [vmem:[%s1781 + $0x2ec] sm:%s1773] %v2156
                  %v2158 = vld [vmem:[%s1780 + $0x5e0] sm:%s1773]
                  %2159 = vst [vmem:[%s1781 + $0x2f0] sm:%s1773] %v2158
                  %v2160 = vld [vmem:[%s1780 + $0x5e8] sm:%s1773]
                  %2161 = vst [vmem:[%s1781 + $0x2f4] sm:%s1773] %v2160
                  %v2162 = vld [vmem:[%s1780 + $0x5f0] sm:%s1773]
                  %2163 = vst [vmem:[%s1781 + $0x2f8] sm:%s1773] %v2162
                  %v2164 = vld [vmem:[%s1780 + $0x5f8] sm:%s1773]
                  %2165 = vst [vmem:[%s1781 + $0x2fc] sm:%s1773] %v2164
                  %v2166 = vld [vmem:[%s1780 + $0x600] sm:%s1773]
                  %2167 = vst [vmem:[%s1781 + $0x300] sm:%s1773] %v2166
                  %v2168 = vld [vmem:[%s1780 + $0x608] sm:%s1773]
                  %2169 = vst [vmem:[%s1781 + $0x304] sm:%s1773] %v2168
                  %v2170 = vld [vmem:[%s1780 + $0x610] sm:%s1773]
                  %2171 = vst [vmem:[%s1781 + $0x308] sm:%s1773] %v2170
                  %v2172 = vld [vmem:[%s1780 + $0x618] sm:%s1773]
                  %2173 = vst [vmem:[%s1781 + $0x30c] sm:%s1773] %v2172
                  %v2174 = vld [vmem:[%s1780 + $0x620] sm:%s1773]
                  %2175 = vst [vmem:[%s1781 + $0x310] sm:%s1773] %v2174
                  %v2176 = vld [vmem:[%s1780 + $0x628] sm:%s1773]
                  %2177 = vst [vmem:[%s1781 + $0x314] sm:%s1773] %v2176
                  %v2178 = vld [vmem:[%s1780 + $0x630] sm:%s1773]
                  %2179 = vst [vmem:[%s1781 + $0x318] sm:%s1773] %v2178
                  %v2180 = vld [vmem:[%s1780 + $0x638] sm:%s1773]
                  %2181 = vst [vmem:[%s1781 + $0x31c] sm:%s1773] %v2180
                  %v2182 = vld [vmem:[%s1780 + $0x640] sm:%s1773]
                  %2183 = vst [vmem:[%s1781 + $0x320] sm:%s1773] %v2182
                  %v2184 = vld [vmem:[%s1780 + $0x648] sm:%s1773]
                  %2185 = vst [vmem:[%s1781 + $0x324] sm:%s1773] %v2184
                  %v2186 = vld [vmem:[%s1780 + $0x650] sm:%s1773]
                  %2187 = vst [vmem:[%s1781 + $0x328] sm:%s1773] %v2186
                  %v2188 = vld [vmem:[%s1780 + $0x658] sm:%s1773]
                  %2189 = vst [vmem:[%s1781 + $0x32c] sm:%s1773] %v2188
                  %v2190 = vld [vmem:[%s1780 + $0x660] sm:%s1773]
                  %2191 = vst [vmem:[%s1781 + $0x330] sm:%s1773] %v2190
                  %v2192 = vld [vmem:[%s1780 + $0x668] sm:%s1773]
                  %2193 = vst [vmem:[%s1781 + $0x334] sm:%s1773] %v2192
                  %v2194 = vld [vmem:[%s1780 + $0x670] sm:%s1773]
                  %2195 = vst [vmem:[%s1781 + $0x338] sm:%s1773] %v2194
                  %v2196 = vld [vmem:[%s1780 + $0x678] sm:%s1773]
                  %2197 = vst [vmem:[%s1781 + $0x33c] sm:%s1773] %v2196
                  %v2198 = vld [vmem:[%s1780 + $0x680] sm:%s1773]
                  %2199 = vst [vmem:[%s1781 + $0x340] sm:%s1773] %v2198
                  %v2200 = vld [vmem:[%s1780 + $0x688] sm:%s1773]
                  %2201 = vst [vmem:[%s1781 + $0x344] sm:%s1773] %v2200
                  %v2202 = vld [vmem:[%s1780 + $0x690] sm:%s1773]
                  %2203 = vst [vmem:[%s1781 + $0x348] sm:%s1773] %v2202
                  %v2204 = vld [vmem:[%s1780 + $0x698] sm:%s1773]
                  %2205 = vst [vmem:[%s1781 + $0x34c] sm:%s1773] %v2204
                  %v2206 = vld [vmem:[%s1780 + $0x6a0] sm:%s1773]
                  %2207 = vst [vmem:[%s1781 + $0x350] sm:%s1773] %v2206
                  %v2208 = vld [vmem:[%s1780 + $0x6a8] sm:%s1773]
                  %2209 = vst [vmem:[%s1781 + $0x354] sm:%s1773] %v2208
                  %v2210 = vld [vmem:[%s1780 + $0x6b0] sm:%s1773]
                  %2211 = vst [vmem:[%s1781 + $0x358] sm:%s1773] %v2210
                  %v2212 = vld [vmem:[%s1780 + $0x6b8] sm:%s1773]
                  %2213 = vst [vmem:[%s1781 + $0x35c] sm:%s1773] %v2212
                  %v2214 = vld [vmem:[%s1780 + $0x6c0] sm:%s1773]
                  %2215 = vst [vmem:[%s1781 + $0x360] sm:%s1773] %v2214
                  %v2216 = vld [vmem:[%s1780 + $0x6c8] sm:%s1773]
                  %2217 = vst [vmem:[%s1781 + $0x364] sm:%s1773] %v2216
                  %v2218 = vld [vmem:[%s1780 + $0x6d0] sm:%s1773]
                  %2219 = vst [vmem:[%s1781 + $0x368] sm:%s1773] %v2218
                  %v2220 = vld [vmem:[%s1780 + $0x6d8] sm:%s1773]
                  %2221 = vst [vmem:[%s1781 + $0x36c] sm:%s1773] %v2220
                  %v2222 = vld [vmem:[%s1780 + $0x6e0] sm:%s1773]
                  %2223 = vst [vmem:[%s1781 + $0x370] sm:%s1773] %v2222
                  %v2224 = vld [vmem:[%s1780 + $0x6e8] sm:%s1773]
                  %2225 = vst [vmem:[%s1781 + $0x374] sm:%s1773] %v2224
                  %v2226 = vld [vmem:[%s1780 + $0x6f0] sm:%s1773]
                  %2227 = vst [vmem:[%s1781 + $0x378] sm:%s1773] %v2226
                  %v2228 = vld [vmem:[%s1780 + $0x6f8] sm:%s1773]
                  %2229 = vst [vmem:[%s1781 + $0x37c] sm:%s1773] %v2228
                  %v2230 = vld [vmem:[%s1780 + $0x700] sm:%s1773]
                  %2231 = vst [vmem:[%s1781 + $0x380] sm:%s1773] %v2230
                  %v2232 = vld [vmem:[%s1780 + $0x708] sm:%s1773]
                  %2233 = vst [vmem:[%s1781 + $0x384] sm:%s1773] %v2232
                  %v2234 = vld [vmem:[%s1780 + $0x710] sm:%s1773]
                  %2235 = vst [vmem:[%s1781 + $0x388] sm:%s1773] %v2234
                  %v2236 = vld [vmem:[%s1780 + $0x718] sm:%s1773]
                  %2237 = vst [vmem:[%s1781 + $0x38c] sm:%s1773] %v2236
                  %v2238 = vld [vmem:[%s1780 + $0x720] sm:%s1773]
                  %2239 = vst [vmem:[%s1781 + $0x390] sm:%s1773] %v2238
                  %v2240 = vld [vmem:[%s1780 + $0x728] sm:%s1773]
                  %2241 = vst [vmem:[%s1781 + $0x394] sm:%s1773] %v2240
                  %v2242 = vld [vmem:[%s1780 + $0x730] sm:%s1773]
                  %2243 = vst [vmem:[%s1781 + $0x398] sm:%s1773] %v2242
                  %v2244 = vld [vmem:[%s1780 + $0x738] sm:%s1773]
                  %2245 = vst [vmem:[%s1781 + $0x39c] sm:%s1773] %v2244
                  %v2246 = vld [vmem:[%s1780 + $0x740] sm:%s1773]
                  %2247 = vst [vmem:[%s1781 + $0x3a0] sm:%s1773] %v2246
                  %v2248 = vld [vmem:[%s1780 + $0x748] sm:%s1773]
                  %2249 = vst [vmem:[%s1781 + $0x3a4] sm:%s1773] %v2248
                  %v2250 = vld [vmem:[%s1780 + $0x750] sm:%s1773]
                  %2251 = vst [vmem:[%s1781 + $0x3a8] sm:%s1773] %v2250
                  %v2252 = vld [vmem:[%s1780 + $0x758] sm:%s1773]
                  %2253 = vst [vmem:[%s1781 + $0x3ac] sm:%s1773] %v2252
                  %v2254 = vld [vmem:[%s1780 + $0x760] sm:%s1773]
                  %2255 = vst [vmem:[%s1781 + $0x3b0] sm:%s1773] %v2254
                  %v2256 = vld [vmem:[%s1780 + $0x768] sm:%s1773]
                  %2257 = vst [vmem:[%s1781 + $0x3b4] sm:%s1773] %v2256
                  %v2258 = vld [vmem:[%s1780 + $0x770] sm:%s1773]
                  %2259 = vst [vmem:[%s1781 + $0x3b8] sm:%s1773] %v2258
                  %v2260 = vld [vmem:[%s1780 + $0x778] sm:%s1773]
                  %2261 = vst [vmem:[%s1781 + $0x3bc] sm:%s1773] %v2260
                  %v2262 = vld [vmem:[%s1780 + $0x780] sm:%s1773]
                  %2263 = vst [vmem:[%s1781 + $0x3c0] sm:%s1773] %v2262
                  %v2264 = vld [vmem:[%s1780 + $0x788] sm:%s1773]
                  %2265 = vst [vmem:[%s1781 + $0x3c4] sm:%s1773] %v2264
                  %v2266 = vld [vmem:[%s1780 + $0x790] sm:%s1773]
                  %2267 = vst [vmem:[%s1781 + $0x3c8] sm:%s1773] %v2266
                  %v2268 = vld [vmem:[%s1780 + $0x798] sm:%s1773]
                  %2269 = vst [vmem:[%s1781 + $0x3cc] sm:%s1773] %v2268
                  %v2270 = vld [vmem:[%s1780 + $0x7a0] sm:%s1773]
                  %2271 = vst [vmem:[%s1781 + $0x3d0] sm:%s1773] %v2270
                  %v2272 = vld [vmem:[%s1780 + $0x7a8] sm:%s1773]
                  %2273 = vst [vmem:[%s1781 + $0x3d4] sm:%s1773] %v2272
                  %v2274 = vld [vmem:[%s1780 + $0x7b0] sm:%s1773]
                  %2275 = vst [vmem:[%s1781 + $0x3d8] sm:%s1773] %v2274
                  %v2276 = vld [vmem:[%s1780 + $0x7b8] sm:%s1773]
                  %2277 = vst [vmem:[%s1781 + $0x3dc] sm:%s1773] %v2276
                  %v2278 = vld [vmem:[%s1780 + $0x7c0] sm:%s1773]
                  %2279 = vst [vmem:[%s1781 + $0x3e0] sm:%s1773] %v2278
                  %v2280 = vld [vmem:[%s1780 + $0x7c8] sm:%s1773]
                  %2281 = vst [vmem:[%s1781 + $0x3e4] sm:%s1773] %v2280
                  %v2282 = vld [vmem:[%s1780 + $0x7d0] sm:%s1773]
                  %2283 = vst [vmem:[%s1781 + $0x3e8] sm:%s1773] %v2282
                  %v2284 = vld [vmem:[%s1780 + $0x7d8] sm:%s1773]
                  %2285 = vst [vmem:[%s1781 + $0x3ec] sm:%s1773] %v2284
                  %v2286 = vld [vmem:[%s1780 + $0x7e0] sm:%s1773]
                  %2287 = vst [vmem:[%s1781 + $0x3f0] sm:%s1773] %v2286
                  %v2288 = vld [vmem:[%s1780 + $0x7e8] sm:%s1773]
                  %2289 = vst [vmem:[%s1781 + $0x3f4] sm:%s1773] %v2288
                  %v2290 = vld [vmem:[%s1780 + $0x7f0] sm:%s1773]
                  %2291 = vst [vmem:[%s1781 + $0x3f8] sm:%s1773] %v2290
                  %v2292 = vld [vmem:[%s1780 + $0x7f8] sm:%s1773]
                  %2293 = vst [vmem:[%s1781 + $0x3fc] sm:%s1773] %v2292
                $region70: #{discriminator_forward.9} parent=57 // loop_footer
                  %s1779 = sadd.s32 1, %s1775
                $region71: #{discriminator_forward.9} parent=57 // loop_footer_branch
                  %1774 = sbr.rel target = $region67
                $region72: #{discriminator_forward.9} parent=57 // loop_exit
                  _
              $region58: #{discriminator_forward.9} parent=31 // pred_fallthru
                _
            $region32: #{discriminator_forward.9} parent=27 // pred_fallthru
              _
            // Predicated region
            $region33: #{discriminator_forward.9} parent=27 // pred_check
              _
            $region34: #{discriminator_forward.9} parent=27 // pred_check_branch
              %189 = sbr.rel (0) target = $region36
            $region35: #{discriminator_forward.9} parent=27 // pred_region
              %s191 = ssub.s32 16, 1
              loop: start=0, step=1, limit=1
              $region37: #{discriminator_forward.9} parent=35 // loop_pre_header
                _
              $region38: #{discriminator_forward.9} parent=35 // loop_header
                %s193 = sphi 0, %s197
                %p194 = scmp.ge.s32.totalorder %s193, 1
                %s198 = sphi %s183, %s183
                %s199 = sphi %s178, %s178
              $region39: #{discriminator_forward.9} parent=35 // loop_header_branch
                %196 = sbr.rel (%p194) target = $region43
              $region40: #{discriminator_forward.9} parent=35 // loop_body
                %v200 = vld [vmem:[%s198] sm:%s191]
                %201 = vst [vmem:[%s199] sm:%s191] %v200
                %v202 = vld [vmem:[%s198 + $0x8] sm:%s191]
                %203 = vst [vmem:[%s199 + $0x4] sm:%s191] %v202
                %v204 = vld [vmem:[%s198 + $0x10] sm:%s191]
                %205 = vst [vmem:[%s199 + $0x8] sm:%s191] %v204
                %v206 = vld [vmem:[%s198 + $0x18] sm:%s191]
                %207 = vst [vmem:[%s199 + $0xc] sm:%s191] %v206
                %v208 = vld [vmem:[%s198 + $0x20] sm:%s191]
                %209 = vst [vmem:[%s199 + $0x10] sm:%s191] %v208
                %v210 = vld [vmem:[%s198 + $0x28] sm:%s191]
                %211 = vst [vmem:[%s199 + $0x14] sm:%s191] %v210
                %v212 = vld [vmem:[%s198 + $0x30] sm:%s191]
                %213 = vst [vmem:[%s199 + $0x18] sm:%s191] %v212
                %v214 = vld [vmem:[%s198 + $0x38] sm:%s191]
                %215 = vst [vmem:[%s199 + $0x1c] sm:%s191] %v214
                %v216 = vld [vmem:[%s198 + $0x40] sm:%s191]
                %217 = vst [vmem:[%s199 + $0x20] sm:%s191] %v216
                %v218 = vld [vmem:[%s198 + $0x48] sm:%s191]
                %219 = vst [vmem:[%s199 + $0x24] sm:%s191] %v218
                %v220 = vld [vmem:[%s198 + $0x50] sm:%s191]
                %221 = vst [vmem:[%s199 + $0x28] sm:%s191] %v220
                %v222 = vld [vmem:[%s198 + $0x58] sm:%s191]
                %223 = vst [vmem:[%s199 + $0x2c] sm:%s191] %v222
                %v224 = vld [vmem:[%s198 + $0x60] sm:%s191]
                %225 = vst [vmem:[%s199 + $0x30] sm:%s191] %v224
                %v226 = vld [vmem:[%s198 + $0x68] sm:%s191]
                %227 = vst [vmem:[%s199 + $0x34] sm:%s191] %v226
                %v228 = vld [vmem:[%s198 + $0x70] sm:%s191]
                %229 = vst [vmem:[%s199 + $0x38] sm:%s191] %v228
                %v230 = vld [vmem:[%s198 + $0x78] sm:%s191]
                %231 = vst [vmem:[%s199 + $0x3c] sm:%s191] %v230
                %v232 = vld [vmem:[%s198 + $0x80] sm:%s191]
                %233 = vst [vmem:[%s199 + $0x40] sm:%s191] %v232
                %v234 = vld [vmem:[%s198 + $0x88] sm:%s191]
                %235 = vst [vmem:[%s199 + $0x44] sm:%s191] %v234
                %v236 = vld [vmem:[%s198 + $0x90] sm:%s191]
                %237 = vst [vmem:[%s199 + $0x48] sm:%s191] %v236
                %v238 = vld [vmem:[%s198 + $0x98] sm:%s191]
                %239 = vst [vmem:[%s199 + $0x4c] sm:%s191] %v238
                %v240 = vld [vmem:[%s198 + $0xa0] sm:%s191]
                %241 = vst [vmem:[%s199 + $0x50] sm:%s191] %v240
                %v242 = vld [vmem:[%s198 + $0xa8] sm:%s191]
                %243 = vst [vmem:[%s199 + $0x54] sm:%s191] %v242
                %v244 = vld [vmem:[%s198 + $0xb0] sm:%s191]
                %245 = vst [vmem:[%s199 + $0x58] sm:%s191] %v244
                %v246 = vld [vmem:[%s198 + $0xb8] sm:%s191]
                %247 = vst [vmem:[%s199 + $0x5c] sm:%s191] %v246
                %v248 = vld [vmem:[%s198 + $0xc0] sm:%s191]
                %249 = vst [vmem:[%s199 + $0x60] sm:%s191] %v248
                %v250 = vld [vmem:[%s198 + $0xc8] sm:%s191]
                %251 = vst [vmem:[%s199 + $0x64] sm:%s191] %v250
                %v252 = vld [vmem:[%s198 + $0xd0] sm:%s191]
                %253 = vst [vmem:[%s199 + $0x68] sm:%s191] %v252
                %v254 = vld [vmem:[%s198 + $0xd8] sm:%s191]
                %255 = vst [vmem:[%s199 + $0x6c] sm:%s191] %v254
                %v256 = vld [vmem:[%s198 + $0xe0] sm:%s191]
                %257 = vst [vmem:[%s199 + $0x70] sm:%s191] %v256
                %v258 = vld [vmem:[%s198 + $0xe8] sm:%s191]
                %259 = vst [vmem:[%s199 + $0x74] sm:%s191] %v258
                %v260 = vld [vmem:[%s198 + $0xf0] sm:%s191]
                %261 = vst [vmem:[%s199 + $0x78] sm:%s191] %v260
                %v262 = vld [vmem:[%s198 + $0xf8] sm:%s191]
                %263 = vst [vmem:[%s199 + $0x7c] sm:%s191] %v262
                %v264 = vld [vmem:[%s198 + $0x100] sm:%s191]
                %265 = vst [vmem:[%s199 + $0x80] sm:%s191] %v264
                %v266 = vld [vmem:[%s198 + $0x108] sm:%s191]
                %267 = vst [vmem:[%s199 + $0x84] sm:%s191] %v266
                %v268 = vld [vmem:[%s198 + $0x110] sm:%s191]
                %269 = vst [vmem:[%s199 + $0x88] sm:%s191] %v268
                %v270 = vld [vmem:[%s198 + $0x118] sm:%s191]
                %271 = vst [vmem:[%s199 + $0x8c] sm:%s191] %v270
                %v272 = vld [vmem:[%s198 + $0x120] sm:%s191]
                %273 = vst [vmem:[%s199 + $0x90] sm:%s191] %v272
                %v274 = vld [vmem:[%s198 + $0x128] sm:%s191]
                %275 = vst [vmem:[%s199 + $0x94] sm:%s191] %v274
                %v276 = vld [vmem:[%s198 + $0x130] sm:%s191]
                %277 = vst [vmem:[%s199 + $0x98] sm:%s191] %v276
                %v278 = vld [vmem:[%s198 + $0x138] sm:%s191]
                %279 = vst [vmem:[%s199 + $0x9c] sm:%s191] %v278
                %v280 = vld [vmem:[%s198 + $0x140] sm:%s191]
                %281 = vst [vmem:[%s199 + $0xa0] sm:%s191] %v280
                %v282 = vld [vmem:[%s198 + $0x148] sm:%s191]
                %283 = vst [vmem:[%s199 + $0xa4] sm:%s191] %v282
                %v284 = vld [vmem:[%s198 + $0x150] sm:%s191]
                %285 = vst [vmem:[%s199 + $0xa8] sm:%s191] %v284
                %v286 = vld [vmem:[%s198 + $0x158] sm:%s191]
                %287 = vst [vmem:[%s199 + $0xac] sm:%s191] %v286
                %v288 = vld [vmem:[%s198 + $0x160] sm:%s191]
                %289 = vst [vmem:[%s199 + $0xb0] sm:%s191] %v288
                %v290 = vld [vmem:[%s198 + $0x168] sm:%s191]
                %291 = vst [vmem:[%s199 + $0xb4] sm:%s191] %v290
                %v292 = vld [vmem:[%s198 + $0x170] sm:%s191]
                %293 = vst [vmem:[%s199 + $0xb8] sm:%s191] %v292
                %v294 = vld [vmem:[%s198 + $0x178] sm:%s191]
                %295 = vst [vmem:[%s199 + $0xbc] sm:%s191] %v294
                %v296 = vld [vmem:[%s198 + $0x180] sm:%s191]
                %297 = vst [vmem:[%s199 + $0xc0] sm:%s191] %v296
                %v298 = vld [vmem:[%s198 + $0x188] sm:%s191]
                %299 = vst [vmem:[%s199 + $0xc4] sm:%s191] %v298
                %v300 = vld [vmem:[%s198 + $0x190] sm:%s191]
                %301 = vst [vmem:[%s199 + $0xc8] sm:%s191] %v300
                %v302 = vld [vmem:[%s198 + $0x198] sm:%s191]
                %303 = vst [vmem:[%s199 + $0xcc] sm:%s191] %v302
                %v304 = vld [vmem:[%s198 + $0x1a0] sm:%s191]
                %305 = vst [vmem:[%s199 + $0xd0] sm:%s191] %v304
                %v306 = vld [vmem:[%s198 + $0x1a8] sm:%s191]
                %307 = vst [vmem:[%s199 + $0xd4] sm:%s191] %v306
                %v308 = vld [vmem:[%s198 + $0x1b0] sm:%s191]
                %309 = vst [vmem:[%s199 + $0xd8] sm:%s191] %v308
                %v310 = vld [vmem:[%s198 + $0x1b8] sm:%s191]
                %311 = vst [vmem:[%s199 + $0xdc] sm:%s191] %v310
                %v312 = vld [vmem:[%s198 + $0x1c0] sm:%s191]
                %313 = vst [vmem:[%s199 + $0xe0] sm:%s191] %v312
                %v314 = vld [vmem:[%s198 + $0x1c8] sm:%s191]
                %315 = vst [vmem:[%s199 + $0xe4] sm:%s191] %v314
                %v316 = vld [vmem:[%s198 + $0x1d0] sm:%s191]
                %317 = vst [vmem:[%s199 + $0xe8] sm:%s191] %v316
                %v318 = vld [vmem:[%s198 + $0x1d8] sm:%s191]
                %319 = vst [vmem:[%s199 + $0xec] sm:%s191] %v318
                %v320 = vld [vmem:[%s198 + $0x1e0] sm:%s191]
                %321 = vst [vmem:[%s199 + $0xf0] sm:%s191] %v320
                %v322 = vld [vmem:[%s198 + $0x1e8] sm:%s191]
                %323 = vst [vmem:[%s199 + $0xf4] sm:%s191] %v322
                %v324 = vld [vmem:[%s198 + $0x1f0] sm:%s191]
                %325 = vst [vmem:[%s199 + $0xf8] sm:%s191] %v324
                %v326 = vld [vmem:[%s198 + $0x1f8] sm:%s191]
                %327 = vst [vmem:[%s199 + $0xfc] sm:%s191] %v326
                %v328 = vld [vmem:[%s198 + $0x200] sm:%s191]
                %329 = vst [vmem:[%s199 + $0x100] sm:%s191] %v328
                %v330 = vld [vmem:[%s198 + $0x208] sm:%s191]
                %331 = vst [vmem:[%s199 + $0x104] sm:%s191] %v330
                %v332 = vld [vmem:[%s198 + $0x210] sm:%s191]
                %333 = vst [vmem:[%s199 + $0x108] sm:%s191] %v332
                %v334 = vld [vmem:[%s198 + $0x218] sm:%s191]
                %335 = vst [vmem:[%s199 + $0x10c] sm:%s191] %v334
                %v336 = vld [vmem:[%s198 + $0x220] sm:%s191]
                %337 = vst [vmem:[%s199 + $0x110] sm:%s191] %v336
                %v338 = vld [vmem:[%s198 + $0x228] sm:%s191]
                %339 = vst [vmem:[%s199 + $0x114] sm:%s191] %v338
                %v340 = vld [vmem:[%s198 + $0x230] sm:%s191]
                %341 = vst [vmem:[%s199 + $0x118] sm:%s191] %v340
                %v342 = vld [vmem:[%s198 + $0x238] sm:%s191]
                %343 = vst [vmem:[%s199 + $0x11c] sm:%s191] %v342
                %v344 = vld [vmem:[%s198 + $0x240] sm:%s191]
                %345 = vst [vmem:[%s199 + $0x120] sm:%s191] %v344
                %v346 = vld [vmem:[%s198 + $0x248] sm:%s191]
                %347 = vst [vmem:[%s199 + $0x124] sm:%s191] %v346
                %v348 = vld [vmem:[%s198 + $0x250] sm:%s191]
                %349 = vst [vmem:[%s199 + $0x128] sm:%s191] %v348
                %v350 = vld [vmem:[%s198 + $0x258] sm:%s191]
                %351 = vst [vmem:[%s199 + $0x12c] sm:%s191] %v350
                %v352 = vld [vmem:[%s198 + $0x260] sm:%s191]
                %353 = vst [vmem:[%s199 + $0x130] sm:%s191] %v352
                %v354 = vld [vmem:[%s198 + $0x268] sm:%s191]
                %355 = vst [vmem:[%s199 + $0x134] sm:%s191] %v354
                %v356 = vld [vmem:[%s198 + $0x270] sm:%s191]
                %357 = vst [vmem:[%s199 + $0x138] sm:%s191] %v356
                %v358 = vld [vmem:[%s198 + $0x278] sm:%s191]
                %359 = vst [vmem:[%s199 + $0x13c] sm:%s191] %v358
                %v360 = vld [vmem:[%s198 + $0x280] sm:%s191]
                %361 = vst [vmem:[%s199 + $0x140] sm:%s191] %v360
                %v362 = vld [vmem:[%s198 + $0x288] sm:%s191]
                %363 = vst [vmem:[%s199 + $0x144] sm:%s191] %v362
                %v364 = vld [vmem:[%s198 + $0x290] sm:%s191]
                %365 = vst [vmem:[%s199 + $0x148] sm:%s191] %v364
                %v366 = vld [vmem:[%s198 + $0x298] sm:%s191]
                %367 = vst [vmem:[%s199 + $0x14c] sm:%s191] %v366
                %v368 = vld [vmem:[%s198 + $0x2a0] sm:%s191]
                %369 = vst [vmem:[%s199 + $0x150] sm:%s191] %v368
                %v370 = vld [vmem:[%s198 + $0x2a8] sm:%s191]
                %371 = vst [vmem:[%s199 + $0x154] sm:%s191] %v370
                %v372 = vld [vmem:[%s198 + $0x2b0] sm:%s191]
                %373 = vst [vmem:[%s199 + $0x158] sm:%s191] %v372
                %v374 = vld [vmem:[%s198 + $0x2b8] sm:%s191]
                %375 = vst [vmem:[%s199 + $0x15c] sm:%s191] %v374
                %v376 = vld [vmem:[%s198 + $0x2c0] sm:%s191]
                %377 = vst [vmem:[%s199 + $0x160] sm:%s191] %v376
                %v378 = vld [vmem:[%s198 + $0x2c8] sm:%s191]
                %379 = vst [vmem:[%s199 + $0x164] sm:%s191] %v378
                %v380 = vld [vmem:[%s198 + $0x2d0] sm:%s191]
                %381 = vst [vmem:[%s199 + $0x168] sm:%s191] %v380
                %v382 = vld [vmem:[%s198 + $0x2d8] sm:%s191]
                %383 = vst [vmem:[%s199 + $0x16c] sm:%s191] %v382
                %v384 = vld [vmem:[%s198 + $0x2e0] sm:%s191]
                %385 = vst [vmem:[%s199 + $0x170] sm:%s191] %v384
                %v386 = vld [vmem:[%s198 + $0x2e8] sm:%s191]
                %387 = vst [vmem:[%s199 + $0x174] sm:%s191] %v386
                %v388 = vld [vmem:[%s198 + $0x2f0] sm:%s191]
                %389 = vst [vmem:[%s199 + $0x178] sm:%s191] %v388
                %v390 = vld [vmem:[%s198 + $0x2f8] sm:%s191]
                %391 = vst [vmem:[%s199 + $0x17c] sm:%s191] %v390
                %v392 = vld [vmem:[%s198 + $0x300] sm:%s191]
                %393 = vst [vmem:[%s199 + $0x180] sm:%s191] %v392
                %v394 = vld [vmem:[%s198 + $0x308] sm:%s191]
                %395 = vst [vmem:[%s199 + $0x184] sm:%s191] %v394
                %v396 = vld [vmem:[%s198 + $0x310] sm:%s191]
                %397 = vst [vmem:[%s199 + $0x188] sm:%s191] %v396
                %v398 = vld [vmem:[%s198 + $0x318] sm:%s191]
                %399 = vst [vmem:[%s199 + $0x18c] sm:%s191] %v398
                %v400 = vld [vmem:[%s198 + $0x320] sm:%s191]
                %401 = vst [vmem:[%s199 + $0x190] sm:%s191] %v400
                %v402 = vld [vmem:[%s198 + $0x328] sm:%s191]
                %403 = vst [vmem:[%s199 + $0x194] sm:%s191] %v402
                %v404 = vld [vmem:[%s198 + $0x330] sm:%s191]
                %405 = vst [vmem:[%s199 + $0x198] sm:%s191] %v404
                %v406 = vld [vmem:[%s198 + $0x338] sm:%s191]
                %407 = vst [vmem:[%s199 + $0x19c] sm:%s191] %v406
                %v408 = vld [vmem:[%s198 + $0x340] sm:%s191]
                %409 = vst [vmem:[%s199 + $0x1a0] sm:%s191] %v408
                %v410 = vld [vmem:[%s198 + $0x348] sm:%s191]
                %411 = vst [vmem:[%s199 + $0x1a4] sm:%s191] %v410
                %v412 = vld [vmem:[%s198 + $0x350] sm:%s191]
                %413 = vst [vmem:[%s199 + $0x1a8] sm:%s191] %v412
                %v414 = vld [vmem:[%s198 + $0x358] sm:%s191]
                %415 = vst [vmem:[%s199 + $0x1ac] sm:%s191] %v414
                %v416 = vld [vmem:[%s198 + $0x360] sm:%s191]
                %417 = vst [vmem:[%s199 + $0x1b0] sm:%s191] %v416
                %v418 = vld [vmem:[%s198 + $0x368] sm:%s191]
                %419 = vst [vmem:[%s199 + $0x1b4] sm:%s191] %v418
                %v420 = vld [vmem:[%s198 + $0x370] sm:%s191]
                %421 = vst [vmem:[%s199 + $0x1b8] sm:%s191] %v420
                %v422 = vld [vmem:[%s198 + $0x378] sm:%s191]
                %423 = vst [vmem:[%s199 + $0x1bc] sm:%s191] %v422
                %v424 = vld [vmem:[%s198 + $0x380] sm:%s191]
                %425 = vst [vmem:[%s199 + $0x1c0] sm:%s191] %v424
                %v426 = vld [vmem:[%s198 + $0x388] sm:%s191]
                %427 = vst [vmem:[%s199 + $0x1c4] sm:%s191] %v426
                %v428 = vld [vmem:[%s198 + $0x390] sm:%s191]
                %429 = vst [vmem:[%s199 + $0x1c8] sm:%s191] %v428
                %v430 = vld [vmem:[%s198 + $0x398] sm:%s191]
                %431 = vst [vmem:[%s199 + $0x1cc] sm:%s191] %v430
                %v432 = vld [vmem:[%s198 + $0x3a0] sm:%s191]
                %433 = vst [vmem:[%s199 + $0x1d0] sm:%s191] %v432
                %v434 = vld [vmem:[%s198 + $0x3a8] sm:%s191]
                %435 = vst [vmem:[%s199 + $0x1d4] sm:%s191] %v434
                %v436 = vld [vmem:[%s198 + $0x3b0] sm:%s191]
                %437 = vst [vmem:[%s199 + $0x1d8] sm:%s191] %v436
                %v438 = vld [vmem:[%s198 + $0x3b8] sm:%s191]
                %439 = vst [vmem:[%s199 + $0x1dc] sm:%s191] %v438
                %v440 = vld [vmem:[%s198 + $0x3c0] sm:%s191]
                %441 = vst [vmem:[%s199 + $0x1e0] sm:%s191] %v440
                %v442 = vld [vmem:[%s198 + $0x3c8] sm:%s191]
                %443 = vst [vmem:[%s199 + $0x1e4] sm:%s191] %v442
                %v444 = vld [vmem:[%s198 + $0x3d0] sm:%s191]
                %445 = vst [vmem:[%s199 + $0x1e8] sm:%s191] %v444
                %v446 = vld [vmem:[%s198 + $0x3d8] sm:%s191]
                %447 = vst [vmem:[%s199 + $0x1ec] sm:%s191] %v446
                %v448 = vld [vmem:[%s198 + $0x3e0] sm:%s191]
                %449 = vst [vmem:[%s199 + $0x1f0] sm:%s191] %v448
                %v450 = vld [vmem:[%s198 + $0x3e8] sm:%s191]
                %451 = vst [vmem:[%s199 + $0x1f4] sm:%s191] %v450
                %v452 = vld [vmem:[%s198 + $0x3f0] sm:%s191]
                %453 = vst [vmem:[%s199 + $0x1f8] sm:%s191] %v452
                %v454 = vld [vmem:[%s198 + $0x3f8] sm:%s191]
                %455 = vst [vmem:[%s199 + $0x1fc] sm:%s191] %v454
                %v456 = vld [vmem:[%s198 + $0x400] sm:%s191]
                %457 = vst [vmem:[%s199 + $0x200] sm:%s191] %v456
                %v458 = vld [vmem:[%s198 + $0x408] sm:%s191]
                %459 = vst [vmem:[%s199 + $0x204] sm:%s191] %v458
                %v460 = vld [vmem:[%s198 + $0x410] sm:%s191]
                %461 = vst [vmem:[%s199 + $0x208] sm:%s191] %v460
                %v462 = vld [vmem:[%s198 + $0x418] sm:%s191]
                %463 = vst [vmem:[%s199 + $0x20c] sm:%s191] %v462
                %v464 = vld [vmem:[%s198 + $0x420] sm:%s191]
                %465 = vst [vmem:[%s199 + $0x210] sm:%s191] %v464
                %v466 = vld [vmem:[%s198 + $0x428] sm:%s191]
                %467 = vst [vmem:[%s199 + $0x214] sm:%s191] %v466
                %v468 = vld [vmem:[%s198 + $0x430] sm:%s191]
                %469 = vst [vmem:[%s199 + $0x218] sm:%s191] %v468
                %v470 = vld [vmem:[%s198 + $0x438] sm:%s191]
                %471 = vst [vmem:[%s199 + $0x21c] sm:%s191] %v470
                %v472 = vld [vmem:[%s198 + $0x440] sm:%s191]
                %473 = vst [vmem:[%s199 + $0x220] sm:%s191] %v472
                %v474 = vld [vmem:[%s198 + $0x448] sm:%s191]
                %475 = vst [vmem:[%s199 + $0x224] sm:%s191] %v474
                %v476 = vld [vmem:[%s198 + $0x450] sm:%s191]
                %477 = vst [vmem:[%s199 + $0x228] sm:%s191] %v476
                %v478 = vld [vmem:[%s198 + $0x458] sm:%s191]
                %479 = vst [vmem:[%s199 + $0x22c] sm:%s191] %v478
                %v480 = vld [vmem:[%s198 + $0x460] sm:%s191]
                %481 = vst [vmem:[%s199 + $0x230] sm:%s191] %v480
                %v482 = vld [vmem:[%s198 + $0x468] sm:%s191]
                %483 = vst [vmem:[%s199 + $0x234] sm:%s191] %v482
                %v484 = vld [vmem:[%s198 + $0x470] sm:%s191]
                %485 = vst [vmem:[%s199 + $0x238] sm:%s191] %v484
                %v486 = vld [vmem:[%s198 + $0x478] sm:%s191]
                %487 = vst [vmem:[%s199 + $0x23c] sm:%s191] %v486
                %v488 = vld [vmem:[%s198 + $0x480] sm:%s191]
                %489 = vst [vmem:[%s199 + $0x240] sm:%s191] %v488
                %v490 = vld [vmem:[%s198 + $0x488] sm:%s191]
                %491 = vst [vmem:[%s199 + $0x244] sm:%s191] %v490
                %v492 = vld [vmem:[%s198 + $0x490] sm:%s191]
                %493 = vst [vmem:[%s199 + $0x248] sm:%s191] %v492
                %v494 = vld [vmem:[%s198 + $0x498] sm:%s191]
                %495 = vst [vmem:[%s199 + $0x24c] sm:%s191] %v494
                %v496 = vld [vmem:[%s198 + $0x4a0] sm:%s191]
                %497 = vst [vmem:[%s199 + $0x250] sm:%s191] %v496
                %v498 = vld [vmem:[%s198 + $0x4a8] sm:%s191]
                %499 = vst [vmem:[%s199 + $0x254] sm:%s191] %v498
                %v500 = vld [vmem:[%s198 + $0x4b0] sm:%s191]
                %501 = vst [vmem:[%s199 + $0x258] sm:%s191] %v500
                %v502 = vld [vmem:[%s198 + $0x4b8] sm:%s191]
                %503 = vst [vmem:[%s199 + $0x25c] sm:%s191] %v502
                %v504 = vld [vmem:[%s198 + $0x4c0] sm:%s191]
                %505 = vst [vmem:[%s199 + $0x260] sm:%s191] %v504
                %v506 = vld [vmem:[%s198 + $0x4c8] sm:%s191]
                %507 = vst [vmem:[%s199 + $0x264] sm:%s191] %v506
                %v508 = vld [vmem:[%s198 + $0x4d0] sm:%s191]
                %509 = vst [vmem:[%s199 + $0x268] sm:%s191] %v508
                %v510 = vld [vmem:[%s198 + $0x4d8] sm:%s191]
                %511 = vst [vmem:[%s199 + $0x26c] sm:%s191] %v510
                %v512 = vld [vmem:[%s198 + $0x4e0] sm:%s191]
                %513 = vst [vmem:[%s199 + $0x270] sm:%s191] %v512
                %v514 = vld [vmem:[%s198 + $0x4e8] sm:%s191]
                %515 = vst [vmem:[%s199 + $0x274] sm:%s191] %v514
                %v516 = vld [vmem:[%s198 + $0x4f0] sm:%s191]
                %517 = vst [vmem:[%s199 + $0x278] sm:%s191] %v516
                %v518 = vld [vmem:[%s198 + $0x4f8] sm:%s191]
                %519 = vst [vmem:[%s199 + $0x27c] sm:%s191] %v518
                %v520 = vld [vmem:[%s198 + $0x500] sm:%s191]
                %521 = vst [vmem:[%s199 + $0x280] sm:%s191] %v520
                %v522 = vld [vmem:[%s198 + $0x508] sm:%s191]
                %523 = vst [vmem:[%s199 + $0x284] sm:%s191] %v522
                %v524 = vld [vmem:[%s198 + $0x510] sm:%s191]
                %525 = vst [vmem:[%s199 + $0x288] sm:%s191] %v524
                %v526 = vld [vmem:[%s198 + $0x518] sm:%s191]
                %527 = vst [vmem:[%s199 + $0x28c] sm:%s191] %v526
                %v528 = vld [vmem:[%s198 + $0x520] sm:%s191]
                %529 = vst [vmem:[%s199 + $0x290] sm:%s191] %v528
                %v530 = vld [vmem:[%s198 + $0x528] sm:%s191]
                %531 = vst [vmem:[%s199 + $0x294] sm:%s191] %v530
                %v532 = vld [vmem:[%s198 + $0x530] sm:%s191]
                %533 = vst [vmem:[%s199 + $0x298] sm:%s191] %v532
                %v534 = vld [vmem:[%s198 + $0x538] sm:%s191]
                %535 = vst [vmem:[%s199 + $0x29c] sm:%s191] %v534
                %v536 = vld [vmem:[%s198 + $0x540] sm:%s191]
                %537 = vst [vmem:[%s199 + $0x2a0] sm:%s191] %v536
                %v538 = vld [vmem:[%s198 + $0x548] sm:%s191]
                %539 = vst [vmem:[%s199 + $0x2a4] sm:%s191] %v538
                %v540 = vld [vmem:[%s198 + $0x550] sm:%s191]
                %541 = vst [vmem:[%s199 + $0x2a8] sm:%s191] %v540
                %v542 = vld [vmem:[%s198 + $0x558] sm:%s191]
                %543 = vst [vmem:[%s199 + $0x2ac] sm:%s191] %v542
                %v544 = vld [vmem:[%s198 + $0x560] sm:%s191]
                %545 = vst [vmem:[%s199 + $0x2b0] sm:%s191] %v544
                %v546 = vld [vmem:[%s198 + $0x568] sm:%s191]
                %547 = vst [vmem:[%s199 + $0x2b4] sm:%s191] %v546
                %v548 = vld [vmem:[%s198 + $0x570] sm:%s191]
                %549 = vst [vmem:[%s199 + $0x2b8] sm:%s191] %v548
                %v550 = vld [vmem:[%s198 + $0x578] sm:%s191]
                %551 = vst [vmem:[%s199 + $0x2bc] sm:%s191] %v550
                %v552 = vld [vmem:[%s198 + $0x580] sm:%s191]
                %553 = vst [vmem:[%s199 + $0x2c0] sm:%s191] %v552
                %v554 = vld [vmem:[%s198 + $0x588] sm:%s191]
                %555 = vst [vmem:[%s199 + $0x2c4] sm:%s191] %v554
                %v556 = vld [vmem:[%s198 + $0x590] sm:%s191]
                %557 = vst [vmem:[%s199 + $0x2c8] sm:%s191] %v556
                %v558 = vld [vmem:[%s198 + $0x598] sm:%s191]
                %559 = vst [vmem:[%s199 + $0x2cc] sm:%s191] %v558
                %v560 = vld [vmem:[%s198 + $0x5a0] sm:%s191]
                %561 = vst [vmem:[%s199 + $0x2d0] sm:%s191] %v560
                %v562 = vld [vmem:[%s198 + $0x5a8] sm:%s191]
                %563 = vst [vmem:[%s199 + $0x2d4] sm:%s191] %v562
                %v564 = vld [vmem:[%s198 + $0x5b0] sm:%s191]
                %565 = vst [vmem:[%s199 + $0x2d8] sm:%s191] %v564
                %v566 = vld [vmem:[%s198 + $0x5b8] sm:%s191]
                %567 = vst [vmem:[%s199 + $0x2dc] sm:%s191] %v566
                %v568 = vld [vmem:[%s198 + $0x5c0] sm:%s191]
                %569 = vst [vmem:[%s199 + $0x2e0] sm:%s191] %v568
                %v570 = vld [vmem:[%s198 + $0x5c8] sm:%s191]
                %571 = vst [vmem:[%s199 + $0x2e4] sm:%s191] %v570
                %v572 = vld [vmem:[%s198 + $0x5d0] sm:%s191]
                %573 = vst [vmem:[%s199 + $0x2e8] sm:%s191] %v572
                %v574 = vld [vmem:[%s198 + $0x5d8] sm:%s191]
                %575 = vst [vmem:[%s199 + $0x2ec] sm:%s191] %v574
                %v576 = vld [vmem:[%s198 + $0x5e0] sm:%s191]
                %577 = vst [vmem:[%s199 + $0x2f0] sm:%s191] %v576
                %v578 = vld [vmem:[%s198 + $0x5e8] sm:%s191]
                %579 = vst [vmem:[%s199 + $0x2f4] sm:%s191] %v578
                %v580 = vld [vmem:[%s198 + $0x5f0] sm:%s191]
                %581 = vst [vmem:[%s199 + $0x2f8] sm:%s191] %v580
                %v582 = vld [vmem:[%s198 + $0x5f8] sm:%s191]
                %583 = vst [vmem:[%s199 + $0x2fc] sm:%s191] %v582
                %v584 = vld [vmem:[%s198 + $0x600] sm:%s191]
                %585 = vst [vmem:[%s199 + $0x300] sm:%s191] %v584
                %v586 = vld [vmem:[%s198 + $0x608] sm:%s191]
                %587 = vst [vmem:[%s199 + $0x304] sm:%s191] %v586
                %v588 = vld [vmem:[%s198 + $0x610] sm:%s191]
                %589 = vst [vmem:[%s199 + $0x308] sm:%s191] %v588
                %v590 = vld [vmem:[%s198 + $0x618] sm:%s191]
                %591 = vst [vmem:[%s199 + $0x30c] sm:%s191] %v590
                %v592 = vld [vmem:[%s198 + $0x620] sm:%s191]
                %593 = vst [vmem:[%s199 + $0x310] sm:%s191] %v592
                %v594 = vld [vmem:[%s198 + $0x628] sm:%s191]
                %595 = vst [vmem:[%s199 + $0x314] sm:%s191] %v594
                %v596 = vld [vmem:[%s198 + $0x630] sm:%s191]
                %597 = vst [vmem:[%s199 + $0x318] sm:%s191] %v596
                %v598 = vld [vmem:[%s198 + $0x638] sm:%s191]
                %599 = vst [vmem:[%s199 + $0x31c] sm:%s191] %v598
                %v600 = vld [vmem:[%s198 + $0x640] sm:%s191]
                %601 = vst [vmem:[%s199 + $0x320] sm:%s191] %v600
                %v602 = vld [vmem:[%s198 + $0x648] sm:%s191]
                %603 = vst [vmem:[%s199 + $0x324] sm:%s191] %v602
                %v604 = vld [vmem:[%s198 + $0x650] sm:%s191]
                %605 = vst [vmem:[%s199 + $0x328] sm:%s191] %v604
                %v606 = vld [vmem:[%s198 + $0x658] sm:%s191]
                %607 = vst [vmem:[%s199 + $0x32c] sm:%s191] %v606
                %v608 = vld [vmem:[%s198 + $0x660] sm:%s191]
                %609 = vst [vmem:[%s199 + $0x330] sm:%s191] %v608
                %v610 = vld [vmem:[%s198 + $0x668] sm:%s191]
                %611 = vst [vmem:[%s199 + $0x334] sm:%s191] %v610
                %v612 = vld [vmem:[%s198 + $0x670] sm:%s191]
                %613 = vst [vmem:[%s199 + $0x338] sm:%s191] %v612
                %v614 = vld [vmem:[%s198 + $0x678] sm:%s191]
                %615 = vst [vmem:[%s199 + $0x33c] sm:%s191] %v614
                %v616 = vld [vmem:[%s198 + $0x680] sm:%s191]
                %617 = vst [vmem:[%s199 + $0x340] sm:%s191] %v616
                %v618 = vld [vmem:[%s198 + $0x688] sm:%s191]
                %619 = vst [vmem:[%s199 + $0x344] sm:%s191] %v618
                %v620 = vld [vmem:[%s198 + $0x690] sm:%s191]
                %621 = vst [vmem:[%s199 + $0x348] sm:%s191] %v620
                %v622 = vld [vmem:[%s198 + $0x698] sm:%s191]
                %623 = vst [vmem:[%s199 + $0x34c] sm:%s191] %v622
                %v624 = vld [vmem:[%s198 + $0x6a0] sm:%s191]
                %625 = vst [vmem:[%s199 + $0x350] sm:%s191] %v624
                %v626 = vld [vmem:[%s198 + $0x6a8] sm:%s191]
                %627 = vst [vmem:[%s199 + $0x354] sm:%s191] %v626
                %v628 = vld [vmem:[%s198 + $0x6b0] sm:%s191]
                %629 = vst [vmem:[%s199 + $0x358] sm:%s191] %v628
                %v630 = vld [vmem:[%s198 + $0x6b8] sm:%s191]
                %631 = vst [vmem:[%s199 + $0x35c] sm:%s191] %v630
                %v632 = vld [vmem:[%s198 + $0x6c0] sm:%s191]
                %633 = vst [vmem:[%s199 + $0x360] sm:%s191] %v632
                %v634 = vld [vmem:[%s198 + $0x6c8] sm:%s191]
                %635 = vst [vmem:[%s199 + $0x364] sm:%s191] %v634
                %v636 = vld [vmem:[%s198 + $0x6d0] sm:%s191]
                %637 = vst [vmem:[%s199 + $0x368] sm:%s191] %v636
                %v638 = vld [vmem:[%s198 + $0x6d8] sm:%s191]
                %639 = vst [vmem:[%s199 + $0x36c] sm:%s191] %v638
                %v640 = vld [vmem:[%s198 + $0x6e0] sm:%s191]
                %641 = vst [vmem:[%s199 + $0x370] sm:%s191] %v640
                %v642 = vld [vmem:[%s198 + $0x6e8] sm:%s191]
                %643 = vst [vmem:[%s199 + $0x374] sm:%s191] %v642
                %v644 = vld [vmem:[%s198 + $0x6f0] sm:%s191]
                %645 = vst [vmem:[%s199 + $0x378] sm:%s191] %v644
                %v646 = vld [vmem:[%s198 + $0x6f8] sm:%s191]
                %647 = vst [vmem:[%s199 + $0x37c] sm:%s191] %v646
                %v648 = vld [vmem:[%s198 + $0x700] sm:%s191]
                %649 = vst [vmem:[%s199 + $0x380] sm:%s191] %v648
                %v650 = vld [vmem:[%s198 + $0x708] sm:%s191]
                %651 = vst [vmem:[%s199 + $0x384] sm:%s191] %v650
                %v652 = vld [vmem:[%s198 + $0x710] sm:%s191]
                %653 = vst [vmem:[%s199 + $0x388] sm:%s191] %v652
                %v654 = vld [vmem:[%s198 + $0x718] sm:%s191]
                %655 = vst [vmem:[%s199 + $0x38c] sm:%s191] %v654
                %v656 = vld [vmem:[%s198 + $0x720] sm:%s191]
                %657 = vst [vmem:[%s199 + $0x390] sm:%s191] %v656
                %v658 = vld [vmem:[%s198 + $0x728] sm:%s191]
                %659 = vst [vmem:[%s199 + $0x394] sm:%s191] %v658
                %v660 = vld [vmem:[%s198 + $0x730] sm:%s191]
                %661 = vst [vmem:[%s199 + $0x398] sm:%s191] %v660
                %v662 = vld [vmem:[%s198 + $0x738] sm:%s191]
                %663 = vst [vmem:[%s199 + $0x39c] sm:%s191] %v662
                %v664 = vld [vmem:[%s198 + $0x740] sm:%s191]
                %665 = vst [vmem:[%s199 + $0x3a0] sm:%s191] %v664
                %v666 = vld [vmem:[%s198 + $0x748] sm:%s191]
                %667 = vst [vmem:[%s199 + $0x3a4] sm:%s191] %v666
                %v668 = vld [vmem:[%s198 + $0x750] sm:%s191]
                %669 = vst [vmem:[%s199 + $0x3a8] sm:%s191] %v668
                %v670 = vld [vmem:[%s198 + $0x758] sm:%s191]
                %671 = vst [vmem:[%s199 + $0x3ac] sm:%s191] %v670
                %v672 = vld [vmem:[%s198 + $0x760] sm:%s191]
                %673 = vst [vmem:[%s199 + $0x3b0] sm:%s191] %v672
                %v674 = vld [vmem:[%s198 + $0x768] sm:%s191]
                %675 = vst [vmem:[%s199 + $0x3b4] sm:%s191] %v674
                %v676 = vld [vmem:[%s198 + $0x770] sm:%s191]
                %677 = vst [vmem:[%s199 + $0x3b8] sm:%s191] %v676
                %v678 = vld [vmem:[%s198 + $0x778] sm:%s191]
                %679 = vst [vmem:[%s199 + $0x3bc] sm:%s191] %v678
                %v680 = vld [vmem:[%s198 + $0x780] sm:%s191]
                %681 = vst [vmem:[%s199 + $0x3c0] sm:%s191] %v680
                %v682 = vld [vmem:[%s198 + $0x788] sm:%s191]
                %683 = vst [vmem:[%s199 + $0x3c4] sm:%s191] %v682
                %v684 = vld [vmem:[%s198 + $0x790] sm:%s191]
                %685 = vst [vmem:[%s199 + $0x3c8] sm:%s191] %v684
                %v686 = vld [vmem:[%s198 + $0x798] sm:%s191]
                %687 = vst [vmem:[%s199 + $0x3cc] sm:%s191] %v686
                %v688 = vld [vmem:[%s198 + $0x7a0] sm:%s191]
                %689 = vst [vmem:[%s199 + $0x3d0] sm:%s191] %v688
                %v690 = vld [vmem:[%s198 + $0x7a8] sm:%s191]
                %691 = vst [vmem:[%s199 + $0x3d4] sm:%s191] %v690
                %v692 = vld [vmem:[%s198 + $0x7b0] sm:%s191]
                %693 = vst [vmem:[%s199 + $0x3d8] sm:%s191] %v692
                %v694 = vld [vmem:[%s198 + $0x7b8] sm:%s191]
                %695 = vst [vmem:[%s199 + $0x3dc] sm:%s191] %v694
                %v696 = vld [vmem:[%s198 + $0x7c0] sm:%s191]
                %697 = vst [vmem:[%s199 + $0x3e0] sm:%s191] %v696
                %v698 = vld [vmem:[%s198 + $0x7c8] sm:%s191]
                %699 = vst [vmem:[%s199 + $0x3e4] sm:%s191] %v698
                %v700 = vld [vmem:[%s198 + $0x7d0] sm:%s191]
                %701 = vst [vmem:[%s199 + $0x3e8] sm:%s191] %v700
                %v702 = vld [vmem:[%s198 + $0x7d8] sm:%s191]
                %703 = vst [vmem:[%s199 + $0x3ec] sm:%s191] %v702
                %v704 = vld [vmem:[%s198 + $0x7e0] sm:%s191]
                %705 = vst [vmem:[%s199 + $0x3f0] sm:%s191] %v704
                %v706 = vld [vmem:[%s198 + $0x7e8] sm:%s191]
                %707 = vst [vmem:[%s199 + $0x3f4] sm:%s191] %v706
                %v708 = vld [vmem:[%s198 + $0x7f0] sm:%s191]
                %709 = vst [vmem:[%s199 + $0x3f8] sm:%s191] %v708
                %v710 = vld [vmem:[%s198 + $0x7f8] sm:%s191]
                %711 = vst [vmem:[%s199 + $0x3fc] sm:%s191] %v710
              $region41: #{discriminator_forward.9} parent=35 // loop_footer
                %s197 = sadd.s32 1, %s193
              $region42: #{discriminator_forward.9} parent=35 // loop_footer_branch
                %192 = sbr.rel target = $region38
              $region43: #{discriminator_forward.9} parent=35 // loop_exit
                _
            $region36: #{discriminator_forward.9} parent=27 // pred_fallthru
              _
          $region28: #{discriminator_forward.9} parent=23 // pred_fallthru
            _
          %2294 = vnop
        $region24: #{discriminator_forward.9} parent=19 // pred_fallthru
          _
        // Predicated region
        $region73: #{discriminator_forward.9} parent=19 // pred_check
          %p2295 = pneg %p104
        $region74: #{discriminator_forward.9} parent=19 // pred_check_branch
          %2297 = sbr.rel (%p2295) target = $region76
        $region75: #{discriminator_forward.9} parent=19 // pred_region
          %p2298 = scmp.lt.s32.totalorder %s17, 1
          %s2299 = scalar_select %p2298, %s17, 1
          %s2300 = scalar_lea.vmem %s2, %s2299
        $region76: #{discriminator_forward.9} parent=19 // pred_fallthru
          _
      $region20: #{discriminator_forward.9} parent=5 // pred_fallthru
        _
      %p2301 = scmp.le.s32.totalorder 1, %s9
      %p2302 = scmp.lt.s32.totalorder %s9, 3
      %p2303 = pnand %p2301, %p2302
      %p2304 = pneg %p2303
      // Predicated region
      $region77: #{discriminator_forward.9} parent=5 // pred_check
        _
      $region78: #{discriminator_forward.9} parent=5 // pred_check_branch
        %2306 = sbr.rel (%p2303) target = $region80
      $region79: #{discriminator_forward.9} parent=5 // pred_region
        %s2307 = ssub.s32 %s9, 1
        %s2308 = sand.u32 %s71, 1
        %s2309 = sand.u32 %s71, 1
        %s2310 = smul.addr %s2309, 1024
        %s2311 = scalar_lea.vmem [#allocation3], %s2310
        // Predicated region
        $region81: #{discriminator_forward.9} parent=79 // pred_check
          %p2312 = pneg %p84
        $region82: #{discriminator_forward.9} parent=79 // pred_check_branch
          %2314 = sbr.rel (%p2312) target = $region84
        $region83: #{discriminator_forward.9} parent=79 // pred_region
          _
        $region84: #{discriminator_forward.9} parent=79 // pred_fallthru
          _
        %s2315 = smul.u32 2, %s19
        %s2316 = smul.u32 16, %s21
        %p2317 = scmp.lt.s32.totalorder %s2315, 1
        %s2318 = scalar_select %p2317, %s2315, 1
        %p2319 = scmp.lt.s32.totalorder %s2316, 15
        %s2320 = scalar_select %p2319, %s2316, 15
        %s2321 = smul.addr %s2318, 16
        %s2322 = sadd.s32 %s2320, %s2321
        %s2323 = smul.addr %s2322, 4
        %s2324 = scalar_lea.vmem %s0, %s2323
        %p2325 = pneg %p56
        %p2326 = pneg %p53
        %s2327 = sand.u32 %s71, 1
        %s2328 = sand.u32 %s71, 1
        %s2329 = smul.addr %s2328, 1024
        %s2330 = scalar_lea.vmem [#allocation3], %s2329
        %p2331 = pneg %p84
        %p2332 = pneg %p81
        %p2333 = scmp.lt.s32.totalorder %s20, 1
        %s2334 = scalar_select %p2333, %s20, 1
        %s2335 = scalar_lea.vmem %s2, %s2334
        %p2336 = pneg %p110
        %p2337 = pneg %p107
        %p2338 = pneg %p138
        %p2339 = pneg %p135
        %s2340 = sand.u32 %s125, 1
        %s2341 = sand.u32 %s125, 1
        %s2342 = smul.addr %s2341, 8
        %s2343 = scalar_lea.vmem [#allocation4], %s2342
        %s2344 = smul.u32 2, %s19
        %s2345 = smul.u32 16, %s21
        %p2346 = scmp.lt.s32.totalorder %s2344, 1
        %s2347 = scalar_select %p2346, %s2344, 1
        %p2348 = scmp.lt.s32.totalorder %s2345, 15
        %s2349 = scalar_select %p2348, %s2345, 15
        %s2350 = smul.addr %s2347, 16
        %s2351 = sadd.s32 %s2349, %s2350
        %s2352 = smul.addr %s2351, 4
        %s2353 = scalar_lea.vmem %s0, %s2352
        %s2354 = smul.u32 2, %s19
        %s2355 = smul.u32 16, %s21
        %s2356 = smul.u32 256, %s21
        %p2357 = scmp.lt.s32.totalorder %s20, 1
        %s2358 = scalar_select %p2357, %s20, 1
        %s2359 = scalar_lea.vmem %s2, %s2358
        %s2360 = smul.u32 2, %s19
        %p2361 = scmp.eq.s32.totalorder %s21, 0
        // Predicated region
        $region85: #{discriminator_forward.9} parent=79 // pred_check
          %p2362 = pneg %p2361
        $region86: #{discriminator_forward.9} parent=79 // pred_check_branch
          %2364 = sbr.rel (%p2362) target = $region88
        $region87: #{discriminator_forward.9} parent=79 // pred_region
          %2365 = vst [vmem:[#allocation2] sm:$0xff] 0.0
          %2366 = vst [vmem:[#allocation2 + $0x8] sm:$0xff] 0.0
        $region88: #{discriminator_forward.9} parent=79 // pred_fallthru
          _
        %v2367 = vld [vmem:[#allocation2] sm:$0xff]
        %v2368 = vld [vmem:[#allocation2 + $0x8] sm:$0xff]
        %v2369 = vld [vmem:[%s2353] sm:$0xff]
        %v2370 = vld [vmem:[%s2353 + $0x8] sm:$0xff]
        %v2371 = vld [vmem:[%s2353 + $0x10] sm:$0xff]
        %v2372 = vld [vmem:[%s2353 + $0x18] sm:$0xff]
        %v2373 = vld [vmem:[%s2353 + $0x20] sm:$0xff]
        %v2374 = vld [vmem:[%s2353 + $0x28] sm:$0xff]
        %v2375 = vld [vmem:[%s2353 + $0x30] sm:$0xff]
        %v2376 = vld [vmem:[%s2353 + $0x38] sm:$0xff]
        %v2377 = vld [vmem:[%s2353 + $0x40] sm:$0xff]
        %v2378 = vld [vmem:[%s2353 + $0x48] sm:$0xff]
        %v2379 = vld [vmem:[%s2353 + $0x50] sm:$0xff]
        %v2380 = vld [vmem:[%s2353 + $0x58] sm:$0xff]
        %v2381 = vld [vmem:[%s2353 + $0x60] sm:$0xff]
        %v2382 = vld [vmem:[%s2353 + $0x68] sm:$0xff]
        %v2383 = vld [vmem:[%s2353 + $0x70] sm:$0xff]
        %v2384 = vld [vmem:[%s2353 + $0x78] sm:$0xff]
        %v2385 = vld [vmem:[%s2311] sm:$0xf]
        %v2386 = vld [vmem:[%s2311 + $0x4] sm:$0xf]
        %v2387 = vld [vmem:[%s2311 + $0x8] sm:$0xf]
        %v2388 = vld [vmem:[%s2311 + $0xc] sm:$0xf]
        %v2389 = vld [vmem:[%s2311 + $0x10] sm:$0xf]
        %v2390 = vld [vmem:[%s2311 + $0x14] sm:$0xf]
        %v2391 = vld [vmem:[%s2311 + $0x18] sm:$0xf]
        %v2392 = vld [vmem:[%s2311 + $0x1c] sm:$0xf]
        %v2393 = vld [vmem:[%s2311 + $0x20] sm:$0xf]
        %v2394 = vld [vmem:[%s2311 + $0x24] sm:$0xf]
        %v2395 = vld [vmem:[%s2311 + $0x28] sm:$0xf]
        %v2396 = vld [vmem:[%s2311 + $0x2c] sm:$0xf]
        %v2397 = vld [vmem:[%s2311 + $0x30] sm:$0xf]
        %v2398 = vld [vmem:[%s2311 + $0x34] sm:$0xf]
        %v2399 = vld [vmem:[%s2311 + $0x38] sm:$0xf]
        %v2400 = vld [vmem:[%s2311 + $0x3c] sm:$0xf]
        %v2401 = vld [vmem:[%s2311 + $0x40] sm:$0xf]
        %v2402 = vld [vmem:[%s2311 + $0x44] sm:$0xf]
        %v2403 = vld [vmem:[%s2311 + $0x48] sm:$0xf]
        %v2404 = vld [vmem:[%s2311 + $0x4c] sm:$0xf]
        %v2405 = vld [vmem:[%s2311 + $0x50] sm:$0xf]
        %v2406 = vld [vmem:[%s2311 + $0x54] sm:$0xf]
        %v2407 = vld [vmem:[%s2311 + $0x58] sm:$0xf]
        %v2408 = vld [vmem:[%s2311 + $0x5c] sm:$0xf]
        %v2409 = vld [vmem:[%s2311 + $0x60] sm:$0xf]
        %v2410 = vld [vmem:[%s2311 + $0x64] sm:$0xf]
        %v2411 = vld [vmem:[%s2311 + $0x68] sm:$0xf]
        %v2412 = vld [vmem:[%s2311 + $0x6c] sm:$0xf]
        %v2413 = vld [vmem:[%s2311 + $0x70] sm:$0xf]
        %v2414 = vld [vmem:[%s2311 + $0x74] sm:$0xf]
        %v2415 = vld [vmem:[%s2311 + $0x78] sm:$0xf]
        %v2416 = vld [vmem:[%s2311 + $0x7c] sm:$0xf]
        %v2417 = vld [vmem:[%s2311 + $0x80] sm:$0xf]
        %v2418 = vld [vmem:[%s2311 + $0x84] sm:$0xf]
        %v2419 = vld [vmem:[%s2311 + $0x88] sm:$0xf]
        %v2420 = vld [vmem:[%s2311 + $0x8c] sm:$0xf]
        %v2421 = vld [vmem:[%s2311 + $0x90] sm:$0xf]
        %v2422 = vld [vmem:[%s2311 + $0x94] sm:$0xf]
        %v2423 = vld [vmem:[%s2311 + $0x98] sm:$0xf]
        %v2424 = vld [vmem:[%s2311 + $0x9c] sm:$0xf]
        %v2425 = vld [vmem:[%s2311 + $0xa0] sm:$0xf]
        %v2426 = vld [vmem:[%s2311 + $0xa4] sm:$0xf]
        %v2427 = vld [vmem:[%s2311 + $0xa8] sm:$0xf]
        %v2428 = vld [vmem:[%s2311 + $0xac] sm:$0xf]
        %v2429 = vld [vmem:[%s2311 + $0xb0] sm:$0xf]
        %v2430 = vld [vmem:[%s2311 + $0xb4] sm:$0xf]
        %v2431 = vld [vmem:[%s2311 + $0xb8] sm:$0xf]
        %v2432 = vld [vmem:[%s2311 + $0xbc] sm:$0xf]
        %v2433 = vld [vmem:[%s2311 + $0xc0] sm:$0xf]
        %v2434 = vld [vmem:[%s2311 + $0xc4] sm:$0xf]
        %v2435 = vld [vmem:[%s2311 + $0xc8] sm:$0xf]
        %v2436 = vld [vmem:[%s2311 + $0xcc] sm:$0xf]
        %v2437 = vld [vmem:[%s2311 + $0xd0] sm:$0xf]
        %v2438 = vld [vmem:[%s2311 + $0xd4] sm:$0xf]
        %v2439 = vld [vmem:[%s2311 + $0xd8] sm:$0xf]
        %v2440 = vld [vmem:[%s2311 + $0xdc] sm:$0xf]
        %v2441 = vld [vmem:[%s2311 + $0xe0] sm:$0xf]
        %v2442 = vld [vmem:[%s2311 + $0xe4] sm:$0xf]
        %v2443 = vld [vmem:[%s2311 + $0xe8] sm:$0xf]
        %v2444 = vld [vmem:[%s2311 + $0xec] sm:$0xf]
        %v2445 = vld [vmem:[%s2311 + $0xf0] sm:$0xf]
        %v2446 = vld [vmem:[%s2311 + $0xf4] sm:$0xf]
        %v2447 = vld [vmem:[%s2311 + $0xf8] sm:$0xf]
        %v2448 = vld [vmem:[%s2311 + $0xfc] sm:$0xf]
        %v2449 = vld [vmem:[%s2311 + $0x100] sm:$0xf]
        %v2450 = vld [vmem:[%s2311 + $0x104] sm:$0xf]
        %v2451 = vld [vmem:[%s2311 + $0x108] sm:$0xf]
        %v2452 = vld [vmem:[%s2311 + $0x10c] sm:$0xf]
        %v2453 = vld [vmem:[%s2311 + $0x110] sm:$0xf]
        %v2454 = vld [vmem:[%s2311 + $0x114] sm:$0xf]
        %v2455 = vld [vmem:[%s2311 + $0x118] sm:$0xf]
        %v2456 = vld [vmem:[%s2311 + $0x11c] sm:$0xf]
        %v2457 = vld [vmem:[%s2311 + $0x120] sm:$0xf]
        %v2458 = vld [vmem:[%s2311 + $0x124] sm:$0xf]
        %v2459 = vld [vmem:[%s2311 + $0x128] sm:$0xf]
        %v2460 = vld [vmem:[%s2311 + $0x12c] sm:$0xf]
        %v2461 = vld [vmem:[%s2311 + $0x130] sm:$0xf]
        %v2462 = vld [vmem:[%s2311 + $0x134] sm:$0xf]
        %v2463 = vld [vmem:[%s2311 + $0x138] sm:$0xf]
        %v2464 = vld [vmem:[%s2311 + $0x13c] sm:$0xf]
        %v2465 = vld [vmem:[%s2311 + $0x140] sm:$0xf]
        %v2466 = vld [vmem:[%s2311 + $0x144] sm:$0xf]
        %v2467 = vld [vmem:[%s2311 + $0x148] sm:$0xf]
        %v2468 = vld [vmem:[%s2311 + $0x14c] sm:$0xf]
        %v2469 = vld [vmem:[%s2311 + $0x150] sm:$0xf]
        %v2470 = vld [vmem:[%s2311 + $0x154] sm:$0xf]
        %v2471 = vld [vmem:[%s2311 + $0x158] sm:$0xf]
        %v2472 = vld [vmem:[%s2311 + $0x15c] sm:$0xf]
        %v2473 = vld [vmem:[%s2311 + $0x160] sm:$0xf]
        %v2474 = vld [vmem:[%s2311 + $0x164] sm:$0xf]
        %v2475 = vld [vmem:[%s2311 + $0x168] sm:$0xf]
        %v2476 = vld [vmem:[%s2311 + $0x16c] sm:$0xf]
        %v2477 = vld [vmem:[%s2311 + $0x170] sm:$0xf]
        %v2478 = vld [vmem:[%s2311 + $0x174] sm:$0xf]
        %v2479 = vld [vmem:[%s2311 + $0x178] sm:$0xf]
        %v2480 = vld [vmem:[%s2311 + $0x17c] sm:$0xf]
        %v2481 = vld [vmem:[%s2311 + $0x180] sm:$0xf]
        %v2482 = vld [vmem:[%s2311 + $0x184] sm:$0xf]
        %v2483 = vld [vmem:[%s2311 + $0x188] sm:$0xf]
        %v2484 = vld [vmem:[%s2311 + $0x18c] sm:$0xf]
        %v2485 = vld [vmem:[%s2311 + $0x190] sm:$0xf]
        %v2486 = vld [vmem:[%s2311 + $0x194] sm:$0xf]
        %v2487 = vld [vmem:[%s2311 + $0x198] sm:$0xf]
        %v2488 = vld [vmem:[%s2311 + $0x19c] sm:$0xf]
        %v2489 = vld [vmem:[%s2311 + $0x1a0] sm:$0xf]
        %v2490 = vld [vmem:[%s2311 + $0x1a4] sm:$0xf]
        %v2491 = vld [vmem:[%s2311 + $0x1a8] sm:$0xf]
        %v2492 = vld [vmem:[%s2311 + $0x1ac] sm:$0xf]
        %v2493 = vld [vmem:[%s2311 + $0x1b0] sm:$0xf]
        %v2494 = vld [vmem:[%s2311 + $0x1b4] sm:$0xf]
        %v2495 = vld [vmem:[%s2311 + $0x1b8] sm:$0xf]
        %v2496 = vld [vmem:[%s2311 + $0x1bc] sm:$0xf]
        %v2497 = vld [vmem:[%s2311 + $0x1c0] sm:$0xf]
        %v2498 = vld [vmem:[%s2311 + $0x1c4] sm:$0xf]
        %v2499 = vld [vmem:[%s2311 + $0x1c8] sm:$0xf]
        %v2500 = vld [vmem:[%s2311 + $0x1cc] sm:$0xf]
        %v2501 = vld [vmem:[%s2311 + $0x1d0] sm:$0xf]
        %v2502 = vld [vmem:[%s2311 + $0x1d4] sm:$0xf]
        %v2503 = vld [vmem:[%s2311 + $0x1d8] sm:$0xf]
        %v2504 = vld [vmem:[%s2311 + $0x1dc] sm:$0xf]
        %v2505 = vld [vmem:[%s2311 + $0x1e0] sm:$0xf]
        %v2506 = vld [vmem:[%s2311 + $0x1e4] sm:$0xf]
        %v2507 = vld [vmem:[%s2311 + $0x1e8] sm:$0xf]
        %v2508 = vld [vmem:[%s2311 + $0x1ec] sm:$0xf]
        %v2509 = vld [vmem:[%s2311 + $0x1f0] sm:$0xf]
        %v2510 = vld [vmem:[%s2311 + $0x1f4] sm:$0xf]
        %v2511 = vld [vmem:[%s2311 + $0x1f8] sm:$0xf]
        %v2512 = vld [vmem:[%s2311 + $0x1fc] sm:$0xf]
        %v2513 = vld [vmem:[%s2311 + $0x200] sm:$0xf]
        %v2514 = vld [vmem:[%s2311 + $0x204] sm:$0xf]
        %v2515 = vld [vmem:[%s2311 + $0x208] sm:$0xf]
        %v2516 = vld [vmem:[%s2311 + $0x20c] sm:$0xf]
        %v2517 = vld [vmem:[%s2311 + $0x210] sm:$0xf]
        %v2518 = vld [vmem:[%s2311 + $0x214] sm:$0xf]
        %v2519 = vld [vmem:[%s2311 + $0x218] sm:$0xf]
        %v2520 = vld [vmem:[%s2311 + $0x21c] sm:$0xf]
        %v2521 = vld [vmem:[%s2311 + $0x220] sm:$0xf]
        %v2522 = vld [vmem:[%s2311 + $0x224] sm:$0xf]
        %v2523 = vld [vmem:[%s2311 + $0x228] sm:$0xf]
        %v2524 = vld [vmem:[%s2311 + $0x22c] sm:$0xf]
        %v2525 = vld [vmem:[%s2311 + $0x230] sm:$0xf]
        %v2526 = vld [vmem:[%s2311 + $0x234] sm:$0xf]
        %v2527 = vld [vmem:[%s2311 + $0x238] sm:$0xf]
        %v2528 = vld [vmem:[%s2311 + $0x23c] sm:$0xf]
        %v2529 = vld [vmem:[%s2311 + $0x240] sm:$0xf]
        %v2530 = vld [vmem:[%s2311 + $0x244] sm:$0xf]
        %v2531 = vld [vmem:[%s2311 + $0x248] sm:$0xf]
        %v2532 = vld [vmem:[%s2311 + $0x24c] sm:$0xf]
        %v2533 = vld [vmem:[%s2311 + $0x250] sm:$0xf]
        %v2534 = vld [vmem:[%s2311 + $0x254] sm:$0xf]
        %v2535 = vld [vmem:[%s2311 + $0x258] sm:$0xf]
        %v2536 = vld [vmem:[%s2311 + $0x25c] sm:$0xf]
        %v2537 = vld [vmem:[%s2311 + $0x260] sm:$0xf]
        %v2538 = vld [vmem:[%s2311 + $0x264] sm:$0xf]
        %v2539 = vld [vmem:[%s2311 + $0x268] sm:$0xf]
        %v2540 = vld [vmem:[%s2311 + $0x26c] sm:$0xf]
        %v2541 = vld [vmem:[%s2311 + $0x270] sm:$0xf]
        %v2542 = vld [vmem:[%s2311 + $0x274] sm:$0xf]
        %v2543 = vld [vmem:[%s2311 + $0x278] sm:$0xf]
        %v2544 = vld [vmem:[%s2311 + $0x27c] sm:$0xf]
        %v2545 = vld [vmem:[%s2311 + $0x280] sm:$0xf]
        %v2546 = vld [vmem:[%s2311 + $0x284] sm:$0xf]
        %v2547 = vld [vmem:[%s2311 + $0x288] sm:$0xf]
        %v2548 = vld [vmem:[%s2311 + $0x28c] sm:$0xf]
        %v2549 = vld [vmem:[%s2311 + $0x290] sm:$0xf]
        %v2550 = vld [vmem:[%s2311 + $0x294] sm:$0xf]
        %v2551 = vld [vmem:[%s2311 + $0x298] sm:$0xf]
        %v2552 = vld [vmem:[%s2311 + $0x29c] sm:$0xf]
        %v2553 = vld [vmem:[%s2311 + $0x2a0] sm:$0xf]
        %v2554 = vld [vmem:[%s2311 + $0x2a4] sm:$0xf]
        %v2555 = vld [vmem:[%s2311 + $0x2a8] sm:$0xf]
        %v2556 = vld [vmem:[%s2311 + $0x2ac] sm:$0xf]
        %v2557 = vld [vmem:[%s2311 + $0x2b0] sm:$0xf]
        %v2558 = vld [vmem:[%s2311 + $0x2b4] sm:$0xf]
        %v2559 = vld [vmem:[%s2311 + $0x2b8] sm:$0xf]
        %v2560 = vld [vmem:[%s2311 + $0x2bc] sm:$0xf]
        %v2561 = vld [vmem:[%s2311 + $0x2c0] sm:$0xf]
        %v2562 = vld [vmem:[%s2311 + $0x2c4] sm:$0xf]
        %v2563 = vld [vmem:[%s2311 + $0x2c8] sm:$0xf]
        %v2564 = vld [vmem:[%s2311 + $0x2cc] sm:$0xf]
        %v2565 = vld [vmem:[%s2311 + $0x2d0] sm:$0xf]
        %v2566 = vld [vmem:[%s2311 + $0x2d4] sm:$0xf]
        %v2567 = vld [vmem:[%s2311 + $0x2d8] sm:$0xf]
        %v2568 = vld [vmem:[%s2311 + $0x2dc] sm:$0xf]
        %v2569 = vld [vmem:[%s2311 + $0x2e0] sm:$0xf]
        %v2570 = vld [vmem:[%s2311 + $0x2e4] sm:$0xf]
        %v2571 = vld [vmem:[%s2311 + $0x2e8] sm:$0xf]
        %v2572 = vld [vmem:[%s2311 + $0x2ec] sm:$0xf]
        %v2573 = vld [vmem:[%s2311 + $0x2f0] sm:$0xf]
        %v2574 = vld [vmem:[%s2311 + $0x2f4] sm:$0xf]
        %v2575 = vld [vmem:[%s2311 + $0x2f8] sm:$0xf]
        %v2576 = vld [vmem:[%s2311 + $0x2fc] sm:$0xf]
        %v2577 = vld [vmem:[%s2311 + $0x300] sm:$0xf]
        %v2578 = vld [vmem:[%s2311 + $0x304] sm:$0xf]
        %v2579 = vld [vmem:[%s2311 + $0x308] sm:$0xf]
        %v2580 = vld [vmem:[%s2311 + $0x30c] sm:$0xf]
        %v2581 = vld [vmem:[%s2311 + $0x310] sm:$0xf]
        %v2582 = vld [vmem:[%s2311 + $0x314] sm:$0xf]
        %v2583 = vld [vmem:[%s2311 + $0x318] sm:$0xf]
        %v2584 = vld [vmem:[%s2311 + $0x31c] sm:$0xf]
        %v2585 = vld [vmem:[%s2311 + $0x320] sm:$0xf]
        %v2586 = vld [vmem:[%s2311 + $0x324] sm:$0xf]
        %v2587 = vld [vmem:[%s2311 + $0x328] sm:$0xf]
        %v2588 = vld [vmem:[%s2311 + $0x32c] sm:$0xf]
        %v2589 = vld [vmem:[%s2311 + $0x330] sm:$0xf]
        %v2590 = vld [vmem:[%s2311 + $0x334] sm:$0xf]
        %v2591 = vld [vmem:[%s2311 + $0x338] sm:$0xf]
        %v2592 = vld [vmem:[%s2311 + $0x33c] sm:$0xf]
        %v2593 = vld [vmem:[%s2311 + $0x340] sm:$0xf]
        %v2594 = vld [vmem:[%s2311 + $0x344] sm:$0xf]
        %v2595 = vld [vmem:[%s2311 + $0x348] sm:$0xf]
        %v2596 = vld [vmem:[%s2311 + $0x34c] sm:$0xf]
        %v2597 = vld [vmem:[%s2311 + $0x350] sm:$0xf]
        %v2598 = vld [vmem:[%s2311 + $0x354] sm:$0xf]
        %v2599 = vld [vmem:[%s2311 + $0x358] sm:$0xf]
        %v2600 = vld [vmem:[%s2311 + $0x35c] sm:$0xf]
        %v2601 = vld [vmem:[%s2311 + $0x360] sm:$0xf]
        %v2602 = vld [vmem:[%s2311 + $0x364] sm:$0xf]
        %v2603 = vld [vmem:[%s2311 + $0x368] sm:$0xf]
        %v2604 = vld [vmem:[%s2311 + $0x36c] sm:$0xf]
        %v2605 = vld [vmem:[%s2311 + $0x370] sm:$0xf]
        %v2606 = vld [vmem:[%s2311 + $0x374] sm:$0xf]
        %v2607 = vld [vmem:[%s2311 + $0x378] sm:$0xf]
        %v2608 = vld [vmem:[%s2311 + $0x37c] sm:$0xf]
        %v2609 = vld [vmem:[%s2311 + $0x380] sm:$0xf]
        %v2610 = vld [vmem:[%s2311 + $0x384] sm:$0xf]
        %v2611 = vld [vmem:[%s2311 + $0x388] sm:$0xf]
        %v2612 = vld [vmem:[%s2311 + $0x38c] sm:$0xf]
        %v2613 = vld [vmem:[%s2311 + $0x390] sm:$0xf]
        %v2614 = vld [vmem:[%s2311 + $0x394] sm:$0xf]
        %v2615 = vld [vmem:[%s2311 + $0x398] sm:$0xf]
        %v2616 = vld [vmem:[%s2311 + $0x39c] sm:$0xf]
        %v2617 = vld [vmem:[%s2311 + $0x3a0] sm:$0xf]
        %v2618 = vld [vmem:[%s2311 + $0x3a4] sm:$0xf]
        %v2619 = vld [vmem:[%s2311 + $0x3a8] sm:$0xf]
        %v2620 = vld [vmem:[%s2311 + $0x3ac] sm:$0xf]
        %v2621 = vld [vmem:[%s2311 + $0x3b0] sm:$0xf]
        %v2622 = vld [vmem:[%s2311 + $0x3b4] sm:$0xf]
        %v2623 = vld [vmem:[%s2311 + $0x3b8] sm:$0xf]
        %v2624 = vld [vmem:[%s2311 + $0x3bc] sm:$0xf]
        %v2625 = vld [vmem:[%s2311 + $0x3c0] sm:$0xf]
        %v2626 = vld [vmem:[%s2311 + $0x3c4] sm:$0xf]
        %v2627 = vld [vmem:[%s2311 + $0x3c8] sm:$0xf]
        %v2628 = vld [vmem:[%s2311 + $0x3cc] sm:$0xf]
        %v2629 = vld [vmem:[%s2311 + $0x3d0] sm:$0xf]
        %v2630 = vld [vmem:[%s2311 + $0x3d4] sm:$0xf]
        %v2631 = vld [vmem:[%s2311 + $0x3d8] sm:$0xf]
        %v2632 = vld [vmem:[%s2311 + $0x3dc] sm:$0xf]
        %v2633 = vld [vmem:[%s2311 + $0x3e0] sm:$0xf]
        %v2634 = vld [vmem:[%s2311 + $0x3e4] sm:$0xf]
        %v2635 = vld [vmem:[%s2311 + $0x3e8] sm:$0xf]
        %v2636 = vld [vmem:[%s2311 + $0x3ec] sm:$0xf]
        %v2637 = vld [vmem:[%s2311 + $0x3f0] sm:$0xf]
        %v2638 = vld [vmem:[%s2311 + $0x3f4] sm:$0xf]
        %v2639 = vld [vmem:[%s2311 + $0x3f8] sm:$0xf]
        %v2640 = vld [vmem:[%s2311 + $0x3fc] sm:$0xf]
        %v2657 = vunpack.c.l.b16 %v2369
        %v2658 = vunpack.c.h.b16 %v2369
        %v2659 = vunpack.c.l.b16 %v2370
        %v2660 = vunpack.c.h.b16 %v2370
        %v2661 = vunpack.c.l.b16 %v2371
        %v2662 = vunpack.c.h.b16 %v2371
        %v2663 = vunpack.c.l.b16 %v2372
        %v2664 = vunpack.c.h.b16 %v2372
        %v2665 = vunpack.c.l.b16 %v2373
        %v2666 = vunpack.c.h.b16 %v2373
        %v2667 = vunpack.c.l.b16 %v2374
        %v2668 = vunpack.c.h.b16 %v2374
        %v2669 = vunpack.c.l.b16 %v2375
        %v2670 = vunpack.c.h.b16 %v2375
        %v2671 = vunpack.c.l.b16 %v2376
        %v2672 = vunpack.c.h.b16 %v2376
        %v2673 = vunpack.c.l.b16 %v2377
        %v2674 = vunpack.c.h.b16 %v2377
        %v2675 = vunpack.c.l.b16 %v2378
        %v2676 = vunpack.c.h.b16 %v2378
        %v2677 = vunpack.c.l.b16 %v2379
        %v2678 = vunpack.c.h.b16 %v2379
        %v2679 = vunpack.c.l.b16 %v2380
        %v2680 = vunpack.c.h.b16 %v2380
        %v2681 = vunpack.c.l.b16 %v2381
        %v2682 = vunpack.c.h.b16 %v2381
        %v2683 = vunpack.c.l.b16 %v2382
        %v2684 = vunpack.c.h.b16 %v2382
        %v2685 = vunpack.c.l.b16 %v2383
        %v2686 = vunpack.c.h.b16 %v2383
        %v2687 = vunpack.c.l.b16 %v2384
        %v2688 = vunpack.c.h.b16 %v2384
        %v2689 = vpack.c.b16 %v2673, %v2657
        %v2690 = vpack.c.b16 %v2674, %v2658
        %v2691 = vpack.c.b16 %v2675, %v2659
        %v2692 = vpack.c.b16 %v2676, %v2660
        %v2693 = vpack.c.b16 %v2677, %v2661
        %v2694 = vpack.c.b16 %v2678, %v2662
        %v2695 = vpack.c.b16 %v2679, %v2663
        %v2696 = vpack.c.b16 %v2680, %v2664
        %v2697 = vpack.c.b16 %v2681, %v2665
        %v2698 = vpack.c.b16 %v2682, %v2666
        %v2699 = vpack.c.b16 %v2683, %v2667
        %v2700 = vpack.c.b16 %v2684, %v2668
        %v2701 = vpack.c.b16 %v2685, %v2669
        %v2702 = vpack.c.b16 %v2686, %v2670
        %v2703 = vpack.c.b16 %v2687, %v2671
        %v2704 = vpack.c.b16 %v2688, %v2672
        %v2977 = vunpack.c.l.b16 %v2385
        %v2978 = vunpack.c.l.b16 %v2386
        %v2979 = vunpack.c.l.b16 %v2387
        %v2980 = vunpack.c.l.b16 %v2388
        %v2981 = vunpack.c.l.b16 %v2389
        %v2982 = vunpack.c.l.b16 %v2390
        %v2983 = vunpack.c.l.b16 %v2391
        %v2984 = vunpack.c.l.b16 %v2392
        %v2985 = vunpack.c.l.b16 %v2393
        %v2986 = vunpack.c.l.b16 %v2394
        %v2987 = vunpack.c.l.b16 %v2395
        %v2988 = vunpack.c.l.b16 %v2396
        %v2989 = vunpack.c.l.b16 %v2397
        %v2990 = vunpack.c.l.b16 %v2398
        %v2991 = vunpack.c.l.b16 %v2399
        %v2992 = vunpack.c.l.b16 %v2400
        %v2993 = vunpack.c.l.b16 %v2401
        %v2994 = vunpack.c.l.b16 %v2402
        %v2995 = vunpack.c.l.b16 %v2403
        %v2996 = vunpack.c.l.b16 %v2404
        %v2997 = vunpack.c.l.b16 %v2405
        %v2998 = vunpack.c.l.b16 %v2406
        %v2999 = vunpack.c.l.b16 %v2407
        %v3000 = vunpack.c.l.b16 %v2408
        %v3001 = vunpack.c.l.b16 %v2409
        %v3002 = vunpack.c.l.b16 %v2410
        %v3003 = vunpack.c.l.b16 %v2411
        %v3004 = vunpack.c.l.b16 %v2412
        %v3005 = vunpack.c.l.b16 %v2413
        %v3006 = vunpack.c.l.b16 %v2414
        %v3007 = vunpack.c.l.b16 %v2415
        %v3008 = vunpack.c.l.b16 %v2416
        %v3009 = vunpack.c.l.b16 %v2417
        %v3010 = vunpack.c.l.b16 %v2418
        %v3011 = vunpack.c.l.b16 %v2419
        %v3012 = vunpack.c.l.b16 %v2420
        %v3013 = vunpack.c.l.b16 %v2421
        %v3014 = vunpack.c.l.b16 %v2422
        %v3015 = vunpack.c.l.b16 %v2423
        %v3016 = vunpack.c.l.b16 %v2424
        %v3017 = vunpack.c.l.b16 %v2425
        %v3018 = vunpack.c.l.b16 %v2426
        %v3019 = vunpack.c.l.b16 %v2427
        %v3020 = vunpack.c.l.b16 %v2428
        %v3021 = vunpack.c.l.b16 %v2429
        %v3022 = vunpack.c.l.b16 %v2430
        %v3023 = vunpack.c.l.b16 %v2431
        %v3024 = vunpack.c.l.b16 %v2432
        %v3025 = vunpack.c.l.b16 %v2433
        %v3026 = vunpack.c.l.b16 %v2434
        %v3027 = vunpack.c.l.b16 %v2435
        %v3028 = vunpack.c.l.b16 %v2436
        %v3029 = vunpack.c.l.b16 %v2437
        %v3030 = vunpack.c.l.b16 %v2438
        %v3031 = vunpack.c.l.b16 %v2439
        %v3032 = vunpack.c.l.b16 %v2440
        %v3033 = vunpack.c.l.b16 %v2441
        %v3034 = vunpack.c.l.b16 %v2442
        %v3035 = vunpack.c.l.b16 %v2443
        %v3036 = vunpack.c.l.b16 %v2444
        %v3037 = vunpack.c.l.b16 %v2445
        %v3038 = vunpack.c.l.b16 %v2446
        %v3039 = vunpack.c.l.b16 %v2447
        %v3040 = vunpack.c.l.b16 %v2448
        %v3041 = vunpack.c.l.b16 %v2449
        %v3042 = vunpack.c.l.b16 %v2450
        %v3043 = vunpack.c.l.b16 %v2451
        %v3044 = vunpack.c.l.b16 %v2452
        %v3045 = vunpack.c.l.b16 %v2453
        %v3046 = vunpack.c.l.b16 %v2454
        %v3047 = vunpack.c.l.b16 %v2455
        %v3048 = vunpack.c.l.b16 %v2456
        %v3049 = vunpack.c.l.b16 %v2457
        %v3050 = vunpack.c.l.b16 %v2458
        %v3051 = vunpack.c.l.b16 %v2459
        %v3052 = vunpack.c.l.b16 %v2460
        %v3053 = vunpack.c.l.b16 %v2461
        %v3054 = vunpack.c.l.b16 %v2462
        %v3055 = vunpack.c.l.b16 %v2463
        %v3056 = vunpack.c.l.b16 %v2464
        %v3057 = vunpack.c.l.b16 %v2465
        %v3058 = vunpack.c.l.b16 %v2466
        %v3059 = vunpack.c.l.b16 %v2467
        %v3060 = vunpack.c.l.b16 %v2468
        %v3061 = vunpack.c.l.b16 %v2469
        %v3062 = vunpack.c.l.b16 %v2470
        %v3063 = vunpack.c.l.b16 %v2471
        %v3064 = vunpack.c.l.b16 %v2472
        %v3065 = vunpack.c.l.b16 %v2473
        %v3066 = vunpack.c.l.b16 %v2474
        %v3067 = vunpack.c.l.b16 %v2475
        %v3068 = vunpack.c.l.b16 %v2476
        %v3069 = vunpack.c.l.b16 %v2477
        %v3070 = vunpack.c.l.b16 %v2478
        %v3071 = vunpack.c.l.b16 %v2479
        %v3072 = vunpack.c.l.b16 %v2480
        %v3073 = vunpack.c.l.b16 %v2481
        %v3074 = vunpack.c.l.b16 %v2482
        %v3075 = vunpack.c.l.b16 %v2483
        %v3076 = vunpack.c.l.b16 %v2484
        %v3077 = vunpack.c.l.b16 %v2485
        %v3078 = vunpack.c.l.b16 %v2486
        %v3079 = vunpack.c.l.b16 %v2487
        %v3080 = vunpack.c.l.b16 %v2488
        %v3081 = vunpack.c.l.b16 %v2489
        %v3082 = vunpack.c.l.b16 %v2490
        %v3083 = vunpack.c.l.b16 %v2491
        %v3084 = vunpack.c.l.b16 %v2492
        %v3085 = vunpack.c.l.b16 %v2493
        %v3086 = vunpack.c.l.b16 %v2494
        %v3087 = vunpack.c.l.b16 %v2495
        %v3088 = vunpack.c.l.b16 %v2496
        %v3089 = vunpack.c.l.b16 %v2497
        %v3090 = vunpack.c.l.b16 %v2498
        %v3091 = vunpack.c.l.b16 %v2499
        %v3092 = vunpack.c.l.b16 %v2500
        %v3093 = vunpack.c.l.b16 %v2501
        %v3094 = vunpack.c.l.b16 %v2502
        %v3095 = vunpack.c.l.b16 %v2503
        %v3096 = vunpack.c.l.b16 %v2504
        %v3097 = vunpack.c.l.b16 %v2505
        %v3098 = vunpack.c.l.b16 %v2506
        %v3099 = vunpack.c.l.b16 %v2507
        %v3100 = vunpack.c.l.b16 %v2508
        %v3101 = vunpack.c.l.b16 %v2509
        %v3102 = vunpack.c.l.b16 %v2510
        %v3103 = vunpack.c.l.b16 %v2511
        %v3104 = vunpack.c.l.b16 %v2512
        %v3105 = vunpack.c.l.b16 %v2513
        %v3106 = vunpack.c.l.b16 %v2514
        %v3107 = vunpack.c.l.b16 %v2515
        %v3108 = vunpack.c.l.b16 %v2516
        %v3109 = vunpack.c.l.b16 %v2517
        %v3110 = vunpack.c.l.b16 %v2518
        %v3111 = vunpack.c.l.b16 %v2519
        %v3112 = vunpack.c.l.b16 %v2520
        %v3113 = vunpack.c.l.b16 %v2521
        %v3114 = vunpack.c.l.b16 %v2522
        %v3115 = vunpack.c.l.b16 %v2523
        %v3116 = vunpack.c.l.b16 %v2524
        %v3117 = vunpack.c.l.b16 %v2525
        %v3118 = vunpack.c.l.b16 %v2526
        %v3119 = vunpack.c.l.b16 %v2527
        %v3120 = vunpack.c.l.b16 %v2528
        %v3121 = vunpack.c.l.b16 %v2529
        %v3122 = vunpack.c.l.b16 %v2530
        %v3123 = vunpack.c.l.b16 %v2531
        %v3124 = vunpack.c.l.b16 %v2532
        %v3125 = vunpack.c.l.b16 %v2533
        %v3126 = vunpack.c.l.b16 %v2534
        %v3127 = vunpack.c.l.b16 %v2535
        %v3128 = vunpack.c.l.b16 %v2536
        %v3129 = vunpack.c.l.b16 %v2537
        %v3130 = vunpack.c.l.b16 %v2538
        %v3131 = vunpack.c.l.b16 %v2539
        %v3132 = vunpack.c.l.b16 %v2540
        %v3133 = vunpack.c.l.b16 %v2541
        %v3134 = vunpack.c.l.b16 %v2542
        %v3135 = vunpack.c.l.b16 %v2543
        %v3136 = vunpack.c.l.b16 %v2544
        %v3137 = vunpack.c.l.b16 %v2545
        %v3138 = vunpack.c.l.b16 %v2546
        %v3139 = vunpack.c.l.b16 %v2547
        %v3140 = vunpack.c.l.b16 %v2548
        %v3141 = vunpack.c.l.b16 %v2549
        %v3142 = vunpack.c.l.b16 %v2550
        %v3143 = vunpack.c.l.b16 %v2551
        %v3144 = vunpack.c.l.b16 %v2552
        %v3145 = vunpack.c.l.b16 %v2553
        %v3146 = vunpack.c.l.b16 %v2554
        %v3147 = vunpack.c.l.b16 %v2555
        %v3148 = vunpack.c.l.b16 %v2556
        %v3149 = vunpack.c.l.b16 %v2557
        %v3150 = vunpack.c.l.b16 %v2558
        %v3151 = vunpack.c.l.b16 %v2559
        %v3152 = vunpack.c.l.b16 %v2560
        %v3153 = vunpack.c.l.b16 %v2561
        %v3154 = vunpack.c.l.b16 %v2562
        %v3155 = vunpack.c.l.b16 %v2563
        %v3156 = vunpack.c.l.b16 %v2564
        %v3157 = vunpack.c.l.b16 %v2565
        %v3158 = vunpack.c.l.b16 %v2566
        %v3159 = vunpack.c.l.b16 %v2567
        %v3160 = vunpack.c.l.b16 %v2568
        %v3161 = vunpack.c.l.b16 %v2569
        %v3162 = vunpack.c.l.b16 %v2570
        %v3163 = vunpack.c.l.b16 %v2571
        %v3164 = vunpack.c.l.b16 %v2572
        %v3165 = vunpack.c.l.b16 %v2573
        %v3166 = vunpack.c.l.b16 %v2574
        %v3167 = vunpack.c.l.b16 %v2575
        %v3168 = vunpack.c.l.b16 %v2576
        %v3169 = vunpack.c.l.b16 %v2577
        %v3170 = vunpack.c.l.b16 %v2578
        %v3171 = vunpack.c.l.b16 %v2579
        %v3172 = vunpack.c.l.b16 %v2580
        %v3173 = vunpack.c.l.b16 %v2581
        %v3174 = vunpack.c.l.b16 %v2582
        %v3175 = vunpack.c.l.b16 %v2583
        %v3176 = vunpack.c.l.b16 %v2584
        %v3177 = vunpack.c.l.b16 %v2585
        %v3178 = vunpack.c.l.b16 %v2586
        %v3179 = vunpack.c.l.b16 %v2587
        %v3180 = vunpack.c.l.b16 %v2588
        %v3181 = vunpack.c.l.b16 %v2589
        %v3182 = vunpack.c.l.b16 %v2590
        %v3183 = vunpack.c.l.b16 %v2591
        %v3184 = vunpack.c.l.b16 %v2592
        %v3185 = vunpack.c.l.b16 %v2593
        %v3186 = vunpack.c.l.b16 %v2594
        %v3187 = vunpack.c.l.b16 %v2595
        %v3188 = vunpack.c.l.b16 %v2596
        %v3189 = vunpack.c.l.b16 %v2597
        %v3190 = vunpack.c.l.b16 %v2598
        %v3191 = vunpack.c.l.b16 %v2599
        %v3192 = vunpack.c.l.b16 %v2600
        %v3193 = vunpack.c.l.b16 %v2601
        %v3194 = vunpack.c.l.b16 %v2602
        %v3195 = vunpack.c.l.b16 %v2603
        %v3196 = vunpack.c.l.b16 %v2604
        %v3197 = vunpack.c.l.b16 %v2605
        %v3198 = vunpack.c.l.b16 %v2606
        %v3199 = vunpack.c.l.b16 %v2607
        %v3200 = vunpack.c.l.b16 %v2608
        %v3201 = vunpack.c.l.b16 %v2609
        %v3202 = vunpack.c.l.b16 %v2610
        %v3203 = vunpack.c.l.b16 %v2611
        %v3204 = vunpack.c.l.b16 %v2612
        %v3205 = vunpack.c.l.b16 %v2613
        %v3206 = vunpack.c.l.b16 %v2614
        %v3207 = vunpack.c.l.b16 %v2615
        %v3208 = vunpack.c.l.b16 %v2616
        %v3209 = vunpack.c.l.b16 %v2617
        %v3210 = vunpack.c.l.b16 %v2618
        %v3211 = vunpack.c.l.b16 %v2619
        %v3212 = vunpack.c.l.b16 %v2620
        %v3213 = vunpack.c.l.b16 %v2621
        %v3214 = vunpack.c.l.b16 %v2622
        %v3215 = vunpack.c.l.b16 %v2623
        %v3216 = vunpack.c.l.b16 %v2624
        %v3217 = vunpack.c.l.b16 %v2625
        %v3218 = vunpack.c.l.b16 %v2626
        %v3219 = vunpack.c.l.b16 %v2627
        %v3220 = vunpack.c.l.b16 %v2628
        %v3221 = vunpack.c.l.b16 %v2629
        %v3222 = vunpack.c.l.b16 %v2630
        %v3223 = vunpack.c.l.b16 %v2631
        %v3224 = vunpack.c.l.b16 %v2632
        %v3225 = vunpack.c.l.b16 %v2633
        %v3226 = vunpack.c.l.b16 %v2634
        %v3227 = vunpack.c.l.b16 %v2635
        %v3228 = vunpack.c.l.b16 %v2636
        %v3229 = vunpack.c.l.b16 %v2637
        %v3230 = vunpack.c.l.b16 %v2638
        %v3231 = vunpack.c.l.b16 %v2639
        %v3232 = vunpack.c.l.b16 %v2640
        %v3233 = vpack.c.b16 %v2978, %v2977
        %v3234 = vpack.c.b16 %v2980, %v2979
        %v3235 = vpack.c.b16 %v2982, %v2981
        %v3236 = vpack.c.b16 %v2984, %v2983
        %v3237 = vpack.c.b16 %v2986, %v2985
        %v3238 = vpack.c.b16 %v2988, %v2987
        %v3239 = vpack.c.b16 %v2990, %v2989
        %v3240 = vpack.c.b16 %v2992, %v2991
        %v3241 = vpack.c.b16 %v2994, %v2993
        %v3242 = vpack.c.b16 %v2996, %v2995
        %v3243 = vpack.c.b16 %v2998, %v2997
        %v3244 = vpack.c.b16 %v3000, %v2999
        %v3245 = vpack.c.b16 %v3002, %v3001
        %v3246 = vpack.c.b16 %v3004, %v3003
        %v3247 = vpack.c.b16 %v3006, %v3005
        %v3248 = vpack.c.b16 %v3008, %v3007
        %v3249 = vpack.c.b16 %v3010, %v3009
        %v3250 = vpack.c.b16 %v3012, %v3011
        %v3251 = vpack.c.b16 %v3014, %v3013
        %v3252 = vpack.c.b16 %v3016, %v3015
        %v3253 = vpack.c.b16 %v3018, %v3017
        %v3254 = vpack.c.b16 %v3020, %v3019
        %v3255 = vpack.c.b16 %v3022, %v3021
        %v3256 = vpack.c.b16 %v3024, %v3023
        %v3257 = vpack.c.b16 %v3026, %v3025
        %v3258 = vpack.c.b16 %v3028, %v3027
        %v3259 = vpack.c.b16 %v3030, %v3029
        %v3260 = vpack.c.b16 %v3032, %v3031
        %v3261 = vpack.c.b16 %v3034, %v3033
        %v3262 = vpack.c.b16 %v3036, %v3035
        %v3263 = vpack.c.b16 %v3038, %v3037
        %v3264 = vpack.c.b16 %v3040, %v3039
        %v3265 = vpack.c.b16 %v3042, %v3041
        %v3266 = vpack.c.b16 %v3044, %v3043
        %v3267 = vpack.c.b16 %v3046, %v3045
        %v3268 = vpack.c.b16 %v3048, %v3047
        %v3269 = vpack.c.b16 %v3050, %v3049
        %v3270 = vpack.c.b16 %v3052, %v3051
        %v3271 = vpack.c.b16 %v3054, %v3053
        %v3272 = vpack.c.b16 %v3056, %v3055
        %v3273 = vpack.c.b16 %v3058, %v3057
        %v3274 = vpack.c.b16 %v3060, %v3059
        %v3275 = vpack.c.b16 %v3062, %v3061
        %v3276 = vpack.c.b16 %v3064, %v3063
        %v3277 = vpack.c.b16 %v3066, %v3065
        %v3278 = vpack.c.b16 %v3068, %v3067
        %v3279 = vpack.c.b16 %v3070, %v3069
        %v3280 = vpack.c.b16 %v3072, %v3071
        %v3281 = vpack.c.b16 %v3074, %v3073
        %v3282 = vpack.c.b16 %v3076, %v3075
        %v3283 = vpack.c.b16 %v3078, %v3077
        %v3284 = vpack.c.b16 %v3080, %v3079
        %v3285 = vpack.c.b16 %v3082, %v3081
        %v3286 = vpack.c.b16 %v3084, %v3083
        %v3287 = vpack.c.b16 %v3086, %v3085
        %v3288 = vpack.c.b16 %v3088, %v3087
        %v3289 = vpack.c.b16 %v3090, %v3089
        %v3290 = vpack.c.b16 %v3092, %v3091
        %v3291 = vpack.c.b16 %v3094, %v3093
        %v3292 = vpack.c.b16 %v3096, %v3095
        %v3293 = vpack.c.b16 %v3098, %v3097
        %v3294 = vpack.c.b16 %v3100, %v3099
        %v3295 = vpack.c.b16 %v3102, %v3101
        %v3296 = vpack.c.b16 %v3104, %v3103
        %v3297 = vpack.c.b16 %v3106, %v3105
        %v3298 = vpack.c.b16 %v3108, %v3107
        %v3299 = vpack.c.b16 %v3110, %v3109
        %v3300 = vpack.c.b16 %v3112, %v3111
        %v3301 = vpack.c.b16 %v3114, %v3113
        %v3302 = vpack.c.b16 %v3116, %v3115
        %v3303 = vpack.c.b16 %v3118, %v3117
        %v3304 = vpack.c.b16 %v3120, %v3119
        %v3305 = vpack.c.b16 %v3122, %v3121
        %v3306 = vpack.c.b16 %v3124, %v3123
        %v3307 = vpack.c.b16 %v3126, %v3125
        %v3308 = vpack.c.b16 %v3128, %v3127
        %v3309 = vpack.c.b16 %v3130, %v3129
        %v3310 = vpack.c.b16 %v3132, %v3131
        %v3311 = vpack.c.b16 %v3134, %v3133
        %v3312 = vpack.c.b16 %v3136, %v3135
        %v3313 = vpack.c.b16 %v3138, %v3137
        %v3314 = vpack.c.b16 %v3140, %v3139
        %v3315 = vpack.c.b16 %v3142, %v3141
        %v3316 = vpack.c.b16 %v3144, %v3143
        %v3317 = vpack.c.b16 %v3146, %v3145
        %v3318 = vpack.c.b16 %v3148, %v3147
        %v3319 = vpack.c.b16 %v3150, %v3149
        %v3320 = vpack.c.b16 %v3152, %v3151
        %v3321 = vpack.c.b16 %v3154, %v3153
        %v3322 = vpack.c.b16 %v3156, %v3155
        %v3323 = vpack.c.b16 %v3158, %v3157
        %v3324 = vpack.c.b16 %v3160, %v3159
        %v3325 = vpack.c.b16 %v3162, %v3161
        %v3326 = vpack.c.b16 %v3164, %v3163
        %v3327 = vpack.c.b16 %v3166, %v3165
        %v3328 = vpack.c.b16 %v3168, %v3167
        %v3329 = vpack.c.b16 %v3170, %v3169
        %v3330 = vpack.c.b16 %v3172, %v3171
        %v3331 = vpack.c.b16 %v3174, %v3173
        %v3332 = vpack.c.b16 %v3176, %v3175
        %v3333 = vpack.c.b16 %v3178, %v3177
        %v3334 = vpack.c.b16 %v3180, %v3179
        %v3335 = vpack.c.b16 %v3182, %v3181
        %v3336 = vpack.c.b16 %v3184, %v3183
        %v3337 = vpack.c.b16 %v3186, %v3185
        %v3338 = vpack.c.b16 %v3188, %v3187
        %v3339 = vpack.c.b16 %v3190, %v3189
        %v3340 = vpack.c.b16 %v3192, %v3191
        %v3341 = vpack.c.b16 %v3194, %v3193
        %v3342 = vpack.c.b16 %v3196, %v3195
        %v3343 = vpack.c.b16 %v3198, %v3197
        %v3344 = vpack.c.b16 %v3200, %v3199
        %v3345 = vpack.c.b16 %v3202, %v3201
        %v3346 = vpack.c.b16 %v3204, %v3203
        %v3347 = vpack.c.b16 %v3206, %v3205
        %v3348 = vpack.c.b16 %v3208, %v3207
        %v3349 = vpack.c.b16 %v3210, %v3209
        %v3350 = vpack.c.b16 %v3212, %v3211
        %v3351 = vpack.c.b16 %v3214, %v3213
        %v3352 = vpack.c.b16 %v3216, %v3215
        %v3353 = vpack.c.b16 %v3218, %v3217
        %v3354 = vpack.c.b16 %v3220, %v3219
        %v3355 = vpack.c.b16 %v3222, %v3221
        %v3356 = vpack.c.b16 %v3224, %v3223
        %v3357 = vpack.c.b16 %v3226, %v3225
        %v3358 = vpack.c.b16 %v3228, %v3227
        %v3359 = vpack.c.b16 %v3230, %v3229
        %v3360 = vpack.c.b16 %v3232, %v3231
        %3489 = vmatpush.bf16.msra.mxu0 %v3240
        %3490 = vmatpush.bf16.msra.mxu0 %v3239
        %3491 = vmatpush.bf16.msra.mxu0 %v3238
        %3492 = vmatpush.bf16.msra.mxu0 %v3237
        %3493 = vmatpush.bf16.msra.mxu0 %v3236
        %3494 = vmatpush.bf16.msra.mxu0 %v3235
        %3495 = vmatpush.bf16.msra.mxu0 %v3234
        %3496 = vmatpush.bf16.msra.mxu0 %v3233
        %3497 = vmatmul.bf16.gmra.mxu0 %v2689
        %v3498 = vpop.f32.mrf.mxu0
        %v3499 = vadd.f32 0.0, %v3498
        %v3500 = vpop.f32.mrf.mxu0
        %v3501 = vadd.f32 0.0, %v3500
        %3502 = vdwg.mxu0
        %3503 = vmatpush.bf16.msra.mxu0 %v3248
        %3504 = vmatpush.bf16.msra.mxu0 %v3247
        %3505 = vmatpush.bf16.msra.mxu0 %v3246
        %3506 = vmatpush.bf16.msra.mxu0 %v3245
        %3507 = vmatpush.bf16.msra.mxu0 %v3244
        %3508 = vmatpush.bf16.msra.mxu0 %v3243
        %3509 = vmatpush.bf16.msra.mxu0 %v3242
        %3510 = vmatpush.bf16.msra.mxu0 %v3241
        %3511 = vmatmul.bf16.gmra.mxu0 %v2690
        %v3512 = vpop.f32.mrf.mxu0
        %v3513 = vadd.f32 %v3499, %v3512
        %v3514 = vpop.f32.mrf.mxu0
        %v3515 = vadd.f32 %v3501, %v3514
        %3516 = vdwg.mxu0
        %3517 = vmatpush.bf16.msra.mxu0 %v3256
        %3518 = vmatpush.bf16.msra.mxu0 %v3255
        %3519 = vmatpush.bf16.msra.mxu0 %v3254
        %3520 = vmatpush.bf16.msra.mxu0 %v3253
        %3521 = vmatpush.bf16.msra.mxu0 %v3252
        %3522 = vmatpush.bf16.msra.mxu0 %v3251
        %3523 = vmatpush.bf16.msra.mxu0 %v3250
        %3524 = vmatpush.bf16.msra.mxu0 %v3249
        %3525 = vmatmul.bf16.gmra.mxu0 %v2691
        %v3526 = vpop.f32.mrf.mxu0
        %v3527 = vadd.f32 %v3513, %v3526
        %v3528 = vpop.f32.mrf.mxu0
        %v3529 = vadd.f32 %v3515, %v3528
        %3530 = vdwg.mxu0
        %3531 = vmatpush.bf16.msra.mxu0 %v3264
        %3532 = vmatpush.bf16.msra.mxu0 %v3263
        %3533 = vmatpush.bf16.msra.mxu0 %v3262
        %3534 = vmatpush.bf16.msra.mxu0 %v3261
        %3535 = vmatpush.bf16.msra.mxu0 %v3260
        %3536 = vmatpush.bf16.msra.mxu0 %v3259
        %3537 = vmatpush.bf16.msra.mxu0 %v3258
        %3538 = vmatpush.bf16.msra.mxu0 %v3257
        %3539 = vmatmul.bf16.gmra.mxu0 %v2692
        %v3540 = vpop.f32.mrf.mxu0
        %v3541 = vadd.f32 %v3527, %v3540
        %v3542 = vpop.f32.mrf.mxu0
        %v3543 = vadd.f32 %v3529, %v3542
        %3544 = vdwg.mxu0
        %3545 = vmatpush.bf16.msra.mxu0 %v3272
        %3546 = vmatpush.bf16.msra.mxu0 %v3271
        %3547 = vmatpush.bf16.msra.mxu0 %v3270
        %3548 = vmatpush.bf16.msra.mxu0 %v3269
        %3549 = vmatpush.bf16.msra.mxu0 %v3268
        %3550 = vmatpush.bf16.msra.mxu0 %v3267
        %3551 = vmatpush.bf16.msra.mxu0 %v3266
        %3552 = vmatpush.bf16.msra.mxu0 %v3265
        %3553 = vmatmul.bf16.gmra.mxu0 %v2693
        %v3554 = vpop.f32.mrf.mxu0
        %v3555 = vadd.f32 %v3541, %v3554
        %v3556 = vpop.f32.mrf.mxu0
        %v3557 = vadd.f32 %v3543, %v3556
        %3558 = vdwg.mxu0
        %3559 = vmatpush.bf16.msra.mxu0 %v3280
        %3560 = vmatpush.bf16.msra.mxu0 %v3279
        %3561 = vmatpush.bf16.msra.mxu0 %v3278
        %3562 = vmatpush.bf16.msra.mxu0 %v3277
        %3563 = vmatpush.bf16.msra.mxu0 %v3276
        %3564 = vmatpush.bf16.msra.mxu0 %v3275
        %3565 = vmatpush.bf16.msra.mxu0 %v3274
        %3566 = vmatpush.bf16.msra.mxu0 %v3273
        %3567 = vmatmul.bf16.gmra.mxu0 %v2694
        %v3568 = vpop.f32.mrf.mxu0
        %v3569 = vadd.f32 %v3555, %v3568
        %v3570 = vpop.f32.mrf.mxu0
        %v3571 = vadd.f32 %v3557, %v3570
        %3572 = vdwg.mxu0
        %3573 = vmatpush.bf16.msra.mxu0 %v3288
        %3574 = vmatpush.bf16.msra.mxu0 %v3287
        %3575 = vmatpush.bf16.msra.mxu0 %v3286
        %3576 = vmatpush.bf16.msra.mxu0 %v3285
        %3577 = vmatpush.bf16.msra.mxu0 %v3284
        %3578 = vmatpush.bf16.msra.mxu0 %v3283
        %3579 = vmatpush.bf16.msra.mxu0 %v3282
        %3580 = vmatpush.bf16.msra.mxu0 %v3281
        %3581 = vmatmul.bf16.gmra.mxu0 %v2695
        %v3582 = vpop.f32.mrf.mxu0
        %v3583 = vadd.f32 %v3569, %v3582
        %v3584 = vpop.f32.mrf.mxu0
        %v3585 = vadd.f32 %v3571, %v3584
        %3586 = vdwg.mxu0
        %3587 = vmatpush.bf16.msra.mxu0 %v3296
        %3588 = vmatpush.bf16.msra.mxu0 %v3295
        %3589 = vmatpush.bf16.msra.mxu0 %v3294
        %3590 = vmatpush.bf16.msra.mxu0 %v3293
        %3591 = vmatpush.bf16.msra.mxu0 %v3292
        %3592 = vmatpush.bf16.msra.mxu0 %v3291
        %3593 = vmatpush.bf16.msra.mxu0 %v3290
        %3594 = vmatpush.bf16.msra.mxu0 %v3289
        %3595 = vmatmul.bf16.gmra.mxu0 %v2696
        %v3596 = vpop.f32.mrf.mxu0
        %v3597 = vadd.f32 %v3583, %v3596
        %v3598 = vpop.f32.mrf.mxu0
        %v3599 = vadd.f32 %v3585, %v3598
        %3600 = vdwg.mxu0
        %3601 = vmatpush.bf16.msra.mxu0 %v3304
        %3602 = vmatpush.bf16.msra.mxu0 %v3303
        %3603 = vmatpush.bf16.msra.mxu0 %v3302
        %3604 = vmatpush.bf16.msra.mxu0 %v3301
        %3605 = vmatpush.bf16.msra.mxu0 %v3300
        %3606 = vmatpush.bf16.msra.mxu0 %v3299
        %3607 = vmatpush.bf16.msra.mxu0 %v3298
        %3608 = vmatpush.bf16.msra.mxu0 %v3297
        %3609 = vmatmul.bf16.gmra.mxu0 %v2697
        %v3610 = vpop.f32.mrf.mxu0
        %v3611 = vadd.f32 %v3597, %v3610
        %v3612 = vpop.f32.mrf.mxu0
        %v3613 = vadd.f32 %v3599, %v3612
        %3614 = vdwg.mxu0
        %3615 = vmatpush.bf16.msra.mxu0 %v3312
        %3616 = vmatpush.bf16.msra.mxu0 %v3311
        %3617 = vmatpush.bf16.msra.mxu0 %v3310
        %3618 = vmatpush.bf16.msra.mxu0 %v3309
        %3619 = vmatpush.bf16.msra.mxu0 %v3308
        %3620 = vmatpush.bf16.msra.mxu0 %v3307
        %3621 = vmatpush.bf16.msra.mxu0 %v3306
        %3622 = vmatpush.bf16.msra.mxu0 %v3305
        %3623 = vmatmul.bf16.gmra.mxu0 %v2698
        %v3624 = vpop.f32.mrf.mxu0
        %v3625 = vadd.f32 %v3611, %v3624
        %v3626 = vpop.f32.mrf.mxu0
        %v3627 = vadd.f32 %v3613, %v3626
        %3628 = vdwg.mxu0
        %3629 = vmatpush.bf16.msra.mxu0 %v3320
        %3630 = vmatpush.bf16.msra.mxu0 %v3319
        %3631 = vmatpush.bf16.msra.mxu0 %v3318
        %3632 = vmatpush.bf16.msra.mxu0 %v3317
        %3633 = vmatpush.bf16.msra.mxu0 %v3316
        %3634 = vmatpush.bf16.msra.mxu0 %v3315
        %3635 = vmatpush.bf16.msra.mxu0 %v3314
        %3636 = vmatpush.bf16.msra.mxu0 %v3313
        %3637 = vmatmul.bf16.gmra.mxu0 %v2699
        %v3638 = vpop.f32.mrf.mxu0
        %v3639 = vadd.f32 %v3625, %v3638
        %v3640 = vpop.f32.mrf.mxu0
        %v3641 = vadd.f32 %v3627, %v3640
        %3642 = vdwg.mxu0
        %3643 = vmatpush.bf16.msra.mxu0 %v3328
        %3644 = vmatpush.bf16.msra.mxu0 %v3327
        %3645 = vmatpush.bf16.msra.mxu0 %v3326
        %3646 = vmatpush.bf16.msra.mxu0 %v3325
        %3647 = vmatpush.bf16.msra.mxu0 %v3324
        %3648 = vmatpush.bf16.msra.mxu0 %v3323
        %3649 = vmatpush.bf16.msra.mxu0 %v3322
        %3650 = vmatpush.bf16.msra.mxu0 %v3321
        %3651 = vmatmul.bf16.gmra.mxu0 %v2700
        %v3652 = vpop.f32.mrf.mxu0
        %v3653 = vadd.f32 %v3639, %v3652
        %v3654 = vpop.f32.mrf.mxu0
        %v3655 = vadd.f32 %v3641, %v3654
        %3656 = vdwg.mxu0
        %3657 = vmatpush.bf16.msra.mxu0 %v3336
        %3658 = vmatpush.bf16.msra.mxu0 %v3335
        %3659 = vmatpush.bf16.msra.mxu0 %v3334
        %3660 = vmatpush.bf16.msra.mxu0 %v3333
        %3661 = vmatpush.bf16.msra.mxu0 %v3332
        %3662 = vmatpush.bf16.msra.mxu0 %v3331
        %3663 = vmatpush.bf16.msra.mxu0 %v3330
        %3664 = vmatpush.bf16.msra.mxu0 %v3329
        %3665 = vmatmul.bf16.gmra.mxu0 %v2701
        %v3666 = vpop.f32.mrf.mxu0
        %v3667 = vadd.f32 %v3653, %v3666
        %v3668 = vpop.f32.mrf.mxu0
        %v3669 = vadd.f32 %v3655, %v3668
        %3670 = vdwg.mxu0
        %3671 = vmatpush.bf16.msra.mxu0 %v3344
        %3672 = vmatpush.bf16.msra.mxu0 %v3343
        %3673 = vmatpush.bf16.msra.mxu0 %v3342
        %3674 = vmatpush.bf16.msra.mxu0 %v3341
        %3675 = vmatpush.bf16.msra.mxu0 %v3340
        %3676 = vmatpush.bf16.msra.mxu0 %v3339
        %3677 = vmatpush.bf16.msra.mxu0 %v3338
        %3678 = vmatpush.bf16.msra.mxu0 %v3337
        %3679 = vmatmul.bf16.gmra.mxu0 %v2702
        %v3680 = vpop.f32.mrf.mxu0
        %v3681 = vadd.f32 %v3667, %v3680
        %v3682 = vpop.f32.mrf.mxu0
        %v3683 = vadd.f32 %v3669, %v3682
        %3684 = vdwg.mxu0
        %3685 = vmatpush.bf16.msra.mxu0 %v3352
        %3686 = vmatpush.bf16.msra.mxu0 %v3351
        %3687 = vmatpush.bf16.msra.mxu0 %v3350
        %3688 = vmatpush.bf16.msra.mxu0 %v3349
        %3689 = vmatpush.bf16.msra.mxu0 %v3348
        %3690 = vmatpush.bf16.msra.mxu0 %v3347
        %3691 = vmatpush.bf16.msra.mxu0 %v3346
        %3692 = vmatpush.bf16.msra.mxu0 %v3345
        %3693 = vmatmul.bf16.gmra.mxu0 %v2703
        %v3694 = vpop.f32.mrf.mxu0
        %v3695 = vadd.f32 %v3681, %v3694
        %v3696 = vpop.f32.mrf.mxu0
        %v3697 = vadd.f32 %v3683, %v3696
        %3698 = vdwg.mxu0
        %3699 = vmatpush.bf16.msra.mxu0 %v3360
        %3700 = vmatpush.bf16.msra.mxu0 %v3359
        %3701 = vmatpush.bf16.msra.mxu0 %v3358
        %3702 = vmatpush.bf16.msra.mxu0 %v3357
        %3703 = vmatpush.bf16.msra.mxu0 %v3356
        %3704 = vmatpush.bf16.msra.mxu0 %v3355
        %3705 = vmatpush.bf16.msra.mxu0 %v3354
        %3706 = vmatpush.bf16.msra.mxu0 %v3353
        %3707 = vmatmul.bf16.gmra.mxu0 %v2704
        %v3708 = vpop.f32.mrf.mxu0
        %v3709 = vadd.f32 %v3695, %v3708
        %v3710 = vpop.f32.mrf.mxu0
        %v3711 = vadd.f32 %v3697, %v3710
        %3712 = vdwg.mxu0
        %v3713 = vadd.f32 %v2367, %v3709
        %v3714 = vadd.f32 %v2368, %v3711
        %3715 = vst [vmem:[#allocation2] sm:$0xff] %v3713
        %3716 = vst [vmem:[#allocation2 + $0x8] sm:$0xff] %v3714
        // Predicated region
        $region89: #{discriminator_forward.9} parent=79 // pred_check
          %p3717 = pneg %p2361
        $region90: #{discriminator_forward.9} parent=79 // pred_check_branch
          %3719 = sbr.rel (%p3717) target = $region92
        $region91: #{discriminator_forward.9} parent=79 // pred_region
          %v3720 = vld [vmem:[#allocation2] sm:$0xff]
          %v3721 = vld [vmem:[#allocation2 + $0x8] sm:$0xff]
          %v3722 = vld [vmem:[%s2359] sm:$0x1]
          %v3724 = vperm.slane %v3722, 0
          %v3726 = vadd.f32 %v3720, %v3724
          %v3727 = vadd.f32 %v3721, %v3724
          %v3728 = vpack.c.bf16 %v3726, %v3726
          %v3729 = vpack.c.bf16 %v3727, %v3727
          %3730 = vst [vmem:[%s2343] sm:$0xf] %v3728
          %3731 = vst [vmem:[%s2343 + $0x4] sm:$0xf] %v3729
        $region92: #{discriminator_forward.9} parent=79 // pred_fallthru
          _
        %s3732 = sand.u32 %s125, 1
        %s3733 = sand.u32 %s125, 1
        %s3734 = smul.addr %s3733, 8
        %s3735 = scalar_lea.vmem [#allocation4], %s3734
        // Predicated region
        $region93: #{discriminator_forward.9} parent=79 // pred_check
          %p3736 = pneg %p135
        $region94: #{discriminator_forward.9} parent=79 // pred_check_branch
          %3738 = sbr.rel (%p3736) target = $region96
        $region95: #{discriminator_forward.9} parent=79 // pred_region
          %s3739 = smul.u32 2, %s19
          %s3740 = smul.addr %s3739, 2
          %s3741 = sadd.s32 %s20, %s3740
          %s3742 = smul.addr %s3741, 4
          %s3743 = scalar_lea.vmem %s3, %s3742
          // Predicated region
          $region97: #{discriminator_forward.9} parent=95 // pred_check
            _
          $region98: #{discriminator_forward.9} parent=95 // pred_check_branch
            %3745 = sbr.rel (0) target = $region100
          $region99: #{discriminator_forward.9} parent=95 // pred_region
            // Predicated region
            $region101: #{discriminator_forward.9} parent=99 // pred_check
              _
            $region102: #{discriminator_forward.9} parent=99 // pred_check_branch
              %3747 = sbr.rel target = $region104
            $region103: #{discriminator_forward.9} parent=99 // pred_region
              // Predicated region
              $region116: #{discriminator_forward.9} parent=103 // pred_check
                _
              $region117: #{discriminator_forward.9} parent=103 // pred_check_branch
                %3765 = sbr.rel (0) target = $region119
              $region118: #{discriminator_forward.9} parent=103 // pred_region
                loop: start=0, step=1, limit=1
                $region120: #{discriminator_forward.9} parent=118 // loop_pre_header
                  _
                $region121: #{discriminator_forward.9} parent=118 // loop_header
                  %s3767 = sphi 0, %s3771
                  %p3768 = scmp.ge.s32.totalorder %s3767, 1
                  %s3772 = sphi %s3735, %s3735
                  %s3773 = sphi %s3743, %s3743
                $region122: #{discriminator_forward.9} parent=118 // loop_header_branch
                  %3770 = sbr.rel (%p3768) target = $region126
                $region123: #{discriminator_forward.9} parent=118 // loop_body
                  _
                $region124: #{discriminator_forward.9} parent=118 // loop_footer
                  %s3771 = sadd.s32 1, %s3767
                $region125: #{discriminator_forward.9} parent=118 // loop_footer_branch
                  %3766 = sbr.rel target = $region121
                $region126: #{discriminator_forward.9} parent=118 // loop_exit
                  _
                %s3775 = ssub.s32 16, 1
                loop: start=0, step=1, limit=1
                $region127: #{discriminator_forward.9} parent=118 // loop_pre_header
                  _
                $region128: #{discriminator_forward.9} parent=118 // loop_header
                  %s3777 = sphi 0, %s3781
                  %p3778 = scmp.ge.s32.totalorder %s3777, 1
                  %s3782 = sphi %s3735, %s3735
                  %s3783 = sphi %s3743, %s3743
                $region129: #{discriminator_forward.9} parent=118 // loop_header_branch
                  %3780 = sbr.rel (%p3778) target = $region133
                $region130: #{discriminator_forward.9} parent=118 // loop_body
                  %v3784 = vld [vmem:[%s3782] sm:%s3775]
                  %3785 = vst [vmem:[%s3783] sm:%s3775] %v3784
                  %v3786 = vld [vmem:[%s3782 + $0x4] sm:%s3775]
                  %3787 = vst [vmem:[%s3783 + $0x8] sm:%s3775] %v3786
                $region131: #{discriminator_forward.9} parent=118 // loop_footer
                  %s3781 = sadd.s32 1, %s3777
                $region132: #{discriminator_forward.9} parent=118 // loop_footer_branch
                  %3776 = sbr.rel target = $region128
                $region133: #{discriminator_forward.9} parent=118 // loop_exit
                  _
              $region119: #{discriminator_forward.9} parent=103 // pred_fallthru
                _
            $region104: #{discriminator_forward.9} parent=99 // pred_fallthru
              _
            // Predicated region
            $region105: #{discriminator_forward.9} parent=99 // pred_check
              _
            $region106: #{discriminator_forward.9} parent=99 // pred_check_branch
              %3749 = sbr.rel (0) target = $region108
            $region107: #{discriminator_forward.9} parent=99 // pred_region
              %s3751 = ssub.s32 16, 1
              loop: start=0, step=1, limit=1
              $region109: #{discriminator_forward.9} parent=107 // loop_pre_header
                _
              $region110: #{discriminator_forward.9} parent=107 // loop_header
                %s3753 = sphi 0, %s3757
                %p3754 = scmp.ge.s32.totalorder %s3753, 1
                %s3758 = sphi %s3735, %s3735
                %s3759 = sphi %s3743, %s3743
              $region111: #{discriminator_forward.9} parent=107 // loop_header_branch
                %3756 = sbr.rel (%p3754) target = $region115
              $region112: #{discriminator_forward.9} parent=107 // loop_body
                %v3760 = vld [vmem:[%s3758] sm:%s3751]
                %3761 = vst [vmem:[%s3759] sm:%s3751] %v3760
                %v3762 = vld [vmem:[%s3758 + $0x4] sm:%s3751]
                %3763 = vst [vmem:[%s3759 + $0x8] sm:%s3751] %v3762
              $region113: #{discriminator_forward.9} parent=107 // loop_footer
                %s3757 = sadd.s32 1, %s3753
              $region114: #{discriminator_forward.9} parent=107 // loop_footer_branch
                %3752 = sbr.rel target = $region110
              $region115: #{discriminator_forward.9} parent=107 // loop_exit
                _
            $region108: #{discriminator_forward.9} parent=99 // pred_fallthru
              _
          $region100: #{discriminator_forward.9} parent=95 // pred_fallthru
            _
          %3788 = vnop
        $region96: #{discriminator_forward.9} parent=79 // pred_fallthru
          _
      $region80: #{discriminator_forward.9} parent=5 // pred_fallthru
        _
      %p3789 = scmp.le.s32.totalorder 2, %s9
      // Predicated region
      $region134: #{discriminator_forward.9} parent=5 // pred_check
        %p3790 = pneg %p3789
      $region135: #{discriminator_forward.9} parent=5 // pred_check_branch
        %3792 = sbr.rel (%p3790) target = $region137
      $region136: #{discriminator_forward.9} parent=5 // pred_region
        %s3793 = ssub.s32 %s9, 2
        // Predicated region
        $region138: #{discriminator_forward.9} parent=136 // pred_check
          %p3794 = pneg %p141
        $region139: #{discriminator_forward.9} parent=136 // pred_check_branch
          %3796 = sbr.rel (%p3794) target = $region141
        $region140: #{discriminator_forward.9} parent=136 // pred_region
          %s3797 = sand.u32 %s126, 1
          %s3798 = sand.u32 %s126, 1
          %s3799 = smul.addr %s3798, 8
          %s3800 = scalar_lea.vmem [#allocation4], %s3799
        $region141: #{discriminator_forward.9} parent=136 // pred_fallthru
          _
      $region137: #{discriminator_forward.9} parent=5 // pred_fallthru
        _
    $region6: #{discriminator_forward.9} parent=1 // loop_footer
      %s13 = sadd.s32 1, %s9
    $region7: #{discriminator_forward.9} parent=1 // loop_footer_branch
      %8 = sbr.rel target = $region3
    $region8: #{discriminator_forward.9} parent=1 // loop_exit
      _

// kernel: discriminator_forward.11
$region0: #{discriminator_forward.11}
  #allocation0 [shape = 'u32[]', space=smem, size = 0x4, offset = 0x4, fixed_abs, tag = 'smem constant byte address 0x4 - core index']
  #allocation1 [shape = 'u32[72,128]{1,0:T(1,128)}', space=vmem, size = 0x9000, scoped, tag = 'internal scratch']
  #allocation2 [shape = 'f32[16,128]{1,0:T(8,128)}', space=vmem, size = 0x2000, scoped, tag = 'scratch operand']
  %s0 = inlined_call_operand.vmem [shape: bf16[16,4096], index: 0, kind: input, shape index: {}]
  %s1 = inlined_call_operand.vmem [shape: bf16[4096,128], index: 1, kind: input, shape index: {}]
  %s2 = inlined_call_operand.vmem [shape: f32[1,128], index: 2, kind: input, shape index: {}]
  %s3 = inlined_call_operand.vmem [shape: f32[16,128], index: 3, kind: output, shape index: {}]
  %s4 = sld [smem:[#allocation0]]
  $region76: #{discriminator_forward.11} parent=0
    _
  %s6 = ssub.s32 1, %s4
  %s7 = scalar_select 0, %s6, %s4
  $region1: #{discriminator_forward.11} parent=0
    #allocation3 [shape = 'u8[131072]{0}', space=vmem, size = 0x20000, scoped, tag = 'input window, operand 0']
    loop: start=0, step=1, limit=4
    $region2: #{discriminator_forward.11} parent=1 // loop_pre_header
      _
    $region3: #{discriminator_forward.11} parent=1 // loop_header
      %s9 = sphi 0, %s13
      %p10 = scmp.ge.s32.totalorder %s9, 4
      %s16 = sphi 0, %s35
      %s17 = sphi 0, %s31
      %s18 = sphi 0, %s27
      %s19 = sphi 0, %s16
      %s20 = sphi 0, %s17
      %s21 = sphi 0, %s18
      %s22 = sphi 0, %s19
      %s23 = sphi 0, %s20
      %s24 = sphi 0, %s21
      %s40 = sphi 0, %s42
      %s43 = sphi 0, %s40
      %s44 = sphi 0, %s43
      %s60 = sphi 0, %s44
      %s68 = sphi 0, %s70
      %s71 = sphi 0, %s68
      %s72 = sphi 0, %s71
      %s88 = sphi 0, %s72
      %s94 = sphi 0, %s96
      %s97 = sphi 0, %s94
      %s98 = sphi 0, %s97
      %s114 = sphi 0, %s98
      %s122 = sphi 0, %s124
      %s125 = sphi 0, %s122
      %s126 = sphi 0, %s125
      %s142 = sphi 0, %s126
    $region4: #{discriminator_forward.11} parent=1 // loop_header_branch
      %12 = sbr.rel (%p10) target = $region8
    $region5: #{discriminator_forward.11} parent=1 // loop_body
      %s14 = ssub.s32 %s9, 1
      %s15 = ssub.s32 %s9, 2
      %s25 = sadd.s32 1, %s18
      %p26 = scmp.ge.s32.totalorder %s25, 2
      %s27 = scalar_select %p26, 0, %s25
      %s28 = sadd.s32 1, %s17
      %s29 = scalar_select %p26, %s28, %s17
      %p30 = scmp.ge.s32.totalorder %s29, 1
      %s31 = scalar_select %p30, 0, %s29
      %s32 = sadd.s32 1, %s16
      %s33 = scalar_select %p30, %s32, %s16
      %p34 = scmp.ge.s32.totalorder %s33, 1
      %s35 = scalar_select %p34, 0, %s33
      %s36 = ssub.s32 %s16, %s35
      %s37 = ssub.s32 %s18, %s27
      %s38 = sor.u32 %s36, %s37
      %p39 = scmp.eq.s32.totalorder %s38, 0
      %s41 = sadd.s32 %s40, 1
      %s42 = scalar_select %p39, %s40, %s41
      %p45 = pneg %p39
      %p46 = scmp.eq.s32.totalorder %s9, 1
      %p47 = por %p45, %p46
      %p48 = scmp.ne.s32.totalorder %s40, %s43
      %p49 = scmp.eq.s32.totalorder %s9, 0
      %p50 = por %p48, %p49
      %p51 = scmp.ne.s32.totalorder %s40, %s43
      %p52 = scmp.eq.s32.totalorder %s14, 1
      %p53 = por %p51, %p52
      %p54 = scmp.ne.s32.totalorder %s43, %s44
      %p55 = scmp.eq.s32.totalorder %s14, 0
      %p56 = por %p54, %p55
      %p57 = scmp.ne.s32.totalorder %s43, %s44
      %p58 = scmp.eq.s32.totalorder %s15, 1
      %p59 = por %p57, %p58
      %p61 = scmp.ne.s32.totalorder %s44, %s60
      %p62 = scmp.eq.s32.totalorder %s15, 0
      %p63 = por %p61, %p62
      %s64 = ssub.s32 %s18, %s27
      %s65 = ssub.s32 %s17, %s31
      %s66 = sor.u32 %s64, %s65
      %p67 = scmp.eq.s32.totalorder %s66, 0
      %s69 = sadd.s32 %s68, 1
      %s70 = scalar_select %p67, %s68, %s69
      %p73 = pneg %p67
      %p74 = scmp.eq.s32.totalorder %s9, 1
      %p75 = por %p73, %p74
      %p76 = scmp.ne.s32.totalorder %s68, %s71
      %p77 = scmp.eq.s32.totalorder %s9, 0
      %p78 = por %p76, %p77
      %p79 = scmp.ne.s32.totalorder %s68, %s71
      %p80 = scmp.eq.s32.totalorder %s14, 1
      %p81 = por %p79, %p80
      %p82 = scmp.ne.s32.totalorder %s71, %s72
      %p83 = scmp.eq.s32.totalorder %s14, 0
      %p84 = por %p82, %p83
      %p85 = scmp.ne.s32.totalorder %s71, %s72
      %p86 = scmp.eq.s32.totalorder %s15, 1
      %p87 = por %p85, %p86
      %p89 = scmp.ne.s32.totalorder %s72, %s88
      %p90 = scmp.eq.s32.totalorder %s15, 0
      %p91 = por %p89, %p90
      %s92 = ssub.s32 %s17, %s31
      %p93 = scmp.eq.s32.totalorder %s92, 0
      %s95 = sadd.s32 %s94, 1
      %s96 = scalar_select %p93, %s94, %s95
      %p99 = pneg %p93
      %p100 = scmp.eq.s32.totalorder %s9, 1
      %p101 = por %p99, %p100
      %p102 = scmp.ne.s32.totalorder %s94, %s97
      %p103 = scmp.eq.s32.totalorder %s9, 0
      %p104 = por %p102, %p103
      %p105 = scmp.ne.s32.totalorder %s94, %s97
      %p106 = scmp.eq.s32.totalorder %s14, 1
      %p107 = por %p105, %p106
      %p108 = scmp.ne.s32.totalorder %s97, %s98
      %p109 = scmp.eq.s32.totalorder %s14, 0
      %p110 = por %p108, %p109
      %p111 = scmp.ne.s32.totalorder %s97, %s98
      %p112 = scmp.eq.s32.totalorder %s15, 1
      %p113 = por %p111, %p112
      %p115 = scmp.ne.s32.totalorder %s98, %s114
      %p116 = scmp.eq.s32.totalorder %s15, 0
      %p117 = por %p115, %p116
      %s118 = ssub.s32 %s16, %s35
      %s119 = ssub.s32 %s17, %s31
      %s120 = sor.u32 %s118, %s119
      %p121 = scmp.eq.s32.totalorder %s120, 0
      %s123 = sadd.s32 %s122, 1
      %s124 = scalar_select %p121, %s122, %s123
      %p127 = pneg %p121
      %p128 = scmp.eq.s32.totalorder %s9, 1
      %p129 = por %p127, %p128
      %p130 = scmp.ne.s32.totalorder %s122, %s125
      %p131 = scmp.eq.s32.totalorder %s9, 0
      %p132 = por %p130, %p131
      %p133 = scmp.ne.s32.totalorder %s122, %s125
      %p134 = scmp.eq.s32.totalorder %s14, 1
      %p135 = por %p133, %p134
      %p136 = scmp.ne.s32.totalorder %s125, %s126
      %p137 = scmp.eq.s32.totalorder %s14, 0
      %p138 = por %p136, %p137
      %p139 = scmp.ne.s32.totalorder %s125, %s126
      %p140 = scmp.eq.s32.totalorder %s15, 1
      %p141 = por %p139, %p140
      %p143 = scmp.ne.s32.totalorder %s126, %s142
      %p144 = scmp.eq.s32.totalorder %s15, 0
      %p145 = por %p143, %p144
      %p146 = scmp.le.s32.totalorder 1, %s9
      %p147 = scmp.lt.s32.totalorder %s9, 3
      %p148 = pnand %p146, %p147
      %p149 = pneg %p148
      // Predicated region
      $region9: #{discriminator_forward.11} parent=5 // pred_check
        _
      $region10: #{discriminator_forward.11} parent=5 // pred_check_branch
        %151 = sbr.rel (%p148) target = $region12
      $region11: #{discriminator_forward.11} parent=5 // pred_region
        %s152 = ssub.s32 %s9, 1
        // Predicated region
        $region13: #{discriminator_forward.11} parent=11 // pred_check
          %p153 = pneg %p110
        $region14: #{discriminator_forward.11} parent=11 // pred_check_branch
          %155 = sbr.rel (%p153) target = $region16
        $region15: #{discriminator_forward.11} parent=11 // pred_region
          %p156 = scmp.lt.s32.totalorder %s20, 0
          %s157 = scalar_select %p156, %s20, 0
          %s158 = scalar_lea.vmem %s2, %s157
        $region16: #{discriminator_forward.11} parent=11 // pred_fallthru
          _
      $region12: #{discriminator_forward.11} parent=5 // pred_fallthru
        _
      %p159 = scmp.lt.s32.totalorder %s9, 2
      // Predicated region
      $region17: #{discriminator_forward.11} parent=5 // pred_check
        %p160 = pneg %p159
      $region18: #{discriminator_forward.11} parent=5 // pred_check_branch
        %162 = sbr.rel (%p160) target = $region20
      $region19: #{discriminator_forward.11} parent=5 // pred_region
        // Predicated region
        $region21: #{discriminator_forward.11} parent=19 // pred_check
          %p163 = pneg %p50
        $region22: #{discriminator_forward.11} parent=19 // pred_check_branch
          %165 = sbr.rel (%p163) target = $region24
        $region23: #{discriminator_forward.11} parent=19 // pred_region
          %s166 = sand.u32 %s40, 1
          %s167 = sand.u32 %s40, 1
          %s168 = smul.addr %s167, 128
          %s169 = scalar_lea.vmem [#allocation3], %s168
          %s170 = smul.u32 2, %s16
          %s171 = smul.u32 16, %s18
          %s172 = smul.addr %s170, 32
          %s173 = sadd.s32 %s171, %s172
          %s174 = smul.addr %s173, 4
          %s175 = scalar_lea.vmem %s0, %s174
          // Predicated region
          $region25: #{discriminator_forward.11} parent=23 // pred_check
            _
          $region26: #{discriminator_forward.11} parent=23 // pred_check_branch
            %177 = sbr.rel (0) target = $region28
          $region27: #{discriminator_forward.11} parent=23 // pred_region
            // Predicated region
            $region29: #{discriminator_forward.11} parent=27 // pred_check
              _
            $region30: #{discriminator_forward.11} parent=27 // pred_check_branch
              %179 = sbr.rel (0) target = $region32
            $region31: #{discriminator_forward.11} parent=27 // pred_region
              loop: start=0, step=1, limit=1
              $region33: #{discriminator_forward.11} parent=31 // loop_pre_header
                _
              $region34: #{discriminator_forward.11} parent=31 // loop_header
                %s181 = sphi 0, %s185
                %p182 = scmp.ge.s32.totalorder %s181, 1
                %s186 = sphi %s175, %s175
                %s187 = sphi %s169, %s169
              $region35: #{discriminator_forward.11} parent=31 // loop_header_branch
                %184 = sbr.rel (%p182) target = $region39
              $region36: #{discriminator_forward.11} parent=31 // loop_body
                %v188 = vld [vmem:[%s186] sm:$0xff]
                %189 = vst [vmem:[%s187] sm:$0xff] %v188
                %v190 = vld [vmem:[%s186 + $0x8] sm:$0xff]
                %191 = vst [vmem:[%s187 + $0x8] sm:$0xff] %v190
                %v192 = vld [vmem:[%s186 + $0x10] sm:$0xff]
                %193 = vst [vmem:[%s187 + $0x10] sm:$0xff] %v192
                %v194 = vld [vmem:[%s186 + $0x18] sm:$0xff]
                %195 = vst [vmem:[%s187 + $0x18] sm:$0xff] %v194
                %v196 = vld [vmem:[%s186 + $0x20] sm:$0xff]
                %197 = vst [vmem:[%s187 + $0x20] sm:$0xff] %v196
                %v198 = vld [vmem:[%s186 + $0x28] sm:$0xff]
                %199 = vst [vmem:[%s187 + $0x28] sm:$0xff] %v198
                %v200 = vld [vmem:[%s186 + $0x30] sm:$0xff]
                %201 = vst [vmem:[%s187 + $0x30] sm:$0xff] %v200
                %v202 = vld [vmem:[%s186 + $0x38] sm:$0xff]
                %203 = vst [vmem:[%s187 + $0x38] sm:$0xff] %v202
                %v204 = vld [vmem:[%s186 + $0x80] sm:$0xff]
                %205 = vst [vmem:[%s187 + $0x40] sm:$0xff] %v204
                %v206 = vld [vmem:[%s186 + $0x88] sm:$0xff]
                %207 = vst [vmem:[%s187 + $0x48] sm:$0xff] %v206
                %v208 = vld [vmem:[%s186 + $0x90] sm:$0xff]
                %209 = vst [vmem:[%s187 + $0x50] sm:$0xff] %v208
                %v210 = vld [vmem:[%s186 + $0x98] sm:$0xff]
                %211 = vst [vmem:[%s187 + $0x58] sm:$0xff] %v210
                %v212 = vld [vmem:[%s186 + $0xa0] sm:$0xff]
                %213 = vst [vmem:[%s187 + $0x60] sm:$0xff] %v212
                %v214 = vld [vmem:[%s186 + $0xa8] sm:$0xff]
                %215 = vst [vmem:[%s187 + $0x68] sm:$0xff] %v214
                %v216 = vld [vmem:[%s186 + $0xb0] sm:$0xff]
                %217 = vst [vmem:[%s187 + $0x70] sm:$0xff] %v216
                %v218 = vld [vmem:[%s186 + $0xb8] sm:$0xff]
                %219 = vst [vmem:[%s187 + $0x78] sm:$0xff] %v218
              $region37: #{discriminator_forward.11} parent=31 // loop_footer
                %s185 = sadd.s32 1, %s181
              $region38: #{discriminator_forward.11} parent=31 // loop_footer_branch
                %180 = sbr.rel target = $region34
              $region39: #{discriminator_forward.11} parent=31 // loop_exit
                _
            $region32: #{discriminator_forward.11} parent=27 // pred_fallthru
              _
            // Predicated region
            $region40: #{discriminator_forward.11} parent=27 // pred_check
              _
            $region41: #{discriminator_forward.11} parent=27 // pred_check_branch
              %221 = sbr.rel target = $region43
            $region42: #{discriminator_forward.11} parent=27 // pred_region
              _
            $region43: #{discriminator_forward.11} parent=27 // pred_fallthru
              _
          $region28: #{discriminator_forward.11} parent=23 // pred_fallthru
            _
          %222 = vnop
        $region24: #{discriminator_forward.11} parent=19 // pred_fallthru
          _
        // Predicated region
        $region44: #{discriminator_forward.11} parent=19 // pred_check
          %p223 = pneg %p78
        $region45: #{discriminator_forward.11} parent=19 // pred_check_branch
          %225 = sbr.rel (%p223) target = $region47
        $region46: #{discriminator_forward.11} parent=19 // pred_region
          %s226 = smul.u32 256, %s18
          %p227 = scmp.lt.s32.totalorder %s226, 511
          %s228 = scalar_select %p227, %s226, 511
          %p229 = scmp.lt.s32.totalorder %s17, 0
          %s230 = scalar_select %p229, %s17, 0
          %s231 = sadd.s32 %s230, %s228
          %s232 = smul.addr %s231, 4
          %s233 = scalar_lea.vmem %s1, %s232
          %s234 = smul.u32 256, %s18
        $region47: #{discriminator_forward.11} parent=19 // pred_fallthru
          _
      $region20: #{discriminator_forward.11} parent=5 // pred_fallthru
        _
      %p235 = scmp.le.s32.totalorder 1, %s9
      %p236 = scmp.lt.s32.totalorder %s9, 3
      %p237 = pnand %p235, %p236
      %p238 = pneg %p237
      // Predicated region
      $region48: #{discriminator_forward.11} parent=5 // pred_check
        _
      $region49: #{discriminator_forward.11} parent=5 // pred_check_branch
        %240 = sbr.rel (%p237) target = $region51
      $region50: #{discriminator_forward.11} parent=5 // pred_region
        %s241 = ssub.s32 %s9, 1
        %s242 = sand.u32 %s43, 1
        %s243 = sand.u32 %s43, 1
        %s244 = smul.addr %s243, 128
        %s245 = scalar_lea.vmem [#allocation3], %s244
        // Predicated region
        $region52: #{discriminator_forward.11} parent=50 // pred_check
          %p246 = pneg %p56
        $region53: #{discriminator_forward.11} parent=50 // pred_check_branch
          %248 = sbr.rel (%p246) target = $region55
        $region54: #{discriminator_forward.11} parent=50 // pred_region
          _
        $region55: #{discriminator_forward.11} parent=50 // pred_fallthru
          _
        %s249 = sand.u32 %s43, 1
        %s250 = sand.u32 %s43, 1
        %s251 = smul.addr %s250, 128
        %s252 = scalar_lea.vmem [#allocation3], %s251
        %p253 = pneg %p56
        %p254 = pneg %p53
        %s255 = smul.u32 256, %s21
        %p256 = scmp.lt.s32.totalorder %s255, 511
        %s257 = scalar_select %p256, %s255, 511
        %p258 = scmp.lt.s32.totalorder %s20, 0
        %s259 = scalar_select %p258, %s20, 0
        %s260 = sadd.s32 %s259, %s257
        %s261 = smul.addr %s260, 4
        %s262 = scalar_lea.vmem %s1, %s261
        %p263 = pneg %p84
        %p264 = pneg %p81
        %p265 = scmp.lt.s32.totalorder %s20, 0
        %s266 = scalar_select %p265, %s20, 0
        %s267 = scalar_lea.vmem %s2, %s266
        %p268 = pneg %p110
        %p269 = pneg %p107
        %p270 = pneg %p138
        %p271 = pneg %p135
        %s272 = smul.u32 2, %s19
        %p273 = scmp.lt.s32.totalorder %s272, 1
        %s274 = scalar_select %p273, %s272, 1
        %p275 = scmp.lt.s32.totalorder %s20, 0
        %s276 = scalar_select %p275, %s20, 0
        %s277 = sadd.s32 %s276, %s274
        %s278 = smul.addr %s277, 8
        %s279 = scalar_lea.vmem %s3, %s278
        %s280 = smul.u32 2, %s19
        %s281 = smul.u32 16, %s21
        %s282 = smul.u32 256, %s21
        %p283 = scmp.lt.s32.totalorder %s282, 511
        %s284 = scalar_select %p283, %s282, 511
        %p285 = scmp.lt.s32.totalorder %s20, 0
        %s286 = scalar_select %p285, %s20, 0
        %s287 = sadd.s32 %s286, %s284
        %s288 = smul.addr %s287, 4
        %s289 = scalar_lea.vmem %s1, %s288
        %s290 = smul.u32 256, %s21
        %p291 = scmp.lt.s32.totalorder %s20, 0
        %s292 = scalar_select %p291, %s20, 0
        %s293 = scalar_lea.vmem %s2, %s292
        %s294 = smul.u32 2, %s19
        %p295 = scmp.lt.s32.totalorder %s294, 1
        %s296 = scalar_select %p295, %s294, 1
        %p297 = scmp.lt.s32.totalorder %s20, 0
        %s298 = scalar_select %p297, %s20, 0
        %s299 = sadd.s32 %s298, %s296
        %s300 = smul.addr %s299, 8
        %s301 = scalar_lea.vmem %s3, %s300
        %s302 = smul.u32 2, %s19
        %p303 = scmp.eq.s32.totalorder %s21, 0
        // Predicated region
        $region56: #{discriminator_forward.11} parent=50 // pred_check
          %p304 = pneg %p303
        $region57: #{discriminator_forward.11} parent=50 // pred_check_branch
          %306 = sbr.rel (%p304) target = $region59
        $region58: #{discriminator_forward.11} parent=50 // pred_region
          %307 = vst [vmem:[#allocation2] sm:$0xff] 0.0
          %308 = vst [vmem:[#allocation2 + $0x8] sm:$0xff] 0.0
        $region59: #{discriminator_forward.11} parent=50 // pred_fallthru
          _
        %v309 = vld [vmem:[#allocation2] sm:$0xff]
        %v310 = vld [vmem:[#allocation2 + $0x8] sm:$0xff]
        %v311 = vld [vmem:[%s245] sm:$0xff]
        %v312 = vld [vmem:[%s245 + $0x8] sm:$0xff]
        %v313 = vld [vmem:[%s245 + $0x10] sm:$0xff]
        %v314 = vld [vmem:[%s245 + $0x18] sm:$0xff]
        %v315 = vld [vmem:[%s245 + $0x20] sm:$0xff]
        %v316 = vld [vmem:[%s245 + $0x28] sm:$0xff]
        %v317 = vld [vmem:[%s245 + $0x30] sm:$0xff]
        %v318 = vld [vmem:[%s245 + $0x38] sm:$0xff]
        %v319 = vld [vmem:[%s245 + $0x40] sm:$0xff]
        %v320 = vld [vmem:[%s245 + $0x48] sm:$0xff]
        %v321 = vld [vmem:[%s245 + $0x50] sm:$0xff]
        %v322 = vld [vmem:[%s245 + $0x58] sm:$0xff]
        %v323 = vld [vmem:[%s245 + $0x60] sm:$0xff]
        %v324 = vld [vmem:[%s245 + $0x68] sm:$0xff]
        %v325 = vld [vmem:[%s245 + $0x70] sm:$0xff]
        %v326 = vld [vmem:[%s245 + $0x78] sm:$0xff]
        %v327 = vld [vmem:[%s289] sm:$0xf]
        %v328 = vld [vmem:[%s289 + $0x4] sm:$0xf]
        %v329 = vld [vmem:[%s289 + $0x8] sm:$0xf]
        %v330 = vld [vmem:[%s289 + $0xc] sm:$0xf]
        %v331 = vld [vmem:[%s289 + $0x10] sm:$0xf]
        %v332 = vld [vmem:[%s289 + $0x14] sm:$0xf]
        %v333 = vld [vmem:[%s289 + $0x18] sm:$0xf]
        %v334 = vld [vmem:[%s289 + $0x1c] sm:$0xf]
        %v335 = vld [vmem:[%s289 + $0x20] sm:$0xf]
        %v336 = vld [vmem:[%s289 + $0x24] sm:$0xf]
        %v337 = vld [vmem:[%s289 + $0x28] sm:$0xf]
        %v338 = vld [vmem:[%s289 + $0x2c] sm:$0xf]
        %v339 = vld [vmem:[%s289 + $0x30] sm:$0xf]
        %v340 = vld [vmem:[%s289 + $0x34] sm:$0xf]
        %v341 = vld [vmem:[%s289 + $0x38] sm:$0xf]
        %v342 = vld [vmem:[%s289 + $0x3c] sm:$0xf]
        %v343 = vld [vmem:[%s289 + $0x40] sm:$0xf]
        %v344 = vld [vmem:[%s289 + $0x44] sm:$0xf]
        %v345 = vld [vmem:[%s289 + $0x48] sm:$0xf]
        %v346 = vld [vmem:[%s289 + $0x4c] sm:$0xf]
        %v347 = vld [vmem:[%s289 + $0x50] sm:$0xf]
        %v348 = vld [vmem:[%s289 + $0x54] sm:$0xf]
        %v349 = vld [vmem:[%s289 + $0x58] sm:$0xf]
        %v350 = vld [vmem:[%s289 + $0x5c] sm:$0xf]
        %v351 = vld [vmem:[%s289 + $0x60] sm:$0xf]
        %v352 = vld [vmem:[%s289 + $0x64] sm:$0xf]
        %v353 = vld [vmem:[%s289 + $0x68] sm:$0xf]
        %v354 = vld [vmem:[%s289 + $0x6c] sm:$0xf]
        %v355 = vld [vmem:[%s289 + $0x70] sm:$0xf]
        %v356 = vld [vmem:[%s289 + $0x74] sm:$0xf]
        %v357 = vld [vmem:[%s289 + $0x78] sm:$0xf]
        %v358 = vld [vmem:[%s289 + $0x7c] sm:$0xf]
        %v359 = vld [vmem:[%s289 + $0x80] sm:$0xf]
        %v360 = vld [vmem:[%s289 + $0x84] sm:$0xf]
        %v361 = vld [vmem:[%s289 + $0x88] sm:$0xf]
        %v362 = vld [vmem:[%s289 + $0x8c] sm:$0xf]
        %v363 = vld [vmem:[%s289 + $0x90] sm:$0xf]
        %v364 = vld [vmem:[%s289 + $0x94] sm:$0xf]
        %v365 = vld [vmem:[%s289 + $0x98] sm:$0xf]
        %v366 = vld [vmem:[%s289 + $0x9c] sm:$0xf]
        %v367 = vld [vmem:[%s289 + $0xa0] sm:$0xf]
        %v368 = vld [vmem:[%s289 + $0xa4] sm:$0xf]
        %v369 = vld [vmem:[%s289 + $0xa8] sm:$0xf]
        %v370 = vld [vmem:[%s289 + $0xac] sm:$0xf]
        %v371 = vld [vmem:[%s289 + $0xb0] sm:$0xf]
        %v372 = vld [vmem:[%s289 + $0xb4] sm:$0xf]
        %v373 = vld [vmem:[%s289 + $0xb8] sm:$0xf]
        %v374 = vld [vmem:[%s289 + $0xbc] sm:$0xf]
        %v375 = vld [vmem:[%s289 + $0xc0] sm:$0xf]
        %v376 = vld [vmem:[%s289 + $0xc4] sm:$0xf]
        %v377 = vld [vmem:[%s289 + $0xc8] sm:$0xf]
        %v378 = vld [vmem:[%s289 + $0xcc] sm:$0xf]
        %v379 = vld [vmem:[%s289 + $0xd0] sm:$0xf]
        %v380 = vld [vmem:[%s289 + $0xd4] sm:$0xf]
        %v381 = vld [vmem:[%s289 + $0xd8] sm:$0xf]
        %v382 = vld [vmem:[%s289 + $0xdc] sm:$0xf]
        %v383 = vld [vmem:[%s289 + $0xe0] sm:$0xf]
        %v384 = vld [vmem:[%s289 + $0xe4] sm:$0xf]
        %v385 = vld [vmem:[%s289 + $0xe8] sm:$0xf]
        %v386 = vld [vmem:[%s289 + $0xec] sm:$0xf]
        %v387 = vld [vmem:[%s289 + $0xf0] sm:$0xf]
        %v388 = vld [vmem:[%s289 + $0xf4] sm:$0xf]
        %v389 = vld [vmem:[%s289 + $0xf8] sm:$0xf]
        %v390 = vld [vmem:[%s289 + $0xfc] sm:$0xf]
        %v391 = vld [vmem:[%s289 + $0x100] sm:$0xf]
        %v392 = vld [vmem:[%s289 + $0x104] sm:$0xf]
        %v393 = vld [vmem:[%s289 + $0x108] sm:$0xf]
        %v394 = vld [vmem:[%s289 + $0x10c] sm:$0xf]
        %v395 = vld [vmem:[%s289 + $0x110] sm:$0xf]
        %v396 = vld [vmem:[%s289 + $0x114] sm:$0xf]
        %v397 = vld [vmem:[%s289 + $0x118] sm:$0xf]
        %v398 = vld [vmem:[%s289 + $0x11c] sm:$0xf]
        %v399 = vld [vmem:[%s289 + $0x120] sm:$0xf]
        %v400 = vld [vmem:[%s289 + $0x124] sm:$0xf]
        %v401 = vld [vmem:[%s289 + $0x128] sm:$0xf]
        %v402 = vld [vmem:[%s289 + $0x12c] sm:$0xf]
        %v403 = vld [vmem:[%s289 + $0x130] sm:$0xf]
        %v404 = vld [vmem:[%s289 + $0x134] sm:$0xf]
        %v405 = vld [vmem:[%s289 + $0x138] sm:$0xf]
        %v406 = vld [vmem:[%s289 + $0x13c] sm:$0xf]
        %v407 = vld [vmem:[%s289 + $0x140] sm:$0xf]
        %v408 = vld [vmem:[%s289 + $0x144] sm:$0xf]
        %v409 = vld [vmem:[%s289 + $0x148] sm:$0xf]
        %v410 = vld [vmem:[%s289 + $0x14c] sm:$0xf]
        %v411 = vld [vmem:[%s289 + $0x150] sm:$0xf]
        %v412 = vld [vmem:[%s289 + $0x154] sm:$0xf]
        %v413 = vld [vmem:[%s289 + $0x158] sm:$0xf]
        %v414 = vld [vmem:[%s289 + $0x15c] sm:$0xf]
        %v415 = vld [vmem:[%s289 + $0x160] sm:$0xf]
        %v416 = vld [vmem:[%s289 + $0x164] sm:$0xf]
        %v417 = vld [vmem:[%s289 + $0x168] sm:$0xf]
        %v418 = vld [vmem:[%s289 + $0x16c] sm:$0xf]
        %v419 = vld [vmem:[%s289 + $0x170] sm:$0xf]
        %v420 = vld [vmem:[%s289 + $0x174] sm:$0xf]
        %v421 = vld [vmem:[%s289 + $0x178] sm:$0xf]
        %v422 = vld [vmem:[%s289 + $0x17c] sm:$0xf]
        %v423 = vld [vmem:[%s289 + $0x180] sm:$0xf]
        %v424 = vld [vmem:[%s289 + $0x184] sm:$0xf]
        %v425 = vld [vmem:[%s289 + $0x188] sm:$0xf]
        %v426 = vld [vmem:[%s289 + $0x18c] sm:$0xf]
        %v427 = vld [vmem:[%s289 + $0x190] sm:$0xf]
        %v428 = vld [vmem:[%s289 + $0x194] sm:$0xf]
        %v429 = vld [vmem:[%s289 + $0x198] sm:$0xf]
        %v430 = vld [vmem:[%s289 + $0x19c] sm:$0xf]
        %v431 = vld [vmem:[%s289 + $0x1a0] sm:$0xf]
        %v432 = vld [vmem:[%s289 + $0x1a4] sm:$0xf]
        %v433 = vld [vmem:[%s289 + $0x1a8] sm:$0xf]
        %v434 = vld [vmem:[%s289 + $0x1ac] sm:$0xf]
        %v435 = vld [vmem:[%s289 + $0x1b0] sm:$0xf]
        %v436 = vld [vmem:[%s289 + $0x1b4] sm:$0xf]
        %v437 = vld [vmem:[%s289 + $0x1b8] sm:$0xf]
        %v438 = vld [vmem:[%s289 + $0x1bc] sm:$0xf]
        %v439 = vld [vmem:[%s289 + $0x1c0] sm:$0xf]
        %v440 = vld [vmem:[%s289 + $0x1c4] sm:$0xf]
        %v441 = vld [vmem:[%s289 + $0x1c8] sm:$0xf]
        %v442 = vld [vmem:[%s289 + $0x1cc] sm:$0xf]
        %v443 = vld [vmem:[%s289 + $0x1d0] sm:$0xf]
        %v444 = vld [vmem:[%s289 + $0x1d4] sm:$0xf]
        %v445 = vld [vmem:[%s289 + $0x1d8] sm:$0xf]
        %v446 = vld [vmem:[%s289 + $0x1dc] sm:$0xf]
        %v447 = vld [vmem:[%s289 + $0x1e0] sm:$0xf]
        %v448 = vld [vmem:[%s289 + $0x1e4] sm:$0xf]
        %v449 = vld [vmem:[%s289 + $0x1e8] sm:$0xf]
        %v450 = vld [vmem:[%s289 + $0x1ec] sm:$0xf]
        %v451 = vld [vmem:[%s289 + $0x1f0] sm:$0xf]
        %v452 = vld [vmem:[%s289 + $0x1f4] sm:$0xf]
        %v453 = vld [vmem:[%s289 + $0x1f8] sm:$0xf]
        %v454 = vld [vmem:[%s289 + $0x1fc] sm:$0xf]
        %v455 = vld [vmem:[%s289 + $0x200] sm:$0xf]
        %v456 = vld [vmem:[%s289 + $0x204] sm:$0xf]
        %v457 = vld [vmem:[%s289 + $0x208] sm:$0xf]
        %v458 = vld [vmem:[%s289 + $0x20c] sm:$0xf]
        %v459 = vld [vmem:[%s289 + $0x210] sm:$0xf]
        %v460 = vld [vmem:[%s289 + $0x214] sm:$0xf]
        %v461 = vld [vmem:[%s289 + $0x218] sm:$0xf]
        %v462 = vld [vmem:[%s289 + $0x21c] sm:$0xf]
        %v463 = vld [vmem:[%s289 + $0x220] sm:$0xf]
        %v464 = vld [vmem:[%s289 + $0x224] sm:$0xf]
        %v465 = vld [vmem:[%s289 + $0x228] sm:$0xf]
        %v466 = vld [vmem:[%s289 + $0x22c] sm:$0xf]
        %v467 = vld [vmem:[%s289 + $0x230] sm:$0xf]
        %v468 = vld [vmem:[%s289 + $0x234] sm:$0xf]
        %v469 = vld [vmem:[%s289 + $0x238] sm:$0xf]
        %v470 = vld [vmem:[%s289 + $0x23c] sm:$0xf]
        %v471 = vld [vmem:[%s289 + $0x240] sm:$0xf]
        %v472 = vld [vmem:[%s289 + $0x244] sm:$0xf]
        %v473 = vld [vmem:[%s289 + $0x248] sm:$0xf]
        %v474 = vld [vmem:[%s289 + $0x24c] sm:$0xf]
        %v475 = vld [vmem:[%s289 + $0x250] sm:$0xf]
        %v476 = vld [vmem:[%s289 + $0x254] sm:$0xf]
        %v477 = vld [vmem:[%s289 + $0x258] sm:$0xf]
        %v478 = vld [vmem:[%s289 + $0x25c] sm:$0xf]
        %v479 = vld [vmem:[%s289 + $0x260] sm:$0xf]
        %v480 = vld [vmem:[%s289 + $0x264] sm:$0xf]
        %v481 = vld [vmem:[%s289 + $0x268] sm:$0xf]
        %v482 = vld [vmem:[%s289 + $0x26c] sm:$0xf]
        %v483 = vld [vmem:[%s289 + $0x270] sm:$0xf]
        %v484 = vld [vmem:[%s289 + $0x274] sm:$0xf]
        %v485 = vld [vmem:[%s289 + $0x278] sm:$0xf]
        %v486 = vld [vmem:[%s289 + $0x27c] sm:$0xf]
        %v487 = vld [vmem:[%s289 + $0x280] sm:$0xf]
        %v488 = vld [vmem:[%s289 + $0x284] sm:$0xf]
        %v489 = vld [vmem:[%s289 + $0x288] sm:$0xf]
        %v490 = vld [vmem:[%s289 + $0x28c] sm:$0xf]
        %v491 = vld [vmem:[%s289 + $0x290] sm:$0xf]
        %v492 = vld [vmem:[%s289 + $0x294] sm:$0xf]
        %v493 = vld [vmem:[%s289 + $0x298] sm:$0xf]
        %v494 = vld [vmem:[%s289 + $0x29c] sm:$0xf]
        %v495 = vld [vmem:[%s289 + $0x2a0] sm:$0xf]
        %v496 = vld [vmem:[%s289 + $0x2a4] sm:$0xf]
        %v497 = vld [vmem:[%s289 + $0x2a8] sm:$0xf]
        %v498 = vld [vmem:[%s289 + $0x2ac] sm:$0xf]
        %v499 = vld [vmem:[%s289 + $0x2b0] sm:$0xf]
        %v500 = vld [vmem:[%s289 + $0x2b4] sm:$0xf]
        %v501 = vld [vmem:[%s289 + $0x2b8] sm:$0xf]
        %v502 = vld [vmem:[%s289 + $0x2bc] sm:$0xf]
        %v503 = vld [vmem:[%s289 + $0x2c0] sm:$0xf]
        %v504 = vld [vmem:[%s289 + $0x2c4] sm:$0xf]
        %v505 = vld [vmem:[%s289 + $0x2c8] sm:$0xf]
        %v506 = vld [vmem:[%s289 + $0x2cc] sm:$0xf]
        %v507 = vld [vmem:[%s289 + $0x2d0] sm:$0xf]
        %v508 = vld [vmem:[%s289 + $0x2d4] sm:$0xf]
        %v509 = vld [vmem:[%s289 + $0x2d8] sm:$0xf]
        %v510 = vld [vmem:[%s289 + $0x2dc] sm:$0xf]
        %v511 = vld [vmem:[%s289 + $0x2e0] sm:$0xf]
        %v512 = vld [vmem:[%s289 + $0x2e4] sm:$0xf]
        %v513 = vld [vmem:[%s289 + $0x2e8] sm:$0xf]
        %v514 = vld [vmem:[%s289 + $0x2ec] sm:$0xf]
        %v515 = vld [vmem:[%s289 + $0x2f0] sm:$0xf]
        %v516 = vld [vmem:[%s289 + $0x2f4] sm:$0xf]
        %v517 = vld [vmem:[%s289 + $0x2f8] sm:$0xf]
        %v518 = vld [vmem:[%s289 + $0x2fc] sm:$0xf]
        %v519 = vld [vmem:[%s289 + $0x300] sm:$0xf]
        %v520 = vld [vmem:[%s289 + $0x304] sm:$0xf]
        %v521 = vld [vmem:[%s289 + $0x308] sm:$0xf]
        %v522 = vld [vmem:[%s289 + $0x30c] sm:$0xf]
        %v523 = vld [vmem:[%s289 + $0x310] sm:$0xf]
        %v524 = vld [vmem:[%s289 + $0x314] sm:$0xf]
        %v525 = vld [vmem:[%s289 + $0x318] sm:$0xf]
        %v526 = vld [vmem:[%s289 + $0x31c] sm:$0xf]
        %v527 = vld [vmem:[%s289 + $0x320] sm:$0xf]
        %v528 = vld [vmem:[%s289 + $0x324] sm:$0xf]
        %v529 = vld [vmem:[%s289 + $0x328] sm:$0xf]
        %v530 = vld [vmem:[%s289 + $0x32c] sm:$0xf]
        %v531 = vld [vmem:[%s289 + $0x330] sm:$0xf]
        %v532 = vld [vmem:[%s289 + $0x334] sm:$0xf]
        %v533 = vld [vmem:[%s289 + $0x338] sm:$0xf]
        %v534 = vld [vmem:[%s289 + $0x33c] sm:$0xf]
        %v535 = vld [vmem:[%s289 + $0x340] sm:$0xf]
        %v536 = vld [vmem:[%s289 + $0x344] sm:$0xf]
        %v537 = vld [vmem:[%s289 + $0x348] sm:$0xf]
        %v538 = vld [vmem:[%s289 + $0x34c] sm:$0xf]
        %v539 = vld [vmem:[%s289 + $0x350] sm:$0xf]
        %v540 = vld [vmem:[%s289 + $0x354] sm:$0xf]
        %v541 = vld [vmem:[%s289 + $0x358] sm:$0xf]
        %v542 = vld [vmem:[%s289 + $0x35c] sm:$0xf]
        %v543 = vld [vmem:[%s289 + $0x360] sm:$0xf]
        %v544 = vld [vmem:[%s289 + $0x364] sm:$0xf]
        %v545 = vld [vmem:[%s289 + $0x368] sm:$0xf]
        %v546 = vld [vmem:[%s289 + $0x36c] sm:$0xf]
        %v547 = vld [vmem:[%s289 + $0x370] sm:$0xf]
        %v548 = vld [vmem:[%s289 + $0x374] sm:$0xf]
        %v549 = vld [vmem:[%s289 + $0x378] sm:$0xf]
        %v550 = vld [vmem:[%s289 + $0x37c] sm:$0xf]
        %v551 = vld [vmem:[%s289 + $0x380] sm:$0xf]
        %v552 = vld [vmem:[%s289 + $0x384] sm:$0xf]
        %v553 = vld [vmem:[%s289 + $0x388] sm:$0xf]
        %v554 = vld [vmem:[%s289 + $0x38c] sm:$0xf]
        %v555 = vld [vmem:[%s289 + $0x390] sm:$0xf]
        %v556 = vld [vmem:[%s289 + $0x394] sm:$0xf]
        %v557 = vld [vmem:[%s289 + $0x398] sm:$0xf]
        %v558 = vld [vmem:[%s289 + $0x39c] sm:$0xf]
        %v559 = vld [vmem:[%s289 + $0x3a0] sm:$0xf]
        %v560 = vld [vmem:[%s289 + $0x3a4] sm:$0xf]
        %v561 = vld [vmem:[%s289 + $0x3a8] sm:$0xf]
        %v562 = vld [vmem:[%s289 + $0x3ac] sm:$0xf]
        %v563 = vld [vmem:[%s289 + $0x3b0] sm:$0xf]
        %v564 = vld [vmem:[%s289 + $0x3b4] sm:$0xf]
        %v565 = vld [vmem:[%s289 + $0x3b8] sm:$0xf]
        %v566 = vld [vmem:[%s289 + $0x3bc] sm:$0xf]
        %v567 = vld [vmem:[%s289 + $0x3c0] sm:$0xf]
        %v568 = vld [vmem:[%s289 + $0x3c4] sm:$0xf]
        %v569 = vld [vmem:[%s289 + $0x3c8] sm:$0xf]
        %v570 = vld [vmem:[%s289 + $0x3cc] sm:$0xf]
        %v571 = vld [vmem:[%s289 + $0x3d0] sm:$0xf]
        %v572 = vld [vmem:[%s289 + $0x3d4] sm:$0xf]
        %v573 = vld [vmem:[%s289 + $0x3d8] sm:$0xf]
        %v574 = vld [vmem:[%s289 + $0x3dc] sm:$0xf]
        %v575 = vld [vmem:[%s289 + $0x3e0] sm:$0xf]
        %v576 = vld [vmem:[%s289 + $0x3e4] sm:$0xf]
        %v577 = vld [vmem:[%s289 + $0x3e8] sm:$0xf]
        %v578 = vld [vmem:[%s289 + $0x3ec] sm:$0xf]
        %v579 = vld [vmem:[%s289 + $0x3f0] sm:$0xf]
        %v580 = vld [vmem:[%s289 + $0x3f4] sm:$0xf]
        %v581 = vld [vmem:[%s289 + $0x3f8] sm:$0xf]
        %v582 = vld [vmem:[%s289 + $0x3fc] sm:$0xf]
        %v599 = vunpack.c.l.b16 %v311
        %v600 = vunpack.c.h.b16 %v311
        %v601 = vunpack.c.l.b16 %v312
        %v602 = vunpack.c.h.b16 %v312
        %v603 = vunpack.c.l.b16 %v313
        %v604 = vunpack.c.h.b16 %v313
        %v605 = vunpack.c.l.b16 %v314
        %v606 = vunpack.c.h.b16 %v314
        %v607 = vunpack.c.l.b16 %v315
        %v608 = vunpack.c.h.b16 %v315
        %v609 = vunpack.c.l.b16 %v316
        %v610 = vunpack.c.h.b16 %v316
        %v611 = vunpack.c.l.b16 %v317
        %v612 = vunpack.c.h.b16 %v317
        %v613 = vunpack.c.l.b16 %v318
        %v614 = vunpack.c.h.b16 %v318
        %v615 = vunpack.c.l.b16 %v319
        %v616 = vunpack.c.h.b16 %v319
        %v617 = vunpack.c.l.b16 %v320
        %v618 = vunpack.c.h.b16 %v320
        %v619 = vunpack.c.l.b16 %v321
        %v620 = vunpack.c.h.b16 %v321
        %v621 = vunpack.c.l.b16 %v322
        %v622 = vunpack.c.h.b16 %v322
        %v623 = vunpack.c.l.b16 %v323
        %v624 = vunpack.c.h.b16 %v323
        %v625 = vunpack.c.l.b16 %v324
        %v626 = vunpack.c.h.b16 %v324
        %v627 = vunpack.c.l.b16 %v325
        %v628 = vunpack.c.h.b16 %v325
        %v629 = vunpack.c.l.b16 %v326
        %v630 = vunpack.c.h.b16 %v326
        %v631 = vpack.c.b16 %v615, %v599
        %v632 = vpack.c.b16 %v616, %v600
        %v633 = vpack.c.b16 %v617, %v601
        %v634 = vpack.c.b16 %v618, %v602
        %v635 = vpack.c.b16 %v619, %v603
        %v636 = vpack.c.b16 %v620, %v604
        %v637 = vpack.c.b16 %v621, %v605
        %v638 = vpack.c.b16 %v622, %v606
        %v639 = vpack.c.b16 %v623, %v607
        %v640 = vpack.c.b16 %v624, %v608
        %v641 = vpack.c.b16 %v625, %v609
        %v642 = vpack.c.b16 %v626, %v610
        %v643 = vpack.c.b16 %v627, %v611
        %v644 = vpack.c.b16 %v628, %v612
        %v645 = vpack.c.b16 %v629, %v613
        %v646 = vpack.c.b16 %v630, %v614
        %v919 = vunpack.c.l.b16 %v327
        %v920 = vunpack.c.l.b16 %v328
        %v921 = vunpack.c.l.b16 %v329
        %v922 = vunpack.c.l.b16 %v330
        %v923 = vunpack.c.l.b16 %v331
        %v924 = vunpack.c.l.b16 %v332
        %v925 = vunpack.c.l.b16 %v333
        %v926 = vunpack.c.l.b16 %v334
        %v927 = vunpack.c.l.b16 %v335
        %v928 = vunpack.c.l.b16 %v336
        %v929 = vunpack.c.l.b16 %v337
        %v930 = vunpack.c.l.b16 %v338
        %v931 = vunpack.c.l.b16 %v339
        %v932 = vunpack.c.l.b16 %v340
        %v933 = vunpack.c.l.b16 %v341
        %v934 = vunpack.c.l.b16 %v342
        %v935 = vunpack.c.l.b16 %v343
        %v936 = vunpack.c.l.b16 %v344
        %v937 = vunpack.c.l.b16 %v345
        %v938 = vunpack.c.l.b16 %v346
        %v939 = vunpack.c.l.b16 %v347
        %v940 = vunpack.c.l.b16 %v348
        %v941 = vunpack.c.l.b16 %v349
        %v942 = vunpack.c.l.b16 %v350
        %v943 = vunpack.c.l.b16 %v351
        %v944 = vunpack.c.l.b16 %v352
        %v945 = vunpack.c.l.b16 %v353
        %v946 = vunpack.c.l.b16 %v354
        %v947 = vunpack.c.l.b16 %v355
        %v948 = vunpack.c.l.b16 %v356
        %v949 = vunpack.c.l.b16 %v357
        %v950 = vunpack.c.l.b16 %v358
        %v951 = vunpack.c.l.b16 %v359
        %v952 = vunpack.c.l.b16 %v360
        %v953 = vunpack.c.l.b16 %v361
        %v954 = vunpack.c.l.b16 %v362
        %v955 = vunpack.c.l.b16 %v363
        %v956 = vunpack.c.l.b16 %v364
        %v957 = vunpack.c.l.b16 %v365
        %v958 = vunpack.c.l.b16 %v366
        %v959 = vunpack.c.l.b16 %v367
        %v960 = vunpack.c.l.b16 %v368
        %v961 = vunpack.c.l.b16 %v369
        %v962 = vunpack.c.l.b16 %v370
        %v963 = vunpack.c.l.b16 %v371
        %v964 = vunpack.c.l.b16 %v372
        %v965 = vunpack.c.l.b16 %v373
        %v966 = vunpack.c.l.b16 %v374
        %v967 = vunpack.c.l.b16 %v375
        %v968 = vunpack.c.l.b16 %v376
        %v969 = vunpack.c.l.b16 %v377
        %v970 = vunpack.c.l.b16 %v378
        %v971 = vunpack.c.l.b16 %v379
        %v972 = vunpack.c.l.b16 %v380
        %v973 = vunpack.c.l.b16 %v381
        %v974 = vunpack.c.l.b16 %v382
        %v975 = vunpack.c.l.b16 %v383
        %v976 = vunpack.c.l.b16 %v384
        %v977 = vunpack.c.l.b16 %v385
        %v978 = vunpack.c.l.b16 %v386
        %v979 = vunpack.c.l.b16 %v387
        %v980 = vunpack.c.l.b16 %v388
        %v981 = vunpack.c.l.b16 %v389
        %v982 = vunpack.c.l.b16 %v390
        %v983 = vunpack.c.l.b16 %v391
        %v984 = vunpack.c.l.b16 %v392
        %v985 = vunpack.c.l.b16 %v393
        %v986 = vunpack.c.l.b16 %v394
        %v987 = vunpack.c.l.b16 %v395
        %v988 = vunpack.c.l.b16 %v396
        %v989 = vunpack.c.l.b16 %v397
        %v990 = vunpack.c.l.b16 %v398
        %v991 = vunpack.c.l.b16 %v399
        %v992 = vunpack.c.l.b16 %v400
        %v993 = vunpack.c.l.b16 %v401
        %v994 = vunpack.c.l.b16 %v402
        %v995 = vunpack.c.l.b16 %v403
        %v996 = vunpack.c.l.b16 %v404
        %v997 = vunpack.c.l.b16 %v405
        %v998 = vunpack.c.l.b16 %v406
        %v999 = vunpack.c.l.b16 %v407
        %v1000 = vunpack.c.l.b16 %v408
        %v1001 = vunpack.c.l.b16 %v409
        %v1002 = vunpack.c.l.b16 %v410
        %v1003 = vunpack.c.l.b16 %v411
        %v1004 = vunpack.c.l.b16 %v412
        %v1005 = vunpack.c.l.b16 %v413
        %v1006 = vunpack.c.l.b16 %v414
        %v1007 = vunpack.c.l.b16 %v415
        %v1008 = vunpack.c.l.b16 %v416
        %v1009 = vunpack.c.l.b16 %v417
        %v1010 = vunpack.c.l.b16 %v418
        %v1011 = vunpack.c.l.b16 %v419
        %v1012 = vunpack.c.l.b16 %v420
        %v1013 = vunpack.c.l.b16 %v421
        %v1014 = vunpack.c.l.b16 %v422
        %v1015 = vunpack.c.l.b16 %v423
        %v1016 = vunpack.c.l.b16 %v424
        %v1017 = vunpack.c.l.b16 %v425
        %v1018 = vunpack.c.l.b16 %v426
        %v1019 = vunpack.c.l.b16 %v427
        %v1020 = vunpack.c.l.b16 %v428
        %v1021 = vunpack.c.l.b16 %v429
        %v1022 = vunpack.c.l.b16 %v430
        %v1023 = vunpack.c.l.b16 %v431
        %v1024 = vunpack.c.l.b16 %v432
        %v1025 = vunpack.c.l.b16 %v433
        %v1026 = vunpack.c.l.b16 %v434
        %v1027 = vunpack.c.l.b16 %v435
        %v1028 = vunpack.c.l.b16 %v436
        %v1029 = vunpack.c.l.b16 %v437
        %v1030 = vunpack.c.l.b16 %v438
        %v1031 = vunpack.c.l.b16 %v439
        %v1032 = vunpack.c.l.b16 %v440
        %v1033 = vunpack.c.l.b16 %v441
        %v1034 = vunpack.c.l.b16 %v442
        %v1035 = vunpack.c.l.b16 %v443
        %v1036 = vunpack.c.l.b16 %v444
        %v1037 = vunpack.c.l.b16 %v445
        %v1038 = vunpack.c.l.b16 %v446
        %v1039 = vunpack.c.l.b16 %v447
        %v1040 = vunpack.c.l.b16 %v448
        %v1041 = vunpack.c.l.b16 %v449
        %v1042 = vunpack.c.l.b16 %v450
        %v1043 = vunpack.c.l.b16 %v451
        %v1044 = vunpack.c.l.b16 %v452
        %v1045 = vunpack.c.l.b16 %v453
        %v1046 = vunpack.c.l.b16 %v454
        %v1047 = vunpack.c.l.b16 %v455
        %v1048 = vunpack.c.l.b16 %v456
        %v1049 = vunpack.c.l.b16 %v457
        %v1050 = vunpack.c.l.b16 %v458
        %v1051 = vunpack.c.l.b16 %v459
        %v1052 = vunpack.c.l.b16 %v460
        %v1053 = vunpack.c.l.b16 %v461
        %v1054 = vunpack.c.l.b16 %v462
        %v1055 = vunpack.c.l.b16 %v463
        %v1056 = vunpack.c.l.b16 %v464
        %v1057 = vunpack.c.l.b16 %v465
        %v1058 = vunpack.c.l.b16 %v466
        %v1059 = vunpack.c.l.b16 %v467
        %v1060 = vunpack.c.l.b16 %v468
        %v1061 = vunpack.c.l.b16 %v469
        %v1062 = vunpack.c.l.b16 %v470
        %v1063 = vunpack.c.l.b16 %v471
        %v1064 = vunpack.c.l.b16 %v472
        %v1065 = vunpack.c.l.b16 %v473
        %v1066 = vunpack.c.l.b16 %v474
        %v1067 = vunpack.c.l.b16 %v475
        %v1068 = vunpack.c.l.b16 %v476
        %v1069 = vunpack.c.l.b16 %v477
        %v1070 = vunpack.c.l.b16 %v478
        %v1071 = vunpack.c.l.b16 %v479
        %v1072 = vunpack.c.l.b16 %v480
        %v1073 = vunpack.c.l.b16 %v481
        %v1074 = vunpack.c.l.b16 %v482
        %v1075 = vunpack.c.l.b16 %v483
        %v1076 = vunpack.c.l.b16 %v484
        %v1077 = vunpack.c.l.b16 %v485
        %v1078 = vunpack.c.l.b16 %v486
        %v1079 = vunpack.c.l.b16 %v487
        %v1080 = vunpack.c.l.b16 %v488
        %v1081 = vunpack.c.l.b16 %v489
        %v1082 = vunpack.c.l.b16 %v490
        %v1083 = vunpack.c.l.b16 %v491
        %v1084 = vunpack.c.l.b16 %v492
        %v1085 = vunpack.c.l.b16 %v493
        %v1086 = vunpack.c.l.b16 %v494
        %v1087 = vunpack.c.l.b16 %v495
        %v1088 = vunpack.c.l.b16 %v496
        %v1089 = vunpack.c.l.b16 %v497
        %v1090 = vunpack.c.l.b16 %v498
        %v1091 = vunpack.c.l.b16 %v499
        %v1092 = vunpack.c.l.b16 %v500
        %v1093 = vunpack.c.l.b16 %v501
        %v1094 = vunpack.c.l.b16 %v502
        %v1095 = vunpack.c.l.b16 %v503
        %v1096 = vunpack.c.l.b16 %v504
        %v1097 = vunpack.c.l.b16 %v505
        %v1098 = vunpack.c.l.b16 %v506
        %v1099 = vunpack.c.l.b16 %v507
        %v1100 = vunpack.c.l.b16 %v508
        %v1101 = vunpack.c.l.b16 %v509
        %v1102 = vunpack.c.l.b16 %v510
        %v1103 = vunpack.c.l.b16 %v511
        %v1104 = vunpack.c.l.b16 %v512
        %v1105 = vunpack.c.l.b16 %v513
        %v1106 = vunpack.c.l.b16 %v514
        %v1107 = vunpack.c.l.b16 %v515
        %v1108 = vunpack.c.l.b16 %v516
        %v1109 = vunpack.c.l.b16 %v517
        %v1110 = vunpack.c.l.b16 %v518
        %v1111 = vunpack.c.l.b16 %v519
        %v1112 = vunpack.c.l.b16 %v520
        %v1113 = vunpack.c.l.b16 %v521
        %v1114 = vunpack.c.l.b16 %v522
        %v1115 = vunpack.c.l.b16 %v523
        %v1116 = vunpack.c.l.b16 %v524
        %v1117 = vunpack.c.l.b16 %v525
        %v1118 = vunpack.c.l.b16 %v526
        %v1119 = vunpack.c.l.b16 %v527
        %v1120 = vunpack.c.l.b16 %v528
        %v1121 = vunpack.c.l.b16 %v529
        %v1122 = vunpack.c.l.b16 %v530
        %v1123 = vunpack.c.l.b16 %v531
        %v1124 = vunpack.c.l.b16 %v532
        %v1125 = vunpack.c.l.b16 %v533
        %v1126 = vunpack.c.l.b16 %v534
        %v1127 = vunpack.c.l.b16 %v535
        %v1128 = vunpack.c.l.b16 %v536
        %v1129 = vunpack.c.l.b16 %v537
        %v1130 = vunpack.c.l.b16 %v538
        %v1131 = vunpack.c.l.b16 %v539
        %v1132 = vunpack.c.l.b16 %v540
        %v1133 = vunpack.c.l.b16 %v541
        %v1134 = vunpack.c.l.b16 %v542
        %v1135 = vunpack.c.l.b16 %v543
        %v1136 = vunpack.c.l.b16 %v544
        %v1137 = vunpack.c.l.b16 %v545
        %v1138 = vunpack.c.l.b16 %v546
        %v1139 = vunpack.c.l.b16 %v547
        %v1140 = vunpack.c.l.b16 %v548
        %v1141 = vunpack.c.l.b16 %v549
        %v1142 = vunpack.c.l.b16 %v550
        %v1143 = vunpack.c.l.b16 %v551
        %v1144 = vunpack.c.l.b16 %v552
        %v1145 = vunpack.c.l.b16 %v553
        %v1146 = vunpack.c.l.b16 %v554
        %v1147 = vunpack.c.l.b16 %v555
        %v1148 = vunpack.c.l.b16 %v556
        %v1149 = vunpack.c.l.b16 %v557
        %v1150 = vunpack.c.l.b16 %v558
        %v1151 = vunpack.c.l.b16 %v559
        %v1152 = vunpack.c.l.b16 %v560
        %v1153 = vunpack.c.l.b16 %v561
        %v1154 = vunpack.c.l.b16 %v562
        %v1155 = vunpack.c.l.b16 %v563
        %v1156 = vunpack.c.l.b16 %v564
        %v1157 = vunpack.c.l.b16 %v565
        %v1158 = vunpack.c.l.b16 %v566
        %v1159 = vunpack.c.l.b16 %v567
        %v1160 = vunpack.c.l.b16 %v568
        %v1161 = vunpack.c.l.b16 %v569
        %v1162 = vunpack.c.l.b16 %v570
        %v1163 = vunpack.c.l.b16 %v571
        %v1164 = vunpack.c.l.b16 %v572
        %v1165 = vunpack.c.l.b16 %v573
        %v1166 = vunpack.c.l.b16 %v574
        %v1167 = vunpack.c.l.b16 %v575
        %v1168 = vunpack.c.l.b16 %v576
        %v1169 = vunpack.c.l.b16 %v577
        %v1170 = vunpack.c.l.b16 %v578
        %v1171 = vunpack.c.l.b16 %v579
        %v1172 = vunpack.c.l.b16 %v580
        %v1173 = vunpack.c.l.b16 %v581
        %v1174 = vunpack.c.l.b16 %v582
        %v1175 = vpack.c.b16 %v920, %v919
        %v1176 = vpack.c.b16 %v922, %v921
        %v1177 = vpack.c.b16 %v924, %v923
        %v1178 = vpack.c.b16 %v926, %v925
        %v1179 = vpack.c.b16 %v928, %v927
        %v1180 = vpack.c.b16 %v930, %v929
        %v1181 = vpack.c.b16 %v932, %v931
        %v1182 = vpack.c.b16 %v934, %v933
        %v1183 = vpack.c.b16 %v936, %v935
        %v1184 = vpack.c.b16 %v938, %v937
        %v1185 = vpack.c.b16 %v940, %v939
        %v1186 = vpack.c.b16 %v942, %v941
        %v1187 = vpack.c.b16 %v944, %v943
        %v1188 = vpack.c.b16 %v946, %v945
        %v1189 = vpack.c.b16 %v948, %v947
        %v1190 = vpack.c.b16 %v950, %v949
        %v1191 = vpack.c.b16 %v952, %v951
        %v1192 = vpack.c.b16 %v954, %v953
        %v1193 = vpack.c.b16 %v956, %v955
        %v1194 = vpack.c.b16 %v958, %v957
        %v1195 = vpack.c.b16 %v960, %v959
        %v1196 = vpack.c.b16 %v962, %v961
        %v1197 = vpack.c.b16 %v964, %v963
        %v1198 = vpack.c.b16 %v966, %v965
        %v1199 = vpack.c.b16 %v968, %v967
        %v1200 = vpack.c.b16 %v970, %v969
        %v1201 = vpack.c.b16 %v972, %v971
        %v1202 = vpack.c.b16 %v974, %v973
        %v1203 = vpack.c.b16 %v976, %v975
        %v1204 = vpack.c.b16 %v978, %v977
        %v1205 = vpack.c.b16 %v980, %v979
        %v1206 = vpack.c.b16 %v982, %v981
        %v1207 = vpack.c.b16 %v984, %v983
        %v1208 = vpack.c.b16 %v986, %v985
        %v1209 = vpack.c.b16 %v988, %v987
        %v1210 = vpack.c.b16 %v990, %v989
        %v1211 = vpack.c.b16 %v992, %v991
        %v1212 = vpack.c.b16 %v994, %v993
        %v1213 = vpack.c.b16 %v996, %v995
        %v1214 = vpack.c.b16 %v998, %v997
        %v1215 = vpack.c.b16 %v1000, %v999
        %v1216 = vpack.c.b16 %v1002, %v1001
        %v1217 = vpack.c.b16 %v1004, %v1003
        %v1218 = vpack.c.b16 %v1006, %v1005
        %v1219 = vpack.c.b16 %v1008, %v1007
        %v1220 = vpack.c.b16 %v1010, %v1009
        %v1221 = vpack.c.b16 %v1012, %v1011
        %v1222 = vpack.c.b16 %v1014, %v1013
        %v1223 = vpack.c.b16 %v1016, %v1015
        %v1224 = vpack.c.b16 %v1018, %v1017
        %v1225 = vpack.c.b16 %v1020, %v1019
        %v1226 = vpack.c.b16 %v1022, %v1021
        %v1227 = vpack.c.b16 %v1024, %v1023
        %v1228 = vpack.c.b16 %v1026, %v1025
        %v1229 = vpack.c.b16 %v1028, %v1027
        %v1230 = vpack.c.b16 %v1030, %v1029
        %v1231 = vpack.c.b16 %v1032, %v1031
        %v1232 = vpack.c.b16 %v1034, %v1033
        %v1233 = vpack.c.b16 %v1036, %v1035
        %v1234 = vpack.c.b16 %v1038, %v1037
        %v1235 = vpack.c.b16 %v1040, %v1039
        %v1236 = vpack.c.b16 %v1042, %v1041
        %v1237 = vpack.c.b16 %v1044, %v1043
        %v1238 = vpack.c.b16 %v1046, %v1045
        %v1239 = vpack.c.b16 %v1048, %v1047
        %v1240 = vpack.c.b16 %v1050, %v1049
        %v1241 = vpack.c.b16 %v1052, %v1051
        %v1242 = vpack.c.b16 %v1054, %v1053
        %v1243 = vpack.c.b16 %v1056, %v1055
        %v1244 = vpack.c.b16 %v1058, %v1057
        %v1245 = vpack.c.b16 %v1060, %v1059
        %v1246 = vpack.c.b16 %v1062, %v1061
        %v1247 = vpack.c.b16 %v1064, %v1063
        %v1248 = vpack.c.b16 %v1066, %v1065
        %v1249 = vpack.c.b16 %v1068, %v1067
        %v1250 = vpack.c.b16 %v1070, %v1069
        %v1251 = vpack.c.b16 %v1072, %v1071
        %v1252 = vpack.c.b16 %v1074, %v1073
        %v1253 = vpack.c.b16 %v1076, %v1075
        %v1254 = vpack.c.b16 %v1078, %v1077
        %v1255 = vpack.c.b16 %v1080, %v1079
        %v1256 = vpack.c.b16 %v1082, %v1081
        %v1257 = vpack.c.b16 %v1084, %v1083
        %v1258 = vpack.c.b16 %v1086, %v1085
        %v1259 = vpack.c.b16 %v1088, %v1087
        %v1260 = vpack.c.b16 %v1090, %v1089
        %v1261 = vpack.c.b16 %v1092, %v1091
        %v1262 = vpack.c.b16 %v1094, %v1093
        %v1263 = vpack.c.b16 %v1096, %v1095
        %v1264 = vpack.c.b16 %v1098, %v1097
        %v1265 = vpack.c.b16 %v1100, %v1099
        %v1266 = vpack.c.b16 %v1102, %v1101
        %v1267 = vpack.c.b16 %v1104, %v1103
        %v1268 = vpack.c.b16 %v1106, %v1105
        %v1269 = vpack.c.b16 %v1108, %v1107
        %v1270 = vpack.c.b16 %v1110, %v1109
        %v1271 = vpack.c.b16 %v1112, %v1111
        %v1272 = vpack.c.b16 %v1114, %v1113
        %v1273 = vpack.c.b16 %v1116, %v1115
        %v1274 = vpack.c.b16 %v1118, %v1117
        %v1275 = vpack.c.b16 %v1120, %v1119
        %v1276 = vpack.c.b16 %v1122, %v1121
        %v1277 = vpack.c.b16 %v1124, %v1123
        %v1278 = vpack.c.b16 %v1126, %v1125
        %v1279 = vpack.c.b16 %v1128, %v1127
        %v1280 = vpack.c.b16 %v1130, %v1129
        %v1281 = vpack.c.b16 %v1132, %v1131
        %v1282 = vpack.c.b16 %v1134, %v1133
        %v1283 = vpack.c.b16 %v1136, %v1135
        %v1284 = vpack.c.b16 %v1138, %v1137
        %v1285 = vpack.c.b16 %v1140, %v1139
        %v1286 = vpack.c.b16 %v1142, %v1141
        %v1287 = vpack.c.b16 %v1144, %v1143
        %v1288 = vpack.c.b16 %v1146, %v1145
        %v1289 = vpack.c.b16 %v1148, %v1147
        %v1290 = vpack.c.b16 %v1150, %v1149
        %v1291 = vpack.c.b16 %v1152, %v1151
        %v1292 = vpack.c.b16 %v1154, %v1153
        %v1293 = vpack.c.b16 %v1156, %v1155
        %v1294 = vpack.c.b16 %v1158, %v1157
        %v1295 = vpack.c.b16 %v1160, %v1159
        %v1296 = vpack.c.b16 %v1162, %v1161
        %v1297 = vpack.c.b16 %v1164, %v1163
        %v1298 = vpack.c.b16 %v1166, %v1165
        %v1299 = vpack.c.b16 %v1168, %v1167
        %v1300 = vpack.c.b16 %v1170, %v1169
        %v1301 = vpack.c.b16 %v1172, %v1171
        %v1302 = vpack.c.b16 %v1174, %v1173
        %1431 = vmatpush.bf16.msra.mxu0 %v1182
        %1432 = vmatpush.bf16.msra.mxu0 %v1181
        %1433 = vmatpush.bf16.msra.mxu0 %v1180
        %1434 = vmatpush.bf16.msra.mxu0 %v1179
        %1435 = vmatpush.bf16.msra.mxu0 %v1178
        %1436 = vmatpush.bf16.msra.mxu0 %v1177
        %1437 = vmatpush.bf16.msra.mxu0 %v1176
        %1438 = vmatpush.bf16.msra.mxu0 %v1175
        %1439 = vmatmul.bf16.gmra.mxu0 %v631
        %v1440 = vpop.f32.mrf.mxu0
        %v1441 = vadd.f32 0.0, %v1440
        %v1442 = vpop.f32.mrf.mxu0
        %v1443 = vadd.f32 0.0, %v1442
        %1444 = vdwg.mxu0
        %1445 = vmatpush.bf16.msra.mxu0 %v1190
        %1446 = vmatpush.bf16.msra.mxu0 %v1189
        %1447 = vmatpush.bf16.msra.mxu0 %v1188
        %1448 = vmatpush.bf16.msra.mxu0 %v1187
        %1449 = vmatpush.bf16.msra.mxu0 %v1186
        %1450 = vmatpush.bf16.msra.mxu0 %v1185
        %1451 = vmatpush.bf16.msra.mxu0 %v1184
        %1452 = vmatpush.bf16.msra.mxu0 %v1183
        %1453 = vmatmul.bf16.gmra.mxu0 %v632
        %v1454 = vpop.f32.mrf.mxu0
        %v1455 = vadd.f32 %v1441, %v1454
        %v1456 = vpop.f32.mrf.mxu0
        %v1457 = vadd.f32 %v1443, %v1456
        %1458 = vdwg.mxu0
        %1459 = vmatpush.bf16.msra.mxu0 %v1198
        %1460 = vmatpush.bf16.msra.mxu0 %v1197
        %1461 = vmatpush.bf16.msra.mxu0 %v1196
        %1462 = vmatpush.bf16.msra.mxu0 %v1195
        %1463 = vmatpush.bf16.msra.mxu0 %v1194
        %1464 = vmatpush.bf16.msra.mxu0 %v1193
        %1465 = vmatpush.bf16.msra.mxu0 %v1192
        %1466 = vmatpush.bf16.msra.mxu0 %v1191
        %1467 = vmatmul.bf16.gmra.mxu0 %v633
        %v1468 = vpop.f32.mrf.mxu0
        %v1469 = vadd.f32 %v1455, %v1468
        %v1470 = vpop.f32.mrf.mxu0
        %v1471 = vadd.f32 %v1457, %v1470
        %1472 = vdwg.mxu0
        %1473 = vmatpush.bf16.msra.mxu0 %v1206
        %1474 = vmatpush.bf16.msra.mxu0 %v1205
        %1475 = vmatpush.bf16.msra.mxu0 %v1204
        %1476 = vmatpush.bf16.msra.mxu0 %v1203
        %1477 = vmatpush.bf16.msra.mxu0 %v1202
        %1478 = vmatpush.bf16.msra.mxu0 %v1201
        %1479 = vmatpush.bf16.msra.mxu0 %v1200
        %1480 = vmatpush.bf16.msra.mxu0 %v1199
        %1481 = vmatmul.bf16.gmra.mxu0 %v634
        %v1482 = vpop.f32.mrf.mxu0
        %v1483 = vadd.f32 %v1469, %v1482
        %v1484 = vpop.f32.mrf.mxu0
        %v1485 = vadd.f32 %v1471, %v1484
        %1486 = vdwg.mxu0
        %1487 = vmatpush.bf16.msra.mxu0 %v1214
        %1488 = vmatpush.bf16.msra.mxu0 %v1213
        %1489 = vmatpush.bf16.msra.mxu0 %v1212
        %1490 = vmatpush.bf16.msra.mxu0 %v1211
        %1491 = vmatpush.bf16.msra.mxu0 %v1210
        %1492 = vmatpush.bf16.msra.mxu0 %v1209
        %1493 = vmatpush.bf16.msra.mxu0 %v1208
        %1494 = vmatpush.bf16.msra.mxu0 %v1207
        %1495 = vmatmul.bf16.gmra.mxu0 %v635
        %v1496 = vpop.f32.mrf.mxu0
        %v1497 = vadd.f32 %v1483, %v1496
        %v1498 = vpop.f32.mrf.mxu0
        %v1499 = vadd.f32 %v1485, %v1498
        %1500 = vdwg.mxu0
        %1501 = vmatpush.bf16.msra.mxu0 %v1222
        %1502 = vmatpush.bf16.msra.mxu0 %v1221
        %1503 = vmatpush.bf16.msra.mxu0 %v1220
        %1504 = vmatpush.bf16.msra.mxu0 %v1219
        %1505 = vmatpush.bf16.msra.mxu0 %v1218
        %1506 = vmatpush.bf16.msra.mxu0 %v1217
        %1507 = vmatpush.bf16.msra.mxu0 %v1216
        %1508 = vmatpush.bf16.msra.mxu0 %v1215
        %1509 = vmatmul.bf16.gmra.mxu0 %v636
        %v1510 = vpop.f32.mrf.mxu0
        %v1511 = vadd.f32 %v1497, %v1510
        %v1512 = vpop.f32.mrf.mxu0
        %v1513 = vadd.f32 %v1499, %v1512
        %1514 = vdwg.mxu0
        %1515 = vmatpush.bf16.msra.mxu0 %v1230
        %1516 = vmatpush.bf16.msra.mxu0 %v1229
        %1517 = vmatpush.bf16.msra.mxu0 %v1228
        %1518 = vmatpush.bf16.msra.mxu0 %v1227
        %1519 = vmatpush.bf16.msra.mxu0 %v1226
        %1520 = vmatpush.bf16.msra.mxu0 %v1225
        %1521 = vmatpush.bf16.msra.mxu0 %v1224
        %1522 = vmatpush.bf16.msra.mxu0 %v1223
        %1523 = vmatmul.bf16.gmra.mxu0 %v637
        %v1524 = vpop.f32.mrf.mxu0
        %v1525 = vadd.f32 %v1511, %v1524
        %v1526 = vpop.f32.mrf.mxu0
        %v1527 = vadd.f32 %v1513, %v1526
        %1528 = vdwg.mxu0
        %1529 = vmatpush.bf16.msra.mxu0 %v1238
        %1530 = vmatpush.bf16.msra.mxu0 %v1237
        %1531 = vmatpush.bf16.msra.mxu0 %v1236
        %1532 = vmatpush.bf16.msra.mxu0 %v1235
        %1533 = vmatpush.bf16.msra.mxu0 %v1234
        %1534 = vmatpush.bf16.msra.mxu0 %v1233
        %1535 = vmatpush.bf16.msra.mxu0 %v1232
        %1536 = vmatpush.bf16.msra.mxu0 %v1231
        %1537 = vmatmul.bf16.gmra.mxu0 %v638
        %v1538 = vpop.f32.mrf.mxu0
        %v1539 = vadd.f32 %v1525, %v1538
        %v1540 = vpop.f32.mrf.mxu0
        %v1541 = vadd.f32 %v1527, %v1540
        %1542 = vdwg.mxu0
        %1543 = vmatpush.bf16.msra.mxu0 %v1246
        %1544 = vmatpush.bf16.msra.mxu0 %v1245
        %1545 = vmatpush.bf16.msra.mxu0 %v1244
        %1546 = vmatpush.bf16.msra.mxu0 %v1243
        %1547 = vmatpush.bf16.msra.mxu0 %v1242
        %1548 = vmatpush.bf16.msra.mxu0 %v1241
        %1549 = vmatpush.bf16.msra.mxu0 %v1240
        %1550 = vmatpush.bf16.msra.mxu0 %v1239
        %1551 = vmatmul.bf16.gmra.mxu0 %v639
        %v1552 = vpop.f32.mrf.mxu0
        %v1553 = vadd.f32 %v1539, %v1552
        %v1554 = vpop.f32.mrf.mxu0
        %v1555 = vadd.f32 %v1541, %v1554
        %1556 = vdwg.mxu0
        %1557 = vmatpush.bf16.msra.mxu0 %v1254
        %1558 = vmatpush.bf16.msra.mxu0 %v1253
        %1559 = vmatpush.bf16.msra.mxu0 %v1252
        %1560 = vmatpush.bf16.msra.mxu0 %v1251
        %1561 = vmatpush.bf16.msra.mxu0 %v1250
        %1562 = vmatpush.bf16.msra.mxu0 %v1249
        %1563 = vmatpush.bf16.msra.mxu0 %v1248
        %1564 = vmatpush.bf16.msra.mxu0 %v1247
        %1565 = vmatmul.bf16.gmra.mxu0 %v640
        %v1566 = vpop.f32.mrf.mxu0
        %v1567 = vadd.f32 %v1553, %v1566
        %v1568 = vpop.f32.mrf.mxu0
        %v1569 = vadd.f32 %v1555, %v1568
        %1570 = vdwg.mxu0
        %1571 = vmatpush.bf16.msra.mxu0 %v1262
        %1572 = vmatpush.bf16.msra.mxu0 %v1261
        %1573 = vmatpush.bf16.msra.mxu0 %v1260
        %1574 = vmatpush.bf16.msra.mxu0 %v1259
        %1575 = vmatpush.bf16.msra.mxu0 %v1258
        %1576 = vmatpush.bf16.msra.mxu0 %v1257
        %1577 = vmatpush.bf16.msra.mxu0 %v1256
        %1578 = vmatpush.bf16.msra.mxu0 %v1255
        %1579 = vmatmul.bf16.gmra.mxu0 %v641
        %v1580 = vpop.f32.mrf.mxu0
        %v1581 = vadd.f32 %v1567, %v1580
        %v1582 = vpop.f32.mrf.mxu0
        %v1583 = vadd.f32 %v1569, %v1582
        %1584 = vdwg.mxu0
        %1585 = vmatpush.bf16.msra.mxu0 %v1270
        %1586 = vmatpush.bf16.msra.mxu0 %v1269
        %1587 = vmatpush.bf16.msra.mxu0 %v1268
        %1588 = vmatpush.bf16.msra.mxu0 %v1267
        %1589 = vmatpush.bf16.msra.mxu0 %v1266
        %1590 = vmatpush.bf16.msra.mxu0 %v1265
        %1591 = vmatpush.bf16.msra.mxu0 %v1264
        %1592 = vmatpush.bf16.msra.mxu0 %v1263
        %1593 = vmatmul.bf16.gmra.mxu0 %v642
        %v1594 = vpop.f32.mrf.mxu0
        %v1595 = vadd.f32 %v1581, %v1594
        %v1596 = vpop.f32.mrf.mxu0
        %v1597 = vadd.f32 %v1583, %v1596
        %1598 = vdwg.mxu0
        %1599 = vmatpush.bf16.msra.mxu0 %v1278
        %1600 = vmatpush.bf16.msra.mxu0 %v1277
        %1601 = vmatpush.bf16.msra.mxu0 %v1276
        %1602 = vmatpush.bf16.msra.mxu0 %v1275
        %1603 = vmatpush.bf16.msra.mxu0 %v1274
        %1604 = vmatpush.bf16.msra.mxu0 %v1273
        %1605 = vmatpush.bf16.msra.mxu0 %v1272
        %1606 = vmatpush.bf16.msra.mxu0 %v1271
        %1607 = vmatmul.bf16.gmra.mxu0 %v643
        %v1608 = vpop.f32.mrf.mxu0
        %v1609 = vadd.f32 %v1595, %v1608
        %v1610 = vpop.f32.mrf.mxu0
        %v1611 = vadd.f32 %v1597, %v1610
        %1612 = vdwg.mxu0
        %1613 = vmatpush.bf16.msra.mxu0 %v1286
        %1614 = vmatpush.bf16.msra.mxu0 %v1285
        %1615 = vmatpush.bf16.msra.mxu0 %v1284
        %1616 = vmatpush.bf16.msra.mxu0 %v1283
        %1617 = vmatpush.bf16.msra.mxu0 %v1282
        %1618 = vmatpush.bf16.msra.mxu0 %v1281
        %1619 = vmatpush.bf16.msra.mxu0 %v1280
        %1620 = vmatpush.bf16.msra.mxu0 %v1279
        %1621 = vmatmul.bf16.gmra.mxu0 %v644
        %v1622 = vpop.f32.mrf.mxu0
        %v1623 = vadd.f32 %v1609, %v1622
        %v1624 = vpop.f32.mrf.mxu0
        %v1625 = vadd.f32 %v1611, %v1624
        %1626 = vdwg.mxu0
        %1627 = vmatpush.bf16.msra.mxu0 %v1294
        %1628 = vmatpush.bf16.msra.mxu0 %v1293
        %1629 = vmatpush.bf16.msra.mxu0 %v1292
        %1630 = vmatpush.bf16.msra.mxu0 %v1291
        %1631 = vmatpush.bf16.msra.mxu0 %v1290
        %1632 = vmatpush.bf16.msra.mxu0 %v1289
        %1633 = vmatpush.bf16.msra.mxu0 %v1288
        %1634 = vmatpush.bf16.msra.mxu0 %v1287
        %1635 = vmatmul.bf16.gmra.mxu0 %v645
        %v1636 = vpop.f32.mrf.mxu0
        %v1637 = vadd.f32 %v1623, %v1636
        %v1638 = vpop.f32.mrf.mxu0
        %v1639 = vadd.f32 %v1625, %v1638
        %1640 = vdwg.mxu0
        %1641 = vmatpush.bf16.msra.mxu0 %v1302
        %1642 = vmatpush.bf16.msra.mxu0 %v1301
        %1643 = vmatpush.bf16.msra.mxu0 %v1300
        %1644 = vmatpush.bf16.msra.mxu0 %v1299
        %1645 = vmatpush.bf16.msra.mxu0 %v1298
        %1646 = vmatpush.bf16.msra.mxu0 %v1297
        %1647 = vmatpush.bf16.msra.mxu0 %v1296
        %1648 = vmatpush.bf16.msra.mxu0 %v1295
        %1649 = vmatmul.bf16.gmra.mxu0 %v646
        %v1650 = vpop.f32.mrf.mxu0
        %v1651 = vadd.f32 %v1637, %v1650
        %v1652 = vpop.f32.mrf.mxu0
        %v1653 = vadd.f32 %v1639, %v1652
        %1654 = vdwg.mxu0
        %v1655 = vadd.f32 %v309, %v1651
        %v1656 = vadd.f32 %v310, %v1653
        %1657 = vst [vmem:[#allocation2] sm:$0xff] %v1655
        %1658 = vst [vmem:[#allocation2 + $0x8] sm:$0xff] %v1656
        %p1659 = scmp.eq.s32.totalorder %s21, 1
        // Predicated region
        $region60: #{discriminator_forward.11} parent=50 // pred_check
          %p1660 = pneg %p1659
        $region61: #{discriminator_forward.11} parent=50 // pred_check_branch
          %1662 = sbr.rel (%p1660) target = $region63
        $region62: #{discriminator_forward.11} parent=50 // pred_region
          %v1663 = vld [vmem:[#allocation2] sm:$0xff]
          %v1664 = vld [vmem:[#allocation2 + $0x8] sm:$0xff]
          %v1665 = vld [vmem:[%s293] sm:$0x1]
          %v1667 = vperm.slane %v1665, 0
          %v1669 = vadd.f32 %v1663, %v1667
          %v1670 = vadd.f32 %v1664, %v1667
          %1671 = vst [vmem:[%s301] sm:$0xff] %v1669
          %1672 = vst [vmem:[%s301 + $0x8] sm:$0xff] %v1670
        $region63: #{discriminator_forward.11} parent=50 // pred_fallthru
          _
        %s1673 = smul.u32 2, %s19
        %p1674 = scmp.lt.s32.totalorder %s1673, 1
        %s1675 = scalar_select %p1674, %s1673, 1
        %p1676 = scmp.lt.s32.totalorder %s20, 0
        %s1677 = scalar_select %p1676, %s20, 0
        %s1678 = sadd.s32 %s1677, %s1675
        %s1679 = smul.addr %s1678, 8
        %s1680 = scalar_lea.vmem %s3, %s1679
        // Predicated region
        $region64: #{discriminator_forward.11} parent=50 // pred_check
          %p1681 = pneg %p135
        $region65: #{discriminator_forward.11} parent=50 // pred_check_branch
          %1683 = sbr.rel (%p1681) target = $region67
        $region66: #{discriminator_forward.11} parent=50 // pred_region
          %s1684 = smul.u32 2, %s19
        $region67: #{discriminator_forward.11} parent=50 // pred_fallthru
          _
        // Predicated region
        $region68: #{discriminator_forward.11} parent=50 // pred_check
          %p1685 = pneg %p135
        $region69: #{discriminator_forward.11} parent=50 // pred_check_branch
          %1687 = sbr.rel (%p1685) target = $region71
        $region70: #{discriminator_forward.11} parent=50 // pred_region
          %s1688 = smul.u32 2, %s19
          %p1689 = scmp.lt.s32.totalorder %s1688, 1
          %s1690 = scalar_select %p1689, %s1688, 1
          %p1691 = scmp.lt.s32.totalorder %s20, 0
          %s1692 = scalar_select %p1691, %s20, 0
          %s1693 = sadd.s32 %s1692, %s1690
          %s1694 = smul.addr %s1693, 8
          %s1695 = scalar_lea.vmem %s3, %s1694
        $region71: #{discriminator_forward.11} parent=50 // pred_fallthru
          _
      $region51: #{discriminator_forward.11} parent=5 // pred_fallthru
        _
      %p1696 = scmp.le.s32.totalorder 2, %s9
      // Predicated region
      $region72: #{discriminator_forward.11} parent=5 // pred_check
        %p1697 = pneg %p1696
      $region73: #{discriminator_forward.11} parent=5 // pred_check_branch
        %1699 = sbr.rel (%p1697) target = $region75
      $region74: #{discriminator_forward.11} parent=5 // pred_region
        %s1700 = ssub.s32 %s9, 2
      $region75: #{discriminator_forward.11} parent=5 // pred_fallthru
        _
    $region6: #{discriminator_forward.11} parent=1 // loop_footer
      %s13 = sadd.s32 1, %s9
    $region7: #{discriminator_forward.11} parent=1 // loop_footer_branch
      %8 = sbr.rel target = $region3
    $region8: #{discriminator_forward.11} parent=1 // loop_exit
      _

</llo_original>
